<compile_context>
chip_gen: v7x
topology: tpu7x:2x2x1
jax: 0.10.0
libtpu: 0.0.40
codegen_flags: <defaults>
</compile_context>

<pallas_src>
import jax
import jax.numpy as jnp
from jax import lax
from jax.experimental import pallas as pl
from jax.experimental.pallas import tpu as pltpu

# Operand dtype for the LSTM matmuls (recurrent h@whh and the overlapped
# h1->gx2 projection).  bf16 is MXU-native on all generations; accumulation
# and all state stay f32.  Set to jnp.float32 for bit-closer reference match
# (the tolerance in __main__ adapts).
MATMUL_DTYPE = jnp.bfloat16


def lstmcnn_kernel(
    x_ref,                        # (T*B, F)   time-major flattened input (f32)
    h10_ref, c10_ref,             # (B, D)     LSTM1 initial state
    h20_ref, c20_ref,             # (B, D)     LSTM2 initial state
    wih1_ref, whh1_ref, b1_ref,   # (F, 4D) f32, (D, 4D) bf16, (1, 4D) f32
    wih2_ref, whh2_ref, b2_ref,   # (D, 4D) bf16, (D, 4D) bf16, (1, 4D) f32
    cw1_ref, cb1_ref,             # (3, D, D), (1, D)
    cw2_ref, cb2_ref,             # (3, D, D/2) zero-interleaved, (1, D/2)
    bns_ref, bnb_ref,             # (T*B, D)  lane-dense BN eval scale/shift
    shift1_ref, shift2_ref,       # (D, D), (D/2, D/2)  sub-diagonal shift mats
    avg_ref,                      # (B, T*B)  AdaptiveAvgPool1d(1) matrix
    hw_ref, hb_ref,               # (D/2, NC) zero-interleaved, (1, NC)
    out_ref,                      # (B, NC)
    gx1_sc,                       # (T*B, 4D)  LSTM1 hoisted input projections
    gx2_sc,                       # (T*B, 4D)  LSTM2 projections (filled during LSTM1)
    pad2_sc,                      # ((T+2)*B, D)  zero-padded LSTM2 outputs
    pad3_sc,                      # ((T+2)*B, D)  zero-padded conv-block-1 out
):
  B, D = h10_ref.shape
  TB = gx1_sc.shape[0]
  T = TB // B
  Dh = D // 2

  # Zero only the two boundary row-slabs of each padded buffer; the interior
  # is fully overwritten below.
  zrow = jnp.zeros((B, D), jnp.float32)
  pad2_sc[pl.ds(0, B)] = zrow
  pad2_sc[pl.ds(TB + B, B)] = zrow
  pad3_sc[pl.ds(0, B)] = zrow
  pad3_sc[pl.ds(TB + B, B)] = zrow

  # ---- LSTM 1 input projection: one bulk matmul, off the recurrent path ----
  gx1_sc[...] = (jnp.dot(x_ref[...], wih1_ref[...],
                         preferred_element_type=jnp.float32) + b1_ref[...])

  def lstm_steps(gx_ref, whh, h0, c0, emit):
    """T recurrent steps, fully unrolled (T static).  Gate columns arrive
    host-permuted to [i|f|o|g]: sigmoid covers the leading 3D lanes, tanh the
    trailing D lanes.  h/c live in vregs; emit(row, h_f32, h_mxu) consumes
    each step's hidden state."""
    h, c = h0, c0
    hmx = h.astype(MATMUL_DTYPE)
    for t in range(T):                       # static full unroll
      r = t * B
      gates = gx_ref[pl.ds(r, B)] + jnp.dot(
          hmx, whh, preferred_element_type=jnp.float32)        # (B, 4D) f32
      sig = jax.nn.sigmoid(gates[:, :3 * D])   # i | f | o  (3D lanes)
      g = jnp.tanh(gates[:, 3 * D:])           # g          (D lanes)
      c = sig[:, D:2 * D] * c + sig[:, :D] * g
      h = sig[:, 2 * D:3 * D] * jnp.tanh(c)
      hmx = h.astype(MATMUL_DTYPE)
      emit(r, h, hmx)

  # ---- LSTM 1 recurrence; LSTM2's input projection is issued per step so it
  # hides under the MXU slack of the serial recurrence. ----
  wih2 = wih2_ref[...]
  b2 = b2_ref[...]

  def emit1(r, h, hmx):
    del h
    gx2_sc[pl.ds(r, B)] = jnp.dot(
        hmx, wih2, preferred_element_type=jnp.float32) + b2

  lstm_steps(gx1_sc, whh1_ref[...], h10_ref[...], c10_ref[...], emit1)

  # ---- LSTM 2 recurrence; hidden states land in the padded conv buffer ----
  def emit2(r, h, hmx):
    del hmx
    pad2_sc[pl.ds(B + r, B)] = h

  lstm_steps(gx2_sc, whh2_ref[...], h20_ref[...], c20_ref[...], emit2)

  # ---- Epilogue (all f32): conv + BN + ReLU + maxpool (x2), avg-pool, head --
  bns = bns_ref[...]
  bnb = bnb_ref[...]

  def conv_block(pad_ref, w_ref, b_ref, shift_ref, bn_s, bn_b):
    """Conv1d(k=3,pad=1) over time + BatchNorm1d(win, eval) + ReLU +
    MaxPool1d(2,2) over channels (result lands in even lanes; odd lanes hold
    garbage that the zero-interleaved downstream weights ignore)."""
    acc = jnp.dot(pad_ref[pl.ds(0, TB)], w_ref[0],
                  preferred_element_type=jnp.float32)
    acc = acc + jnp.dot(pad_ref[pl.ds(B, TB)], w_ref[1],
                        preferred_element_type=jnp.float32)
    acc = acc + jnp.dot(pad_ref[pl.ds(2 * B, TB)], w_ref[2],
                        preferred_element_type=jnp.float32)
    y = acc + b_ref[...]
    y = y * bn_s + bn_b                      # BatchNorm over the time axis
    y = jnp.maximum(y, 0.0)                  # ReLU
    # TODO(synk): pltpu.roll(y, C-1, axis=-1) would move this lane shift to
    # the XLU; kept as a tiny matmul until sub-128-lane rotate lowering is
    # confirmed on the target Mosaic build.
    y_next = jnp.dot(y, shift_ref[...],      # y_next[:, c] = y[:, c+1]
                     preferred_element_type=jnp.float32)
    return jnp.maximum(y, y_next)            # pair-max at even lanes

  y1 = conv_block(pad2_sc, cw1_ref, cb1_ref, shift1_ref, bns, bnb)  # (T*B, D)
  pad3_sc[pl.ds(B, TB)] = y1
  y2 = conv_block(pad3_sc, cw2_ref, cb2_ref, shift2_ref,
                  bns[:, :Dh], bnb[:, :Dh])                         # (T*B, Dh)

  # AdaptiveAvgPool1d(1) over time as one (B, T*B) x (T*B, D/2) matmul.
  pooled = jnp.dot(avg_ref[...], y2, preferred_element_type=jnp.float32)

  # Classification head (even rows of hw carry the real weights).
  out_ref[...] = (jnp.dot(pooled, hw_ref[...],
                          preferred_element_type=jnp.float32) + hb_ref[...])


def prepare_params(params, batch, win):
  """One-time host-side preprocessing of PyTorch-layout parameters into
  kernel-ready operands (hoisted out of the per-call forward path)."""
  D = params["whh1"].shape[0]
  NC = params["head_w"].shape[1]
  Dh = D // 2
  B, T = batch, win

  assert B % 8 == 0, "batch must be a multiple of 8 (sublane alignment)"
  assert (4 * D) % 128 == 0, "4*d_model must be a multiple of 128 lanes"
  assert D % 4 == 0, "d_model must be divisible by 4 (two channel maxpools)"

  def permute_gates(w):
    # PyTorch LSTM gate order [i|f|g|o] -> [i|f|o|g]: sigmoid gates become one
    # contiguous 3D-lane slab, tanh gate the trailing D lanes.
    return jnp.concatenate(
        [w[..., :2 * D], w[..., 3 * D:], w[..., 2 * D:3 * D]], axis=-1)

  # MaxPool shift matrices: (y @ S)[:, c] = y[:, c + 1], last column -> 0.
  shift1 = jnp.eye(D, k=-1, dtype=jnp.float32)
  shift2 = jnp.eye(Dh, k=-1, dtype=jnp.float32)

  # Fold the even-lane down-select of each MaxPool into the next stage's
  # weights by interleaving zero rows (odd input lanes are ignored).
  cw2e = jnp.zeros((3, D, Dh), jnp.float32).at[:, ::2, :].set(params["cw2"])
  hwe = jnp.zeros((Dh, NC), jnp.float32).at[::2, :].set(params["head_w"])

  # BatchNorm1d(win) eval scale/shift, pre-broadcast lane-dense to (T*B, D)
  # (row t*B + b <-> time step t) so the kernel does a plain elementwise FMA.
  bns = jnp.tile(jnp.repeat(params["bn_scale"], B)[:, None], (1, D))
  bnb = jnp.tile(jnp.repeat(params["bn_shift"], B)[:, None], (1, D))

  # AdaptiveAvgPool1d(1) over time as a host-precomputed averaging matrix.
  rows = jnp.arange(B, dtype=jnp.int32)[:, None]
  cols = jnp.arange(T * B, dtype=jnp.int32)[None, :]
  avg = ((cols % B) == rows).astype(jnp.float32) / T

  return {
      # wih1 feeds a single one-time K=feature_num matmul off the critical
      # path -> keep f32; the recurrent / overlapped operands go bf16.
      "wih1": permute_gates(params["wih1"]),
      "whh1": permute_gates(params["whh1"]).astype(MATMUL_DTYPE),
      "b1": permute_gates(params["b1"]),
      "wih2": permute_gates(params["wih2"]).astype(MATMUL_DTYPE),
      "whh2": permute_gates(params["whh2"]).astype(MATMUL_DTYPE),
      "b2": permute_gates(params["b2"]),
      "cw1": params["cw1"], "cb1": params["cb1"],
      "cw2e": cw2e, "cb2": params["cb2"],
      "bns": bns, "bnb": bnb,
      "shift1": shift1, "shift2": shift2,
      "avg": avg, "hwe": hwe, "head_b": params["head_b"],
  }


@jax.jit
def lstmcnn1d_forward(x, h10, c10, h20, c20, prep):
  B, T, F = x.shape
  D = h10.shape[1]
  NC = prep["head_b"].shape[1]
  assert B % 8 == 0 and (4 * D) % 128 == 0

  # time-major flattened sequence: row t*B + b <-> (batch b, time t)
  x_tm = jnp.transpose(x, (1, 0, 2)).reshape(T * B, F)

  args = (x_tm, h10, c10, h20, c20,
          prep["wih1"], prep["whh1"], prep["b1"],
          prep["wih2"], prep["whh2"], prep["b2"],
          prep["cw1"], prep["cb1"], prep["cw2e"], prep["cb2"],
          prep["bns"], prep["bnb"], prep["shift1"], prep["shift2"],
          prep["avg"], prep["hwe"], prep["head_b"])

  vmem = pl.BlockSpec(memory_space=pltpu.MemorySpace.VMEM)
  # Single invocation, everything resident in VMEM (~0.2 MiB total): no grid,
  # no tiling -- the kernel is latency-bound on the 2*T serial LSTM steps.
  # TODO(synk): when running many independent forwards on v7x, shard batches
  # across the 2 TensorCores with a leading parallel grid axis.
  return pl.pallas_call(
      lstmcnn_kernel,
      out_shape=jax.ShapeDtypeStruct((B, NC), jnp.float32),
      in_specs=[vmem] * len(args),
      out_specs=vmem,
      scratch_shapes=[
          pltpu.VMEM((T * B, 4 * D), jnp.float32),        # LSTM1 gate inputs
          pltpu.VMEM((T * B, 4 * D), jnp.float32),        # LSTM2 gate inputs
          pltpu.VMEM(((T + 2) * B, D), jnp.float32),      # padded LSTM2 outputs
          pltpu.VMEM(((T + 2) * B, D), jnp.float32),      # padded conv1 output
      ],
  )(*args)


def init_params(key, F, T, D, NC):
  """Deterministic synthetic parameters matching the PyTorch module shapes."""
  ks = jax.random.split(key, 17)

  def u(k, shape, bound):
    return jax.random.uniform(k, shape, jnp.float32, -bound, bound)

  kl = 1.0 / float(D) ** 0.5   # PyTorch LSTM default init bound
  dh, dq = D // 2, D // 4

  # BatchNorm1d(win_size), eval mode.  Non-trivial stats/affine so the
  # per-time-step normalization path is actually exercised.
  eps = 1e-5
  gamma = 1.0 + 0.25 * jax.random.normal(ks[13], (T,), jnp.float32)
  beta = 0.1 * jax.random.normal(ks[14], (T,), jnp.float32)
  rmean = 0.1 * jax.random.normal(ks[15], (T,), jnp.float32)
  rvar = jax.random.uniform(ks[16], (T,), jnp.float32, 0.5, 1.5)
  scale = gamma / jnp.sqrt(rvar + eps)
  shift = beta - rmean * scale

  return {
      "wih1": u(ks[0], (F, 4 * D), kl),
      "whh1": u(ks[1], (D, 4 * D), kl),
      "b1": u(ks[2], (1, 4 * D), kl) + u(ks[3], (1, 4 * D), kl),
      "wih2": u(ks[4], (D, 4 * D), kl),
      "whh2": u(ks[5], (D, 4 * D), kl),
      "b2": u(ks[6], (1, 4 * D), kl) + u(ks[7], (1, 4 * D), kl),
      "cw1": u(ks[8], (3, D, D), 1.0 / float(3 * D) ** 0.5),     # [k, cin, cout]
      "cb1": u(ks[9], (1, D), 1.0 / float(3 * D) ** 0.5),
      "cw2": u(ks[10], (3, dh, dh), 1.0 / float(3 * dh) ** 0.5),
      "cb2": u(ks[11], (1, dh), 1.0 / float(3 * dh) ** 0.5),
      "bn_scale": scale,
      "bn_shift": shift,
      # head: ~ kaiming_uniform(fan_in, leaky_relu); bias = 0
      "head_w": u(ks[12], (dq, NC), (6.0 / dq) ** 0.5),
      "head_b": jnp.zeros((1, NC), jnp.float32),
  }


def reference_forward(x, h10, c10, h20, c20, p):
  """Pure-JAX f32 reference with PyTorch semantics (eval mode)."""
  B, T, F = x.shape
  D = p["whh1"].shape[0]

  def lstm(seq, wih, whh, b, h0, c0):
    def step(carry, x_t):
      h, c = carry
      g = x_t @ wih + h @ whh + b
      i = jax.nn.sigmoid(g[:, :D])
      f = jax.nn.sigmoid(g[:, D:2 * D])
      gg = jnp.tanh(g[:, 2 * D:3 * D])
      o = jax.nn.sigmoid(g[:, 3 * D:])
      c = f * c + i * gg
      h = o * jnp.tanh(c)
      return (h, c), h
    _, ys = lax.scan(step, (h0, c0), jnp.swapaxes(seq, 0, 1))
    return jnp.swapaxes(ys, 0, 1)

  out = lstm(x, p["wih1"], p["whh1"], p["b1"], h10, c10)
  out = lstm(out, p["wih2"], p["whh2"], p["b2"], h20, c20)

  def conv_block(seq, w, b):
    Bb, Tt, C = seq.shape
    padded = jnp.pad(seq, ((0, 0), (1, 1), (0, 0)))
    y = sum(jnp.einsum("btc,cd->btd", padded[:, k:k + Tt], w[k])
            for k in range(3)) + b
    y = y * p["bn_scale"][None, :, None] + p["bn_shift"][None, :, None]
    y = jnp.maximum(y, 0.0)
    return jnp.max(y.reshape(Bb, Tt, C // 2, 2), axis=-1)

  y = conv_block(out, p["cw1"], p["cb1"])
  y = conv_block(y, p["cw2"], p["cb2"])
  pooled = jnp.mean(y, axis=1)
  return pooled @ p["head_w"] + p["head_b"]


if __name__ == "__main__":
  # feature_num=4, win_size=16, d_model=32, num_classes=5, batch=8
  # (B is kept a multiple of 8 so the (B, 4D) gate slab is sublane-aligned.)
  B, T, F, D, NC = 8, 16, 4, 32, 5
  key = jax.random.PRNGKey(0)
  kx, kh1, kc1, kh2, kc2, kp = jax.random.split(key, 6)

  x = jax.random.normal(kx, (B, T, F), jnp.float32)
  # torch.randn initial LSTM states (e_layers == 1 -> squeezed to (B, D)),
  # provided as explicit inputs instead of in-kernel RNG.
  h10 = jax.random.normal(kh1, (B, D), jnp.float32)
  c10 = jax.random.normal(kc1, (B, D), jnp.float32)
  h20 = jax.random.normal(kh2, (B, D), jnp.float32)
  c20 = jax.random.normal(kc2, (B, D), jnp.float32)
  params = init_params(kp, F, T, D, NC)

  prep = prepare_params(params, batch=B, win=T)     # one-time host prep

  out = lstmcnn1d_forward(x, h10, c10, h20, c20, prep)
  out = jax.block_until_ready(out)

  ref = reference_forward(x, h10, c10, h20, c20, params)
  assert out.shape == (B, NC), out.shape
  assert bool(jnp.all(jnp.isfinite(out)))
  # f32 operands reproduce the f32 reference to 5e-3; bf16 MXU operands
  # quantize LSTM weights/hidden states to 8-bit mantissas, so allow ~2x the
  # bf16 half-ulp through the two stacked recurrences + conv head.
  tol = 5e-3 if MATMUL_DTYPE == jnp.float32 else 1e-2
  err = float(jnp.max(jnp.abs(out - ref)))
  assert bool(jnp.allclose(out, ref, rtol=tol, atol=tol)), err
  print("KERNEL_OK")
</pallas_src>

<mosaic_0001>
module attributes {stable_mosaic.version = 11 : i64} {
  func.func @lstmcnn_kernel(%arg0: memref<128x4xf32, #tpu.memory_space<vmem>>, %arg1: memref<8x32xf32, #tpu.memory_space<vmem>>, %arg2: memref<8x32xf32, #tpu.memory_space<vmem>>, %arg3: memref<8x32xf32, #tpu.memory_space<vmem>>, %arg4: memref<8x32xf32, #tpu.memory_space<vmem>>, %arg5: memref<4x128xf32, #tpu.memory_space<vmem>>, %arg6: memref<32x128xbf16, #tpu.memory_space<vmem>>, %arg7: memref<1x128xf32, #tpu.memory_space<vmem>>, %arg8: memref<32x128xbf16, #tpu.memory_space<vmem>>, %arg9: memref<32x128xbf16, #tpu.memory_space<vmem>>, %arg10: memref<1x128xf32, #tpu.memory_space<vmem>>, %arg11: memref<3x32x32xf32, #tpu.memory_space<vmem>>, %arg12: memref<1x32xf32, #tpu.memory_space<vmem>>, %arg13: memref<3x32x16xf32, #tpu.memory_space<vmem>>, %arg14: memref<1x16xf32, #tpu.memory_space<vmem>>, %arg15: memref<128x32xf32, #tpu.memory_space<vmem>>, %arg16: memref<128x32xf32, #tpu.memory_space<vmem>>, %arg17: memref<32x32xf32, #tpu.memory_space<vmem>>, %arg18: memref<16x16xf32, #tpu.memory_space<vmem>>, %arg19: memref<8x128xf32, #tpu.memory_space<vmem>>, %arg20: memref<16x5xf32, #tpu.memory_space<vmem>>, %arg21: memref<1x5xf32, #tpu.memory_space<vmem>>, %arg22: memref<8x5xf32, #tpu.memory_space<vmem>>, %arg23: memref<128x128xf32, #tpu.memory_space<vmem>>, %arg24: memref<128x128xf32, #tpu.memory_space<vmem>>, %arg25: memref<144x32xf32, #tpu.memory_space<vmem>>, %arg26: memref<144x32xf32, #tpu.memory_space<vmem>>) attributes {dimension_semantics = [], scalar_prefetch = 0 : i64, scratch_operands = 4 : i64, tpu.core_type = #tpu.core_type<tc>} {
    %cst = arith.constant 0.000000e+00 : f32
    %0 = vector.broadcast %cst : f32 to vector<8x32xf32>
    %c0 = arith.constant 0 : index
    %c0_0 = arith.constant 0 : index
    %1 = vector.load %arg25[%c0, %c0_0] : memref<144x32xf32, #tpu.memory_space<vmem>>, vector<8x32xf32>
    tpu.vector_store %arg25[%c0, %c0_0], %0 {strides = array<i32>} : memref<144x32xf32, #tpu.memory_space<vmem>>, vector<8x32xf32>,
    %c136 = arith.constant 136 : index
    %c0_1 = arith.constant 0 : index
    %2 = vector.load %arg25[%c136, %c0_1] : memref<144x32xf32, #tpu.memory_space<vmem>>, vector<8x32xf32>
    tpu.vector_store %arg25[%c136, %c0_1], %0 {strides = array<i32>} : memref<144x32xf32, #tpu.memory_space<vmem>>, vector<8x32xf32>,
    %c0_2 = arith.constant 0 : index
    %c0_3 = arith.constant 0 : index
    %3 = vector.load %arg26[%c0_2, %c0_3] : memref<144x32xf32, #tpu.memory_space<vmem>>, vector<8x32xf32>
    tpu.vector_store %arg26[%c0_2, %c0_3], %0 {strides = array<i32>} : memref<144x32xf32, #tpu.memory_space<vmem>>, vector<8x32xf32>,
    %c136_4 = arith.constant 136 : index
    %c0_5 = arith.constant 0 : index
    %4 = vector.load %arg26[%c136_4, %c0_5] : memref<144x32xf32, #tpu.memory_space<vmem>>, vector<8x32xf32>
    tpu.vector_store %arg26[%c136_4, %c0_5], %0 {strides = array<i32>} : memref<144x32xf32, #tpu.memory_space<vmem>>, vector<8x32xf32>,
    %c0_6 = arith.constant 0 : index
    %c0_7 = arith.constant 0 : index
    %5 = vector.load %arg0[%c0_6, %c0_7] : memref<128x4xf32, #tpu.memory_space<vmem>>, vector<128x4xf32>
    %c0_8 = arith.constant 0 : index
    %c0_9 = arith.constant 0 : index
    %6 = vector.load %arg5[%c0_8, %c0_9] : memref<4x128xf32, #tpu.memory_space<vmem>>, vector<4x128xf32>
    %cst_10 = arith.constant dense<0.000000e+00> : vector<128x128xf32>
    %7 = tpu.matmul %5, %6, %cst_10 {dimension_numbers = #tpu.dot_dimension_numbers<[1], [0], [0], [1], [0, 0, 1, 1], [], []>} : vector<128x4xf32>, vector<4x128xf32>, vector<128x128xf32> -> vector<128x128xf32>
    %c0_11 = arith.constant 0 : index
    %c0_12 = arith.constant 0 : index
    %8 = vector.load %arg7[%c0_11, %c0_12] : memref<1x128xf32, #tpu.memory_space<vmem>>, vector<1x128xf32>
    %9 = vector.broadcast %8 : vector<1x128xf32> to vector<128x128xf32>
    %10 = arith.addf %7, %9 : vector<128x128xf32>
    %c0_13 = arith.constant 0 : index
    %c0_14 = arith.constant 0 : index
    %11 = vector.load %arg23[%c0_13, %c0_14] : memref<128x128xf32, #tpu.memory_space<vmem>>, vector<128x128xf32>
    tpu.vector_store %arg23[%c0_13, %c0_14], %10 {strides = array<i32>} : memref<128x128xf32, #tpu.memory_space<vmem>>, vector<128x128xf32>,
    %c0_15 = arith.constant 0 : index
    %c0_16 = arith.constant 0 : index
    %12 = vector.load %arg8[%c0_15, %c0_16] : memref<32x128xbf16, #tpu.memory_space<vmem>>, vector<32x128xbf16>
    %c0_17 = arith.constant 0 : index
    %c0_18 = arith.constant 0 : index
    %13 = vector.load %arg10[%c0_17, %c0_18] : memref<1x128xf32, #tpu.memory_space<vmem>>, vector<1x128xf32>
    %c0_19 = arith.constant 0 : index
    %c0_20 = arith.constant 0 : index
    %14 = vector.load %arg6[%c0_19, %c0_20] : memref<32x128xbf16, #tpu.memory_space<vmem>>, vector<32x128xbf16>
    %c0_21 = arith.constant 0 : index
    %c0_22 = arith.constant 0 : index
    %15 = vector.load %arg1[%c0_21, %c0_22] : memref<8x32xf32, #tpu.memory_space<vmem>>, vector<8x32xf32>
    %c0_23 = arith.constant 0 : index
    %c0_24 = arith.constant 0 : index
    %16 = vector.load %arg2[%c0_23, %c0_24] : memref<8x32xf32, #tpu.memory_space<vmem>>, vector<8x32xf32>
    %17 = arith.truncf %15 : vector<8x32xf32> to vector<8x32xbf16>
    %c0_25 = arith.constant 0 : index
    %c0_26 = arith.constant 0 : index
    %18 = vector.load %arg23[%c0_25, %c0_26] : memref<128x128xf32, #tpu.memory_space<vmem>>, vector<8x128xf32>
    %cst_27 = arith.constant dense<0.000000e+00> : vector<8x128xf32>
    %19 = tpu.matmul %17, %14, %cst_27 {dimension_numbers = #tpu.dot_dimension_numbers<[1], [0], [0], [1], [0, 0, 1, 1], [], []>} : vector<8x32xbf16>, vector<32x128xbf16>, vector<8x128xf32> -> vector<8x128xf32>
    %20 = arith.addf %18, %19 : vector<8x128xf32>
    %21 = vector.extract_strided_slice %20 {offsets = [0, 0], sizes = [8, 96], strides = [1, 1]} : vector<8x128xf32> to vector<8x96xf32>
    %22 = arith.negf %21 : vector<8x96xf32>
    %23 = math.exp %22 : vector<8x96xf32>
    %cst_28 = arith.constant 1.000000e+00 : f32
    %24 = vector.broadcast %cst_28 : f32 to vector<8x96xf32>
    %25 = arith.addf %24, %23 : vector<8x96xf32>
    %26 = arith.divf %24, %25 : vector<8x96xf32>
    %27 = vector.extract_strided_slice %20 {offsets = [0, 96], sizes = [8, 32], strides = [1, 1]} : vector<8x128xf32> to vector<8x32xf32>
    %28 = math.tanh %27 : vector<8x32xf32>
    %29 = vector.extract_strided_slice %26 {offsets = [0, 32], sizes = [8, 32], strides = [1, 1]} : vector<8x96xf32> to vector<8x32xf32>
    %30 = arith.mulf %29, %16 : vector<8x32xf32>
    %31 = vector.extract_strided_slice %26 {offsets = [0, 0], sizes = [8, 32], strides = [1, 1]} : vector<8x96xf32> to vector<8x32xf32>
    %32 = arith.mulf %31, %28 : vector<8x32xf32>
    %33 = arith.addf %30, %32 : vector<8x32xf32>
    %34 = vector.extract_strided_slice %26 {offsets = [0, 64], sizes = [8, 32], strides = [1, 1]} : vector<8x96xf32> to vector<8x32xf32>
    %35 = math.tanh %33 : vector<8x32xf32>
    %36 = arith.mulf %34, %35 : vector<8x32xf32>
    %37 = arith.truncf %36 : vector<8x32xf32> to vector<8x32xbf16>
    %cst_29 = arith.constant dense<0.000000e+00> : vector<8x128xf32>
    %38 = tpu.matmul %37, %12, %cst_29 {dimension_numbers = #tpu.dot_dimension_numbers<[1], [0], [0], [1], [0, 0, 1, 1], [], []>} : vector<8x32xbf16>, vector<32x128xbf16>, vector<8x128xf32> -> vector<8x128xf32>
    %39 = vector.broadcast %13 : vector<1x128xf32> to vector<8x128xf32>
    %40 = arith.addf %38, %39 : vector<8x128xf32>
    %c0_30 = arith.constant 0 : index
    %c0_31 = arith.constant 0 : index
    %41 = vector.load %arg24[%c0_30, %c0_31] : memref<128x128xf32, #tpu.memory_space<vmem>>, vector<8x128xf32>
    tpu.vector_store %arg24[%c0_30, %c0_31], %40 {strides = array<i32>} : memref<128x128xf32, #tpu.memory_space<vmem>>, vector<8x128xf32>,
    %c8 = arith.constant 8 : index
    %c0_32 = arith.constant 0 : index
    %42 = vector.load %arg23[%c8, %c0_32] : memref<128x128xf32, #tpu.memory_space<vmem>>, vector<8x128xf32>
    %cst_33 = arith.constant dense<0.000000e+00> : vector<8x128xf32>
    %43 = tpu.matmul %37, %14, %cst_33 {dimension_numbers = #tpu.dot_dimension_numbers<[1], [0], [0], [1], [0, 0, 1, 1], [], []>} : vector<8x32xbf16>, vector<32x128xbf16>, vector<8x128xf32> -> vector<8x128xf32>
    %44 = arith.addf %42, %43 : vector<8x128xf32>
    %45 = vector.extract_strided_slice %44 {offsets = [0, 0], sizes = [8, 96], strides = [1, 1]} : vector<8x128xf32> to vector<8x96xf32>
    %46 = arith.negf %45 : vector<8x96xf32>
    %47 = math.exp %46 : vector<8x96xf32>
    %cst_34 = arith.constant 1.000000e+00 : f32
    %48 = vector.broadcast %cst_34 : f32 to vector<8x96xf32>
    %49 = arith.addf %48, %47 : vector<8x96xf32>
    %50 = arith.divf %48, %49 : vector<8x96xf32>
    %51 = vector.extract_strided_slice %44 {offsets = [0, 96], sizes = [8, 32], strides = [1, 1]} : vector<8x128xf32> to vector<8x32xf32>
    %52 = math.tanh %51 : vector<8x32xf32>
    %53 = vector.extract_strided_slice %50 {offsets = [0, 32], sizes = [8, 32], strides = [1, 1]} : vector<8x96xf32> to vector<8x32xf32>
    %54 = arith.mulf %53, %33 : vector<8x32xf32>
    %55 = vector.extract_strided_slice %50 {offsets = [0, 0], sizes = [8, 32], strides = [1, 1]} : vector<8x96xf32> to vector<8x32xf32>
    %56 = arith.mulf %55, %52 : vector<8x32xf32>
    %57 = arith.addf %54, %56 : vector<8x32xf32>
    %58 = vector.extract_strided_slice %50 {offsets = [0, 64], sizes = [8, 32], strides = [1, 1]} : vector<8x96xf32> to vector<8x32xf32>
    %59 = math.tanh %57 : vector<8x32xf32>
    %60 = arith.mulf %58, %59 : vector<8x32xf32>
    %61 = arith.truncf %60 : vector<8x32xf32> to vector<8x32xbf16>
    %cst_35 = arith.constant dense<0.000000e+00> : vector<8x128xf32>
    %62 = tpu.matmul %61, %12, %cst_35 {dimension_numbers = #tpu.dot_dimension_numbers<[1], [0], [0], [1], [0, 0, 1, 1], [], []>} : vector<8x32xbf16>, vector<32x128xbf16>, vector<8x128xf32> -> vector<8x128xf32>
    %63 = vector.broadcast %13 : vector<1x128xf32> to vector<8x128xf32>
    %64 = arith.addf %62, %63 : vector<8x128xf32>
    %c8_36 = arith.constant 8 : index
    %c0_37 = arith.constant 0 : index
    %65 = vector.load %arg24[%c8_36, %c0_37] : memref<128x128xf32, #tpu.memory_space<vmem>>, vector<8x128xf32>
    tpu.vector_store %arg24[%c8_36, %c0_37], %64 {strides = array<i32>} : memref<128x128xf32, #tpu.memory_space<vmem>>, vector<8x128xf32>,
    %c16 = arith.constant 16 : index
    %c0_38 = arith.constant 0 : index
    %66 = vector.load %arg23[%c16, %c0_38] : memref<128x128xf32, #tpu.memory_space<vmem>>, vector<8x128xf32>
    %cst_39 = arith.constant dense<0.000000e+00> : vector<8x128xf32>
    %67 = tpu.matmul %61, %14, %cst_39 {dimension_numbers = #tpu.dot_dimension_numbers<[1], [0], [0], [1], [0, 0, 1, 1], [], []>} : vector<8x32xbf16>, vector<32x128xbf16>, vector<8x128xf32> -> vector<8x128xf32>
    %68 = arith.addf %66, %67 : vector<8x128xf32>
    %69 = vector.extract_strided_slice %68 {offsets = [0, 0], sizes = [8, 96], strides = [1, 1]} : vector<8x128xf32> to vector<8x96xf32>
    %70 = arith.negf %69 : vector<8x96xf32>
    %71 = math.exp %70 : vector<8x96xf32>
    %cst_40 = arith.constant 1.000000e+00 : f32
    %72 = vector.broadcast %cst_40 : f32 to vector<8x96xf32>
    %73 = arith.addf %72, %71 : vector<8x96xf32>
    %74 = arith.divf %72, %73 : vector<8x96xf32>
    %75 = vector.extract_strided_slice %68 {offsets = [0, 96], sizes = [8, 32], strides = [1, 1]} : vector<8x128xf32> to vector<8x32xf32>
    %76 = math.tanh %75 : vector<8x32xf32>
    %77 = vector.extract_strided_slice %74 {offsets = [0, 32], sizes = [8, 32], strides = [1, 1]} : vector<8x96xf32> to vector<8x32xf32>
    %78 = arith.mulf %77, %57 : vector<8x32xf32>
    %79 = vector.extract_strided_slice %74 {offsets = [0, 0], sizes = [8, 32], strides = [1, 1]} : vector<8x96xf32> to vector<8x32xf32>
    %80 = arith.mulf %79, %76 : vector<8x32xf32>
    %81 = arith.addf %78, %80 : vector<8x32xf32>
    %82 = vector.extract_strided_slice %74 {offsets = [0, 64], sizes = [8, 32], strides = [1, 1]} : vector<8x96xf32> to vector<8x32xf32>
    %83 = math.tanh %81 : vector<8x32xf32>
    %84 = arith.mulf %82, %83 : vector<8x32xf32>
    %85 = arith.truncf %84 : vector<8x32xf32> to vector<8x32xbf16>
    %cst_41 = arith.constant dense<0.000000e+00> : vector<8x128xf32>
    %86 = tpu.matmul %85, %12, %cst_41 {dimension_numbers = #tpu.dot_dimension_numbers<[1], [0], [0], [1], [0, 0, 1, 1], [], []>} : vector<8x32xbf16>, vector<32x128xbf16>, vector<8x128xf32> -> vector<8x128xf32>
    %87 = vector.broadcast %13 : vector<1x128xf32> to vector<8x128xf32>
    %88 = arith.addf %86, %87 : vector<8x128xf32>
    %c16_42 = arith.constant 16 : index
    %c0_43 = arith.constant 0 : index
    %89 = vector.load %arg24[%c16_42, %c0_43] : memref<128x128xf32, #tpu.memory_space<vmem>>, vector<8x128xf32>
    tpu.vector_store %arg24[%c16_42, %c0_43], %88 {strides = array<i32>} : memref<128x128xf32, #tpu.memory_space<vmem>>, vector<8x128xf32>,
    %c24 = arith.constant 24 : index
    %c0_44 = arith.constant 0 : index
    %90 = vector.load %arg23[%c24, %c0_44] : memref<128x128xf32, #tpu.memory_space<vmem>>, vector<8x128xf32>
    %cst_45 = arith.constant dense<0.000000e+00> : vector<8x128xf32>
    %91 = tpu.matmul %85, %14, %cst_45 {dimension_numbers = #tpu.dot_dimension_numbers<[1], [0], [0], [1], [0, 0, 1, 1], [], []>} : vector<8x32xbf16>, vector<32x128xbf16>, vector<8x128xf32> -> vector<8x128xf32>
    %92 = arith.addf %90, %91 : vector<8x128xf32>
    %93 = vector.extract_strided_slice %92 {offsets = [0, 0], sizes = [8, 96], strides = [1, 1]} : vector<8x128xf32> to vector<8x96xf32>
    %94 = arith.negf %93 : vector<8x96xf32>
    %95 = math.exp %94 : vector<8x96xf32>
    %cst_46 = arith.constant 1.000000e+00 : f32
    %96 = vector.broadcast %cst_46 : f32 to vector<8x96xf32>
    %97 = arith.addf %96, %95 : vector<8x96xf32>
    %98 = arith.divf %96, %97 : vector<8x96xf32>
    %99 = vector.extract_strided_slice %92 {offsets = [0, 96], sizes = [8, 32], strides = [1, 1]} : vector<8x128xf32> to vector<8x32xf32>
    %100 = math.tanh %99 : vector<8x32xf32>
    %101 = vector.extract_strided_slice %98 {offsets = [0, 32], sizes = [8, 32], strides = [1, 1]} : vector<8x96xf32> to vector<8x32xf32>
    %102 = arith.mulf %101, %81 : vector<8x32xf32>
    %103 = vector.extract_strided_slice %98 {offsets = [0, 0], sizes = [8, 32], strides = [1, 1]} : vector<8x96xf32> to vector<8x32xf32>
    %104 = arith.mulf %103, %100 : vector<8x32xf32>
    %105 = arith.addf %102, %104 : vector<8x32xf32>
    %106 = vector.extract_strided_slice %98 {offsets = [0, 64], sizes = [8, 32], strides = [1, 1]} : vector<8x96xf32> to vector<8x32xf32>
    %107 = math.tanh %105 : vector<8x32xf32>
    %108 = arith.mulf %106, %107 : vector<8x32xf32>
    %109 = arith.truncf %108 : vector<8x32xf32> to vector<8x32xbf16>
    %cst_47 = arith.constant dense<0.000000e+00> : vector<8x128xf32>
    %110 = tpu.matmul %109, %12, %cst_47 {dimension_numbers = #tpu.dot_dimension_numbers<[1], [0], [0], [1], [0, 0, 1, 1], [], []>} : vector<8x32xbf16>, vector<32x128xbf16>, vector<8x128xf32> -> vector<8x128xf32>
    %111 = vector.broadcast %13 : vector<1x128xf32> to vector<8x128xf32>
    %112 = arith.addf %110, %111 : vector<8x128xf32>
    %c24_48 = arith.constant 24 : index
    %c0_49 = arith.constant 0 : index
    %113 = vector.load %arg24[%c24_48, %c0_49] : memref<128x128xf32, #tpu.memory_space<vmem>>, vector<8x128xf32>
    tpu.vector_store %arg24[%c24_48, %c0_49], %112 {strides = array<i32>} : memref<128x128xf32, #tpu.memory_space<vmem>>, vector<8x128xf32>,
    %c32 = arith.constant 32 : index
    %c0_50 = arith.constant 0 : index
    %114 = vector.load %arg23[%c32, %c0_50] : memref<128x128xf32, #tpu.memory_space<vmem>>, vector<8x128xf32>
    %cst_51 = arith.constant dense<0.000000e+00> : vector<8x128xf32>
    %115 = tpu.matmul %109, %14, %cst_51 {dimension_numbers = #tpu.dot_dimension_numbers<[1], [0], [0], [1], [0, 0, 1, 1], [], []>} : vector<8x32xbf16>, vector<32x128xbf16>, vector<8x128xf32> -> vector<8x128xf32>
    %116 = arith.addf %114, %115 : vector<8x128xf32>
    %117 = vector.extract_strided_slice %116 {offsets = [0, 0], sizes = [8, 96], strides = [1, 1]} : vector<8x128xf32> to vector<8x96xf32>
    %118 = arith.negf %117 : vector<8x96xf32>
    %119 = math.exp %118 : vector<8x96xf32>
    %cst_52 = arith.constant 1.000000e+00 : f32
    %120 = vector.broadcast %cst_52 : f32 to vector<8x96xf32>
    %121 = arith.addf %120, %119 : vector<8x96xf32>
    %122 = arith.divf %120, %121 : vector<8x96xf32>
    %123 = vector.extract_strided_slice %116 {offsets = [0, 96], sizes = [8, 32], strides = [1, 1]} : vector<8x128xf32> to vector<8x32xf32>
    %124 = math.tanh %123 : vector<8x32xf32>
    %125 = vector.extract_strided_slice %122 {offsets = [0, 32], sizes = [8, 32], strides = [1, 1]} : vector<8x96xf32> to vector<8x32xf32>
    %126 = arith.mulf %125, %105 : vector<8x32xf32>
    %127 = vector.extract_strided_slice %122 {offsets = [0, 0], sizes = [8, 32], strides = [1, 1]} : vector<8x96xf32> to vector<8x32xf32>
    %128 = arith.mulf %127, %124 : vector<8x32xf32>
    %129 = arith.addf %126, %128 : vector<8x32xf32>
    %130 = vector.extract_strided_slice %122 {offsets = [0, 64], sizes = [8, 32], strides = [1, 1]} : vector<8x96xf32> to vector<8x32xf32>
    %131 = math.tanh %129 : vector<8x32xf32>
    %132 = arith.mulf %130, %131 : vector<8x32xf32>
    %133 = arith.truncf %132 : vector<8x32xf32> to vector<8x32xbf16>
    %cst_53 = arith.constant dense<0.000000e+00> : vector<8x128xf32>
    %134 = tpu.matmul %133, %12, %cst_53 {dimension_numbers = #tpu.dot_dimension_numbers<[1], [0], [0], [1], [0, 0, 1, 1], [], []>} : vector<8x32xbf16>, vector<32x128xbf16>, vector<8x128xf32> -> vector<8x128xf32>
    %135 = vector.broadcast %13 : vector<1x128xf32> to vector<8x128xf32>
    %136 = arith.addf %134, %135 : vector<8x128xf32>
    %c32_54 = arith.constant 32 : index
    %c0_55 = arith.constant 0 : index
    %137 = vector.load %arg24[%c32_54, %c0_55] : memref<128x128xf32, #tpu.memory_space<vmem>>, vector<8x128xf32>
    tpu.vector_store %arg24[%c32_54, %c0_55], %136 {strides = array<i32>} : memref<128x128xf32, #tpu.memory_space<vmem>>, vector<8x128xf32>,
    %c40 = arith.constant 40 : index
    %c0_56 = arith.constant 0 : index
    %138 = vector.load %arg23[%c40, %c0_56] : memref<128x128xf32, #tpu.memory_space<vmem>>, vector<8x128xf32>
    %cst_57 = arith.constant dense<0.000000e+00> : vector<8x128xf32>
    %139 = tpu.matmul %133, %14, %cst_57 {dimension_numbers = #tpu.dot_dimension_numbers<[1], [0], [0], [1], [0, 0, 1, 1], [], []>} : vector<8x32xbf16>, vector<32x128xbf16>, vector<8x128xf32> -> vector<8x128xf32>
    %140 = arith.addf %138, %139 : vector<8x128xf32>
    %141 = vector.extract_strided_slice %140 {offsets = [0, 0], sizes = [8, 96], strides = [1, 1]} : vector<8x128xf32> to vector<8x96xf32>
    %142 = arith.negf %141 : vector<8x96xf32>
    %143 = math.exp %142 : vector<8x96xf32>
    %cst_58 = arith.constant 1.000000e+00 : f32
    %144 = vector.broadcast %cst_58 : f32 to vector<8x96xf32>
    %145 = arith.addf %144, %143 : vector<8x96xf32>
    %146 = arith.divf %144, %145 : vector<8x96xf32>
    %147 = vector.extract_strided_slice %140 {offsets = [0, 96], sizes = [8, 32], strides = [1, 1]} : vector<8x128xf32> to vector<8x32xf32>
    %148 = math.tanh %147 : vector<8x32xf32>
    %149 = vector.extract_strided_slice %146 {offsets = [0, 32], sizes = [8, 32], strides = [1, 1]} : vector<8x96xf32> to vector<8x32xf32>
    %150 = arith.mulf %149, %129 : vector<8x32xf32>
    %151 = vector.extract_strided_slice %146 {offsets = [0, 0], sizes = [8, 32], strides = [1, 1]} : vector<8x96xf32> to vector<8x32xf32>
    %152 = arith.mulf %151, %148 : vector<8x32xf32>
    %153 = arith.addf %150, %152 : vector<8x32xf32>
    %154 = vector.extract_strided_slice %146 {offsets = [0, 64], sizes = [8, 32], strides = [1, 1]} : vector<8x96xf32> to vector<8x32xf32>
    %155 = math.tanh %153 : vector<8x32xf32>
    %156 = arith.mulf %154, %155 : vector<8x32xf32>
    %157 = arith.truncf %156 : vector<8x32xf32> to vector<8x32xbf16>
    %cst_59 = arith.constant dense<0.000000e+00> : vector<8x128xf32>
    %158 = tpu.matmul %157, %12, %cst_59 {dimension_numbers = #tpu.dot_dimension_numbers<[1], [0], [0], [1], [0, 0, 1, 1], [], []>} : vector<8x32xbf16>, vector<32x128xbf16>, vector<8x128xf32> -> vector<8x128xf32>
    %159 = vector.broadcast %13 : vector<1x128xf32> to vector<8x128xf32>
    %160 = arith.addf %158, %159 : vector<8x128xf32>
    %c40_60 = arith.constant 40 : index
    %c0_61 = arith.constant 0 : index
    %161 = vector.load %arg24[%c40_60, %c0_61] : memref<128x128xf32, #tpu.memory_space<vmem>>, vector<8x128xf32>
    tpu.vector_store %arg24[%c40_60, %c0_61], %160 {strides = array<i32>} : memref<128x128xf32, #tpu.memory_space<vmem>>, vector<8x128xf32>,
    %c48 = arith.constant 48 : index
    %c0_62 = arith.constant 0 : index
    %162 = vector.load %arg23[%c48, %c0_62] : memref<128x128xf32, #tpu.memory_space<vmem>>, vector<8x128xf32>
    %cst_63 = arith.constant dense<0.000000e+00> : vector<8x128xf32>
    %163 = tpu.matmul %157, %14, %cst_63 {dimension_numbers = #tpu.dot_dimension_numbers<[1], [0], [0], [1], [0, 0, 1, 1], [], []>} : vector<8x32xbf16>, vector<32x128xbf16>, vector<8x128xf32> -> vector<8x128xf32>
    %164 = arith.addf %162, %163 : vector<8x128xf32>
    %165 = vector.extract_strided_slice %164 {offsets = [0, 0], sizes = [8, 96], strides = [1, 1]} : vector<8x128xf32> to vector<8x96xf32>
    %166 = arith.negf %165 : vector<8x96xf32>
    %167 = math.exp %166 : vector<8x96xf32>
    %cst_64 = arith.constant 1.000000e+00 : f32
    %168 = vector.broadcast %cst_64 : f32 to vector<8x96xf32>
    %169 = arith.addf %168, %167 : vector<8x96xf32>
    %170 = arith.divf %168, %169 : vector<8x96xf32>
    %171 = vector.extract_strided_slice %164 {offsets = [0, 96], sizes = [8, 32], strides = [1, 1]} : vector<8x128xf32> to vector<8x32xf32>
    %172 = math.tanh %171 : vector<8x32xf32>
    %173 = vector.extract_strided_slice %170 {offsets = [0, 32], sizes = [8, 32], strides = [1, 1]} : vector<8x96xf32> to vector<8x32xf32>
    %174 = arith.mulf %173, %153 : vector<8x32xf32>
    %175 = vector.extract_strided_slice %170 {offsets = [0, 0], sizes = [8, 32], strides = [1, 1]} : vector<8x96xf32> to vector<8x32xf32>
    %176 = arith.mulf %175, %172 : vector<8x32xf32>
    %177 = arith.addf %174, %176 : vector<8x32xf32>
    %178 = vector.extract_strided_slice %170 {offsets = [0, 64], sizes = [8, 32], strides = [1, 1]} : vector<8x96xf32> to vector<8x32xf32>
    %179 = math.tanh %177 : vector<8x32xf32>
    %180 = arith.mulf %178, %179 : vector<8x32xf32>
    %181 = arith.truncf %180 : vector<8x32xf32> to vector<8x32xbf16>
    %cst_65 = arith.constant dense<0.000000e+00> : vector<8x128xf32>
    %182 = tpu.matmul %181, %12, %cst_65 {dimension_numbers = #tpu.dot_dimension_numbers<[1], [0], [0], [1], [0, 0, 1, 1], [], []>} : vector<8x32xbf16>, vector<32x128xbf16>, vector<8x128xf32> -> vector<8x128xf32>
    %183 = vector.broadcast %13 : vector<1x128xf32> to vector<8x128xf32>
    %184 = arith.addf %182, %183 : vector<8x128xf32>
    %c48_66 = arith.constant 48 : index
    %c0_67 = arith.constant 0 : index
    %185 = vector.load %arg24[%c48_66, %c0_67] : memref<128x128xf32, #tpu.memory_space<vmem>>, vector<8x128xf32>
    tpu.vector_store %arg24[%c48_66, %c0_67], %184 {strides = array<i32>} : memref<128x128xf32, #tpu.memory_space<vmem>>, vector<8x128xf32>,
    %c56 = arith.constant 56 : index
    %c0_68 = arith.constant 0 : index
    %186 = vector.load %arg23[%c56, %c0_68] : memref<128x128xf32, #tpu.memory_space<vmem>>, vector<8x128xf32>
    %cst_69 = arith.constant dense<0.000000e+00> : vector<8x128xf32>
    %187 = tpu.matmul %181, %14, %cst_69 {dimension_numbers = #tpu.dot_dimension_numbers<[1], [0], [0], [1], [0, 0, 1, 1], [], []>} : vector<8x32xbf16>, vector<32x128xbf16>, vector<8x128xf32> -> vector<8x128xf32>
    %188 = arith.addf %186, %187 : vector<8x128xf32>
    %189 = vector.extract_strided_slice %188 {offsets = [0, 0], sizes = [8, 96], strides = [1, 1]} : vector<8x128xf32> to vector<8x96xf32>
    %190 = arith.negf %189 : vector<8x96xf32>
    %191 = math.exp %190 : vector<8x96xf32>
    %cst_70 = arith.constant 1.000000e+00 : f32
    %192 = vector.broadcast %cst_70 : f32 to vector<8x96xf32>
    %193 = arith.addf %192, %191 : vector<8x96xf32>
    %194 = arith.divf %192, %193 : vector<8x96xf32>
    %195 = vector.extract_strided_slice %188 {offsets = [0, 96], sizes = [8, 32], strides = [1, 1]} : vector<8x128xf32> to vector<8x32xf32>
    %196 = math.tanh %195 : vector<8x32xf32>
    %197 = vector.extract_strided_slice %194 {offsets = [0, 32], sizes = [8, 32], strides = [1, 1]} : vector<8x96xf32> to vector<8x32xf32>
    %198 = arith.mulf %197, %177 : vector<8x32xf32>
    %199 = vector.extract_strided_slice %194 {offsets = [0, 0], sizes = [8, 32], strides = [1, 1]} : vector<8x96xf32> to vector<8x32xf32>
    %200 = arith.mulf %199, %196 : vector<8x32xf32>
    %201 = arith.addf %198, %200 : vector<8x32xf32>
    %202 = vector.extract_strided_slice %194 {offsets = [0, 64], sizes = [8, 32], strides = [1, 1]} : vector<8x96xf32> to vector<8x32xf32>
    %203 = math.tanh %201 : vector<8x32xf32>
    %204 = arith.mulf %202, %203 : vector<8x32xf32>
    %205 = arith.truncf %204 : vector<8x32xf32> to vector<8x32xbf16>
    %cst_71 = arith.constant dense<0.000000e+00> : vector<8x128xf32>
    %206 = tpu.matmul %205, %12, %cst_71 {dimension_numbers = #tpu.dot_dimension_numbers<[1], [0], [0], [1], [0, 0, 1, 1], [], []>} : vector<8x32xbf16>, vector<32x128xbf16>, vector<8x128xf32> -> vector<8x128xf32>
    %207 = vector.broadcast %13 : vector<1x128xf32> to vector<8x128xf32>
    %208 = arith.addf %206, %207 : vector<8x128xf32>
    %c56_72 = arith.constant 56 : index
    %c0_73 = arith.constant 0 : index
    %209 = vector.load %arg24[%c56_72, %c0_73] : memref<128x128xf32, #tpu.memory_space<vmem>>, vector<8x128xf32>
    tpu.vector_store %arg24[%c56_72, %c0_73], %208 {strides = array<i32>} : memref<128x128xf32, #tpu.memory_space<vmem>>, vector<8x128xf32>,
    %c64 = arith.constant 64 : index
    %c0_74 = arith.constant 0 : index
    %210 = vector.load %arg23[%c64, %c0_74] : memref<128x128xf32, #tpu.memory_space<vmem>>, vector<8x128xf32>
    %cst_75 = arith.constant dense<0.000000e+00> : vector<8x128xf32>
    %211 = tpu.matmul %205, %14, %cst_75 {dimension_numbers = #tpu.dot_dimension_numbers<[1], [0], [0], [1], [0, 0, 1, 1], [], []>} : vector<8x32xbf16>, vector<32x128xbf16>, vector<8x128xf32> -> vector<8x128xf32>
    %212 = arith.addf %210, %211 : vector<8x128xf32>
    %213 = vector.extract_strided_slice %212 {offsets = [0, 0], sizes = [8, 96], strides = [1, 1]} : vector<8x128xf32> to vector<8x96xf32>
    %214 = arith.negf %213 : vector<8x96xf32>
    %215 = math.exp %214 : vector<8x96xf32>
    %cst_76 = arith.constant 1.000000e+00 : f32
    %216 = vector.broadcast %cst_76 : f32 to vector<8x96xf32>
    %217 = arith.addf %216, %215 : vector<8x96xf32>
    %218 = arith.divf %216, %217 : vector<8x96xf32>
    %219 = vector.extract_strided_slice %212 {offsets = [0, 96], sizes = [8, 32], strides = [1, 1]} : vector<8x128xf32> to vector<8x32xf32>
    %220 = math.tanh %219 : vector<8x32xf32>
    %221 = vector.extract_strided_slice %218 {offsets = [0, 32], sizes = [8, 32], strides = [1, 1]} : vector<8x96xf32> to vector<8x32xf32>
    %222 = arith.mulf %221, %201 : vector<8x32xf32>
    %223 = vector.extract_strided_slice %218 {offsets = [0, 0], sizes = [8, 32], strides = [1, 1]} : vector<8x96xf32> to vector<8x32xf32>
    %224 = arith.mulf %223, %220 : vector<8x32xf32>
    %225 = arith.addf %222, %224 : vector<8x32xf32>
    %226 = vector.extract_strided_slice %218 {offsets = [0, 64], sizes = [8, 32], strides = [1, 1]} : vector<8x96xf32> to vector<8x32xf32>
    %227 = math.tanh %225 : vector<8x32xf32>
    %228 = arith.mulf %226, %227 : vector<8x32xf32>
    %229 = arith.truncf %228 : vector<8x32xf32> to vector<8x32xbf16>
    %cst_77 = arith.constant dense<0.000000e+00> : vector<8x128xf32>
    %230 = tpu.matmul %229, %12, %cst_77 {dimension_numbers = #tpu.dot_dimension_numbers<[1], [0], [0], [1], [0, 0, 1, 1], [], []>} : vector<8x32xbf16>, vector<32x128xbf16>, vector<8x128xf32> -> vector<8x128xf32>
    %231 = vector.broadcast %13 : vector<1x128xf32> to vector<8x128xf32>
    %232 = arith.addf %230, %231 : vector<8x128xf32>
    %c64_78 = arith.constant 64 : index
    %c0_79 = arith.constant 0 : index
    %233 = vector.load %arg24[%c64_78, %c0_79] : memref<128x128xf32, #tpu.memory_space<vmem>>, vector<8x128xf32>
    tpu.vector_store %arg24[%c64_78, %c0_79], %232 {strides = array<i32>} : memref<128x128xf32, #tpu.memory_space<vmem>>, vector<8x128xf32>,
    %c72 = arith.constant 72 : index
    %c0_80 = arith.constant 0 : index
    %234 = vector.load %arg23[%c72, %c0_80] : memref<128x128xf32, #tpu.memory_space<vmem>>, vector<8x128xf32>
    %cst_81 = arith.constant dense<0.000000e+00> : vector<8x128xf32>
    %235 = tpu.matmul %229, %14, %cst_81 {dimension_numbers = #tpu.dot_dimension_numbers<[1], [0], [0], [1], [0, 0, 1, 1], [], []>} : vector<8x32xbf16>, vector<32x128xbf16>, vector<8x128xf32> -> vector<8x128xf32>
    %236 = arith.addf %234, %235 : vector<8x128xf32>
    %237 = vector.extract_strided_slice %236 {offsets = [0, 0], sizes = [8, 96], strides = [1, 1]} : vector<8x128xf32> to vector<8x96xf32>
    %238 = arith.negf %237 : vector<8x96xf32>
    %239 = math.exp %238 : vector<8x96xf32>
    %cst_82 = arith.constant 1.000000e+00 : f32
    %240 = vector.broadcast %cst_82 : f32 to vector<8x96xf32>
    %241 = arith.addf %240, %239 : vector<8x96xf32>
    %242 = arith.divf %240, %241 : vector<8x96xf32>
    %243 = vector.extract_strided_slice %236 {offsets = [0, 96], sizes = [8, 32], strides = [1, 1]} : vector<8x128xf32> to vector<8x32xf32>
    %244 = math.tanh %243 : vector<8x32xf32>
    %245 = vector.extract_strided_slice %242 {offsets = [0, 32], sizes = [8, 32], strides = [1, 1]} : vector<8x96xf32> to vector<8x32xf32>
    %246 = arith.mulf %245, %225 : vector<8x32xf32>
    %247 = vector.extract_strided_slice %242 {offsets = [0, 0], sizes = [8, 32], strides = [1, 1]} : vector<8x96xf32> to vector<8x32xf32>
    %248 = arith.mulf %247, %244 : vector<8x32xf32>
    %249 = arith.addf %246, %248 : vector<8x32xf32>
    %250 = vector.extract_strided_slice %242 {offsets = [0, 64], sizes = [8, 32], strides = [1, 1]} : vector<8x96xf32> to vector<8x32xf32>
    %251 = math.tanh %249 : vector<8x32xf32>
    %252 = arith.mulf %250, %251 : vector<8x32xf32>
    %253 = arith.truncf %252 : vector<8x32xf32> to vector<8x32xbf16>
    %cst_83 = arith.constant dense<0.000000e+00> : vector<8x128xf32>
    %254 = tpu.matmul %253, %12, %cst_83 {dimension_numbers = #tpu.dot_dimension_numbers<[1], [0], [0], [1], [0, 0, 1, 1], [], []>} : vector<8x32xbf16>, vector<32x128xbf16>, vector<8x128xf32> -> vector<8x128xf32>
    %255 = vector.broadcast %13 : vector<1x128xf32> to vector<8x128xf32>
    %256 = arith.addf %254, %255 : vector<8x128xf32>
    %c72_84 = arith.constant 72 : index
    %c0_85 = arith.constant 0 : index
    %257 = vector.load %arg24[%c72_84, %c0_85] : memref<128x128xf32, #tpu.memory_space<vmem>>, vector<8x128xf32>
    tpu.vector_store %arg24[%c72_84, %c0_85], %256 {strides = array<i32>} : memref<128x128xf32, #tpu.memory_space<vmem>>, vector<8x128xf32>,
    %c80 = arith.constant 80 : index
    %c0_86 = arith.constant 0 : index
    %258 = vector.load %arg23[%c80, %c0_86] : memref<128x128xf32, #tpu.memory_space<vmem>>, vector<8x128xf32>
    %cst_87 = arith.constant dense<0.000000e+00> : vector<8x128xf32>
    %259 = tpu.matmul %253, %14, %cst_87 {dimension_numbers = #tpu.dot_dimension_numbers<[1], [0], [0], [1], [0, 0, 1, 1], [], []>} : vector<8x32xbf16>, vector<32x128xbf16>, vector<8x128xf32> -> vector<8x128xf32>
    %260 = arith.addf %258, %259 : vector<8x128xf32>
    %261 = vector.extract_strided_slice %260 {offsets = [0, 0], sizes = [8, 96], strides = [1, 1]} : vector<8x128xf32> to vector<8x96xf32>
    %262 = arith.negf %261 : vector<8x96xf32>
    %263 = math.exp %262 : vector<8x96xf32>
    %cst_88 = arith.constant 1.000000e+00 : f32
    %264 = vector.broadcast %cst_88 : f32 to vector<8x96xf32>
    %265 = arith.addf %264, %263 : vector<8x96xf32>
    %266 = arith.divf %264, %265 : vector<8x96xf32>
    %267 = vector.extract_strided_slice %260 {offsets = [0, 96], sizes = [8, 32], strides = [1, 1]} : vector<8x128xf32> to vector<8x32xf32>
    %268 = math.tanh %267 : vector<8x32xf32>
    %269 = vector.extract_strided_slice %266 {offsets = [0, 32], sizes = [8, 32], strides = [1, 1]} : vector<8x96xf32> to vector<8x32xf32>
    %270 = arith.mulf %269, %249 : vector<8x32xf32>
    %271 = vector.extract_strided_slice %266 {offsets = [0, 0], sizes = [8, 32], strides = [1, 1]} : vector<8x96xf32> to vector<8x32xf32>
    %272 = arith.mulf %271, %268 : vector<8x32xf32>
    %273 = arith.addf %270, %272 : vector<8x32xf32>
    %274 = vector.extract_strided_slice %266 {offsets = [0, 64], sizes = [8, 32], strides = [1, 1]} : vector<8x96xf32> to vector<8x32xf32>
    %275 = math.tanh %273 : vector<8x32xf32>
    %276 = arith.mulf %274, %275 : vector<8x32xf32>
    %277 = arith.truncf %276 : vector<8x32xf32> to vector<8x32xbf16>
    %cst_89 = arith.constant dense<0.000000e+00> : vector<8x128xf32>
    %278 = tpu.matmul %277, %12, %cst_89 {dimension_numbers = #tpu.dot_dimension_numbers<[1], [0], [0], [1], [0, 0, 1, 1], [], []>} : vector<8x32xbf16>, vector<32x128xbf16>, vector<8x128xf32> -> vector<8x128xf32>
    %279 = vector.broadcast %13 : vector<1x128xf32> to vector<8x128xf32>
    %280 = arith.addf %278, %279 : vector<8x128xf32>
    %c80_90 = arith.constant 80 : index
    %c0_91 = arith.constant 0 : index
    %281 = vector.load %arg24[%c80_90, %c0_91] : memref<128x128xf32, #tpu.memory_space<vmem>>, vector<8x128xf32>
    tpu.vector_store %arg24[%c80_90, %c0_91], %280 {strides = array<i32>} : memref<128x128xf32, #tpu.memory_space<vmem>>, vector<8x128xf32>,
    %c88 = arith.constant 88 : index
    %c0_92 = arith.constant 0 : index
    %282 = vector.load %arg23[%c88, %c0_92] : memref<128x128xf32, #tpu.memory_space<vmem>>, vector<8x128xf32>
    %cst_93 = arith.constant dense<0.000000e+00> : vector<8x128xf32>
    %283 = tpu.matmul %277, %14, %cst_93 {dimension_numbers = #tpu.dot_dimension_numbers<[1], [0], [0], [1], [0, 0, 1, 1], [], []>} : vector<8x32xbf16>, vector<32x128xbf16>, vector<8x128xf32> -> vector<8x128xf32>
    %284 = arith.addf %282, %283 : vector<8x128xf32>
    %285 = vector.extract_strided_slice %284 {offsets = [0, 0], sizes = [8, 96], strides = [1, 1]} : vector<8x128xf32> to vector<8x96xf32>
    %286 = arith.negf %285 : vector<8x96xf32>
    %287 = math.exp %286 : vector<8x96xf32>
    %cst_94 = arith.constant 1.000000e+00 : f32
    %288 = vector.broadcast %cst_94 : f32 to vector<8x96xf32>
    %289 = arith.addf %288, %287 : vector<8x96xf32>
    %290 = arith.divf %288, %289 : vector<8x96xf32>
    %291 = vector.extract_strided_slice %284 {offsets = [0, 96], sizes = [8, 32], strides = [1, 1]} : vector<8x128xf32> to vector<8x32xf32>
    %292 = math.tanh %291 : vector<8x32xf32>
    %293 = vector.extract_strided_slice %290 {offsets = [0, 32], sizes = [8, 32], strides = [1, 1]} : vector<8x96xf32> to vector<8x32xf32>
    %294 = arith.mulf %293, %273 : vector<8x32xf32>
    %295 = vector.extract_strided_slice %290 {offsets = [0, 0], sizes = [8, 32], strides = [1, 1]} : vector<8x96xf32> to vector<8x32xf32>
    %296 = arith.mulf %295, %292 : vector<8x32xf32>
    %297 = arith.addf %294, %296 : vector<8x32xf32>
    %298 = vector.extract_strided_slice %290 {offsets = [0, 64], sizes = [8, 32], strides = [1, 1]} : vector<8x96xf32> to vector<8x32xf32>
    %299 = math.tanh %297 : vector<8x32xf32>
    %300 = arith.mulf %298, %299 : vector<8x32xf32>
    %301 = arith.truncf %300 : vector<8x32xf32> to vector<8x32xbf16>
    %cst_95 = arith.constant dense<0.000000e+00> : vector<8x128xf32>
    %302 = tpu.matmul %301, %12, %cst_95 {dimension_numbers = #tpu.dot_dimension_numbers<[1], [0], [0], [1], [0, 0, 1, 1], [], []>} : vector<8x32xbf16>, vector<32x128xbf16>, vector<8x128xf32> -> vector<8x128xf32>
    %303 = vector.broadcast %13 : vector<1x128xf32> to vector<8x128xf32>
    %304 = arith.addf %302, %303 : vector<8x128xf32>
    %c88_96 = arith.constant 88 : index
    %c0_97 = arith.constant 0 : index
    %305 = vector.load %arg24[%c88_96, %c0_97] : memref<128x128xf32, #tpu.memory_space<vmem>>, vector<8x128xf32>
    tpu.vector_store %arg24[%c88_96, %c0_97], %304 {strides = array<i32>} : memref<128x128xf32, #tpu.memory_space<vmem>>, vector<8x128xf32>,
    %c96 = arith.constant 96 : index
    %c0_98 = arith.constant 0 : index
    %306 = vector.load %arg23[%c96, %c0_98] : memref<128x128xf32, #tpu.memory_space<vmem>>, vector<8x128xf32>
    %cst_99 = arith.constant dense<0.000000e+00> : vector<8x128xf32>
    %307 = tpu.matmul %301, %14, %cst_99 {dimension_numbers = #tpu.dot_dimension_numbers<[1], [0], [0], [1], [0, 0, 1, 1], [], []>} : vector<8x32xbf16>, vector<32x128xbf16>, vector<8x128xf32> -> vector<8x128xf32>
    %308 = arith.addf %306, %307 : vector<8x128xf32>
    %309 = vector.extract_strided_slice %308 {offsets = [0, 0], sizes = [8, 96], strides = [1, 1]} : vector<8x128xf32> to vector<8x96xf32>
    %310 = arith.negf %309 : vector<8x96xf32>
    %311 = math.exp %310 : vector<8x96xf32>
    %cst_100 = arith.constant 1.000000e+00 : f32
    %312 = vector.broadcast %cst_100 : f32 to vector<8x96xf32>
    %313 = arith.addf %312, %311 : vector<8x96xf32>
    %314 = arith.divf %312, %313 : vector<8x96xf32>
    %315 = vector.extract_strided_slice %308 {offsets = [0, 96], sizes = [8, 32], strides = [1, 1]} : vector<8x128xf32> to vector<8x32xf32>
    %316 = math.tanh %315 : vector<8x32xf32>
    %317 = vector.extract_strided_slice %314 {offsets = [0, 32], sizes = [8, 32], strides = [1, 1]} : vector<8x96xf32> to vector<8x32xf32>
    %318 = arith.mulf %317, %297 : vector<8x32xf32>
    %319 = vector.extract_strided_slice %314 {offsets = [0, 0], sizes = [8, 32], strides = [1, 1]} : vector<8x96xf32> to vector<8x32xf32>
    %320 = arith.mulf %319, %316 : vector<8x32xf32>
    %321 = arith.addf %318, %320 : vector<8x32xf32>
    %322 = vector.extract_strided_slice %314 {offsets = [0, 64], sizes = [8, 32], strides = [1, 1]} : vector<8x96xf32> to vector<8x32xf32>
    %323 = math.tanh %321 : vector<8x32xf32>
    %324 = arith.mulf %322, %323 : vector<8x32xf32>
    %325 = arith.truncf %324 : vector<8x32xf32> to vector<8x32xbf16>
    %cst_101 = arith.constant dense<0.000000e+00> : vector<8x128xf32>
    %326 = tpu.matmul %325, %12, %cst_101 {dimension_numbers = #tpu.dot_dimension_numbers<[1], [0], [0], [1], [0, 0, 1, 1], [], []>} : vector<8x32xbf16>, vector<32x128xbf16>, vector<8x128xf32> -> vector<8x128xf32>
    %327 = vector.broadcast %13 : vector<1x128xf32> to vector<8x128xf32>
    %328 = arith.addf %326, %327 : vector<8x128xf32>
    %c96_102 = arith.constant 96 : index
    %c0_103 = arith.constant 0 : index
    %329 = vector.load %arg24[%c96_102, %c0_103] : memref<128x128xf32, #tpu.memory_space<vmem>>, vector<8x128xf32>
    tpu.vector_store %arg24[%c96_102, %c0_103], %328 {strides = array<i32>} : memref<128x128xf32, #tpu.memory_space<vmem>>, vector<8x128xf32>,
    %c104 = arith.constant 104 : index
    %c0_104 = arith.constant 0 : index
    %330 = vector.load %arg23[%c104, %c0_104] : memref<128x128xf32, #tpu.memory_space<vmem>>, vector<8x128xf32>
    %cst_105 = arith.constant dense<0.000000e+00> : vector<8x128xf32>
    %331 = tpu.matmul %325, %14, %cst_105 {dimension_numbers = #tpu.dot_dimension_numbers<[1], [0], [0], [1], [0, 0, 1, 1], [], []>} : vector<8x32xbf16>, vector<32x128xbf16>, vector<8x128xf32> -> vector<8x128xf32>
    %332 = arith.addf %330, %331 : vector<8x128xf32>
    %333 = vector.extract_strided_slice %332 {offsets = [0, 0], sizes = [8, 96], strides = [1, 1]} : vector<8x128xf32> to vector<8x96xf32>
    %334 = arith.negf %333 : vector<8x96xf32>
    %335 = math.exp %334 : vector<8x96xf32>
    %cst_106 = arith.constant 1.000000e+00 : f32
    %336 = vector.broadcast %cst_106 : f32 to vector<8x96xf32>
    %337 = arith.addf %336, %335 : vector<8x96xf32>
    %338 = arith.divf %336, %337 : vector<8x96xf32>
    %339 = vector.extract_strided_slice %332 {offsets = [0, 96], sizes = [8, 32], strides = [1, 1]} : vector<8x128xf32> to vector<8x32xf32>
    %340 = math.tanh %339 : vector<8x32xf32>
    %341 = vector.extract_strided_slice %338 {offsets = [0, 32], sizes = [8, 32], strides = [1, 1]} : vector<8x96xf32> to vector<8x32xf32>
    %342 = arith.mulf %341, %321 : vector<8x32xf32>
    %343 = vector.extract_strided_slice %338 {offsets = [0, 0], sizes = [8, 32], strides = [1, 1]} : vector<8x96xf32> to vector<8x32xf32>
    %344 = arith.mulf %343, %340 : vector<8x32xf32>
    %345 = arith.addf %342, %344 : vector<8x32xf32>
    %346 = vector.extract_strided_slice %338 {offsets = [0, 64], sizes = [8, 32], strides = [1, 1]} : vector<8x96xf32> to vector<8x32xf32>
    %347 = math.tanh %345 : vector<8x32xf32>
    %348 = arith.mulf %346, %347 : vector<8x32xf32>
    %349 = arith.truncf %348 : vector<8x32xf32> to vector<8x32xbf16>
    %cst_107 = arith.constant dense<0.000000e+00> : vector<8x128xf32>
    %350 = tpu.matmul %349, %12, %cst_107 {dimension_numbers = #tpu.dot_dimension_numbers<[1], [0], [0], [1], [0, 0, 1, 1], [], []>} : vector<8x32xbf16>, vector<32x128xbf16>, vector<8x128xf32> -> vector<8x128xf32>
    %351 = vector.broadcast %13 : vector<1x128xf32> to vector<8x128xf32>
    %352 = arith.addf %350, %351 : vector<8x128xf32>
    %c104_108 = arith.constant 104 : index
    %c0_109 = arith.constant 0 : index
    %353 = vector.load %arg24[%c104_108, %c0_109] : memref<128x128xf32, #tpu.memory_space<vmem>>, vector<8x128xf32>
    tpu.vector_store %arg24[%c104_108, %c0_109], %352 {strides = array<i32>} : memref<128x128xf32, #tpu.memory_space<vmem>>, vector<8x128xf32>,
    %c112 = arith.constant 112 : index
    %c0_110 = arith.constant 0 : index
    %354 = vector.load %arg23[%c112, %c0_110] : memref<128x128xf32, #tpu.memory_space<vmem>>, vector<8x128xf32>
    %cst_111 = arith.constant dense<0.000000e+00> : vector<8x128xf32>
    %355 = tpu.matmul %349, %14, %cst_111 {dimension_numbers = #tpu.dot_dimension_numbers<[1], [0], [0], [1], [0, 0, 1, 1], [], []>} : vector<8x32xbf16>, vector<32x128xbf16>, vector<8x128xf32> -> vector<8x128xf32>
    %356 = arith.addf %354, %355 : vector<8x128xf32>
    %357 = vector.extract_strided_slice %356 {offsets = [0, 0], sizes = [8, 96], strides = [1, 1]} : vector<8x128xf32> to vector<8x96xf32>
    %358 = arith.negf %357 : vector<8x96xf32>
    %359 = math.exp %358 : vector<8x96xf32>
    %cst_112 = arith.constant 1.000000e+00 : f32
    %360 = vector.broadcast %cst_112 : f32 to vector<8x96xf32>
    %361 = arith.addf %360, %359 : vector<8x96xf32>
    %362 = arith.divf %360, %361 : vector<8x96xf32>
    %363 = vector.extract_strided_slice %356 {offsets = [0, 96], sizes = [8, 32], strides = [1, 1]} : vector<8x128xf32> to vector<8x32xf32>
    %364 = math.tanh %363 : vector<8x32xf32>
    %365 = vector.extract_strided_slice %362 {offsets = [0, 32], sizes = [8, 32], strides = [1, 1]} : vector<8x96xf32> to vector<8x32xf32>
    %366 = arith.mulf %365, %345 : vector<8x32xf32>
    %367 = vector.extract_strided_slice %362 {offsets = [0, 0], sizes = [8, 32], strides = [1, 1]} : vector<8x96xf32> to vector<8x32xf32>
    %368 = arith.mulf %367, %364 : vector<8x32xf32>
    %369 = arith.addf %366, %368 : vector<8x32xf32>
    %370 = vector.extract_strided_slice %362 {offsets = [0, 64], sizes = [8, 32], strides = [1, 1]} : vector<8x96xf32> to vector<8x32xf32>
    %371 = math.tanh %369 : vector<8x32xf32>
    %372 = arith.mulf %370, %371 : vector<8x32xf32>
    %373 = arith.truncf %372 : vector<8x32xf32> to vector<8x32xbf16>
    %cst_113 = arith.constant dense<0.000000e+00> : vector<8x128xf32>
    %374 = tpu.matmul %373, %12, %cst_113 {dimension_numbers = #tpu.dot_dimension_numbers<[1], [0], [0], [1], [0, 0, 1, 1], [], []>} : vector<8x32xbf16>, vector<32x128xbf16>, vector<8x128xf32> -> vector<8x128xf32>
    %375 = vector.broadcast %13 : vector<1x128xf32> to vector<8x128xf32>
    %376 = arith.addf %374, %375 : vector<8x128xf32>
    %c112_114 = arith.constant 112 : index
    %c0_115 = arith.constant 0 : index
    %377 = vector.load %arg24[%c112_114, %c0_115] : memref<128x128xf32, #tpu.memory_space<vmem>>, vector<8x128xf32>
    tpu.vector_store %arg24[%c112_114, %c0_115], %376 {strides = array<i32>} : memref<128x128xf32, #tpu.memory_space<vmem>>, vector<8x128xf32>,
    %c120 = arith.constant 120 : index
    %c0_116 = arith.constant 0 : index
    %378 = vector.load %arg23[%c120, %c0_116] : memref<128x128xf32, #tpu.memory_space<vmem>>, vector<8x128xf32>
    %cst_117 = arith.constant dense<0.000000e+00> : vector<8x128xf32>
    %379 = tpu.matmul %373, %14, %cst_117 {dimension_numbers = #tpu.dot_dimension_numbers<[1], [0], [0], [1], [0, 0, 1, 1], [], []>} : vector<8x32xbf16>, vector<32x128xbf16>, vector<8x128xf32> -> vector<8x128xf32>
    %380 = arith.addf %378, %379 : vector<8x128xf32>
    %381 = vector.extract_strided_slice %380 {offsets = [0, 0], sizes = [8, 96], strides = [1, 1]} : vector<8x128xf32> to vector<8x96xf32>
    %382 = arith.negf %381 : vector<8x96xf32>
    %383 = math.exp %382 : vector<8x96xf32>
    %cst_118 = arith.constant 1.000000e+00 : f32
    %384 = vector.broadcast %cst_118 : f32 to vector<8x96xf32>
    %385 = arith.addf %384, %383 : vector<8x96xf32>
    %386 = arith.divf %384, %385 : vector<8x96xf32>
    %387 = vector.extract_strided_slice %380 {offsets = [0, 96], sizes = [8, 32], strides = [1, 1]} : vector<8x128xf32> to vector<8x32xf32>
    %388 = math.tanh %387 : vector<8x32xf32>
    %389 = vector.extract_strided_slice %386 {offsets = [0, 32], sizes = [8, 32], strides = [1, 1]} : vector<8x96xf32> to vector<8x32xf32>
    %390 = arith.mulf %389, %369 : vector<8x32xf32>
    %391 = vector.extract_strided_slice %386 {offsets = [0, 0], sizes = [8, 32], strides = [1, 1]} : vector<8x96xf32> to vector<8x32xf32>
    %392 = arith.mulf %391, %388 : vector<8x32xf32>
    %393 = arith.addf %390, %392 : vector<8x32xf32>
    %394 = vector.extract_strided_slice %386 {offsets = [0, 64], sizes = [8, 32], strides = [1, 1]} : vector<8x96xf32> to vector<8x32xf32>
    %395 = math.tanh %393 : vector<8x32xf32>
    %396 = arith.mulf %394, %395 : vector<8x32xf32>
    %397 = arith.truncf %396 : vector<8x32xf32> to vector<8x32xbf16>
    %cst_119 = arith.constant dense<0.000000e+00> : vector<8x128xf32>
    %398 = tpu.matmul %397, %12, %cst_119 {dimension_numbers = #tpu.dot_dimension_numbers<[1], [0], [0], [1], [0, 0, 1, 1], [], []>} : vector<8x32xbf16>, vector<32x128xbf16>, vector<8x128xf32> -> vector<8x128xf32>
    %399 = vector.broadcast %13 : vector<1x128xf32> to vector<8x128xf32>
    %400 = arith.addf %398, %399 : vector<8x128xf32>
    %c120_120 = arith.constant 120 : index
    %c0_121 = arith.constant 0 : index
    %401 = vector.load %arg24[%c120_120, %c0_121] : memref<128x128xf32, #tpu.memory_space<vmem>>, vector<8x128xf32>
    tpu.vector_store %arg24[%c120_120, %c0_121], %400 {strides = array<i32>} : memref<128x128xf32, #tpu.memory_space<vmem>>, vector<8x128xf32>,
    %c0_122 = arith.constant 0 : index
    %c0_123 = arith.constant 0 : index
    %402 = vector.load %arg9[%c0_122, %c0_123] : memref<32x128xbf16, #tpu.memory_space<vmem>>, vector<32x128xbf16>
    %c0_124 = arith.constant 0 : index
    %c0_125 = arith.constant 0 : index
    %403 = vector.load %arg3[%c0_124, %c0_125] : memref<8x32xf32, #tpu.memory_space<vmem>>, vector<8x32xf32>
    %c0_126 = arith.constant 0 : index
    %c0_127 = arith.constant 0 : index
    %404 = vector.load %arg4[%c0_126, %c0_127] : memref<8x32xf32, #tpu.memory_space<vmem>>, vector<8x32xf32>
    %405 = arith.truncf %403 : vector<8x32xf32> to vector<8x32xbf16>
    %c0_128 = arith.constant 0 : index
    %c0_129 = arith.constant 0 : index
    %406 = vector.load %arg24[%c0_128, %c0_129] : memref<128x128xf32, #tpu.memory_space<vmem>>, vector<8x128xf32>
    %cst_130 = arith.constant dense<0.000000e+00> : vector<8x128xf32>
    %407 = tpu.matmul %405, %402, %cst_130 {dimension_numbers = #tpu.dot_dimension_numbers<[1], [0], [0], [1], [0, 0, 1, 1], [], []>} : vector<8x32xbf16>, vector<32x128xbf16>, vector<8x128xf32> -> vector<8x128xf32>
    %408 = arith.addf %406, %407 : vector<8x128xf32>
    %409 = vector.extract_strided_slice %408 {offsets = [0, 0], sizes = [8, 96], strides = [1, 1]} : vector<8x128xf32> to vector<8x96xf32>
    %410 = arith.negf %409 : vector<8x96xf32>
    %411 = math.exp %410 : vector<8x96xf32>
    %cst_131 = arith.constant 1.000000e+00 : f32
    %412 = vector.broadcast %cst_131 : f32 to vector<8x96xf32>
    %413 = arith.addf %412, %411 : vector<8x96xf32>
    %414 = arith.divf %412, %413 : vector<8x96xf32>
    %415 = vector.extract_strided_slice %408 {offsets = [0, 96], sizes = [8, 32], strides = [1, 1]} : vector<8x128xf32> to vector<8x32xf32>
    %416 = math.tanh %415 : vector<8x32xf32>
    %417 = vector.extract_strided_slice %414 {offsets = [0, 32], sizes = [8, 32], strides = [1, 1]} : vector<8x96xf32> to vector<8x32xf32>
    %418 = arith.mulf %417, %404 : vector<8x32xf32>
    %419 = vector.extract_strided_slice %414 {offsets = [0, 0], sizes = [8, 32], strides = [1, 1]} : vector<8x96xf32> to vector<8x32xf32>
    %420 = arith.mulf %419, %416 : vector<8x32xf32>
    %421 = arith.addf %418, %420 : vector<8x32xf32>
    %422 = vector.extract_strided_slice %414 {offsets = [0, 64], sizes = [8, 32], strides = [1, 1]} : vector<8x96xf32> to vector<8x32xf32>
    %423 = math.tanh %421 : vector<8x32xf32>
    %424 = arith.mulf %422, %423 : vector<8x32xf32>
    %425 = arith.truncf %424 : vector<8x32xf32> to vector<8x32xbf16>
    %c8_132 = arith.constant 8 : index
    %c0_133 = arith.constant 0 : index
    %426 = vector.load %arg25[%c8_132, %c0_133] : memref<144x32xf32, #tpu.memory_space<vmem>>, vector<8x32xf32>
    tpu.vector_store %arg25[%c8_132, %c0_133], %424 {strides = array<i32>} : memref<144x32xf32, #tpu.memory_space<vmem>>, vector<8x32xf32>,
    %c8_134 = arith.constant 8 : index
    %c0_135 = arith.constant 0 : index
    %427 = vector.load %arg24[%c8_134, %c0_135] : memref<128x128xf32, #tpu.memory_space<vmem>>, vector<8x128xf32>
    %cst_136 = arith.constant dense<0.000000e+00> : vector<8x128xf32>
    %428 = tpu.matmul %425, %402, %cst_136 {dimension_numbers = #tpu.dot_dimension_numbers<[1], [0], [0], [1], [0, 0, 1, 1], [], []>} : vector<8x32xbf16>, vector<32x128xbf16>, vector<8x128xf32> -> vector<8x128xf32>
    %429 = arith.addf %427, %428 : vector<8x128xf32>
    %430 = vector.extract_strided_slice %429 {offsets = [0, 0], sizes = [8, 96], strides = [1, 1]} : vector<8x128xf32> to vector<8x96xf32>
    %431 = arith.negf %430 : vector<8x96xf32>
    %432 = math.exp %431 : vector<8x96xf32>
    %cst_137 = arith.constant 1.000000e+00 : f32
    %433 = vector.broadcast %cst_137 : f32 to vector<8x96xf32>
    %434 = arith.addf %433, %432 : vector<8x96xf32>
    %435 = arith.divf %433, %434 : vector<8x96xf32>
    %436 = vector.extract_strided_slice %429 {offsets = [0, 96], sizes = [8, 32], strides = [1, 1]} : vector<8x128xf32> to vector<8x32xf32>
    %437 = math.tanh %436 : vector<8x32xf32>
    %438 = vector.extract_strided_slice %435 {offsets = [0, 32], sizes = [8, 32], strides = [1, 1]} : vector<8x96xf32> to vector<8x32xf32>
    %439 = arith.mulf %438, %421 : vector<8x32xf32>
    %440 = vector.extract_strided_slice %435 {offsets = [0, 0], sizes = [8, 32], strides = [1, 1]} : vector<8x96xf32> to vector<8x32xf32>
    %441 = arith.mulf %440, %437 : vector<8x32xf32>
    %442 = arith.addf %439, %441 : vector<8x32xf32>
    %443 = vector.extract_strided_slice %435 {offsets = [0, 64], sizes = [8, 32], strides = [1, 1]} : vector<8x96xf32> to vector<8x32xf32>
    %444 = math.tanh %442 : vector<8x32xf32>
    %445 = arith.mulf %443, %444 : vector<8x32xf32>
    %446 = arith.truncf %445 : vector<8x32xf32> to vector<8x32xbf16>
    %c16_138 = arith.constant 16 : index
    %c0_139 = arith.constant 0 : index
    %447 = vector.load %arg25[%c16_138, %c0_139] : memref<144x32xf32, #tpu.memory_space<vmem>>, vector<8x32xf32>
    tpu.vector_store %arg25[%c16_138, %c0_139], %445 {strides = array<i32>} : memref<144x32xf32, #tpu.memory_space<vmem>>, vector<8x32xf32>,
    %c16_140 = arith.constant 16 : index
    %c0_141 = arith.constant 0 : index
    %448 = vector.load %arg24[%c16_140, %c0_141] : memref<128x128xf32, #tpu.memory_space<vmem>>, vector<8x128xf32>
    %cst_142 = arith.constant dense<0.000000e+00> : vector<8x128xf32>
    %449 = tpu.matmul %446, %402, %cst_142 {dimension_numbers = #tpu.dot_dimension_numbers<[1], [0], [0], [1], [0, 0, 1, 1], [], []>} : vector<8x32xbf16>, vector<32x128xbf16>, vector<8x128xf32> -> vector<8x128xf32>
    %450 = arith.addf %448, %449 : vector<8x128xf32>
    %451 = vector.extract_strided_slice %450 {offsets = [0, 0], sizes = [8, 96], strides = [1, 1]} : vector<8x128xf32> to vector<8x96xf32>
    %452 = arith.negf %451 : vector<8x96xf32>
    %453 = math.exp %452 : vector<8x96xf32>
    %cst_143 = arith.constant 1.000000e+00 : f32
    %454 = vector.broadcast %cst_143 : f32 to vector<8x96xf32>
    %455 = arith.addf %454, %453 : vector<8x96xf32>
    %456 = arith.divf %454, %455 : vector<8x96xf32>
    %457 = vector.extract_strided_slice %450 {offsets = [0, 96], sizes = [8, 32], strides = [1, 1]} : vector<8x128xf32> to vector<8x32xf32>
    %458 = math.tanh %457 : vector<8x32xf32>
    %459 = vector.extract_strided_slice %456 {offsets = [0, 32], sizes = [8, 32], strides = [1, 1]} : vector<8x96xf32> to vector<8x32xf32>
    %460 = arith.mulf %459, %442 : vector<8x32xf32>
    %461 = vector.extract_strided_slice %456 {offsets = [0, 0], sizes = [8, 32], strides = [1, 1]} : vector<8x96xf32> to vector<8x32xf32>
    %462 = arith.mulf %461, %458 : vector<8x32xf32>
    %463 = arith.addf %460, %462 : vector<8x32xf32>
    %464 = vector.extract_strided_slice %456 {offsets = [0, 64], sizes = [8, 32], strides = [1, 1]} : vector<8x96xf32> to vector<8x32xf32>
    %465 = math.tanh %463 : vector<8x32xf32>
    %466 = arith.mulf %464, %465 : vector<8x32xf32>
    %467 = arith.truncf %466 : vector<8x32xf32> to vector<8x32xbf16>
    %c24_144 = arith.constant 24 : index
    %c0_145 = arith.constant 0 : index
    %468 = vector.load %arg25[%c24_144, %c0_145] : memref<144x32xf32, #tpu.memory_space<vmem>>, vector<8x32xf32>
    tpu.vector_store %arg25[%c24_144, %c0_145], %466 {strides = array<i32>} : memref<144x32xf32, #tpu.memory_space<vmem>>, vector<8x32xf32>,
    %c24_146 = arith.constant 24 : index
    %c0_147 = arith.constant 0 : index
    %469 = vector.load %arg24[%c24_146, %c0_147] : memref<128x128xf32, #tpu.memory_space<vmem>>, vector<8x128xf32>
    %cst_148 = arith.constant dense<0.000000e+00> : vector<8x128xf32>
    %470 = tpu.matmul %467, %402, %cst_148 {dimension_numbers = #tpu.dot_dimension_numbers<[1], [0], [0], [1], [0, 0, 1, 1], [], []>} : vector<8x32xbf16>, vector<32x128xbf16>, vector<8x128xf32> -> vector<8x128xf32>
    %471 = arith.addf %469, %470 : vector<8x128xf32>
    %472 = vector.extract_strided_slice %471 {offsets = [0, 0], sizes = [8, 96], strides = [1, 1]} : vector<8x128xf32> to vector<8x96xf32>
    %473 = arith.negf %472 : vector<8x96xf32>
    %474 = math.exp %473 : vector<8x96xf32>
    %cst_149 = arith.constant 1.000000e+00 : f32
    %475 = vector.broadcast %cst_149 : f32 to vector<8x96xf32>
    %476 = arith.addf %475, %474 : vector<8x96xf32>
    %477 = arith.divf %475, %476 : vector<8x96xf32>
    %478 = vector.extract_strided_slice %471 {offsets = [0, 96], sizes = [8, 32], strides = [1, 1]} : vector<8x128xf32> to vector<8x32xf32>
    %479 = math.tanh %478 : vector<8x32xf32>
    %480 = vector.extract_strided_slice %477 {offsets = [0, 32], sizes = [8, 32], strides = [1, 1]} : vector<8x96xf32> to vector<8x32xf32>
    %481 = arith.mulf %480, %463 : vector<8x32xf32>
    %482 = vector.extract_strided_slice %477 {offsets = [0, 0], sizes = [8, 32], strides = [1, 1]} : vector<8x96xf32> to vector<8x32xf32>
    %483 = arith.mulf %482, %479 : vector<8x32xf32>
    %484 = arith.addf %481, %483 : vector<8x32xf32>
    %485 = vector.extract_strided_slice %477 {offsets = [0, 64], sizes = [8, 32], strides = [1, 1]} : vector<8x96xf32> to vector<8x32xf32>
    %486 = math.tanh %484 : vector<8x32xf32>
    %487 = arith.mulf %485, %486 : vector<8x32xf32>
    %488 = arith.truncf %487 : vector<8x32xf32> to vector<8x32xbf16>
    %c32_150 = arith.constant 32 : index
    %c0_151 = arith.constant 0 : index
    %489 = vector.load %arg25[%c32_150, %c0_151] : memref<144x32xf32, #tpu.memory_space<vmem>>, vector<8x32xf32>
    tpu.vector_store %arg25[%c32_150, %c0_151], %487 {strides = array<i32>} : memref<144x32xf32, #tpu.memory_space<vmem>>, vector<8x32xf32>,
    %c32_152 = arith.constant 32 : index
    %c0_153 = arith.constant 0 : index
    %490 = vector.load %arg24[%c32_152, %c0_153] : memref<128x128xf32, #tpu.memory_space<vmem>>, vector<8x128xf32>
    %cst_154 = arith.constant dense<0.000000e+00> : vector<8x128xf32>
    %491 = tpu.matmul %488, %402, %cst_154 {dimension_numbers = #tpu.dot_dimension_numbers<[1], [0], [0], [1], [0, 0, 1, 1], [], []>} : vector<8x32xbf16>, vector<32x128xbf16>, vector<8x128xf32> -> vector<8x128xf32>
    %492 = arith.addf %490, %491 : vector<8x128xf32>
    %493 = vector.extract_strided_slice %492 {offsets = [0, 0], sizes = [8, 96], strides = [1, 1]} : vector<8x128xf32> to vector<8x96xf32>
    %494 = arith.negf %493 : vector<8x96xf32>
    %495 = math.exp %494 : vector<8x96xf32>
    %cst_155 = arith.constant 1.000000e+00 : f32
    %496 = vector.broadcast %cst_155 : f32 to vector<8x96xf32>
    %497 = arith.addf %496, %495 : vector<8x96xf32>
    %498 = arith.divf %496, %497 : vector<8x96xf32>
    %499 = vector.extract_strided_slice %492 {offsets = [0, 96], sizes = [8, 32], strides = [1, 1]} : vector<8x128xf32> to vector<8x32xf32>
    %500 = math.tanh %499 : vector<8x32xf32>
    %501 = vector.extract_strided_slice %498 {offsets = [0, 32], sizes = [8, 32], strides = [1, 1]} : vector<8x96xf32> to vector<8x32xf32>
    %502 = arith.mulf %501, %484 : vector<8x32xf32>
    %503 = vector.extract_strided_slice %498 {offsets = [0, 0], sizes = [8, 32], strides = [1, 1]} : vector<8x96xf32> to vector<8x32xf32>
    %504 = arith.mulf %503, %500 : vector<8x32xf32>
    %505 = arith.addf %502, %504 : vector<8x32xf32>
    %506 = vector.extract_strided_slice %498 {offsets = [0, 64], sizes = [8, 32], strides = [1, 1]} : vector<8x96xf32> to vector<8x32xf32>
    %507 = math.tanh %505 : vector<8x32xf32>
    %508 = arith.mulf %506, %507 : vector<8x32xf32>
    %509 = arith.truncf %508 : vector<8x32xf32> to vector<8x32xbf16>
    %c40_156 = arith.constant 40 : index
    %c0_157 = arith.constant 0 : index
    %510 = vector.load %arg25[%c40_156, %c0_157] : memref<144x32xf32, #tpu.memory_space<vmem>>, vector<8x32xf32>
    tpu.vector_store %arg25[%c40_156, %c0_157], %508 {strides = array<i32>} : memref<144x32xf32, #tpu.memory_space<vmem>>, vector<8x32xf32>,
    %c40_158 = arith.constant 40 : index
    %c0_159 = arith.constant 0 : index
    %511 = vector.load %arg24[%c40_158, %c0_159] : memref<128x128xf32, #tpu.memory_space<vmem>>, vector<8x128xf32>
    %cst_160 = arith.constant dense<0.000000e+00> : vector<8x128xf32>
    %512 = tpu.matmul %509, %402, %cst_160 {dimension_numbers = #tpu.dot_dimension_numbers<[1], [0], [0], [1], [0, 0, 1, 1], [], []>} : vector<8x32xbf16>, vector<32x128xbf16>, vector<8x128xf32> -> vector<8x128xf32>
    %513 = arith.addf %511, %512 : vector<8x128xf32>
    %514 = vector.extract_strided_slice %513 {offsets = [0, 0], sizes = [8, 96], strides = [1, 1]} : vector<8x128xf32> to vector<8x96xf32>
    %515 = arith.negf %514 : vector<8x96xf32>
    %516 = math.exp %515 : vector<8x96xf32>
    %cst_161 = arith.constant 1.000000e+00 : f32
    %517 = vector.broadcast %cst_161 : f32 to vector<8x96xf32>
    %518 = arith.addf %517, %516 : vector<8x96xf32>
    %519 = arith.divf %517, %518 : vector<8x96xf32>
    %520 = vector.extract_strided_slice %513 {offsets = [0, 96], sizes = [8, 32], strides = [1, 1]} : vector<8x128xf32> to vector<8x32xf32>
    %521 = math.tanh %520 : vector<8x32xf32>
    %522 = vector.extract_strided_slice %519 {offsets = [0, 32], sizes = [8, 32], strides = [1, 1]} : vector<8x96xf32> to vector<8x32xf32>
    %523 = arith.mulf %522, %505 : vector<8x32xf32>
    %524 = vector.extract_strided_slice %519 {offsets = [0, 0], sizes = [8, 32], strides = [1, 1]} : vector<8x96xf32> to vector<8x32xf32>
    %525 = arith.mulf %524, %521 : vector<8x32xf32>
    %526 = arith.addf %523, %525 : vector<8x32xf32>
    %527 = vector.extract_strided_slice %519 {offsets = [0, 64], sizes = [8, 32], strides = [1, 1]} : vector<8x96xf32> to vector<8x32xf32>
    %528 = math.tanh %526 : vector<8x32xf32>
    %529 = arith.mulf %527, %528 : vector<8x32xf32>
    %530 = arith.truncf %529 : vector<8x32xf32> to vector<8x32xbf16>
    %c48_162 = arith.constant 48 : index
    %c0_163 = arith.constant 0 : index
    %531 = vector.load %arg25[%c48_162, %c0_163] : memref<144x32xf32, #tpu.memory_space<vmem>>, vector<8x32xf32>
    tpu.vector_store %arg25[%c48_162, %c0_163], %529 {strides = array<i32>} : memref<144x32xf32, #tpu.memory_space<vmem>>, vector<8x32xf32>,
    %c48_164 = arith.constant 48 : index
    %c0_165 = arith.constant 0 : index
    %532 = vector.load %arg24[%c48_164, %c0_165] : memref<128x128xf32, #tpu.memory_space<vmem>>, vector<8x128xf32>
    %cst_166 = arith.constant dense<0.000000e+00> : vector<8x128xf32>
    %533 = tpu.matmul %530, %402, %cst_166 {dimension_numbers = #tpu.dot_dimension_numbers<[1], [0], [0], [1], [0, 0, 1, 1], [], []>} : vector<8x32xbf16>, vector<32x128xbf16>, vector<8x128xf32> -> vector<8x128xf32>
    %534 = arith.addf %532, %533 : vector<8x128xf32>
    %535 = vector.extract_strided_slice %534 {offsets = [0, 0], sizes = [8, 96], strides = [1, 1]} : vector<8x128xf32> to vector<8x96xf32>
    %536 = arith.negf %535 : vector<8x96xf32>
    %537 = math.exp %536 : vector<8x96xf32>
    %cst_167 = arith.constant 1.000000e+00 : f32
    %538 = vector.broadcast %cst_167 : f32 to vector<8x96xf32>
    %539 = arith.addf %538, %537 : vector<8x96xf32>
    %540 = arith.divf %538, %539 : vector<8x96xf32>
    %541 = vector.extract_strided_slice %534 {offsets = [0, 96], sizes = [8, 32], strides = [1, 1]} : vector<8x128xf32> to vector<8x32xf32>
    %542 = math.tanh %541 : vector<8x32xf32>
    %543 = vector.extract_strided_slice %540 {offsets = [0, 32], sizes = [8, 32], strides = [1, 1]} : vector<8x96xf32> to vector<8x32xf32>
    %544 = arith.mulf %543, %526 : vector<8x32xf32>
    %545 = vector.extract_strided_slice %540 {offsets = [0, 0], sizes = [8, 32], strides = [1, 1]} : vector<8x96xf32> to vector<8x32xf32>
    %546 = arith.mulf %545, %542 : vector<8x32xf32>
    %547 = arith.addf %544, %546 : vector<8x32xf32>
    %548 = vector.extract_strided_slice %540 {offsets = [0, 64], sizes = [8, 32], strides = [1, 1]} : vector<8x96xf32> to vector<8x32xf32>
    %549 = math.tanh %547 : vector<8x32xf32>
    %550 = arith.mulf %548, %549 : vector<8x32xf32>
    %551 = arith.truncf %550 : vector<8x32xf32> to vector<8x32xbf16>
    %c56_168 = arith.constant 56 : index
    %c0_169 = arith.constant 0 : index
    %552 = vector.load %arg25[%c56_168, %c0_169] : memref<144x32xf32, #tpu.memory_space<vmem>>, vector<8x32xf32>
    tpu.vector_store %arg25[%c56_168, %c0_169], %550 {strides = array<i32>} : memref<144x32xf32, #tpu.memory_space<vmem>>, vector<8x32xf32>,
    %c56_170 = arith.constant 56 : index
    %c0_171 = arith.constant 0 : index
    %553 = vector.load %arg24[%c56_170, %c0_171] : memref<128x128xf32, #tpu.memory_space<vmem>>, vector<8x128xf32>
    %cst_172 = arith.constant dense<0.000000e+00> : vector<8x128xf32>
    %554 = tpu.matmul %551, %402, %cst_172 {dimension_numbers = #tpu.dot_dimension_numbers<[1], [0], [0], [1], [0, 0, 1, 1], [], []>} : vector<8x32xbf16>, vector<32x128xbf16>, vector<8x128xf32> -> vector<8x128xf32>
    %555 = arith.addf %553, %554 : vector<8x128xf32>
    %556 = vector.extract_strided_slice %555 {offsets = [0, 0], sizes = [8, 96], strides = [1, 1]} : vector<8x128xf32> to vector<8x96xf32>
    %557 = arith.negf %556 : vector<8x96xf32>
    %558 = math.exp %557 : vector<8x96xf32>
    %cst_173 = arith.constant 1.000000e+00 : f32
    %559 = vector.broadcast %cst_173 : f32 to vector<8x96xf32>
    %560 = arith.addf %559, %558 : vector<8x96xf32>
    %561 = arith.divf %559, %560 : vector<8x96xf32>
    %562 = vector.extract_strided_slice %555 {offsets = [0, 96], sizes = [8, 32], strides = [1, 1]} : vector<8x128xf32> to vector<8x32xf32>
    %563 = math.tanh %562 : vector<8x32xf32>
    %564 = vector.extract_strided_slice %561 {offsets = [0, 32], sizes = [8, 32], strides = [1, 1]} : vector<8x96xf32> to vector<8x32xf32>
    %565 = arith.mulf %564, %547 : vector<8x32xf32>
    %566 = vector.extract_strided_slice %561 {offsets = [0, 0], sizes = [8, 32], strides = [1, 1]} : vector<8x96xf32> to vector<8x32xf32>
    %567 = arith.mulf %566, %563 : vector<8x32xf32>
    %568 = arith.addf %565, %567 : vector<8x32xf32>
    %569 = vector.extract_strided_slice %561 {offsets = [0, 64], sizes = [8, 32], strides = [1, 1]} : vector<8x96xf32> to vector<8x32xf32>
    %570 = math.tanh %568 : vector<8x32xf32>
    %571 = arith.mulf %569, %570 : vector<8x32xf32>
    %572 = arith.truncf %571 : vector<8x32xf32> to vector<8x32xbf16>
    %c64_174 = arith.constant 64 : index
    %c0_175 = arith.constant 0 : index
    %573 = vector.load %arg25[%c64_174, %c0_175] : memref<144x32xf32, #tpu.memory_space<vmem>>, vector<8x32xf32>
    tpu.vector_store %arg25[%c64_174, %c0_175], %571 {strides = array<i32>} : memref<144x32xf32, #tpu.memory_space<vmem>>, vector<8x32xf32>,
    %c64_176 = arith.constant 64 : index
    %c0_177 = arith.constant 0 : index
    %574 = vector.load %arg24[%c64_176, %c0_177] : memref<128x128xf32, #tpu.memory_space<vmem>>, vector<8x128xf32>
    %cst_178 = arith.constant dense<0.000000e+00> : vector<8x128xf32>
    %575 = tpu.matmul %572, %402, %cst_178 {dimension_numbers = #tpu.dot_dimension_numbers<[1], [0], [0], [1], [0, 0, 1, 1], [], []>} : vector<8x32xbf16>, vector<32x128xbf16>, vector<8x128xf32> -> vector<8x128xf32>
    %576 = arith.addf %574, %575 : vector<8x128xf32>
    %577 = vector.extract_strided_slice %576 {offsets = [0, 0], sizes = [8, 96], strides = [1, 1]} : vector<8x128xf32> to vector<8x96xf32>
    %578 = arith.negf %577 : vector<8x96xf32>
    %579 = math.exp %578 : vector<8x96xf32>
    %cst_179 = arith.constant 1.000000e+00 : f32
    %580 = vector.broadcast %cst_179 : f32 to vector<8x96xf32>
    %581 = arith.addf %580, %579 : vector<8x96xf32>
    %582 = arith.divf %580, %581 : vector<8x96xf32>
    %583 = vector.extract_strided_slice %576 {offsets = [0, 96], sizes = [8, 32], strides = [1, 1]} : vector<8x128xf32> to vector<8x32xf32>
    %584 = math.tanh %583 : vector<8x32xf32>
    %585 = vector.extract_strided_slice %582 {offsets = [0, 32], sizes = [8, 32], strides = [1, 1]} : vector<8x96xf32> to vector<8x32xf32>
    %586 = arith.mulf %585, %568 : vector<8x32xf32>
    %587 = vector.extract_strided_slice %582 {offsets = [0, 0], sizes = [8, 32], strides = [1, 1]} : vector<8x96xf32> to vector<8x32xf32>
    %588 = arith.mulf %587, %584 : vector<8x32xf32>
    %589 = arith.addf %586, %588 : vector<8x32xf32>
    %590 = vector.extract_strided_slice %582 {offsets = [0, 64], sizes = [8, 32], strides = [1, 1]} : vector<8x96xf32> to vector<8x32xf32>
    %591 = math.tanh %589 : vector<8x32xf32>
    %592 = arith.mulf %590, %591 : vector<8x32xf32>
    %593 = arith.truncf %592 : vector<8x32xf32> to vector<8x32xbf16>
    %c72_180 = arith.constant 72 : index
    %c0_181 = arith.constant 0 : index
    %594 = vector.load %arg25[%c72_180, %c0_181] : memref<144x32xf32, #tpu.memory_space<vmem>>, vector<8x32xf32>
    tpu.vector_store %arg25[%c72_180, %c0_181], %592 {strides = array<i32>} : memref<144x32xf32, #tpu.memory_space<vmem>>, vector<8x32xf32>,
    %c72_182 = arith.constant 72 : index
    %c0_183 = arith.constant 0 : index
    %595 = vector.load %arg24[%c72_182, %c0_183] : memref<128x128xf32, #tpu.memory_space<vmem>>, vector<8x128xf32>
    %cst_184 = arith.constant dense<0.000000e+00> : vector<8x128xf32>
    %596 = tpu.matmul %593, %402, %cst_184 {dimension_numbers = #tpu.dot_dimension_numbers<[1], [0], [0], [1], [0, 0, 1, 1], [], []>} : vector<8x32xbf16>, vector<32x128xbf16>, vector<8x128xf32> -> vector<8x128xf32>
    %597 = arith.addf %595, %596 : vector<8x128xf32>
    %598 = vector.extract_strided_slice %597 {offsets = [0, 0], sizes = [8, 96], strides = [1, 1]} : vector<8x128xf32> to vector<8x96xf32>
    %599 = arith.negf %598 : vector<8x96xf32>
    %600 = math.exp %599 : vector<8x96xf32>
    %cst_185 = arith.constant 1.000000e+00 : f32
    %601 = vector.broadcast %cst_185 : f32 to vector<8x96xf32>
    %602 = arith.addf %601, %600 : vector<8x96xf32>
    %603 = arith.divf %601, %602 : vector<8x96xf32>
    %604 = vector.extract_strided_slice %597 {offsets = [0, 96], sizes = [8, 32], strides = [1, 1]} : vector<8x128xf32> to vector<8x32xf32>
    %605 = math.tanh %604 : vector<8x32xf32>
    %606 = vector.extract_strided_slice %603 {offsets = [0, 32], sizes = [8, 32], strides = [1, 1]} : vector<8x96xf32> to vector<8x32xf32>
    %607 = arith.mulf %606, %589 : vector<8x32xf32>
    %608 = vector.extract_strided_slice %603 {offsets = [0, 0], sizes = [8, 32], strides = [1, 1]} : vector<8x96xf32> to vector<8x32xf32>
    %609 = arith.mulf %608, %605 : vector<8x32xf32>
    %610 = arith.addf %607, %609 : vector<8x32xf32>
    %611 = vector.extract_strided_slice %603 {offsets = [0, 64], sizes = [8, 32], strides = [1, 1]} : vector<8x96xf32> to vector<8x32xf32>
    %612 = math.tanh %610 : vector<8x32xf32>
    %613 = arith.mulf %611, %612 : vector<8x32xf32>
    %614 = arith.truncf %613 : vector<8x32xf32> to vector<8x32xbf16>
    %c80_186 = arith.constant 80 : index
    %c0_187 = arith.constant 0 : index
    %615 = vector.load %arg25[%c80_186, %c0_187] : memref<144x32xf32, #tpu.memory_space<vmem>>, vector<8x32xf32>
    tpu.vector_store %arg25[%c80_186, %c0_187], %613 {strides = array<i32>} : memref<144x32xf32, #tpu.memory_space<vmem>>, vector<8x32xf32>,
    %c80_188 = arith.constant 80 : index
    %c0_189 = arith.constant 0 : index
    %616 = vector.load %arg24[%c80_188, %c0_189] : memref<128x128xf32, #tpu.memory_space<vmem>>, vector<8x128xf32>
    %cst_190 = arith.constant dense<0.000000e+00> : vector<8x128xf32>
    %617 = tpu.matmul %614, %402, %cst_190 {dimension_numbers = #tpu.dot_dimension_numbers<[1], [0], [0], [1], [0, 0, 1, 1], [], []>} : vector<8x32xbf16>, vector<32x128xbf16>, vector<8x128xf32> -> vector<8x128xf32>
    %618 = arith.addf %616, %617 : vector<8x128xf32>
    %619 = vector.extract_strided_slice %618 {offsets = [0, 0], sizes = [8, 96], strides = [1, 1]} : vector<8x128xf32> to vector<8x96xf32>
    %620 = arith.negf %619 : vector<8x96xf32>
    %621 = math.exp %620 : vector<8x96xf32>
    %cst_191 = arith.constant 1.000000e+00 : f32
    %622 = vector.broadcast %cst_191 : f32 to vector<8x96xf32>
    %623 = arith.addf %622, %621 : vector<8x96xf32>
    %624 = arith.divf %622, %623 : vector<8x96xf32>
    %625 = vector.extract_strided_slice %618 {offsets = [0, 96], sizes = [8, 32], strides = [1, 1]} : vector<8x128xf32> to vector<8x32xf32>
    %626 = math.tanh %625 : vector<8x32xf32>
    %627 = vector.extract_strided_slice %624 {offsets = [0, 32], sizes = [8, 32], strides = [1, 1]} : vector<8x96xf32> to vector<8x32xf32>
    %628 = arith.mulf %627, %610 : vector<8x32xf32>
    %629 = vector.extract_strided_slice %624 {offsets = [0, 0], sizes = [8, 32], strides = [1, 1]} : vector<8x96xf32> to vector<8x32xf32>
    %630 = arith.mulf %629, %626 : vector<8x32xf32>
    %631 = arith.addf %628, %630 : vector<8x32xf32>
    %632 = vector.extract_strided_slice %624 {offsets = [0, 64], sizes = [8, 32], strides = [1, 1]} : vector<8x96xf32> to vector<8x32xf32>
    %633 = math.tanh %631 : vector<8x32xf32>
    %634 = arith.mulf %632, %633 : vector<8x32xf32>
    %635 = arith.truncf %634 : vector<8x32xf32> to vector<8x32xbf16>
    %c88_192 = arith.constant 88 : index
    %c0_193 = arith.constant 0 : index
    %636 = vector.load %arg25[%c88_192, %c0_193] : memref<144x32xf32, #tpu.memory_space<vmem>>, vector<8x32xf32>
    tpu.vector_store %arg25[%c88_192, %c0_193], %634 {strides = array<i32>} : memref<144x32xf32, #tpu.memory_space<vmem>>, vector<8x32xf32>,
    %c88_194 = arith.constant 88 : index
    %c0_195 = arith.constant 0 : index
    %637 = vector.load %arg24[%c88_194, %c0_195] : memref<128x128xf32, #tpu.memory_space<vmem>>, vector<8x128xf32>
    %cst_196 = arith.constant dense<0.000000e+00> : vector<8x128xf32>
    %638 = tpu.matmul %635, %402, %cst_196 {dimension_numbers = #tpu.dot_dimension_numbers<[1], [0], [0], [1], [0, 0, 1, 1], [], []>} : vector<8x32xbf16>, vector<32x128xbf16>, vector<8x128xf32> -> vector<8x128xf32>
    %639 = arith.addf %637, %638 : vector<8x128xf32>
    %640 = vector.extract_strided_slice %639 {offsets = [0, 0], sizes = [8, 96], strides = [1, 1]} : vector<8x128xf32> to vector<8x96xf32>
    %641 = arith.negf %640 : vector<8x96xf32>
    %642 = math.exp %641 : vector<8x96xf32>
    %cst_197 = arith.constant 1.000000e+00 : f32
    %643 = vector.broadcast %cst_197 : f32 to vector<8x96xf32>
    %644 = arith.addf %643, %642 : vector<8x96xf32>
    %645 = arith.divf %643, %644 : vector<8x96xf32>
    %646 = vector.extract_strided_slice %639 {offsets = [0, 96], sizes = [8, 32], strides = [1, 1]} : vector<8x128xf32> to vector<8x32xf32>
    %647 = math.tanh %646 : vector<8x32xf32>
    %648 = vector.extract_strided_slice %645 {offsets = [0, 32], sizes = [8, 32], strides = [1, 1]} : vector<8x96xf32> to vector<8x32xf32>
    %649 = arith.mulf %648, %631 : vector<8x32xf32>
    %650 = vector.extract_strided_slice %645 {offsets = [0, 0], sizes = [8, 32], strides = [1, 1]} : vector<8x96xf32> to vector<8x32xf32>
    %651 = arith.mulf %650, %647 : vector<8x32xf32>
    %652 = arith.addf %649, %651 : vector<8x32xf32>
    %653 = vector.extract_strided_slice %645 {offsets = [0, 64], sizes = [8, 32], strides = [1, 1]} : vector<8x96xf32> to vector<8x32xf32>
    %654 = math.tanh %652 : vector<8x32xf32>
    %655 = arith.mulf %653, %654 : vector<8x32xf32>
    %656 = arith.truncf %655 : vector<8x32xf32> to vector<8x32xbf16>
    %c96_198 = arith.constant 96 : index
    %c0_199 = arith.constant 0 : index
    %657 = vector.load %arg25[%c96_198, %c0_199] : memref<144x32xf32, #tpu.memory_space<vmem>>, vector<8x32xf32>
    tpu.vector_store %arg25[%c96_198, %c0_199], %655 {strides = array<i32>} : memref<144x32xf32, #tpu.memory_space<vmem>>, vector<8x32xf32>,
    %c96_200 = arith.constant 96 : index
    %c0_201 = arith.constant 0 : index
    %658 = vector.load %arg24[%c96_200, %c0_201] : memref<128x128xf32, #tpu.memory_space<vmem>>, vector<8x128xf32>
    %cst_202 = arith.constant dense<0.000000e+00> : vector<8x128xf32>
    %659 = tpu.matmul %656, %402, %cst_202 {dimension_numbers = #tpu.dot_dimension_numbers<[1], [0], [0], [1], [0, 0, 1, 1], [], []>} : vector<8x32xbf16>, vector<32x128xbf16>, vector<8x128xf32> -> vector<8x128xf32>
    %660 = arith.addf %658, %659 : vector<8x128xf32>
    %661 = vector.extract_strided_slice %660 {offsets = [0, 0], sizes = [8, 96], strides = [1, 1]} : vector<8x128xf32> to vector<8x96xf32>
    %662 = arith.negf %661 : vector<8x96xf32>
    %663 = math.exp %662 : vector<8x96xf32>
    %cst_203 = arith.constant 1.000000e+00 : f32
    %664 = vector.broadcast %cst_203 : f32 to vector<8x96xf32>
    %665 = arith.addf %664, %663 : vector<8x96xf32>
    %666 = arith.divf %664, %665 : vector<8x96xf32>
    %667 = vector.extract_strided_slice %660 {offsets = [0, 96], sizes = [8, 32], strides = [1, 1]} : vector<8x128xf32> to vector<8x32xf32>
    %668 = math.tanh %667 : vector<8x32xf32>
    %669 = vector.extract_strided_slice %666 {offsets = [0, 32], sizes = [8, 32], strides = [1, 1]} : vector<8x96xf32> to vector<8x32xf32>
    %670 = arith.mulf %669, %652 : vector<8x32xf32>
    %671 = vector.extract_strided_slice %666 {offsets = [0, 0], sizes = [8, 32], strides = [1, 1]} : vector<8x96xf32> to vector<8x32xf32>
    %672 = arith.mulf %671, %668 : vector<8x32xf32>
    %673 = arith.addf %670, %672 : vector<8x32xf32>
    %674 = vector.extract_strided_slice %666 {offsets = [0, 64], sizes = [8, 32], strides = [1, 1]} : vector<8x96xf32> to vector<8x32xf32>
    %675 = math.tanh %673 : vector<8x32xf32>
    %676 = arith.mulf %674, %675 : vector<8x32xf32>
    %677 = arith.truncf %676 : vector<8x32xf32> to vector<8x32xbf16>
    %c104_204 = arith.constant 104 : index
    %c0_205 = arith.constant 0 : index
    %678 = vector.load %arg25[%c104_204, %c0_205] : memref<144x32xf32, #tpu.memory_space<vmem>>, vector<8x32xf32>
    tpu.vector_store %arg25[%c104_204, %c0_205], %676 {strides = array<i32>} : memref<144x32xf32, #tpu.memory_space<vmem>>, vector<8x32xf32>,
    %c104_206 = arith.constant 104 : index
    %c0_207 = arith.constant 0 : index
    %679 = vector.load %arg24[%c104_206, %c0_207] : memref<128x128xf32, #tpu.memory_space<vmem>>, vector<8x128xf32>
    %cst_208 = arith.constant dense<0.000000e+00> : vector<8x128xf32>
    %680 = tpu.matmul %677, %402, %cst_208 {dimension_numbers = #tpu.dot_dimension_numbers<[1], [0], [0], [1], [0, 0, 1, 1], [], []>} : vector<8x32xbf16>, vector<32x128xbf16>, vector<8x128xf32> -> vector<8x128xf32>
    %681 = arith.addf %679, %680 : vector<8x128xf32>
    %682 = vector.extract_strided_slice %681 {offsets = [0, 0], sizes = [8, 96], strides = [1, 1]} : vector<8x128xf32> to vector<8x96xf32>
    %683 = arith.negf %682 : vector<8x96xf32>
    %684 = math.exp %683 : vector<8x96xf32>
    %cst_209 = arith.constant 1.000000e+00 : f32
    %685 = vector.broadcast %cst_209 : f32 to vector<8x96xf32>
    %686 = arith.addf %685, %684 : vector<8x96xf32>
    %687 = arith.divf %685, %686 : vector<8x96xf32>
    %688 = vector.extract_strided_slice %681 {offsets = [0, 96], sizes = [8, 32], strides = [1, 1]} : vector<8x128xf32> to vector<8x32xf32>
    %689 = math.tanh %688 : vector<8x32xf32>
    %690 = vector.extract_strided_slice %687 {offsets = [0, 32], sizes = [8, 32], strides = [1, 1]} : vector<8x96xf32> to vector<8x32xf32>
    %691 = arith.mulf %690, %673 : vector<8x32xf32>
    %692 = vector.extract_strided_slice %687 {offsets = [0, 0], sizes = [8, 32], strides = [1, 1]} : vector<8x96xf32> to vector<8x32xf32>
    %693 = arith.mulf %692, %689 : vector<8x32xf32>
    %694 = arith.addf %691, %693 : vector<8x32xf32>
    %695 = vector.extract_strided_slice %687 {offsets = [0, 64], sizes = [8, 32], strides = [1, 1]} : vector<8x96xf32> to vector<8x32xf32>
    %696 = math.tanh %694 : vector<8x32xf32>
    %697 = arith.mulf %695, %696 : vector<8x32xf32>
    %698 = arith.truncf %697 : vector<8x32xf32> to vector<8x32xbf16>
    %c112_210 = arith.constant 112 : index
    %c0_211 = arith.constant 0 : index
    %699 = vector.load %arg25[%c112_210, %c0_211] : memref<144x32xf32, #tpu.memory_space<vmem>>, vector<8x32xf32>
    tpu.vector_store %arg25[%c112_210, %c0_211], %697 {strides = array<i32>} : memref<144x32xf32, #tpu.memory_space<vmem>>, vector<8x32xf32>,
    %c112_212 = arith.constant 112 : index
    %c0_213 = arith.constant 0 : index
    %700 = vector.load %arg24[%c112_212, %c0_213] : memref<128x128xf32, #tpu.memory_space<vmem>>, vector<8x128xf32>
    %cst_214 = arith.constant dense<0.000000e+00> : vector<8x128xf32>
    %701 = tpu.matmul %698, %402, %cst_214 {dimension_numbers = #tpu.dot_dimension_numbers<[1], [0], [0], [1], [0, 0, 1, 1], [], []>} : vector<8x32xbf16>, vector<32x128xbf16>, vector<8x128xf32> -> vector<8x128xf32>
    %702 = arith.addf %700, %701 : vector<8x128xf32>
    %703 = vector.extract_strided_slice %702 {offsets = [0, 0], sizes = [8, 96], strides = [1, 1]} : vector<8x128xf32> to vector<8x96xf32>
    %704 = arith.negf %703 : vector<8x96xf32>
    %705 = math.exp %704 : vector<8x96xf32>
    %cst_215 = arith.constant 1.000000e+00 : f32
    %706 = vector.broadcast %cst_215 : f32 to vector<8x96xf32>
    %707 = arith.addf %706, %705 : vector<8x96xf32>
    %708 = arith.divf %706, %707 : vector<8x96xf32>
    %709 = vector.extract_strided_slice %702 {offsets = [0, 96], sizes = [8, 32], strides = [1, 1]} : vector<8x128xf32> to vector<8x32xf32>
    %710 = math.tanh %709 : vector<8x32xf32>
    %711 = vector.extract_strided_slice %708 {offsets = [0, 32], sizes = [8, 32], strides = [1, 1]} : vector<8x96xf32> to vector<8x32xf32>
    %712 = arith.mulf %711, %694 : vector<8x32xf32>
    %713 = vector.extract_strided_slice %708 {offsets = [0, 0], sizes = [8, 32], strides = [1, 1]} : vector<8x96xf32> to vector<8x32xf32>
    %714 = arith.mulf %713, %710 : vector<8x32xf32>
    %715 = arith.addf %712, %714 : vector<8x32xf32>
    %716 = vector.extract_strided_slice %708 {offsets = [0, 64], sizes = [8, 32], strides = [1, 1]} : vector<8x96xf32> to vector<8x32xf32>
    %717 = math.tanh %715 : vector<8x32xf32>
    %718 = arith.mulf %716, %717 : vector<8x32xf32>
    %719 = arith.truncf %718 : vector<8x32xf32> to vector<8x32xbf16>
    %c120_216 = arith.constant 120 : index
    %c0_217 = arith.constant 0 : index
    %720 = vector.load %arg25[%c120_216, %c0_217] : memref<144x32xf32, #tpu.memory_space<vmem>>, vector<8x32xf32>
    tpu.vector_store %arg25[%c120_216, %c0_217], %718 {strides = array<i32>} : memref<144x32xf32, #tpu.memory_space<vmem>>, vector<8x32xf32>,
    %c120_218 = arith.constant 120 : index
    %c0_219 = arith.constant 0 : index
    %721 = vector.load %arg24[%c120_218, %c0_219] : memref<128x128xf32, #tpu.memory_space<vmem>>, vector<8x128xf32>
    %cst_220 = arith.constant dense<0.000000e+00> : vector<8x128xf32>
    %722 = tpu.matmul %719, %402, %cst_220 {dimension_numbers = #tpu.dot_dimension_numbers<[1], [0], [0], [1], [0, 0, 1, 1], [], []>} : vector<8x32xbf16>, vector<32x128xbf16>, vector<8x128xf32> -> vector<8x128xf32>
    %723 = arith.addf %721, %722 : vector<8x128xf32>
    %724 = vector.extract_strided_slice %723 {offsets = [0, 0], sizes = [8, 96], strides = [1, 1]} : vector<8x128xf32> to vector<8x96xf32>
    %725 = arith.negf %724 : vector<8x96xf32>
    %726 = math.exp %725 : vector<8x96xf32>
    %cst_221 = arith.constant 1.000000e+00 : f32
    %727 = vector.broadcast %cst_221 : f32 to vector<8x96xf32>
    %728 = arith.addf %727, %726 : vector<8x96xf32>
    %729 = arith.divf %727, %728 : vector<8x96xf32>
    %730 = vector.extract_strided_slice %723 {offsets = [0, 96], sizes = [8, 32], strides = [1, 1]} : vector<8x128xf32> to vector<8x32xf32>
    %731 = math.tanh %730 : vector<8x32xf32>
    %732 = vector.extract_strided_slice %729 {offsets = [0, 32], sizes = [8, 32], strides = [1, 1]} : vector<8x96xf32> to vector<8x32xf32>
    %733 = arith.mulf %732, %715 : vector<8x32xf32>
    %734 = vector.extract_strided_slice %729 {offsets = [0, 0], sizes = [8, 32], strides = [1, 1]} : vector<8x96xf32> to vector<8x32xf32>
    %735 = arith.mulf %734, %731 : vector<8x32xf32>
    %736 = arith.addf %733, %735 : vector<8x32xf32>
    %737 = vector.extract_strided_slice %729 {offsets = [0, 64], sizes = [8, 32], strides = [1, 1]} : vector<8x96xf32> to vector<8x32xf32>
    %738 = math.tanh %736 : vector<8x32xf32>
    %739 = arith.mulf %737, %738 : vector<8x32xf32>
    %c128 = arith.constant 128 : index
    %c0_222 = arith.constant 0 : index
    %740 = vector.load %arg25[%c128, %c0_222] : memref<144x32xf32, #tpu.memory_space<vmem>>, vector<8x32xf32>
    tpu.vector_store %arg25[%c128, %c0_222], %739 {strides = array<i32>} : memref<144x32xf32, #tpu.memory_space<vmem>>, vector<8x32xf32>,
    %c0_223 = arith.constant 0 : index
    %c0_224 = arith.constant 0 : index
    %741 = vector.load %arg15[%c0_223, %c0_224] : memref<128x32xf32, #tpu.memory_space<vmem>>, vector<128x32xf32>
    %c0_225 = arith.constant 0 : index
    %c0_226 = arith.constant 0 : index
    %742 = vector.load %arg16[%c0_225, %c0_226] : memref<128x32xf32, #tpu.memory_space<vmem>>, vector<128x32xf32>
    %c0_227 = arith.constant 0 : index
    %c0_228 = arith.constant 0 : index
    %743 = vector.load %arg25[%c0_227, %c0_228] : memref<144x32xf32, #tpu.memory_space<vmem>>, vector<128x32xf32>
    %c0_229 = arith.constant 0 : index
    %c0_230 = arith.constant 0 : index
    %c0_231 = arith.constant 0 : index
    %744 = vector.load %arg11[%c0_229, %c0_230, %c0_231] : memref<3x32x32xf32, #tpu.memory_space<vmem>>, vector<1x32x32xf32>
    %745 = vector.shape_cast %744 : vector<1x32x32xf32> to vector<32x32xf32>
    %cst_232 = arith.constant dense<0.000000e+00> : vector<128x32xf32>
    %746 = tpu.matmul %743, %745, %cst_232 {dimension_numbers = #tpu.dot_dimension_numbers<[1], [0], [0], [1], [0, 0, 1, 1], [], []>} : vector<128x32xf32>, vector<32x32xf32>, vector<128x32xf32> -> vector<128x32xf32>
    %c8_233 = arith.constant 8 : index
    %c0_234 = arith.constant 0 : index
    %747 = vector.load %arg25[%c8_233, %c0_234] : memref<144x32xf32, #tpu.memory_space<vmem>>, vector<128x32xf32>
    %c1 = arith.constant 1 : index
    %c0_235 = arith.constant 0 : index
    %c0_236 = arith.constant 0 : index
    %748 = vector.load %arg11[%c1, %c0_235, %c0_236] : memref<3x32x32xf32, #tpu.memory_space<vmem>>, vector<1x32x32xf32>
    %749 = vector.shape_cast %748 : vector<1x32x32xf32> to vector<32x32xf32>
    %cst_237 = arith.constant dense<0.000000e+00> : vector<128x32xf32>
    %750 = tpu.matmul %747, %749, %cst_237 {dimension_numbers = #tpu.dot_dimension_numbers<[1], [0], [0], [1], [0, 0, 1, 1], [], []>} : vector<128x32xf32>, vector<32x32xf32>, vector<128x32xf32> -> vector<128x32xf32>
    %751 = arith.addf %746, %750 : vector<128x32xf32>
    %c16_238 = arith.constant 16 : index
    %c0_239 = arith.constant 0 : index
    %752 = vector.load %arg25[%c16_238, %c0_239] : memref<144x32xf32, #tpu.memory_space<vmem>>, vector<128x32xf32>
    %c2 = arith.constant 2 : index
    %c0_240 = arith.constant 0 : index
    %c0_241 = arith.constant 0 : index
    %753 = vector.load %arg11[%c2, %c0_240, %c0_241] : memref<3x32x32xf32, #tpu.memory_space<vmem>>, vector<1x32x32xf32>
    %754 = vector.shape_cast %753 : vector<1x32x32xf32> to vector<32x32xf32>
    %cst_242 = arith.constant dense<0.000000e+00> : vector<128x32xf32>
    %755 = tpu.matmul %752, %754, %cst_242 {dimension_numbers = #tpu.dot_dimension_numbers<[1], [0], [0], [1], [0, 0, 1, 1], [], []>} : vector<128x32xf32>, vector<32x32xf32>, vector<128x32xf32> -> vector<128x32xf32>
    %756 = arith.addf %751, %755 : vector<128x32xf32>
    %c0_243 = arith.constant 0 : index
    %c0_244 = arith.constant 0 : index
    %757 = vector.load %arg12[%c0_243, %c0_244] : memref<1x32xf32, #tpu.memory_space<vmem>>, vector<1x32xf32>
    %758 = vector.broadcast %757 : vector<1x32xf32> to vector<128x32xf32>
    %759 = arith.addf %756, %758 : vector<128x32xf32>
    %760 = arith.mulf %759, %741 : vector<128x32xf32>
    %761 = arith.addf %760, %742 : vector<128x32xf32>
    %cst_245 = arith.constant 0.000000e+00 : f32
    %762 = vector.broadcast %cst_245 : f32 to vector<128x32xf32>
    %763 = arith.maximumf %761, %762 : vector<128x32xf32>
    %c0_246 = arith.constant 0 : index
    %c0_247 = arith.constant 0 : index
    %764 = vector.load %arg17[%c0_246, %c0_247] : memref<32x32xf32, #tpu.memory_space<vmem>>, vector<32x32xf32>
    %cst_248 = arith.constant dense<0.000000e+00> : vector<128x32xf32>
    %765 = tpu.matmul %763, %764, %cst_248 {dimension_numbers = #tpu.dot_dimension_numbers<[1], [0], [0], [1], [0, 0, 1, 1], [], []>} : vector<128x32xf32>, vector<32x32xf32>, vector<128x32xf32> -> vector<128x32xf32>
    %766 = arith.maximumf %763, %765 : vector<128x32xf32>
    %c8_249 = arith.constant 8 : index
    %c0_250 = arith.constant 0 : index
    %767 = vector.load %arg26[%c8_249, %c0_250] : memref<144x32xf32, #tpu.memory_space<vmem>>, vector<128x32xf32>
    tpu.vector_store %arg26[%c8_249, %c0_250], %766 {strides = array<i32>} : memref<144x32xf32, #tpu.memory_space<vmem>>, vector<128x32xf32>,
    %768 = vector.extract_strided_slice %741 {offsets = [0, 0], sizes = [128, 16], strides = [1, 1]} : vector<128x32xf32> to vector<128x16xf32>
    %769 = vector.extract_strided_slice %742 {offsets = [0, 0], sizes = [128, 16], strides = [1, 1]} : vector<128x32xf32> to vector<128x16xf32>
    %c0_251 = arith.constant 0 : index
    %c0_252 = arith.constant 0 : index
    %770 = vector.load %arg26[%c0_251, %c0_252] : memref<144x32xf32, #tpu.memory_space<vmem>>, vector<128x32xf32>
    %c0_253 = arith.constant 0 : index
    %c0_254 = arith.constant 0 : index
    %c0_255 = arith.constant 0 : index
    %771 = vector.load %arg13[%c0_253, %c0_254, %c0_255] : memref<3x32x16xf32, #tpu.memory_space<vmem>>, vector<1x32x16xf32>
    %772 = vector.shape_cast %771 : vector<1x32x16xf32> to vector<32x16xf32>
    %cst_256 = arith.constant dense<0.000000e+00> : vector<128x16xf32>
    %773 = tpu.matmul %770, %772, %cst_256 {dimension_numbers = #tpu.dot_dimension_numbers<[1], [0], [0], [1], [0, 0, 1, 1], [], []>} : vector<128x32xf32>, vector<32x16xf32>, vector<128x16xf32> -> vector<128x16xf32>
    %c8_257 = arith.constant 8 : index
    %c0_258 = arith.constant 0 : index
    %774 = vector.load %arg26[%c8_257, %c0_258] : memref<144x32xf32, #tpu.memory_space<vmem>>, vector<128x32xf32>
    %c1_259 = arith.constant 1 : index
    %c0_260 = arith.constant 0 : index
    %c0_261 = arith.constant 0 : index
    %775 = vector.load %arg13[%c1_259, %c0_260, %c0_261] : memref<3x32x16xf32, #tpu.memory_space<vmem>>, vector<1x32x16xf32>
    %776 = vector.shape_cast %775 : vector<1x32x16xf32> to vector<32x16xf32>
    %cst_262 = arith.constant dense<0.000000e+00> : vector<128x16xf32>
    %777 = tpu.matmul %774, %776, %cst_262 {dimension_numbers = #tpu.dot_dimension_numbers<[1], [0], [0], [1], [0, 0, 1, 1], [], []>} : vector<128x32xf32>, vector<32x16xf32>, vector<128x16xf32> -> vector<128x16xf32>
    %778 = arith.addf %773, %777 : vector<128x16xf32>
    %c16_263 = arith.constant 16 : index
    %c0_264 = arith.constant 0 : index
    %779 = vector.load %arg26[%c16_263, %c0_264] : memref<144x32xf32, #tpu.memory_space<vmem>>, vector<128x32xf32>
    %c2_265 = arith.constant 2 : index
    %c0_266 = arith.constant 0 : index
    %c0_267 = arith.constant 0 : index
    %780 = vector.load %arg13[%c2_265, %c0_266, %c0_267] : memref<3x32x16xf32, #tpu.memory_space<vmem>>, vector<1x32x16xf32>
    %781 = vector.shape_cast %780 : vector<1x32x16xf32> to vector<32x16xf32>
    %cst_268 = arith.constant dense<0.000000e+00> : vector<128x16xf32>
    %782 = tpu.matmul %779, %781, %cst_268 {dimension_numbers = #tpu.dot_dimension_numbers<[1], [0], [0], [1], [0, 0, 1, 1], [], []>} : vector<128x32xf32>, vector<32x16xf32>, vector<128x16xf32> -> vector<128x16xf32>
    %783 = arith.addf %778, %782 : vector<128x16xf32>
    %c0_269 = arith.constant 0 : index
    %c0_270 = arith.constant 0 : index
    %784 = vector.load %arg14[%c0_269, %c0_270] : memref<1x16xf32, #tpu.memory_space<vmem>>, vector<1x16xf32>
    %785 = vector.broadcast %784 : vector<1x16xf32> to vector<128x16xf32>
    %786 = arith.addf %783, %785 : vector<128x16xf32>
    %787 = arith.mulf %786, %768 : vector<128x16xf32>
    %788 = arith.addf %787, %769 : vector<128x16xf32>
    %cst_271 = arith.constant 0.000000e+00 : f32
    %789 = vector.broadcast %cst_271 : f32 to vector<128x16xf32>
    %790 = arith.maximumf %788, %789 : vector<128x16xf32>
    %c0_272 = arith.constant 0 : index
    %c0_273 = arith.constant 0 : index
    %791 = vector.load %arg18[%c0_272, %c0_273] : memref<16x16xf32, #tpu.memory_space<vmem>>, vector<16x16xf32>
    %cst_274 = arith.constant dense<0.000000e+00> : vector<128x16xf32>
    %792 = tpu.matmul %790, %791, %cst_274 {dimension_numbers = #tpu.dot_dimension_numbers<[1], [0], [0], [1], [0, 0, 1, 1], [], []>} : vector<128x16xf32>, vector<16x16xf32>, vector<128x16xf32> -> vector<128x16xf32>
    %793 = arith.maximumf %790, %792 : vector<128x16xf32>
    %c0_275 = arith.constant 0 : index
    %c0_276 = arith.constant 0 : index
    %794 = vector.load %arg19[%c0_275, %c0_276] : memref<8x128xf32, #tpu.memory_space<vmem>>, vector<8x128xf32>
    %cst_277 = arith.constant dense<0.000000e+00> : vector<8x16xf32>
    %795 = tpu.matmul %794, %793, %cst_277 {dimension_numbers = #tpu.dot_dimension_numbers<[1], [0], [0], [1], [0, 0, 1, 1], [], []>} : vector<8x128xf32>, vector<128x16xf32>, vector<8x16xf32> -> vector<8x16xf32>
    %c0_278 = arith.constant 0 : index
    %c0_279 = arith.constant 0 : index
    %796 = vector.load %arg20[%c0_278, %c0_279] : memref<16x5xf32, #tpu.memory_space<vmem>>, vector<16x5xf32>
    %cst_280 = arith.constant dense<0.000000e+00> : vector<8x5xf32>
    %797 = tpu.matmul %795, %796, %cst_280 {dimension_numbers = #tpu.dot_dimension_numbers<[1], [0], [0], [1], [0, 0, 1, 1], [], []>} : vector<8x16xf32>, vector<16x5xf32>, vector<8x5xf32> -> vector<8x5xf32>
    %c0_281 = arith.constant 0 : index
    %c0_282 = arith.constant 0 : index
    %798 = vector.load %arg21[%c0_281, %c0_282] : memref<1x5xf32, #tpu.memory_space<vmem>>, vector<1x5xf32>
    %799 = vector.broadcast %798 : vector<1x5xf32> to vector<8x5xf32>
    %800 = arith.addf %797, %799 : vector<8x5xf32>
    %c0_283 = arith.constant 0 : index
    %c0_284 = arith.constant 0 : index
    %801 = vector.load %arg22[%c0_283, %c0_284] : memref<8x5xf32, #tpu.memory_space<vmem>>, vector<8x5xf32>
    tpu.vector_store %arg22[%c0_283, %c0_284], %800 {strides = array<i32>} : memref<8x5xf32, #tpu.memory_space<vmem>>, vector<8x5xf32>,
    return
  }
}

</mosaic_0001>

<llo_original>
// kernel: lstmcnn1d_forward.1
$region0: #{lstmcnn1d_forward.1}
  #allocation0 [shape = 'u32[]', space=smem, size = 0x4, offset = 0x4, fixed_abs, tag = 'smem constant byte address 0x4 - core index']
  #allocation1 [shape = 'u32[144,128]{1,0:T(1,128)}', space=vmem, size = 0x12000, scoped, tag = 'internal scratch']
  #allocation2 [shape = 'f32[128,128]{1,0:T(8,128)}', space=vmem, size = 0x10000, scoped, tag = 'scratch operand']
  #allocation3 [shape = 'f32[128,128]{1,0:T(8,128)}', space=vmem, size = 0x10000, scoped, tag = 'scratch operand']
  #allocation4 [shape = 'f32[144,32]{1,0:T(8,128)}', space=vmem, size = 0x12000, scoped, tag = 'scratch operand']
  #allocation5 [shape = 'f32[144,32]{1,0:T(8,128)}', space=vmem, size = 0x12000, scoped, tag = 'scratch operand']
  %s0 = inlined_call_operand.vmem [shape: f32[128,4], index: 0, kind: input, shape index: {}]
  %s1 = inlined_call_operand.vmem [shape: f32[8,32], index: 1, kind: input, shape index: {}]
  %s2 = inlined_call_operand.vmem [shape: f32[8,32], index: 2, kind: input, shape index: {}]
  %s3 = inlined_call_operand.vmem [shape: f32[8,32], index: 3, kind: input, shape index: {}]
  %s4 = inlined_call_operand.vmem [shape: f32[8,32], index: 4, kind: input, shape index: {}]
  %s5 = inlined_call_operand.vmem [shape: f32[4,128], index: 5, kind: input, shape index: {}]
  %s6 = inlined_call_operand.vmem [shape: bf16[32,128], index: 6, kind: input, shape index: {}]
  %s7 = inlined_call_operand.vmem [shape: f32[1,128], index: 7, kind: input, shape index: {}]
  %s8 = inlined_call_operand.vmem [shape: bf16[32,128], index: 8, kind: input, shape index: {}]
  %s9 = inlined_call_operand.vmem [shape: bf16[32,128], index: 9, kind: input, shape index: {}]
  %s10 = inlined_call_operand.vmem [shape: f32[1,128], index: 10, kind: input, shape index: {}]
  %s11 = inlined_call_operand.vmem [shape: f32[3,32,32], index: 11, kind: input, shape index: {}]
  %s12 = inlined_call_operand.vmem [shape: f32[1,32], index: 12, kind: input, shape index: {}]
  %s13 = inlined_call_operand.vmem [shape: f32[3,32,16], index: 13, kind: input, shape index: {}]
  %s14 = inlined_call_operand.vmem [shape: f32[1,16], index: 14, kind: input, shape index: {}]
  %s15 = inlined_call_operand.vmem [shape: f32[128,32], index: 15, kind: input, shape index: {}]
  %s16 = inlined_call_operand.vmem [shape: f32[128,32], index: 16, kind: input, shape index: {}]
  %s17 = inlined_call_operand.vmem [shape: f32[32,32], index: 17, kind: input, shape index: {}]
  %s18 = inlined_call_operand.vmem [shape: f32[16,16], index: 18, kind: input, shape index: {}]
  %s19 = inlined_call_operand.vmem [shape: f32[8,128], index: 19, kind: input, shape index: {}]
  %s20 = inlined_call_operand.vmem [shape: f32[16,5], index: 20, kind: input, shape index: {}]
  %s21 = inlined_call_operand.vmem [shape: f32[1,5], index: 21, kind: input, shape index: {}]
  %s22 = inlined_call_operand.hbm [shape: f32[8,5], index: 22, kind: output, shape index: {}]
  %s23 = sld [smem:[#allocation0]]
  $region98: #{lstmcnn1d_forward.1} parent=0
    _
  %s25 = ssub.s32 1, %s23
  %s26 = scalar_select 0, %s25, %s23
  $region1: #{lstmcnn1d_forward.1} parent=0
    #allocation6 [shape = 'u8[4096]{0}', space=vmem, size = 0x1000, scoped, tag = 'output window, operand 0, single buffered']
    #allocation7 [shape = 's32[1]{0}', space=sflag, size = 0x4, scoped, tag = 'scoped memory for lstmcnn1d_forward.1']
    %27 = vsyncpa [#allocation7], 0
    // Predicated region
    $region2: #{lstmcnn1d_forward.1} parent=1 // pred_check
      _
    $region3: #{lstmcnn1d_forward.1} parent=1 // pred_check_branch
      %29 = sbr.rel (0) target = $region5
    $region4: #{lstmcnn1d_forward.1} parent=1 // pred_region
      _
    $region5: #{lstmcnn1d_forward.1} parent=1 // pred_fallthru
      _
    // Predicated region
    $region6: #{lstmcnn1d_forward.1} parent=1 // pred_check
      _
    $region7: #{lstmcnn1d_forward.1} parent=1 // pred_check_branch
      %31 = sbr.rel (0) target = $region9
    $region8: #{lstmcnn1d_forward.1} parent=1 // pred_region
      _
    $region9: #{lstmcnn1d_forward.1} parent=1 // pred_fallthru
      _
    // Predicated region
    $region10: #{lstmcnn1d_forward.1} parent=1 // pred_check
      _
    $region11: #{lstmcnn1d_forward.1} parent=1 // pred_check_branch
      %33 = sbr.rel (0) target = $region13
    $region12: #{lstmcnn1d_forward.1} parent=1 // pred_region
      _
    $region13: #{lstmcnn1d_forward.1} parent=1 // pred_fallthru
      _
    // Predicated region
    $region14: #{lstmcnn1d_forward.1} parent=1 // pred_check
      _
    $region15: #{lstmcnn1d_forward.1} parent=1 // pred_check_branch
      %35 = sbr.rel (0) target = $region17
    $region16: #{lstmcnn1d_forward.1} parent=1 // pred_region
      _
    $region17: #{lstmcnn1d_forward.1} parent=1 // pred_fallthru
      _
    // Predicated region
    $region18: #{lstmcnn1d_forward.1} parent=1 // pred_check
      _
    $region19: #{lstmcnn1d_forward.1} parent=1 // pred_check_branch
      %37 = sbr.rel (0) target = $region21
    $region20: #{lstmcnn1d_forward.1} parent=1 // pred_region
      _
    $region21: #{lstmcnn1d_forward.1} parent=1 // pred_fallthru
      _
    // Predicated region
    $region22: #{lstmcnn1d_forward.1} parent=1 // pred_check
      _
    $region23: #{lstmcnn1d_forward.1} parent=1 // pred_check_branch
      %39 = sbr.rel (0) target = $region25
    $region24: #{lstmcnn1d_forward.1} parent=1 // pred_region
      _
    $region25: #{lstmcnn1d_forward.1} parent=1 // pred_fallthru
      _
    // Predicated region
    $region26: #{lstmcnn1d_forward.1} parent=1 // pred_check
      _
    $region27: #{lstmcnn1d_forward.1} parent=1 // pred_check_branch
      %41 = sbr.rel (0) target = $region29
    $region28: #{lstmcnn1d_forward.1} parent=1 // pred_region
      _
    $region29: #{lstmcnn1d_forward.1} parent=1 // pred_fallthru
      _
    // Predicated region
    $region30: #{lstmcnn1d_forward.1} parent=1 // pred_check
      _
    $region31: #{lstmcnn1d_forward.1} parent=1 // pred_check_branch
      %43 = sbr.rel (0) target = $region33
    $region32: #{lstmcnn1d_forward.1} parent=1 // pred_region
      _
    $region33: #{lstmcnn1d_forward.1} parent=1 // pred_fallthru
      _
    // Predicated region
    $region34: #{lstmcnn1d_forward.1} parent=1 // pred_check
      _
    $region35: #{lstmcnn1d_forward.1} parent=1 // pred_check_branch
      %45 = sbr.rel (0) target = $region37
    $region36: #{lstmcnn1d_forward.1} parent=1 // pred_region
      _
    $region37: #{lstmcnn1d_forward.1} parent=1 // pred_fallthru
      _
    // Predicated region
    $region38: #{lstmcnn1d_forward.1} parent=1 // pred_check
      _
    $region39: #{lstmcnn1d_forward.1} parent=1 // pred_check_branch
      %47 = sbr.rel (0) target = $region41
    $region40: #{lstmcnn1d_forward.1} parent=1 // pred_region
      _
    $region41: #{lstmcnn1d_forward.1} parent=1 // pred_fallthru
      _
    // Predicated region
    $region42: #{lstmcnn1d_forward.1} parent=1 // pred_check
      _
    $region43: #{lstmcnn1d_forward.1} parent=1 // pred_check_branch
      %49 = sbr.rel (0) target = $region45
    $region44: #{lstmcnn1d_forward.1} parent=1 // pred_region
      _
    $region45: #{lstmcnn1d_forward.1} parent=1 // pred_fallthru
      _
    // Predicated region
    $region46: #{lstmcnn1d_forward.1} parent=1 // pred_check
      _
    $region47: #{lstmcnn1d_forward.1} parent=1 // pred_check_branch
      %51 = sbr.rel (0) target = $region49
    $region48: #{lstmcnn1d_forward.1} parent=1 // pred_region
      _
    $region49: #{lstmcnn1d_forward.1} parent=1 // pred_fallthru
      _
    // Predicated region
    $region50: #{lstmcnn1d_forward.1} parent=1 // pred_check
      _
    $region51: #{lstmcnn1d_forward.1} parent=1 // pred_check_branch
      %53 = sbr.rel (0) target = $region53
    $region52: #{lstmcnn1d_forward.1} parent=1 // pred_region
      _
    $region53: #{lstmcnn1d_forward.1} parent=1 // pred_fallthru
      _
    // Predicated region
    $region54: #{lstmcnn1d_forward.1} parent=1 // pred_check
      _
    $region55: #{lstmcnn1d_forward.1} parent=1 // pred_check_branch
      %55 = sbr.rel (0) target = $region57
    $region56: #{lstmcnn1d_forward.1} parent=1 // pred_region
      _
    $region57: #{lstmcnn1d_forward.1} parent=1 // pred_fallthru
      _
    // Predicated region
    $region58: #{lstmcnn1d_forward.1} parent=1 // pred_check
      _
    $region59: #{lstmcnn1d_forward.1} parent=1 // pred_check_branch
      %57 = sbr.rel (0) target = $region61
    $region60: #{lstmcnn1d_forward.1} parent=1 // pred_region
      _
    $region61: #{lstmcnn1d_forward.1} parent=1 // pred_fallthru
      _
    // Predicated region
    $region62: #{lstmcnn1d_forward.1} parent=1 // pred_check
      _
    $region63: #{lstmcnn1d_forward.1} parent=1 // pred_check_branch
      %59 = sbr.rel (0) target = $region65
    $region64: #{lstmcnn1d_forward.1} parent=1 // pred_region
      _
    $region65: #{lstmcnn1d_forward.1} parent=1 // pred_fallthru
      _
    // Predicated region
    $region66: #{lstmcnn1d_forward.1} parent=1 // pred_check
      _
    $region67: #{lstmcnn1d_forward.1} parent=1 // pred_check_branch
      %61 = sbr.rel (0) target = $region69
    $region68: #{lstmcnn1d_forward.1} parent=1 // pred_region
      _
    $region69: #{lstmcnn1d_forward.1} parent=1 // pred_fallthru
      _
    // Predicated region
    $region70: #{lstmcnn1d_forward.1} parent=1 // pred_check
      _
    $region71: #{lstmcnn1d_forward.1} parent=1 // pred_check_branch
      %63 = sbr.rel (0) target = $region73
    $region72: #{lstmcnn1d_forward.1} parent=1 // pred_region
      _
    $region73: #{lstmcnn1d_forward.1} parent=1 // pred_fallthru
      _
    // Predicated region
    $region74: #{lstmcnn1d_forward.1} parent=1 // pred_check
      _
    $region75: #{lstmcnn1d_forward.1} parent=1 // pred_check_branch
      %65 = sbr.rel (0) target = $region77
    $region76: #{lstmcnn1d_forward.1} parent=1 // pred_region
      _
    $region77: #{lstmcnn1d_forward.1} parent=1 // pred_fallthru
      _
    // Predicated region
    $region78: #{lstmcnn1d_forward.1} parent=1 // pred_check
      _
    $region79: #{lstmcnn1d_forward.1} parent=1 // pred_check_branch
      %67 = sbr.rel (0) target = $region81
    $region80: #{lstmcnn1d_forward.1} parent=1 // pred_region
      _
    $region81: #{lstmcnn1d_forward.1} parent=1 // pred_fallthru
      _
    // Predicated region
    $region82: #{lstmcnn1d_forward.1} parent=1 // pred_check
      _
    $region83: #{lstmcnn1d_forward.1} parent=1 // pred_check_branch
      %69 = sbr.rel (0) target = $region85
    $region84: #{lstmcnn1d_forward.1} parent=1 // pred_region
      _
    $region85: #{lstmcnn1d_forward.1} parent=1 // pred_fallthru
      _
    // Predicated region
    $region86: #{lstmcnn1d_forward.1} parent=1 // pred_check
      _
    $region87: #{lstmcnn1d_forward.1} parent=1 // pred_check_branch
      %71 = sbr.rel (0) target = $region89
    $region88: #{lstmcnn1d_forward.1} parent=1 // pred_region
      _
    $region89: #{lstmcnn1d_forward.1} parent=1 // pred_fallthru
      _
    %vm73 = vcmask 261120
    %74 = vst.msk [vmem:[#allocation4] sm:$0xff] %vm73, 0.0
    %75 = vst.msk [vmem:[#allocation4 + $0x88] sm:$0xff] %vm73, 0.0
    %76 = vst.msk [vmem:[#allocation5] sm:$0xff] %vm73, 0.0
    %77 = vst.msk [vmem:[#allocation5 + $0x88] sm:$0xff] %vm73, 0.0
    %v78 = vld [vmem:[%s0] sm:$0xff]
    %v79 = vld [vmem:[%s0 + $0x8] sm:$0xff]
    %v80 = vld [vmem:[%s0 + $0x10] sm:$0xff]
    %v81 = vld [vmem:[%s0 + $0x18] sm:$0xff]
    %v82 = vld [vmem:[%s0 + $0x20] sm:$0xff]
    %v83 = vld [vmem:[%s0 + $0x28] sm:$0xff]
    %v84 = vld [vmem:[%s0 + $0x30] sm:$0xff]
    %v85 = vld [vmem:[%s0 + $0x38] sm:$0xff]
    %v86 = vld [vmem:[%s0 + $0x40] sm:$0xff]
    %v87 = vld [vmem:[%s0 + $0x48] sm:$0xff]
    %v88 = vld [vmem:[%s0 + $0x50] sm:$0xff]
    %v89 = vld [vmem:[%s0 + $0x58] sm:$0xff]
    %v90 = vld [vmem:[%s0 + $0x60] sm:$0xff]
    %v91 = vld [vmem:[%s0 + $0x68] sm:$0xff]
    %v92 = vld [vmem:[%s0 + $0x70] sm:$0xff]
    %v93 = vld [vmem:[%s0 + $0x78] sm:$0xff]
    %v94 = vld [vmem:[%s5] sm:$0xf]
    %v95 = vld [vmem:[%s7] sm:$0x1]
    %v97 = vlaneseq
    %v98 = vshrl.u32 %v97, 7
    %v99 = vsub.s32 0, %v98
    %v100 = vrot.slane %v95, %v99
    %vm102 = vcmask 31744
    %v104 = vsel %vm102, %v78, 0
    %v107 = vsel %vm102, %v79, 0
    %v110 = vsel %vm102, %v80, 0
    %v113 = vsel %vm102, %v81, 0
    %v116 = vsel %vm102, %v82, 0
    %v119 = vsel %vm102, %v83, 0
    %v122 = vsel %vm102, %v84, 0
    %v125 = vsel %vm102, %v85, 0
    %v128 = vsel %vm102, %v86, 0
    %v131 = vsel %vm102, %v87, 0
    %v134 = vsel %vm102, %v88, 0
    %v137 = vsel %vm102, %v89, 0
    %v140 = vsel %vm102, %v90, 0
    %v143 = vsel %vm102, %v91, 0
    %v146 = vsel %vm102, %v92, 0
    %v149 = vsel %vm102, %v93, 0
    %vm151 = vcmask 1043456
    %v153 = vsel %vm151, %v94, 0
    %155 = vmatprep.subr.mxu0 0.0
    %156 = vmatpush1.msra.mxu0 %v153
    %157 = vmatprep.subr.mxu0 0.0
    %158 = vmatpush1.msra.mxu0 0.0
    %159 = vmatprep.subr.mxu0 0.0
    %160 = vmatpush1.msra.mxu0 0.0
    %161 = vmatprep.subr.mxu0 0.0
    %162 = vmatpush1.msra.mxu0 0.0
    %163 = vmatprep.subr.mxu0 0.0
    %164 = vmatpush1.msra.mxu0 0.0
    %165 = vmatprep.subr.mxu0 0.0
    %166 = vmatpush1.msra.mxu0 0.0
    %167 = vmatprep.subr.mxu0 0.0
    %168 = vmatpush1.msra.mxu0 0.0
    %169 = vmatprep.subr.mxu0 0.0
    %170 = vmatpush1.msra.mxu0 0.0
    %171 = vmatprep.subr.mxu0 0.0
    %172 = vmatpush1.msra.mxu0 0.0
    %173 = vmatprep.subr.mxu0 0.0
    %174 = vmatpush1.msra.mxu0 0.0
    %175 = vmatprep.subr.mxu0 0.0
    %176 = vmatpush1.msra.mxu0 0.0
    %177 = vmatprep.subr.mxu0 0.0
    %178 = vmatpush1.msra.mxu0 0.0
    %179 = vmatprep.subr.mxu0 0.0
    %180 = vmatpush1.msra.mxu0 0.0
    %181 = vmatprep.subr.mxu0 0.0
    %182 = vmatpush1.msra.mxu0 0.0
    %183 = vmatprep.subr.mxu0 0.0
    %184 = vmatpush1.msra.mxu0 0.0
    %185 = vmatprep.subr.mxu0 0.0
    %186 = vmatpush1.msra.mxu0 0.0
    %187 = vmatprep.subr.mxu0 0.0
    %188 = vmatpush1.msra.mxu0 0.0
    %189 = vmatprep.subr.mxu0 0.0
    %190 = vmatpush1.msra.mxu0 0.0
    %191 = vmatprep.subr.mxu0 0.0
    %192 = vmatpush1.msra.mxu0 0.0
    %193 = vmatprep.subr.mxu0 0.0
    %194 = vmatpush1.msra.mxu0 0.0
    %195 = vmatprep.subr.mxu0 0.0
    %196 = vmatpush1.msra.mxu0 0.0
    %197 = vmatprep.subr.mxu0 0.0
    %198 = vmatpush1.msra.mxu0 0.0
    %199 = vmatprep.subr.mxu0 0.0
    %200 = vmatpush1.msra.mxu0 0.0
    %201 = vmatprep.subr.mxu0 0.0
    %202 = vmatpush1.msra.mxu0 0.0
    %203 = vmatprep.subr.mxu0 0.0
    %204 = vmatpush1.msra.mxu0 0.0
    %205 = vmatprep.subr.mxu0 0.0
    %206 = vmatpush1.msra.mxu0 0.0
    %207 = vmatprep.subr.mxu0 0.0
    %208 = vmatpush1.msra.mxu0 0.0
    %209 = vmatprep.subr.mxu0 0.0
    %210 = vmatpush1.msra.mxu0 0.0
    %211 = vmatprep.subr.mxu0 0.0
    %212 = vmatpush1.msra.mxu0 0.0
    %213 = vmatprep.subr.mxu0 0.0
    %214 = vmatpush1.msra.mxu0 0.0
    %215 = vmatprep.subr.mxu0 0.0
    %216 = vmatpush1.msra.mxu0 0.0
    %217 = vmatprep.subr.mxu0 0.0
    %218 = vmatpush1.msra.mxu0 0.0
    %219 = vmatprep.mubr.f32.mxu0 0.0
    %220 = vmatmul.mubr.f32.gmra.mrb[0].mxu0 %v104
    %v221 = vpop.f32.mrb[0].mxu0
    %v222 = vadd.f32 %v100, %v221
    %v223 = vpop.f32.mrb[0].mxu0
    %224 = vmatprep.mubr.f32.mxu0 0.0
    %225 = vmatmul.mubr.f32.gmra.mrb[0].mxu0 %v107
    %v226 = vpop.f32.mrb[0].mxu0
    %v227 = vadd.f32 %v100, %v226
    %v228 = vpop.f32.mrb[0].mxu0
    %229 = vmatprep.mubr.f32.mxu0 0.0
    %230 = vmatmul.mubr.f32.gmra.mrb[0].mxu0 %v110
    %v231 = vpop.f32.mrb[0].mxu0
    %v232 = vadd.f32 %v100, %v231
    %v233 = vpop.f32.mrb[0].mxu0
    %234 = vmatprep.mubr.f32.mxu0 0.0
    %235 = vmatmul.mubr.f32.gmra.mrb[0].mxu0 %v113
    %v236 = vpop.f32.mrb[0].mxu0
    %v237 = vadd.f32 %v100, %v236
    %v238 = vpop.f32.mrb[0].mxu0
    %239 = vmatprep.mubr.f32.mxu0 0.0
    %240 = vmatmul.mubr.f32.gmra.mrb[0].mxu0 %v116
    %v241 = vpop.f32.mrb[0].mxu0
    %v242 = vadd.f32 %v100, %v241
    %v243 = vpop.f32.mrb[0].mxu0
    %244 = vmatprep.mubr.f32.mxu0 0.0
    %245 = vmatmul.mubr.f32.gmra.mrb[0].mxu0 %v119
    %v246 = vpop.f32.mrb[0].mxu0
    %v247 = vadd.f32 %v100, %v246
    %v248 = vpop.f32.mrb[0].mxu0
    %249 = vmatprep.mubr.f32.mxu0 0.0
    %250 = vmatmul.mubr.f32.gmra.mrb[0].mxu0 %v122
    %v251 = vpop.f32.mrb[0].mxu0
    %v252 = vadd.f32 %v100, %v251
    %v253 = vpop.f32.mrb[0].mxu0
    %254 = vmatprep.mubr.f32.mxu0 0.0
    %255 = vmatmul.mubr.f32.gmra.mrb[0].mxu0 %v125
    %v256 = vpop.f32.mrb[0].mxu0
    %v257 = vadd.f32 %v100, %v256
    %v258 = vpop.f32.mrb[0].mxu0
    %259 = vmatprep.mubr.f32.mxu0 0.0
    %260 = vmatmul.mubr.f32.gmra.mrb[0].mxu0 %v128
    %v261 = vpop.f32.mrb[0].mxu0
    %v262 = vadd.f32 %v100, %v261
    %v263 = vpop.f32.mrb[0].mxu0
    %264 = vmatprep.mubr.f32.mxu0 0.0
    %265 = vmatmul.mubr.f32.gmra.mrb[0].mxu0 %v131
    %v266 = vpop.f32.mrb[0].mxu0
    %v267 = vadd.f32 %v100, %v266
    %v268 = vpop.f32.mrb[0].mxu0
    %269 = vmatprep.mubr.f32.mxu0 0.0
    %270 = vmatmul.mubr.f32.gmra.mrb[0].mxu0 %v134
    %v271 = vpop.f32.mrb[0].mxu0
    %v272 = vadd.f32 %v100, %v271
    %v273 = vpop.f32.mrb[0].mxu0
    %274 = vmatprep.mubr.f32.mxu0 0.0
    %275 = vmatmul.mubr.f32.gmra.mrb[0].mxu0 %v137
    %v276 = vpop.f32.mrb[0].mxu0
    %v277 = vadd.f32 %v100, %v276
    %v278 = vpop.f32.mrb[0].mxu0
    %279 = vmatprep.mubr.f32.mxu0 0.0
    %280 = vmatmul.mubr.f32.gmra.mrb[0].mxu0 %v140
    %v281 = vpop.f32.mrb[0].mxu0
    %v282 = vadd.f32 %v100, %v281
    %v283 = vpop.f32.mrb[0].mxu0
    %284 = vmatprep.mubr.f32.mxu0 0.0
    %285 = vmatmul.mubr.f32.gmra.mrb[0].mxu0 %v143
    %v286 = vpop.f32.mrb[0].mxu0
    %v287 = vadd.f32 %v100, %v286
    %v288 = vpop.f32.mrb[0].mxu0
    %289 = vmatprep.mubr.f32.mxu0 0.0
    %290 = vmatmul.mubr.f32.gmra.mrb[0].mxu0 %v146
    %v291 = vpop.f32.mrb[0].mxu0
    %v292 = vadd.f32 %v100, %v291
    %v293 = vpop.f32.mrb[0].mxu0
    %294 = vmatprep.mubr.f32.mxu0 0.0
    %295 = vmatmul.mubr.f32.gmra.mrb[0].mxu0 %v149
    %v296 = vpop.f32.mrb[0].mxu0
    %v297 = vadd.f32 %v100, %v296
    %v298 = vpop.f32.mrb[0].mxu0
    %299 = vdwg.mxu0
    %300 = vst [vmem:[#allocation2] sm:$0xff] %v222
    %301 = vst [vmem:[#allocation2 + $0x8] sm:$0xff] %v227
    %302 = vst [vmem:[#allocation2 + $0x10] sm:$0xff] %v232
    %303 = vst [vmem:[#allocation2 + $0x18] sm:$0xff] %v237
    %304 = vst [vmem:[#allocation2 + $0x20] sm:$0xff] %v242
    %305 = vst [vmem:[#allocation2 + $0x28] sm:$0xff] %v247
    %306 = vst [vmem:[#allocation2 + $0x30] sm:$0xff] %v252
    %307 = vst [vmem:[#allocation2 + $0x38] sm:$0xff] %v257
    %308 = vst [vmem:[#allocation2 + $0x40] sm:$0xff] %v262
    %309 = vst [vmem:[#allocation2 + $0x48] sm:$0xff] %v267
    %310 = vst [vmem:[#allocation2 + $0x50] sm:$0xff] %v272
    %311 = vst [vmem:[#allocation2 + $0x58] sm:$0xff] %v277
    %312 = vst [vmem:[#allocation2 + $0x60] sm:$0xff] %v282
    %313 = vst [vmem:[#allocation2 + $0x68] sm:$0xff] %v287
    %314 = vst [vmem:[#allocation2 + $0x70] sm:$0xff] %v292
    %315 = vst [vmem:[#allocation2 + $0x78] sm:$0xff] %v297
    %v316 = vld [vmem:[%s8] sm:$0xf]
    %v317 = vld [vmem:[%s8 + $0x4] sm:$0xf]
    %v318 = vld [vmem:[%s8 + $0x8] sm:$0xf]
    %v319 = vld [vmem:[%s8 + $0xc] sm:$0xf]
    %v320 = vld [vmem:[%s10] sm:$0x1]
    %v321 = vld [vmem:[%s6] sm:$0xf]
    %v322 = vld [vmem:[%s6 + $0x4] sm:$0xf]
    %v323 = vld [vmem:[%s6 + $0x8] sm:$0xf]
    %v324 = vld [vmem:[%s6 + $0xc] sm:$0xf]
    %v325 = vld [vmem:[%s1] sm:$0xff]
    %v326 = vld [vmem:[%s2] sm:$0xff]
    %v327 = vpack.c.bf16 %v325, %v325
    %v328 = vld [vmem:[#allocation2] sm:$0xff]
    %v333 = vunpack.c.l.b16 %v321
    %v334 = vunpack.c.l.b16 %v322
    %v335 = vunpack.c.l.b16 %v323
    %v336 = vunpack.c.l.b16 %v324
    %v337 = vpack.c.b16 %v334, %v333
    %v338 = vpack.c.b16 %v336, %v335
    %v342 = vsel %vm73, %v327, 0
    %344 = vmatprep.subr.bf16.mxu0 0
    %345 = vmatpush1.bf16.msra.mxu0 %v337
    %346 = vmatprep.subr.bf16.mxu0 0
    %347 = vmatpush1.bf16.msra.mxu0 %v338
    %348 = vmatprep.subr.bf16.mxu0 0
    %349 = vmatpush1.bf16.msra.mxu0 0
    %350 = vmatprep.subr.bf16.mxu0 0
    %351 = vmatpush1.bf16.msra.mxu0 0
    %352 = vmatprep.subr.bf16.mxu0 0
    %353 = vmatpush1.bf16.msra.mxu0 0
    %354 = vmatprep.subr.bf16.mxu0 0
    %355 = vmatpush1.bf16.msra.mxu0 0
    %356 = vmatprep.subr.bf16.mxu0 0
    %357 = vmatpush1.bf16.msra.mxu0 0
    %358 = vmatprep.subr.bf16.mxu0 0
    %359 = vmatpush1.bf16.msra.mxu0 0
    %360 = vmatprep.subr.bf16.mxu0 0
    %361 = vmatpush1.bf16.msra.mxu0 0
    %362 = vmatprep.subr.bf16.mxu0 0
    %363 = vmatpush1.bf16.msra.mxu0 0
    %364 = vmatprep.subr.bf16.mxu0 0
    %365 = vmatpush1.bf16.msra.mxu0 0
    %366 = vmatprep.subr.bf16.mxu0 0
    %367 = vmatpush1.bf16.msra.mxu0 0
    %368 = vmatprep.subr.bf16.mxu0 0
    %369 = vmatpush1.bf16.msra.mxu0 0
    %370 = vmatprep.subr.bf16.mxu0 0
    %371 = vmatpush1.bf16.msra.mxu0 0
    %372 = vmatprep.subr.bf16.mxu0 0
    %373 = vmatpush1.bf16.msra.mxu0 0
    %374 = vmatprep.subr.bf16.mxu0 0
    %375 = vmatpush1.bf16.msra.mxu0 0
    %376 = vmatprep.mubr.bf16.mxu0 0
    %377 = vmatmul.mubr.bf16.gmra.mrb[0].mxu0 %v342
    %v378 = vpop.f32.mrb[0].mxu0
    %v379 = vadd.f32 0.0, %v378
    %v380 = vpop.f32.mrb[0].mxu0
    %v381 = vpop.f32.mrb[0].mxu0
    %v382 = vpop.f32.mrb[0].mxu0
    %383 = vdwg.mxu0
    %v384 = vadd.f32 %v328, %v379
    %v385 = vxor.u32 %v384, 2147483648
    %v386 = vmul.f32 %v385, 1.442695
    %v387 = vpow.pop %v386
    %v388 = vadd.f32 %v387, 1.0
    %v389 = vrcp.pop %v388
    %v390 = vmul.f32 1.0, %v389
    %v391 = vtanh.pop %v384
    %393 = vrot.lane.b32.xlu0 %v326, 32
    %v394 = vpop.permute.xlu0 %393
    %v396 = vmul.f32 %v390, %v394
    %398 = vrot.lane.b32.xlu0 %v391, 32
    %v399 = vpop.permute.xlu0 %398
    %v401 = vmul.f32 %v390, %v399
    %403 = vrot.lane.b32.xlu0 %v401, 32
    %v404 = vpop.permute.xlu0 %403
    %v406 = vadd.f32 %v396, %v404
    %v407 = vtanh.pop %v406
    %409 = vrot.lane.b32.xlu0 %v407, 32
    %v410 = vpop.permute.xlu0 %409
    %v412 = vmul.f32 %v390, %v410
    %v413 = vpack.c.bf16 %v412, %v412
    %v415 = vlaneseq
    %v416 = vshrl.u32 %v415, 7
    %v417 = vsub.s32 0, %v416
    %v418 = vrot.slane %v320, %v417
    %421 = vrot.lane.b32.xlu0 %v413, 64
    %v422 = vpop.permute.xlu0 %421
    %v427 = vunpack.c.l.b16 %v316
    %v428 = vunpack.c.l.b16 %v317
    %v429 = vunpack.c.l.b16 %v318
    %v430 = vunpack.c.l.b16 %v319
    %v431 = vpack.c.b16 %v428, %v427
    %v432 = vpack.c.b16 %v430, %v429
    %v436 = vsel %vm73, %v422, 0
    %438 = vmatprep.subr.bf16.mxu0 0
    %439 = vmatpush1.bf16.msra.mxu0 %v431
    %440 = vmatprep.subr.bf16.mxu0 0
    %441 = vmatpush1.bf16.msra.mxu0 %v432
    %442 = vmatprep.subr.bf16.mxu0 0
    %443 = vmatpush1.bf16.msra.mxu0 0
    %444 = vmatprep.subr.bf16.mxu0 0
    %445 = vmatpush1.bf16.msra.mxu0 0
    %446 = vmatprep.subr.bf16.mxu0 0
    %447 = vmatpush1.bf16.msra.mxu0 0
    %448 = vmatprep.subr.bf16.mxu0 0
    %449 = vmatpush1.bf16.msra.mxu0 0
    %450 = vmatprep.subr.bf16.mxu0 0
    %451 = vmatpush1.bf16.msra.mxu0 0
    %452 = vmatprep.subr.bf16.mxu0 0
    %453 = vmatpush1.bf16.msra.mxu0 0
    %454 = vmatprep.subr.bf16.mxu0 0
    %455 = vmatpush1.bf16.msra.mxu0 0
    %456 = vmatprep.subr.bf16.mxu0 0
    %457 = vmatpush1.bf16.msra.mxu0 0
    %458 = vmatprep.subr.bf16.mxu0 0
    %459 = vmatpush1.bf16.msra.mxu0 0
    %460 = vmatprep.subr.bf16.mxu0 0
    %461 = vmatpush1.bf16.msra.mxu0 0
    %462 = vmatprep.subr.bf16.mxu0 0
    %463 = vmatpush1.bf16.msra.mxu0 0
    %464 = vmatprep.subr.bf16.mxu0 0
    %465 = vmatpush1.bf16.msra.mxu0 0
    %466 = vmatprep.subr.bf16.mxu0 0
    %467 = vmatpush1.bf16.msra.mxu0 0
    %468 = vmatprep.subr.bf16.mxu0 0
    %469 = vmatpush1.bf16.msra.mxu0 0
    %470 = vmatprep.mubr.bf16.mxu0 0
    %471 = vmatmul.mubr.bf16.gmra.mrb[0].mxu0 %v436
    %v472 = vpop.f32.mrb[0].mxu0
    %v473 = vadd.f32 %v418, %v472
    %v474 = vpop.f32.mrb[0].mxu0
    %v475 = vpop.f32.mrb[0].mxu0
    %v476 = vpop.f32.mrb[0].mxu0
    %477 = vdwg.mxu0
    %478 = vst [vmem:[#allocation3] sm:$0xff] %v473
    %v479 = vld [vmem:[#allocation2 + $0x8] sm:$0xff]
    %480 = vmatprep.subr.bf16.mxu0 0
    %481 = vmatpush1.bf16.msra.mxu0 %v337
    %482 = vmatprep.subr.bf16.mxu0 0
    %483 = vmatpush1.bf16.msra.mxu0 %v338
    %484 = vmatprep.subr.bf16.mxu0 0
    %485 = vmatpush1.bf16.msra.mxu0 0
    %486 = vmatprep.subr.bf16.mxu0 0
    %487 = vmatpush1.bf16.msra.mxu0 0
    %488 = vmatprep.subr.bf16.mxu0 0
    %489 = vmatpush1.bf16.msra.mxu0 0
    %490 = vmatprep.subr.bf16.mxu0 0
    %491 = vmatpush1.bf16.msra.mxu0 0
    %492 = vmatprep.subr.bf16.mxu0 0
    %493 = vmatpush1.bf16.msra.mxu0 0
    %494 = vmatprep.subr.bf16.mxu0 0
    %495 = vmatpush1.bf16.msra.mxu0 0
    %496 = vmatprep.subr.bf16.mxu0 0
    %497 = vmatpush1.bf16.msra.mxu0 0
    %498 = vmatprep.subr.bf16.mxu0 0
    %499 = vmatpush1.bf16.msra.mxu0 0
    %500 = vmatprep.subr.bf16.mxu0 0
    %501 = vmatpush1.bf16.msra.mxu0 0
    %502 = vmatprep.subr.bf16.mxu0 0
    %503 = vmatpush1.bf16.msra.mxu0 0
    %504 = vmatprep.subr.bf16.mxu0 0
    %505 = vmatpush1.bf16.msra.mxu0 0
    %506 = vmatprep.subr.bf16.mxu0 0
    %507 = vmatpush1.bf16.msra.mxu0 0
    %508 = vmatprep.subr.bf16.mxu0 0
    %509 = vmatpush1.bf16.msra.mxu0 0
    %510 = vmatprep.subr.bf16.mxu0 0
    %511 = vmatpush1.bf16.msra.mxu0 0
    %512 = vmatprep.mubr.bf16.mxu0 0
    %513 = vmatmul.mubr.bf16.gmra.mrb[0].mxu0 %v436
    %v514 = vpop.f32.mrb[0].mxu0
    %v515 = vadd.f32 0.0, %v514
    %v516 = vpop.f32.mrb[0].mxu0
    %v517 = vpop.f32.mrb[0].mxu0
    %v518 = vpop.f32.mrb[0].mxu0
    %519 = vdwg.mxu0
    %v520 = vadd.f32 %v479, %v515
    %v521 = vxor.u32 %v520, 2147483648
    %v522 = vmul.f32 %v521, 1.442695
    %v523 = vpow.pop %v522
    %v524 = vadd.f32 %v523, 1.0
    %v525 = vrcp.pop %v524
    %v526 = vmul.f32 1.0, %v525
    %v527 = vtanh.pop %v520
    %v528 = vmul.f32 %v526, %v406
    %530 = vrot.lane.b32.xlu0 %v527, 32
    %v531 = vpop.permute.xlu0 %530
    %v533 = vmul.f32 %v526, %v531
    %535 = vrot.lane.b32.xlu0 %v533, 32
    %v536 = vpop.permute.xlu0 %535
    %v538 = vadd.f32 %v528, %v536
    %v539 = vtanh.pop %v538
    %541 = vrot.lane.b32.xlu0 %v539, 32
    %v542 = vpop.permute.xlu0 %541
    %v544 = vmul.f32 %v526, %v542
    %v545 = vpack.c.bf16 %v544, %v544
    %547 = vrot.lane.b32.xlu0 %v545, 64
    %v548 = vpop.permute.xlu0 %547
    %v550 = vsel %vm73, %v548, 0
    %552 = vmatprep.subr.bf16.mxu0 0
    %553 = vmatpush1.bf16.msra.mxu0 %v431
    %554 = vmatprep.subr.bf16.mxu0 0
    %555 = vmatpush1.bf16.msra.mxu0 %v432
    %556 = vmatprep.subr.bf16.mxu0 0
    %557 = vmatpush1.bf16.msra.mxu0 0
    %558 = vmatprep.subr.bf16.mxu0 0
    %559 = vmatpush1.bf16.msra.mxu0 0
    %560 = vmatprep.subr.bf16.mxu0 0
    %561 = vmatpush1.bf16.msra.mxu0 0
    %562 = vmatprep.subr.bf16.mxu0 0
    %563 = vmatpush1.bf16.msra.mxu0 0
    %564 = vmatprep.subr.bf16.mxu0 0
    %565 = vmatpush1.bf16.msra.mxu0 0
    %566 = vmatprep.subr.bf16.mxu0 0
    %567 = vmatpush1.bf16.msra.mxu0 0
    %568 = vmatprep.subr.bf16.mxu0 0
    %569 = vmatpush1.bf16.msra.mxu0 0
    %570 = vmatprep.subr.bf16.mxu0 0
    %571 = vmatpush1.bf16.msra.mxu0 0
    %572 = vmatprep.subr.bf16.mxu0 0
    %573 = vmatpush1.bf16.msra.mxu0 0
    %574 = vmatprep.subr.bf16.mxu0 0
    %575 = vmatpush1.bf16.msra.mxu0 0
    %576 = vmatprep.subr.bf16.mxu0 0
    %577 = vmatpush1.bf16.msra.mxu0 0
    %578 = vmatprep.subr.bf16.mxu0 0
    %579 = vmatpush1.bf16.msra.mxu0 0
    %580 = vmatprep.subr.bf16.mxu0 0
    %581 = vmatpush1.bf16.msra.mxu0 0
    %582 = vmatprep.subr.bf16.mxu0 0
    %583 = vmatpush1.bf16.msra.mxu0 0
    %584 = vmatprep.mubr.bf16.mxu0 0
    %585 = vmatmul.mubr.bf16.gmra.mrb[0].mxu0 %v550
    %v586 = vpop.f32.mrb[0].mxu0
    %v587 = vadd.f32 %v418, %v586
    %v588 = vpop.f32.mrb[0].mxu0
    %v589 = vpop.f32.mrb[0].mxu0
    %v590 = vpop.f32.mrb[0].mxu0
    %591 = vdwg.mxu0
    %592 = vst [vmem:[#allocation3 + $0x8] sm:$0xff] %v587
    %v593 = vld [vmem:[#allocation2 + $0x10] sm:$0xff]
    %594 = vmatprep.subr.bf16.mxu0 0
    %595 = vmatpush1.bf16.msra.mxu0 %v337
    %596 = vmatprep.subr.bf16.mxu0 0
    %597 = vmatpush1.bf16.msra.mxu0 %v338
    %598 = vmatprep.subr.bf16.mxu0 0
    %599 = vmatpush1.bf16.msra.mxu0 0
    %600 = vmatprep.subr.bf16.mxu0 0
    %601 = vmatpush1.bf16.msra.mxu0 0
    %602 = vmatprep.subr.bf16.mxu0 0
    %603 = vmatpush1.bf16.msra.mxu0 0
    %604 = vmatprep.subr.bf16.mxu0 0
    %605 = vmatpush1.bf16.msra.mxu0 0
    %606 = vmatprep.subr.bf16.mxu0 0
    %607 = vmatpush1.bf16.msra.mxu0 0
    %608 = vmatprep.subr.bf16.mxu0 0
    %609 = vmatpush1.bf16.msra.mxu0 0
    %610 = vmatprep.subr.bf16.mxu0 0
    %611 = vmatpush1.bf16.msra.mxu0 0
    %612 = vmatprep.subr.bf16.mxu0 0
    %613 = vmatpush1.bf16.msra.mxu0 0
    %614 = vmatprep.subr.bf16.mxu0 0
    %615 = vmatpush1.bf16.msra.mxu0 0
    %616 = vmatprep.subr.bf16.mxu0 0
    %617 = vmatpush1.bf16.msra.mxu0 0
    %618 = vmatprep.subr.bf16.mxu0 0
    %619 = vmatpush1.bf16.msra.mxu0 0
    %620 = vmatprep.subr.bf16.mxu0 0
    %621 = vmatpush1.bf16.msra.mxu0 0
    %622 = vmatprep.subr.bf16.mxu0 0
    %623 = vmatpush1.bf16.msra.mxu0 0
    %624 = vmatprep.subr.bf16.mxu0 0
    %625 = vmatpush1.bf16.msra.mxu0 0
    %626 = vmatprep.mubr.bf16.mxu0 0
    %627 = vmatmul.mubr.bf16.gmra.mrb[0].mxu0 %v550
    %v628 = vpop.f32.mrb[0].mxu0
    %v629 = vadd.f32 0.0, %v628
    %v630 = vpop.f32.mrb[0].mxu0
    %v631 = vpop.f32.mrb[0].mxu0
    %v632 = vpop.f32.mrb[0].mxu0
    %633 = vdwg.mxu0
    %v634 = vadd.f32 %v593, %v629
    %v635 = vxor.u32 %v634, 2147483648
    %v636 = vmul.f32 %v635, 1.442695
    %v637 = vpow.pop %v636
    %v638 = vadd.f32 %v637, 1.0
    %v639 = vrcp.pop %v638
    %v640 = vmul.f32 1.0, %v639
    %v641 = vtanh.pop %v634
    %v642 = vmul.f32 %v640, %v538
    %644 = vrot.lane.b32.xlu0 %v641, 32
    %v645 = vpop.permute.xlu0 %644
    %v647 = vmul.f32 %v640, %v645
    %649 = vrot.lane.b32.xlu0 %v647, 32
    %v650 = vpop.permute.xlu0 %649
    %v652 = vadd.f32 %v642, %v650
    %v653 = vtanh.pop %v652
    %655 = vrot.lane.b32.xlu0 %v653, 32
    %v656 = vpop.permute.xlu0 %655
    %v658 = vmul.f32 %v640, %v656
    %v659 = vpack.c.bf16 %v658, %v658
    %661 = vrot.lane.b32.xlu0 %v659, 64
    %v662 = vpop.permute.xlu0 %661
    %v664 = vsel %vm73, %v662, 0
    %666 = vmatprep.subr.bf16.mxu0 0
    %667 = vmatpush1.bf16.msra.mxu0 %v431
    %668 = vmatprep.subr.bf16.mxu0 0
    %669 = vmatpush1.bf16.msra.mxu0 %v432
    %670 = vmatprep.subr.bf16.mxu0 0
    %671 = vmatpush1.bf16.msra.mxu0 0
    %672 = vmatprep.subr.bf16.mxu0 0
    %673 = vmatpush1.bf16.msra.mxu0 0
    %674 = vmatprep.subr.bf16.mxu0 0
    %675 = vmatpush1.bf16.msra.mxu0 0
    %676 = vmatprep.subr.bf16.mxu0 0
    %677 = vmatpush1.bf16.msra.mxu0 0
    %678 = vmatprep.subr.bf16.mxu0 0
    %679 = vmatpush1.bf16.msra.mxu0 0
    %680 = vmatprep.subr.bf16.mxu0 0
    %681 = vmatpush1.bf16.msra.mxu0 0
    %682 = vmatprep.subr.bf16.mxu0 0
    %683 = vmatpush1.bf16.msra.mxu0 0
    %684 = vmatprep.subr.bf16.mxu0 0
    %685 = vmatpush1.bf16.msra.mxu0 0
    %686 = vmatprep.subr.bf16.mxu0 0
    %687 = vmatpush1.bf16.msra.mxu0 0
    %688 = vmatprep.subr.bf16.mxu0 0
    %689 = vmatpush1.bf16.msra.mxu0 0
    %690 = vmatprep.subr.bf16.mxu0 0
    %691 = vmatpush1.bf16.msra.mxu0 0
    %692 = vmatprep.subr.bf16.mxu0 0
    %693 = vmatpush1.bf16.msra.mxu0 0
    %694 = vmatprep.subr.bf16.mxu0 0
    %695 = vmatpush1.bf16.msra.mxu0 0
    %696 = vmatprep.subr.bf16.mxu0 0
    %697 = vmatpush1.bf16.msra.mxu0 0
    %698 = vmatprep.mubr.bf16.mxu0 0
    %699 = vmatmul.mubr.bf16.gmra.mrb[0].mxu0 %v664
    %v700 = vpop.f32.mrb[0].mxu0
    %v701 = vadd.f32 %v418, %v700
    %v702 = vpop.f32.mrb[0].mxu0
    %v703 = vpop.f32.mrb[0].mxu0
    %v704 = vpop.f32.mrb[0].mxu0
    %705 = vdwg.mxu0
    %706 = vst [vmem:[#allocation3 + $0x10] sm:$0xff] %v701
    %v707 = vld [vmem:[#allocation2 + $0x18] sm:$0xff]
    %708 = vmatprep.subr.bf16.mxu0 0
    %709 = vmatpush1.bf16.msra.mxu0 %v337
    %710 = vmatprep.subr.bf16.mxu0 0
    %711 = vmatpush1.bf16.msra.mxu0 %v338
    %712 = vmatprep.subr.bf16.mxu0 0
    %713 = vmatpush1.bf16.msra.mxu0 0
    %714 = vmatprep.subr.bf16.mxu0 0
    %715 = vmatpush1.bf16.msra.mxu0 0
    %716 = vmatprep.subr.bf16.mxu0 0
    %717 = vmatpush1.bf16.msra.mxu0 0
    %718 = vmatprep.subr.bf16.mxu0 0
    %719 = vmatpush1.bf16.msra.mxu0 0
    %720 = vmatprep.subr.bf16.mxu0 0
    %721 = vmatpush1.bf16.msra.mxu0 0
    %722 = vmatprep.subr.bf16.mxu0 0
    %723 = vmatpush1.bf16.msra.mxu0 0
    %724 = vmatprep.subr.bf16.mxu0 0
    %725 = vmatpush1.bf16.msra.mxu0 0
    %726 = vmatprep.subr.bf16.mxu0 0
    %727 = vmatpush1.bf16.msra.mxu0 0
    %728 = vmatprep.subr.bf16.mxu0 0
    %729 = vmatpush1.bf16.msra.mxu0 0
    %730 = vmatprep.subr.bf16.mxu0 0
    %731 = vmatpush1.bf16.msra.mxu0 0
    %732 = vmatprep.subr.bf16.mxu0 0
    %733 = vmatpush1.bf16.msra.mxu0 0
    %734 = vmatprep.subr.bf16.mxu0 0
    %735 = vmatpush1.bf16.msra.mxu0 0
    %736 = vmatprep.subr.bf16.mxu0 0
    %737 = vmatpush1.bf16.msra.mxu0 0
    %738 = vmatprep.subr.bf16.mxu0 0
    %739 = vmatpush1.bf16.msra.mxu0 0
    %740 = vmatprep.mubr.bf16.mxu0 0
    %741 = vmatmul.mubr.bf16.gmra.mrb[0].mxu0 %v664
    %v742 = vpop.f32.mrb[0].mxu0
    %v743 = vadd.f32 0.0, %v742
    %v744 = vpop.f32.mrb[0].mxu0
    %v745 = vpop.f32.mrb[0].mxu0
    %v746 = vpop.f32.mrb[0].mxu0
    %747 = vdwg.mxu0
    %v748 = vadd.f32 %v707, %v743
    %v749 = vxor.u32 %v748, 2147483648
    %v750 = vmul.f32 %v749, 1.442695
    %v751 = vpow.pop %v750
    %v752 = vadd.f32 %v751, 1.0
    %v753 = vrcp.pop %v752
    %v754 = vmul.f32 1.0, %v753
    %v755 = vtanh.pop %v748
    %v756 = vmul.f32 %v754, %v652
    %758 = vrot.lane.b32.xlu0 %v755, 32
    %v759 = vpop.permute.xlu0 %758
    %v761 = vmul.f32 %v754, %v759
    %763 = vrot.lane.b32.xlu0 %v761, 32
    %v764 = vpop.permute.xlu0 %763
    %v766 = vadd.f32 %v756, %v764
    %v767 = vtanh.pop %v766
    %769 = vrot.lane.b32.xlu0 %v767, 32
    %v770 = vpop.permute.xlu0 %769
    %v772 = vmul.f32 %v754, %v770
    %v773 = vpack.c.bf16 %v772, %v772
    %775 = vrot.lane.b32.xlu0 %v773, 64
    %v776 = vpop.permute.xlu0 %775
    %v778 = vsel %vm73, %v776, 0
    %780 = vmatprep.subr.bf16.mxu0 0
    %781 = vmatpush1.bf16.msra.mxu0 %v431
    %782 = vmatprep.subr.bf16.mxu0 0
    %783 = vmatpush1.bf16.msra.mxu0 %v432
    %784 = vmatprep.subr.bf16.mxu0 0
    %785 = vmatpush1.bf16.msra.mxu0 0
    %786 = vmatprep.subr.bf16.mxu0 0
    %787 = vmatpush1.bf16.msra.mxu0 0
    %788 = vmatprep.subr.bf16.mxu0 0
    %789 = vmatpush1.bf16.msra.mxu0 0
    %790 = vmatprep.subr.bf16.mxu0 0
    %791 = vmatpush1.bf16.msra.mxu0 0
    %792 = vmatprep.subr.bf16.mxu0 0
    %793 = vmatpush1.bf16.msra.mxu0 0
    %794 = vmatprep.subr.bf16.mxu0 0
    %795 = vmatpush1.bf16.msra.mxu0 0
    %796 = vmatprep.subr.bf16.mxu0 0
    %797 = vmatpush1.bf16.msra.mxu0 0
    %798 = vmatprep.subr.bf16.mxu0 0
    %799 = vmatpush1.bf16.msra.mxu0 0
    %800 = vmatprep.subr.bf16.mxu0 0
    %801 = vmatpush1.bf16.msra.mxu0 0
    %802 = vmatprep.subr.bf16.mxu0 0
    %803 = vmatpush1.bf16.msra.mxu0 0
    %804 = vmatprep.subr.bf16.mxu0 0
    %805 = vmatpush1.bf16.msra.mxu0 0
    %806 = vmatprep.subr.bf16.mxu0 0
    %807 = vmatpush1.bf16.msra.mxu0 0
    %808 = vmatprep.subr.bf16.mxu0 0
    %809 = vmatpush1.bf16.msra.mxu0 0
    %810 = vmatprep.subr.bf16.mxu0 0
    %811 = vmatpush1.bf16.msra.mxu0 0
    %812 = vmatprep.mubr.bf16.mxu0 0
    %813 = vmatmul.mubr.bf16.gmra.mrb[0].mxu0 %v778
    %v814 = vpop.f32.mrb[0].mxu0
    %v815 = vadd.f32 %v418, %v814
    %v816 = vpop.f32.mrb[0].mxu0
    %v817 = vpop.f32.mrb[0].mxu0
    %v818 = vpop.f32.mrb[0].mxu0
    %819 = vdwg.mxu0
    %820 = vst [vmem:[#allocation3 + $0x18] sm:$0xff] %v815
    %v821 = vld [vmem:[#allocation2 + $0x20] sm:$0xff]
    %822 = vmatprep.subr.bf16.mxu0 0
    %823 = vmatpush1.bf16.msra.mxu0 %v337
    %824 = vmatprep.subr.bf16.mxu0 0
    %825 = vmatpush1.bf16.msra.mxu0 %v338
    %826 = vmatprep.subr.bf16.mxu0 0
    %827 = vmatpush1.bf16.msra.mxu0 0
    %828 = vmatprep.subr.bf16.mxu0 0
    %829 = vmatpush1.bf16.msra.mxu0 0
    %830 = vmatprep.subr.bf16.mxu0 0
    %831 = vmatpush1.bf16.msra.mxu0 0
    %832 = vmatprep.subr.bf16.mxu0 0
    %833 = vmatpush1.bf16.msra.mxu0 0
    %834 = vmatprep.subr.bf16.mxu0 0
    %835 = vmatpush1.bf16.msra.mxu0 0
    %836 = vmatprep.subr.bf16.mxu0 0
    %837 = vmatpush1.bf16.msra.mxu0 0
    %838 = vmatprep.subr.bf16.mxu0 0
    %839 = vmatpush1.bf16.msra.mxu0 0
    %840 = vmatprep.subr.bf16.mxu0 0
    %841 = vmatpush1.bf16.msra.mxu0 0
    %842 = vmatprep.subr.bf16.mxu0 0
    %843 = vmatpush1.bf16.msra.mxu0 0
    %844 = vmatprep.subr.bf16.mxu0 0
    %845 = vmatpush1.bf16.msra.mxu0 0
    %846 = vmatprep.subr.bf16.mxu0 0
    %847 = vmatpush1.bf16.msra.mxu0 0
    %848 = vmatprep.subr.bf16.mxu0 0
    %849 = vmatpush1.bf16.msra.mxu0 0
    %850 = vmatprep.subr.bf16.mxu0 0
    %851 = vmatpush1.bf16.msra.mxu0 0
    %852 = vmatprep.subr.bf16.mxu0 0
    %853 = vmatpush1.bf16.msra.mxu0 0
    %854 = vmatprep.mubr.bf16.mxu0 0
    %855 = vmatmul.mubr.bf16.gmra.mrb[0].mxu0 %v778
    %v856 = vpop.f32.mrb[0].mxu0
    %v857 = vadd.f32 0.0, %v856
    %v858 = vpop.f32.mrb[0].mxu0
    %v859 = vpop.f32.mrb[0].mxu0
    %v860 = vpop.f32.mrb[0].mxu0
    %861 = vdwg.mxu0
    %v862 = vadd.f32 %v821, %v857
    %v863 = vxor.u32 %v862, 2147483648
    %v864 = vmul.f32 %v863, 1.442695
    %v865 = vpow.pop %v864
    %v866 = vadd.f32 %v865, 1.0
    %v867 = vrcp.pop %v866
    %v868 = vmul.f32 1.0, %v867
    %v869 = vtanh.pop %v862
    %v870 = vmul.f32 %v868, %v766
    %872 = vrot.lane.b32.xlu0 %v869, 32
    %v873 = vpop.permute.xlu0 %872
    %v875 = vmul.f32 %v868, %v873
    %877 = vrot.lane.b32.xlu0 %v875, 32
    %v878 = vpop.permute.xlu0 %877
    %v880 = vadd.f32 %v870, %v878
    %v881 = vtanh.pop %v880
    %883 = vrot.lane.b32.xlu0 %v881, 32
    %v884 = vpop.permute.xlu0 %883
    %v886 = vmul.f32 %v868, %v884
    %v887 = vpack.c.bf16 %v886, %v886
    %889 = vrot.lane.b32.xlu0 %v887, 64
    %v890 = vpop.permute.xlu0 %889
    %v892 = vsel %vm73, %v890, 0
    %894 = vmatprep.subr.bf16.mxu0 0
    %895 = vmatpush1.bf16.msra.mxu0 %v431
    %896 = vmatprep.subr.bf16.mxu0 0
    %897 = vmatpush1.bf16.msra.mxu0 %v432
    %898 = vmatprep.subr.bf16.mxu0 0
    %899 = vmatpush1.bf16.msra.mxu0 0
    %900 = vmatprep.subr.bf16.mxu0 0
    %901 = vmatpush1.bf16.msra.mxu0 0
    %902 = vmatprep.subr.bf16.mxu0 0
    %903 = vmatpush1.bf16.msra.mxu0 0
    %904 = vmatprep.subr.bf16.mxu0 0
    %905 = vmatpush1.bf16.msra.mxu0 0
    %906 = vmatprep.subr.bf16.mxu0 0
    %907 = vmatpush1.bf16.msra.mxu0 0
    %908 = vmatprep.subr.bf16.mxu0 0
    %909 = vmatpush1.bf16.msra.mxu0 0
    %910 = vmatprep.subr.bf16.mxu0 0
    %911 = vmatpush1.bf16.msra.mxu0 0
    %912 = vmatprep.subr.bf16.mxu0 0
    %913 = vmatpush1.bf16.msra.mxu0 0
    %914 = vmatprep.subr.bf16.mxu0 0
    %915 = vmatpush1.bf16.msra.mxu0 0
    %916 = vmatprep.subr.bf16.mxu0 0
    %917 = vmatpush1.bf16.msra.mxu0 0
    %918 = vmatprep.subr.bf16.mxu0 0
    %919 = vmatpush1.bf16.msra.mxu0 0
    %920 = vmatprep.subr.bf16.mxu0 0
    %921 = vmatpush1.bf16.msra.mxu0 0
    %922 = vmatprep.subr.bf16.mxu0 0
    %923 = vmatpush1.bf16.msra.mxu0 0
    %924 = vmatprep.subr.bf16.mxu0 0
    %925 = vmatpush1.bf16.msra.mxu0 0
    %926 = vmatprep.mubr.bf16.mxu0 0
    %927 = vmatmul.mubr.bf16.gmra.mrb[0].mxu0 %v892
    %v928 = vpop.f32.mrb[0].mxu0
    %v929 = vadd.f32 %v418, %v928
    %v930 = vpop.f32.mrb[0].mxu0
    %v931 = vpop.f32.mrb[0].mxu0
    %v932 = vpop.f32.mrb[0].mxu0
    %933 = vdwg.mxu0
    %934 = vst [vmem:[#allocation3 + $0x20] sm:$0xff] %v929
    %v935 = vld [vmem:[#allocation2 + $0x28] sm:$0xff]
    %936 = vmatprep.subr.bf16.mxu0 0
    %937 = vmatpush1.bf16.msra.mxu0 %v337
    %938 = vmatprep.subr.bf16.mxu0 0
    %939 = vmatpush1.bf16.msra.mxu0 %v338
    %940 = vmatprep.subr.bf16.mxu0 0
    %941 = vmatpush1.bf16.msra.mxu0 0
    %942 = vmatprep.subr.bf16.mxu0 0
    %943 = vmatpush1.bf16.msra.mxu0 0
    %944 = vmatprep.subr.bf16.mxu0 0
    %945 = vmatpush1.bf16.msra.mxu0 0
    %946 = vmatprep.subr.bf16.mxu0 0
    %947 = vmatpush1.bf16.msra.mxu0 0
    %948 = vmatprep.subr.bf16.mxu0 0
    %949 = vmatpush1.bf16.msra.mxu0 0
    %950 = vmatprep.subr.bf16.mxu0 0
    %951 = vmatpush1.bf16.msra.mxu0 0
    %952 = vmatprep.subr.bf16.mxu0 0
    %953 = vmatpush1.bf16.msra.mxu0 0
    %954 = vmatprep.subr.bf16.mxu0 0
    %955 = vmatpush1.bf16.msra.mxu0 0
    %956 = vmatprep.subr.bf16.mxu0 0
    %957 = vmatpush1.bf16.msra.mxu0 0
    %958 = vmatprep.subr.bf16.mxu0 0
    %959 = vmatpush1.bf16.msra.mxu0 0
    %960 = vmatprep.subr.bf16.mxu0 0
    %961 = vmatpush1.bf16.msra.mxu0 0
    %962 = vmatprep.subr.bf16.mxu0 0
    %963 = vmatpush1.bf16.msra.mxu0 0
    %964 = vmatprep.subr.bf16.mxu0 0
    %965 = vmatpush1.bf16.msra.mxu0 0
    %966 = vmatprep.subr.bf16.mxu0 0
    %967 = vmatpush1.bf16.msra.mxu0 0
    %968 = vmatprep.mubr.bf16.mxu0 0
    %969 = vmatmul.mubr.bf16.gmra.mrb[0].mxu0 %v892
    %v970 = vpop.f32.mrb[0].mxu0
    %v971 = vadd.f32 0.0, %v970
    %v972 = vpop.f32.mrb[0].mxu0
    %v973 = vpop.f32.mrb[0].mxu0
    %v974 = vpop.f32.mrb[0].mxu0
    %975 = vdwg.mxu0
    %v976 = vadd.f32 %v935, %v971
    %v977 = vxor.u32 %v976, 2147483648
    %v978 = vmul.f32 %v977, 1.442695
    %v979 = vpow.pop %v978
    %v980 = vadd.f32 %v979, 1.0
    %v981 = vrcp.pop %v980
    %v982 = vmul.f32 1.0, %v981
    %v983 = vtanh.pop %v976
    %v984 = vmul.f32 %v982, %v880
    %986 = vrot.lane.b32.xlu0 %v983, 32
    %v987 = vpop.permute.xlu0 %986
    %v989 = vmul.f32 %v982, %v987
    %991 = vrot.lane.b32.xlu0 %v989, 32
    %v992 = vpop.permute.xlu0 %991
    %v994 = vadd.f32 %v984, %v992
    %v995 = vtanh.pop %v994
    %997 = vrot.lane.b32.xlu0 %v995, 32
    %v998 = vpop.permute.xlu0 %997
    %v1000 = vmul.f32 %v982, %v998
    %v1001 = vpack.c.bf16 %v1000, %v1000
    %1003 = vrot.lane.b32.xlu0 %v1001, 64
    %v1004 = vpop.permute.xlu0 %1003
    %v1006 = vsel %vm73, %v1004, 0
    %1008 = vmatprep.subr.bf16.mxu0 0
    %1009 = vmatpush1.bf16.msra.mxu0 %v431
    %1010 = vmatprep.subr.bf16.mxu0 0
    %1011 = vmatpush1.bf16.msra.mxu0 %v432
    %1012 = vmatprep.subr.bf16.mxu0 0
    %1013 = vmatpush1.bf16.msra.mxu0 0
    %1014 = vmatprep.subr.bf16.mxu0 0
    %1015 = vmatpush1.bf16.msra.mxu0 0
    %1016 = vmatprep.subr.bf16.mxu0 0
    %1017 = vmatpush1.bf16.msra.mxu0 0
    %1018 = vmatprep.subr.bf16.mxu0 0
    %1019 = vmatpush1.bf16.msra.mxu0 0
    %1020 = vmatprep.subr.bf16.mxu0 0
    %1021 = vmatpush1.bf16.msra.mxu0 0
    %1022 = vmatprep.subr.bf16.mxu0 0
    %1023 = vmatpush1.bf16.msra.mxu0 0
    %1024 = vmatprep.subr.bf16.mxu0 0
    %1025 = vmatpush1.bf16.msra.mxu0 0
    %1026 = vmatprep.subr.bf16.mxu0 0
    %1027 = vmatpush1.bf16.msra.mxu0 0
    %1028 = vmatprep.subr.bf16.mxu0 0
    %1029 = vmatpush1.bf16.msra.mxu0 0
    %1030 = vmatprep.subr.bf16.mxu0 0
    %1031 = vmatpush1.bf16.msra.mxu0 0
    %1032 = vmatprep.subr.bf16.mxu0 0
    %1033 = vmatpush1.bf16.msra.mxu0 0
    %1034 = vmatprep.subr.bf16.mxu0 0
    %1035 = vmatpush1.bf16.msra.mxu0 0
    %1036 = vmatprep.subr.bf16.mxu0 0
    %1037 = vmatpush1.bf16.msra.mxu0 0
    %1038 = vmatprep.subr.bf16.mxu0 0
    %1039 = vmatpush1.bf16.msra.mxu0 0
    %1040 = vmatprep.mubr.bf16.mxu0 0
    %1041 = vmatmul.mubr.bf16.gmra.mrb[0].mxu0 %v1006
    %v1042 = vpop.f32.mrb[0].mxu0
    %v1043 = vadd.f32 %v418, %v1042
    %v1044 = vpop.f32.mrb[0].mxu0
    %v1045 = vpop.f32.mrb[0].mxu0
    %v1046 = vpop.f32.mrb[0].mxu0
    %1047 = vdwg.mxu0
    %1048 = vst [vmem:[#allocation3 + $0x28] sm:$0xff] %v1043
    %v1049 = vld [vmem:[#allocation2 + $0x30] sm:$0xff]
    %1050 = vmatprep.subr.bf16.mxu0 0
    %1051 = vmatpush1.bf16.msra.mxu0 %v337
    %1052 = vmatprep.subr.bf16.mxu0 0
    %1053 = vmatpush1.bf16.msra.mxu0 %v338
    %1054 = vmatprep.subr.bf16.mxu0 0
    %1055 = vmatpush1.bf16.msra.mxu0 0
    %1056 = vmatprep.subr.bf16.mxu0 0
    %1057 = vmatpush1.bf16.msra.mxu0 0
    %1058 = vmatprep.subr.bf16.mxu0 0
    %1059 = vmatpush1.bf16.msra.mxu0 0
    %1060 = vmatprep.subr.bf16.mxu0 0
    %1061 = vmatpush1.bf16.msra.mxu0 0
    %1062 = vmatprep.subr.bf16.mxu0 0
    %1063 = vmatpush1.bf16.msra.mxu0 0
    %1064 = vmatprep.subr.bf16.mxu0 0
    %1065 = vmatpush1.bf16.msra.mxu0 0
    %1066 = vmatprep.subr.bf16.mxu0 0
    %1067 = vmatpush1.bf16.msra.mxu0 0
    %1068 = vmatprep.subr.bf16.mxu0 0
    %1069 = vmatpush1.bf16.msra.mxu0 0
    %1070 = vmatprep.subr.bf16.mxu0 0
    %1071 = vmatpush1.bf16.msra.mxu0 0
    %1072 = vmatprep.subr.bf16.mxu0 0
    %1073 = vmatpush1.bf16.msra.mxu0 0
    %1074 = vmatprep.subr.bf16.mxu0 0
    %1075 = vmatpush1.bf16.msra.mxu0 0
    %1076 = vmatprep.subr.bf16.mxu0 0
    %1077 = vmatpush1.bf16.msra.mxu0 0
    %1078 = vmatprep.subr.bf16.mxu0 0
    %1079 = vmatpush1.bf16.msra.mxu0 0
    %1080 = vmatprep.subr.bf16.mxu0 0
    %1081 = vmatpush1.bf16.msra.mxu0 0
    %1082 = vmatprep.mubr.bf16.mxu0 0
    %1083 = vmatmul.mubr.bf16.gmra.mrb[0].mxu0 %v1006
    %v1084 = vpop.f32.mrb[0].mxu0
    %v1085 = vadd.f32 0.0, %v1084
    %v1086 = vpop.f32.mrb[0].mxu0
    %v1087 = vpop.f32.mrb[0].mxu0
    %v1088 = vpop.f32.mrb[0].mxu0
    %1089 = vdwg.mxu0
    %v1090 = vadd.f32 %v1049, %v1085
    %v1091 = vxor.u32 %v1090, 2147483648
    %v1092 = vmul.f32 %v1091, 1.442695
    %v1093 = vpow.pop %v1092
    %v1094 = vadd.f32 %v1093, 1.0
    %v1095 = vrcp.pop %v1094
    %v1096 = vmul.f32 1.0, %v1095
    %v1097 = vtanh.pop %v1090
    %v1098 = vmul.f32 %v1096, %v994
    %1100 = vrot.lane.b32.xlu0 %v1097, 32
    %v1101 = vpop.permute.xlu0 %1100
    %v1103 = vmul.f32 %v1096, %v1101
    %1105 = vrot.lane.b32.xlu0 %v1103, 32
    %v1106 = vpop.permute.xlu0 %1105
    %v1108 = vadd.f32 %v1098, %v1106
    %v1109 = vtanh.pop %v1108
    %1111 = vrot.lane.b32.xlu0 %v1109, 32
    %v1112 = vpop.permute.xlu0 %1111
    %v1114 = vmul.f32 %v1096, %v1112
    %v1115 = vpack.c.bf16 %v1114, %v1114
    %1117 = vrot.lane.b32.xlu0 %v1115, 64
    %v1118 = vpop.permute.xlu0 %1117
    %v1120 = vsel %vm73, %v1118, 0
    %1122 = vmatprep.subr.bf16.mxu0 0
    %1123 = vmatpush1.bf16.msra.mxu0 %v431
    %1124 = vmatprep.subr.bf16.mxu0 0
    %1125 = vmatpush1.bf16.msra.mxu0 %v432
    %1126 = vmatprep.subr.bf16.mxu0 0
    %1127 = vmatpush1.bf16.msra.mxu0 0
    %1128 = vmatprep.subr.bf16.mxu0 0
    %1129 = vmatpush1.bf16.msra.mxu0 0
    %1130 = vmatprep.subr.bf16.mxu0 0
    %1131 = vmatpush1.bf16.msra.mxu0 0
    %1132 = vmatprep.subr.bf16.mxu0 0
    %1133 = vmatpush1.bf16.msra.mxu0 0
    %1134 = vmatprep.subr.bf16.mxu0 0
    %1135 = vmatpush1.bf16.msra.mxu0 0
    %1136 = vmatprep.subr.bf16.mxu0 0
    %1137 = vmatpush1.bf16.msra.mxu0 0
    %1138 = vmatprep.subr.bf16.mxu0 0
    %1139 = vmatpush1.bf16.msra.mxu0 0
    %1140 = vmatprep.subr.bf16.mxu0 0
    %1141 = vmatpush1.bf16.msra.mxu0 0
    %1142 = vmatprep.subr.bf16.mxu0 0
    %1143 = vmatpush1.bf16.msra.mxu0 0
    %1144 = vmatprep.subr.bf16.mxu0 0
    %1145 = vmatpush1.bf16.msra.mxu0 0
    %1146 = vmatprep.subr.bf16.mxu0 0
    %1147 = vmatpush1.bf16.msra.mxu0 0
    %1148 = vmatprep.subr.bf16.mxu0 0
    %1149 = vmatpush1.bf16.msra.mxu0 0
    %1150 = vmatprep.subr.bf16.mxu0 0
    %1151 = vmatpush1.bf16.msra.mxu0 0
    %1152 = vmatprep.subr.bf16.mxu0 0
    %1153 = vmatpush1.bf16.msra.mxu0 0
    %1154 = vmatprep.mubr.bf16.mxu0 0
    %1155 = vmatmul.mubr.bf16.gmra.mrb[0].mxu0 %v1120
    %v1156 = vpop.f32.mrb[0].mxu0
    %v1157 = vadd.f32 %v418, %v1156
    %v1158 = vpop.f32.mrb[0].mxu0
    %v1159 = vpop.f32.mrb[0].mxu0
    %v1160 = vpop.f32.mrb[0].mxu0
    %1161 = vdwg.mxu0
    %1162 = vst [vmem:[#allocation3 + $0x30] sm:$0xff] %v1157
    %v1163 = vld [vmem:[#allocation2 + $0x38] sm:$0xff]
    %1164 = vmatprep.subr.bf16.mxu0 0
    %1165 = vmatpush1.bf16.msra.mxu0 %v337
    %1166 = vmatprep.subr.bf16.mxu0 0
    %1167 = vmatpush1.bf16.msra.mxu0 %v338
    %1168 = vmatprep.subr.bf16.mxu0 0
    %1169 = vmatpush1.bf16.msra.mxu0 0
    %1170 = vmatprep.subr.bf16.mxu0 0
    %1171 = vmatpush1.bf16.msra.mxu0 0
    %1172 = vmatprep.subr.bf16.mxu0 0
    %1173 = vmatpush1.bf16.msra.mxu0 0
    %1174 = vmatprep.subr.bf16.mxu0 0
    %1175 = vmatpush1.bf16.msra.mxu0 0
    %1176 = vmatprep.subr.bf16.mxu0 0
    %1177 = vmatpush1.bf16.msra.mxu0 0
    %1178 = vmatprep.subr.bf16.mxu0 0
    %1179 = vmatpush1.bf16.msra.mxu0 0
    %1180 = vmatprep.subr.bf16.mxu0 0
    %1181 = vmatpush1.bf16.msra.mxu0 0
    %1182 = vmatprep.subr.bf16.mxu0 0
    %1183 = vmatpush1.bf16.msra.mxu0 0
    %1184 = vmatprep.subr.bf16.mxu0 0
    %1185 = vmatpush1.bf16.msra.mxu0 0
    %1186 = vmatprep.subr.bf16.mxu0 0
    %1187 = vmatpush1.bf16.msra.mxu0 0
    %1188 = vmatprep.subr.bf16.mxu0 0
    %1189 = vmatpush1.bf16.msra.mxu0 0
    %1190 = vmatprep.subr.bf16.mxu0 0
    %1191 = vmatpush1.bf16.msra.mxu0 0
    %1192 = vmatprep.subr.bf16.mxu0 0
    %1193 = vmatpush1.bf16.msra.mxu0 0
    %1194 = vmatprep.subr.bf16.mxu0 0
    %1195 = vmatpush1.bf16.msra.mxu0 0
    %1196 = vmatprep.mubr.bf16.mxu0 0
    %1197 = vmatmul.mubr.bf16.gmra.mrb[0].mxu0 %v1120
    %v1198 = vpop.f32.mrb[0].mxu0
    %v1199 = vadd.f32 0.0, %v1198
    %v1200 = vpop.f32.mrb[0].mxu0
    %v1201 = vpop.f32.mrb[0].mxu0
    %v1202 = vpop.f32.mrb[0].mxu0
    %1203 = vdwg.mxu0
    %v1204 = vadd.f32 %v1163, %v1199
    %v1205 = vxor.u32 %v1204, 2147483648
    %v1206 = vmul.f32 %v1205, 1.442695
    %v1207 = vpow.pop %v1206
    %v1208 = vadd.f32 %v1207, 1.0
    %v1209 = vrcp.pop %v1208
    %v1210 = vmul.f32 1.0, %v1209
    %v1211 = vtanh.pop %v1204
    %v1212 = vmul.f32 %v1210, %v1108
    %1214 = vrot.lane.b32.xlu0 %v1211, 32
    %v1215 = vpop.permute.xlu0 %1214
    %v1217 = vmul.f32 %v1210, %v1215
    %1219 = vrot.lane.b32.xlu0 %v1217, 32
    %v1220 = vpop.permute.xlu0 %1219
    %v1222 = vadd.f32 %v1212, %v1220
    %v1223 = vtanh.pop %v1222
    %1225 = vrot.lane.b32.xlu0 %v1223, 32
    %v1226 = vpop.permute.xlu0 %1225
    %v1228 = vmul.f32 %v1210, %v1226
    %v1229 = vpack.c.bf16 %v1228, %v1228
    %1231 = vrot.lane.b32.xlu0 %v1229, 64
    %v1232 = vpop.permute.xlu0 %1231
    %v1234 = vsel %vm73, %v1232, 0
    %1236 = vmatprep.subr.bf16.mxu0 0
    %1237 = vmatpush1.bf16.msra.mxu0 %v431
    %1238 = vmatprep.subr.bf16.mxu0 0
    %1239 = vmatpush1.bf16.msra.mxu0 %v432
    %1240 = vmatprep.subr.bf16.mxu0 0
    %1241 = vmatpush1.bf16.msra.mxu0 0
    %1242 = vmatprep.subr.bf16.mxu0 0
    %1243 = vmatpush1.bf16.msra.mxu0 0
    %1244 = vmatprep.subr.bf16.mxu0 0
    %1245 = vmatpush1.bf16.msra.mxu0 0
    %1246 = vmatprep.subr.bf16.mxu0 0
    %1247 = vmatpush1.bf16.msra.mxu0 0
    %1248 = vmatprep.subr.bf16.mxu0 0
    %1249 = vmatpush1.bf16.msra.mxu0 0
    %1250 = vmatprep.subr.bf16.mxu0 0
    %1251 = vmatpush1.bf16.msra.mxu0 0
    %1252 = vmatprep.subr.bf16.mxu0 0
    %1253 = vmatpush1.bf16.msra.mxu0 0
    %1254 = vmatprep.subr.bf16.mxu0 0
    %1255 = vmatpush1.bf16.msra.mxu0 0
    %1256 = vmatprep.subr.bf16.mxu0 0
    %1257 = vmatpush1.bf16.msra.mxu0 0
    %1258 = vmatprep.subr.bf16.mxu0 0
    %1259 = vmatpush1.bf16.msra.mxu0 0
    %1260 = vmatprep.subr.bf16.mxu0 0
    %1261 = vmatpush1.bf16.msra.mxu0 0
    %1262 = vmatprep.subr.bf16.mxu0 0
    %1263 = vmatpush1.bf16.msra.mxu0 0
    %1264 = vmatprep.subr.bf16.mxu0 0
    %1265 = vmatpush1.bf16.msra.mxu0 0
    %1266 = vmatprep.subr.bf16.mxu0 0
    %1267 = vmatpush1.bf16.msra.mxu0 0
    %1268 = vmatprep.mubr.bf16.mxu0 0
    %1269 = vmatmul.mubr.bf16.gmra.mrb[0].mxu0 %v1234
    %v1270 = vpop.f32.mrb[0].mxu0
    %v1271 = vadd.f32 %v418, %v1270
    %v1272 = vpop.f32.mrb[0].mxu0
    %v1273 = vpop.f32.mrb[0].mxu0
    %v1274 = vpop.f32.mrb[0].mxu0
    %1275 = vdwg.mxu0
    %1276 = vst [vmem:[#allocation3 + $0x38] sm:$0xff] %v1271
    %v1277 = vld [vmem:[#allocation2 + $0x40] sm:$0xff]
    %1278 = vmatprep.subr.bf16.mxu0 0
    %1279 = vmatpush1.bf16.msra.mxu0 %v337
    %1280 = vmatprep.subr.bf16.mxu0 0
    %1281 = vmatpush1.bf16.msra.mxu0 %v338
    %1282 = vmatprep.subr.bf16.mxu0 0
    %1283 = vmatpush1.bf16.msra.mxu0 0
    %1284 = vmatprep.subr.bf16.mxu0 0
    %1285 = vmatpush1.bf16.msra.mxu0 0
    %1286 = vmatprep.subr.bf16.mxu0 0
    %1287 = vmatpush1.bf16.msra.mxu0 0
    %1288 = vmatprep.subr.bf16.mxu0 0
    %1289 = vmatpush1.bf16.msra.mxu0 0
    %1290 = vmatprep.subr.bf16.mxu0 0
    %1291 = vmatpush1.bf16.msra.mxu0 0
    %1292 = vmatprep.subr.bf16.mxu0 0
    %1293 = vmatpush1.bf16.msra.mxu0 0
    %1294 = vmatprep.subr.bf16.mxu0 0
    %1295 = vmatpush1.bf16.msra.mxu0 0
    %1296 = vmatprep.subr.bf16.mxu0 0
    %1297 = vmatpush1.bf16.msra.mxu0 0
    %1298 = vmatprep.subr.bf16.mxu0 0
    %1299 = vmatpush1.bf16.msra.mxu0 0
    %1300 = vmatprep.subr.bf16.mxu0 0
    %1301 = vmatpush1.bf16.msra.mxu0 0
    %1302 = vmatprep.subr.bf16.mxu0 0
    %1303 = vmatpush1.bf16.msra.mxu0 0
    %1304 = vmatprep.subr.bf16.mxu0 0
    %1305 = vmatpush1.bf16.msra.mxu0 0
    %1306 = vmatprep.subr.bf16.mxu0 0
    %1307 = vmatpush1.bf16.msra.mxu0 0
    %1308 = vmatprep.subr.bf16.mxu0 0
    %1309 = vmatpush1.bf16.msra.mxu0 0
    %1310 = vmatprep.mubr.bf16.mxu0 0
    %1311 = vmatmul.mubr.bf16.gmra.mrb[0].mxu0 %v1234
    %v1312 = vpop.f32.mrb[0].mxu0
    %v1313 = vadd.f32 0.0, %v1312
    %v1314 = vpop.f32.mrb[0].mxu0
    %v1315 = vpop.f32.mrb[0].mxu0
    %v1316 = vpop.f32.mrb[0].mxu0
    %1317 = vdwg.mxu0
    %v1318 = vadd.f32 %v1277, %v1313
    %v1319 = vxor.u32 %v1318, 2147483648
    %v1320 = vmul.f32 %v1319, 1.442695
    %v1321 = vpow.pop %v1320
    %v1322 = vadd.f32 %v1321, 1.0
    %v1323 = vrcp.pop %v1322
    %v1324 = vmul.f32 1.0, %v1323
    %v1325 = vtanh.pop %v1318
    %v1326 = vmul.f32 %v1324, %v1222
    %1328 = vrot.lane.b32.xlu0 %v1325, 32
    %v1329 = vpop.permute.xlu0 %1328
    %v1331 = vmul.f32 %v1324, %v1329
    %1333 = vrot.lane.b32.xlu0 %v1331, 32
    %v1334 = vpop.permute.xlu0 %1333
    %v1336 = vadd.f32 %v1326, %v1334
    %v1337 = vtanh.pop %v1336
    %1339 = vrot.lane.b32.xlu0 %v1337, 32
    %v1340 = vpop.permute.xlu0 %1339
    %v1342 = vmul.f32 %v1324, %v1340
    %v1343 = vpack.c.bf16 %v1342, %v1342
    %1345 = vrot.lane.b32.xlu0 %v1343, 64
    %v1346 = vpop.permute.xlu0 %1345
    %v1348 = vsel %vm73, %v1346, 0
    %1350 = vmatprep.subr.bf16.mxu0 0
    %1351 = vmatpush1.bf16.msra.mxu0 %v431
    %1352 = vmatprep.subr.bf16.mxu0 0
    %1353 = vmatpush1.bf16.msra.mxu0 %v432
    %1354 = vmatprep.subr.bf16.mxu0 0
    %1355 = vmatpush1.bf16.msra.mxu0 0
    %1356 = vmatprep.subr.bf16.mxu0 0
    %1357 = vmatpush1.bf16.msra.mxu0 0
    %1358 = vmatprep.subr.bf16.mxu0 0
    %1359 = vmatpush1.bf16.msra.mxu0 0
    %1360 = vmatprep.subr.bf16.mxu0 0
    %1361 = vmatpush1.bf16.msra.mxu0 0
    %1362 = vmatprep.subr.bf16.mxu0 0
    %1363 = vmatpush1.bf16.msra.mxu0 0
    %1364 = vmatprep.subr.bf16.mxu0 0
    %1365 = vmatpush1.bf16.msra.mxu0 0
    %1366 = vmatprep.subr.bf16.mxu0 0
    %1367 = vmatpush1.bf16.msra.mxu0 0
    %1368 = vmatprep.subr.bf16.mxu0 0
    %1369 = vmatpush1.bf16.msra.mxu0 0
    %1370 = vmatprep.subr.bf16.mxu0 0
    %1371 = vmatpush1.bf16.msra.mxu0 0
    %1372 = vmatprep.subr.bf16.mxu0 0
    %1373 = vmatpush1.bf16.msra.mxu0 0
    %1374 = vmatprep.subr.bf16.mxu0 0
    %1375 = vmatpush1.bf16.msra.mxu0 0
    %1376 = vmatprep.subr.bf16.mxu0 0
    %1377 = vmatpush1.bf16.msra.mxu0 0
    %1378 = vmatprep.subr.bf16.mxu0 0
    %1379 = vmatpush1.bf16.msra.mxu0 0
    %1380 = vmatprep.subr.bf16.mxu0 0
    %1381 = vmatpush1.bf16.msra.mxu0 0
    %1382 = vmatprep.mubr.bf16.mxu0 0
    %1383 = vmatmul.mubr.bf16.gmra.mrb[0].mxu0 %v1348
    %v1384 = vpop.f32.mrb[0].mxu0
    %v1385 = vadd.f32 %v418, %v1384
    %v1386 = vpop.f32.mrb[0].mxu0
    %v1387 = vpop.f32.mrb[0].mxu0
    %v1388 = vpop.f32.mrb[0].mxu0
    %1389 = vdwg.mxu0
    %1390 = vst [vmem:[#allocation3 + $0x40] sm:$0xff] %v1385
    %v1391 = vld [vmem:[#allocation2 + $0x48] sm:$0xff]
    %1392 = vmatprep.subr.bf16.mxu0 0
    %1393 = vmatpush1.bf16.msra.mxu0 %v337
    %1394 = vmatprep.subr.bf16.mxu0 0
    %1395 = vmatpush1.bf16.msra.mxu0 %v338
    %1396 = vmatprep.subr.bf16.mxu0 0
    %1397 = vmatpush1.bf16.msra.mxu0 0
    %1398 = vmatprep.subr.bf16.mxu0 0
    %1399 = vmatpush1.bf16.msra.mxu0 0
    %1400 = vmatprep.subr.bf16.mxu0 0
    %1401 = vmatpush1.bf16.msra.mxu0 0
    %1402 = vmatprep.subr.bf16.mxu0 0
    %1403 = vmatpush1.bf16.msra.mxu0 0
    %1404 = vmatprep.subr.bf16.mxu0 0
    %1405 = vmatpush1.bf16.msra.mxu0 0
    %1406 = vmatprep.subr.bf16.mxu0 0
    %1407 = vmatpush1.bf16.msra.mxu0 0
    %1408 = vmatprep.subr.bf16.mxu0 0
    %1409 = vmatpush1.bf16.msra.mxu0 0
    %1410 = vmatprep.subr.bf16.mxu0 0
    %1411 = vmatpush1.bf16.msra.mxu0 0
    %1412 = vmatprep.subr.bf16.mxu0 0
    %1413 = vmatpush1.bf16.msra.mxu0 0
    %1414 = vmatprep.subr.bf16.mxu0 0
    %1415 = vmatpush1.bf16.msra.mxu0 0
    %1416 = vmatprep.subr.bf16.mxu0 0
    %1417 = vmatpush1.bf16.msra.mxu0 0
    %1418 = vmatprep.subr.bf16.mxu0 0
    %1419 = vmatpush1.bf16.msra.mxu0 0
    %1420 = vmatprep.subr.bf16.mxu0 0
    %1421 = vmatpush1.bf16.msra.mxu0 0
    %1422 = vmatprep.subr.bf16.mxu0 0
    %1423 = vmatpush1.bf16.msra.mxu0 0
    %1424 = vmatprep.mubr.bf16.mxu0 0
    %1425 = vmatmul.mubr.bf16.gmra.mrb[0].mxu0 %v1348
    %v1426 = vpop.f32.mrb[0].mxu0
    %v1427 = vadd.f32 0.0, %v1426
    %v1428 = vpop.f32.mrb[0].mxu0
    %v1429 = vpop.f32.mrb[0].mxu0
    %v1430 = vpop.f32.mrb[0].mxu0
    %1431 = vdwg.mxu0
    %v1432 = vadd.f32 %v1391, %v1427
    %v1433 = vxor.u32 %v1432, 2147483648
    %v1434 = vmul.f32 %v1433, 1.442695
    %v1435 = vpow.pop %v1434
    %v1436 = vadd.f32 %v1435, 1.0
    %v1437 = vrcp.pop %v1436
    %v1438 = vmul.f32 1.0, %v1437
    %v1439 = vtanh.pop %v1432
    %v1440 = vmul.f32 %v1438, %v1336
    %1442 = vrot.lane.b32.xlu0 %v1439, 32
    %v1443 = vpop.permute.xlu0 %1442
    %v1445 = vmul.f32 %v1438, %v1443
    %1447 = vrot.lane.b32.xlu0 %v1445, 32
    %v1448 = vpop.permute.xlu0 %1447
    %v1450 = vadd.f32 %v1440, %v1448
    %v1451 = vtanh.pop %v1450
    %1453 = vrot.lane.b32.xlu0 %v1451, 32
    %v1454 = vpop.permute.xlu0 %1453
    %v1456 = vmul.f32 %v1438, %v1454
    %v1457 = vpack.c.bf16 %v1456, %v1456
    %1459 = vrot.lane.b32.xlu0 %v1457, 64
    %v1460 = vpop.permute.xlu0 %1459
    %v1462 = vsel %vm73, %v1460, 0
    %1464 = vmatprep.subr.bf16.mxu0 0
    %1465 = vmatpush1.bf16.msra.mxu0 %v431
    %1466 = vmatprep.subr.bf16.mxu0 0
    %1467 = vmatpush1.bf16.msra.mxu0 %v432
    %1468 = vmatprep.subr.bf16.mxu0 0
    %1469 = vmatpush1.bf16.msra.mxu0 0
    %1470 = vmatprep.subr.bf16.mxu0 0
    %1471 = vmatpush1.bf16.msra.mxu0 0
    %1472 = vmatprep.subr.bf16.mxu0 0
    %1473 = vmatpush1.bf16.msra.mxu0 0
    %1474 = vmatprep.subr.bf16.mxu0 0
    %1475 = vmatpush1.bf16.msra.mxu0 0
    %1476 = vmatprep.subr.bf16.mxu0 0
    %1477 = vmatpush1.bf16.msra.mxu0 0
    %1478 = vmatprep.subr.bf16.mxu0 0
    %1479 = vmatpush1.bf16.msra.mxu0 0
    %1480 = vmatprep.subr.bf16.mxu0 0
    %1481 = vmatpush1.bf16.msra.mxu0 0
    %1482 = vmatprep.subr.bf16.mxu0 0
    %1483 = vmatpush1.bf16.msra.mxu0 0
    %1484 = vmatprep.subr.bf16.mxu0 0
    %1485 = vmatpush1.bf16.msra.mxu0 0
    %1486 = vmatprep.subr.bf16.mxu0 0
    %1487 = vmatpush1.bf16.msra.mxu0 0
    %1488 = vmatprep.subr.bf16.mxu0 0
    %1489 = vmatpush1.bf16.msra.mxu0 0
    %1490 = vmatprep.subr.bf16.mxu0 0
    %1491 = vmatpush1.bf16.msra.mxu0 0
    %1492 = vmatprep.subr.bf16.mxu0 0
    %1493 = vmatpush1.bf16.msra.mxu0 0
    %1494 = vmatprep.subr.bf16.mxu0 0
    %1495 = vmatpush1.bf16.msra.mxu0 0
    %1496 = vmatprep.mubr.bf16.mxu0 0
    %1497 = vmatmul.mubr.bf16.gmra.mrb[0].mxu0 %v1462
    %v1498 = vpop.f32.mrb[0].mxu0
    %v1499 = vadd.f32 %v418, %v1498
    %v1500 = vpop.f32.mrb[0].mxu0
    %v1501 = vpop.f32.mrb[0].mxu0
    %v1502 = vpop.f32.mrb[0].mxu0
    %1503 = vdwg.mxu0
    %1504 = vst [vmem:[#allocation3 + $0x48] sm:$0xff] %v1499
    %v1505 = vld [vmem:[#allocation2 + $0x50] sm:$0xff]
    %1506 = vmatprep.subr.bf16.mxu0 0
    %1507 = vmatpush1.bf16.msra.mxu0 %v337
    %1508 = vmatprep.subr.bf16.mxu0 0
    %1509 = vmatpush1.bf16.msra.mxu0 %v338
    %1510 = vmatprep.subr.bf16.mxu0 0
    %1511 = vmatpush1.bf16.msra.mxu0 0
    %1512 = vmatprep.subr.bf16.mxu0 0
    %1513 = vmatpush1.bf16.msra.mxu0 0
    %1514 = vmatprep.subr.bf16.mxu0 0
    %1515 = vmatpush1.bf16.msra.mxu0 0
    %1516 = vmatprep.subr.bf16.mxu0 0
    %1517 = vmatpush1.bf16.msra.mxu0 0
    %1518 = vmatprep.subr.bf16.mxu0 0
    %1519 = vmatpush1.bf16.msra.mxu0 0
    %1520 = vmatprep.subr.bf16.mxu0 0
    %1521 = vmatpush1.bf16.msra.mxu0 0
    %1522 = vmatprep.subr.bf16.mxu0 0
    %1523 = vmatpush1.bf16.msra.mxu0 0
    %1524 = vmatprep.subr.bf16.mxu0 0
    %1525 = vmatpush1.bf16.msra.mxu0 0
    %1526 = vmatprep.subr.bf16.mxu0 0
    %1527 = vmatpush1.bf16.msra.mxu0 0
    %1528 = vmatprep.subr.bf16.mxu0 0
    %1529 = vmatpush1.bf16.msra.mxu0 0
    %1530 = vmatprep.subr.bf16.mxu0 0
    %1531 = vmatpush1.bf16.msra.mxu0 0
    %1532 = vmatprep.subr.bf16.mxu0 0
    %1533 = vmatpush1.bf16.msra.mxu0 0
    %1534 = vmatprep.subr.bf16.mxu0 0
    %1535 = vmatpush1.bf16.msra.mxu0 0
    %1536 = vmatprep.subr.bf16.mxu0 0
    %1537 = vmatpush1.bf16.msra.mxu0 0
    %1538 = vmatprep.mubr.bf16.mxu0 0
    %1539 = vmatmul.mubr.bf16.gmra.mrb[0].mxu0 %v1462
    %v1540 = vpop.f32.mrb[0].mxu0
    %v1541 = vadd.f32 0.0, %v1540
    %v1542 = vpop.f32.mrb[0].mxu0
    %v1543 = vpop.f32.mrb[0].mxu0
    %v1544 = vpop.f32.mrb[0].mxu0
    %1545 = vdwg.mxu0
    %v1546 = vadd.f32 %v1505, %v1541
    %v1547 = vxor.u32 %v1546, 2147483648
    %v1548 = vmul.f32 %v1547, 1.442695
    %v1549 = vpow.pop %v1548
    %v1550 = vadd.f32 %v1549, 1.0
    %v1551 = vrcp.pop %v1550
    %v1552 = vmul.f32 1.0, %v1551
    %v1553 = vtanh.pop %v1546
    %v1554 = vmul.f32 %v1552, %v1450
    %1556 = vrot.lane.b32.xlu0 %v1553, 32
    %v1557 = vpop.permute.xlu0 %1556
    %v1559 = vmul.f32 %v1552, %v1557
    %1561 = vrot.lane.b32.xlu0 %v1559, 32
    %v1562 = vpop.permute.xlu0 %1561
    %v1564 = vadd.f32 %v1554, %v1562
    %v1565 = vtanh.pop %v1564
    %1567 = vrot.lane.b32.xlu0 %v1565, 32
    %v1568 = vpop.permute.xlu0 %1567
    %v1570 = vmul.f32 %v1552, %v1568
    %v1571 = vpack.c.bf16 %v1570, %v1570
    %1573 = vrot.lane.b32.xlu0 %v1571, 64
    %v1574 = vpop.permute.xlu0 %1573
    %v1576 = vsel %vm73, %v1574, 0
    %1578 = vmatprep.subr.bf16.mxu0 0
    %1579 = vmatpush1.bf16.msra.mxu0 %v431
    %1580 = vmatprep.subr.bf16.mxu0 0
    %1581 = vmatpush1.bf16.msra.mxu0 %v432
    %1582 = vmatprep.subr.bf16.mxu0 0
    %1583 = vmatpush1.bf16.msra.mxu0 0
    %1584 = vmatprep.subr.bf16.mxu0 0
    %1585 = vmatpush1.bf16.msra.mxu0 0
    %1586 = vmatprep.subr.bf16.mxu0 0
    %1587 = vmatpush1.bf16.msra.mxu0 0
    %1588 = vmatprep.subr.bf16.mxu0 0
    %1589 = vmatpush1.bf16.msra.mxu0 0
    %1590 = vmatprep.subr.bf16.mxu0 0
    %1591 = vmatpush1.bf16.msra.mxu0 0
    %1592 = vmatprep.subr.bf16.mxu0 0
    %1593 = vmatpush1.bf16.msra.mxu0 0
    %1594 = vmatprep.subr.bf16.mxu0 0
    %1595 = vmatpush1.bf16.msra.mxu0 0
    %1596 = vmatprep.subr.bf16.mxu0 0
    %1597 = vmatpush1.bf16.msra.mxu0 0
    %1598 = vmatprep.subr.bf16.mxu0 0
    %1599 = vmatpush1.bf16.msra.mxu0 0
    %1600 = vmatprep.subr.bf16.mxu0 0
    %1601 = vmatpush1.bf16.msra.mxu0 0
    %1602 = vmatprep.subr.bf16.mxu0 0
    %1603 = vmatpush1.bf16.msra.mxu0 0
    %1604 = vmatprep.subr.bf16.mxu0 0
    %1605 = vmatpush1.bf16.msra.mxu0 0
    %1606 = vmatprep.subr.bf16.mxu0 0
    %1607 = vmatpush1.bf16.msra.mxu0 0
    %1608 = vmatprep.subr.bf16.mxu0 0
    %1609 = vmatpush1.bf16.msra.mxu0 0
    %1610 = vmatprep.mubr.bf16.mxu0 0
    %1611 = vmatmul.mubr.bf16.gmra.mrb[0].mxu0 %v1576
    %v1612 = vpop.f32.mrb[0].mxu0
    %v1613 = vadd.f32 %v418, %v1612
    %v1614 = vpop.f32.mrb[0].mxu0
    %v1615 = vpop.f32.mrb[0].mxu0
    %v1616 = vpop.f32.mrb[0].mxu0
    %1617 = vdwg.mxu0
    %1618 = vst [vmem:[#allocation3 + $0x50] sm:$0xff] %v1613
    %v1619 = vld [vmem:[#allocation2 + $0x58] sm:$0xff]
    %1620 = vmatprep.subr.bf16.mxu0 0
    %1621 = vmatpush1.bf16.msra.mxu0 %v337
    %1622 = vmatprep.subr.bf16.mxu0 0
    %1623 = vmatpush1.bf16.msra.mxu0 %v338
    %1624 = vmatprep.subr.bf16.mxu0 0
    %1625 = vmatpush1.bf16.msra.mxu0 0
    %1626 = vmatprep.subr.bf16.mxu0 0
    %1627 = vmatpush1.bf16.msra.mxu0 0
    %1628 = vmatprep.subr.bf16.mxu0 0
    %1629 = vmatpush1.bf16.msra.mxu0 0
    %1630 = vmatprep.subr.bf16.mxu0 0
    %1631 = vmatpush1.bf16.msra.mxu0 0
    %1632 = vmatprep.subr.bf16.mxu0 0
    %1633 = vmatpush1.bf16.msra.mxu0 0
    %1634 = vmatprep.subr.bf16.mxu0 0
    %1635 = vmatpush1.bf16.msra.mxu0 0
    %1636 = vmatprep.subr.bf16.mxu0 0
    %1637 = vmatpush1.bf16.msra.mxu0 0
    %1638 = vmatprep.subr.bf16.mxu0 0
    %1639 = vmatpush1.bf16.msra.mxu0 0
    %1640 = vmatprep.subr.bf16.mxu0 0
    %1641 = vmatpush1.bf16.msra.mxu0 0
    %1642 = vmatprep.subr.bf16.mxu0 0
    %1643 = vmatpush1.bf16.msra.mxu0 0
    %1644 = vmatprep.subr.bf16.mxu0 0
    %1645 = vmatpush1.bf16.msra.mxu0 0
    %1646 = vmatprep.subr.bf16.mxu0 0
    %1647 = vmatpush1.bf16.msra.mxu0 0
    %1648 = vmatprep.subr.bf16.mxu0 0
    %1649 = vmatpush1.bf16.msra.mxu0 0
    %1650 = vmatprep.subr.bf16.mxu0 0
    %1651 = vmatpush1.bf16.msra.mxu0 0
    %1652 = vmatprep.mubr.bf16.mxu0 0
    %1653 = vmatmul.mubr.bf16.gmra.mrb[0].mxu0 %v1576
    %v1654 = vpop.f32.mrb[0].mxu0
    %v1655 = vadd.f32 0.0, %v1654
    %v1656 = vpop.f32.mrb[0].mxu0
    %v1657 = vpop.f32.mrb[0].mxu0
    %v1658 = vpop.f32.mrb[0].mxu0
    %1659 = vdwg.mxu0
    %v1660 = vadd.f32 %v1619, %v1655
    %v1661 = vxor.u32 %v1660, 2147483648
    %v1662 = vmul.f32 %v1661, 1.442695
    %v1663 = vpow.pop %v1662
    %v1664 = vadd.f32 %v1663, 1.0
    %v1665 = vrcp.pop %v1664
    %v1666 = vmul.f32 1.0, %v1665
    %v1667 = vtanh.pop %v1660
    %v1668 = vmul.f32 %v1666, %v1564
    %1670 = vrot.lane.b32.xlu0 %v1667, 32
    %v1671 = vpop.permute.xlu0 %1670
    %v1673 = vmul.f32 %v1666, %v1671
    %1675 = vrot.lane.b32.xlu0 %v1673, 32
    %v1676 = vpop.permute.xlu0 %1675
    %v1678 = vadd.f32 %v1668, %v1676
    %v1679 = vtanh.pop %v1678
    %1681 = vrot.lane.b32.xlu0 %v1679, 32
    %v1682 = vpop.permute.xlu0 %1681
    %v1684 = vmul.f32 %v1666, %v1682
    %v1685 = vpack.c.bf16 %v1684, %v1684
    %1687 = vrot.lane.b32.xlu0 %v1685, 64
    %v1688 = vpop.permute.xlu0 %1687
    %v1690 = vsel %vm73, %v1688, 0
    %1692 = vmatprep.subr.bf16.mxu0 0
    %1693 = vmatpush1.bf16.msra.mxu0 %v431
    %1694 = vmatprep.subr.bf16.mxu0 0
    %1695 = vmatpush1.bf16.msra.mxu0 %v432
    %1696 = vmatprep.subr.bf16.mxu0 0
    %1697 = vmatpush1.bf16.msra.mxu0 0
    %1698 = vmatprep.subr.bf16.mxu0 0
    %1699 = vmatpush1.bf16.msra.mxu0 0
    %1700 = vmatprep.subr.bf16.mxu0 0
    %1701 = vmatpush1.bf16.msra.mxu0 0
    %1702 = vmatprep.subr.bf16.mxu0 0
    %1703 = vmatpush1.bf16.msra.mxu0 0
    %1704 = vmatprep.subr.bf16.mxu0 0
    %1705 = vmatpush1.bf16.msra.mxu0 0
    %1706 = vmatprep.subr.bf16.mxu0 0
    %1707 = vmatpush1.bf16.msra.mxu0 0
    %1708 = vmatprep.subr.bf16.mxu0 0
    %1709 = vmatpush1.bf16.msra.mxu0 0
    %1710 = vmatprep.subr.bf16.mxu0 0
    %1711 = vmatpush1.bf16.msra.mxu0 0
    %1712 = vmatprep.subr.bf16.mxu0 0
    %1713 = vmatpush1.bf16.msra.mxu0 0
    %1714 = vmatprep.subr.bf16.mxu0 0
    %1715 = vmatpush1.bf16.msra.mxu0 0
    %1716 = vmatprep.subr.bf16.mxu0 0
    %1717 = vmatpush1.bf16.msra.mxu0 0
    %1718 = vmatprep.subr.bf16.mxu0 0
    %1719 = vmatpush1.bf16.msra.mxu0 0
    %1720 = vmatprep.subr.bf16.mxu0 0
    %1721 = vmatpush1.bf16.msra.mxu0 0
    %1722 = vmatprep.subr.bf16.mxu0 0
    %1723 = vmatpush1.bf16.msra.mxu0 0
    %1724 = vmatprep.mubr.bf16.mxu0 0
    %1725 = vmatmul.mubr.bf16.gmra.mrb[0].mxu0 %v1690
    %v1726 = vpop.f32.mrb[0].mxu0
    %v1727 = vadd.f32 %v418, %v1726
    %v1728 = vpop.f32.mrb[0].mxu0
    %v1729 = vpop.f32.mrb[0].mxu0
    %v1730 = vpop.f32.mrb[0].mxu0
    %1731 = vdwg.mxu0
    %1732 = vst [vmem:[#allocation3 + $0x58] sm:$0xff] %v1727
    %v1733 = vld [vmem:[#allocation2 + $0x60] sm:$0xff]
    %1734 = vmatprep.subr.bf16.mxu0 0
    %1735 = vmatpush1.bf16.msra.mxu0 %v337
    %1736 = vmatprep.subr.bf16.mxu0 0
    %1737 = vmatpush1.bf16.msra.mxu0 %v338
    %1738 = vmatprep.subr.bf16.mxu0 0
    %1739 = vmatpush1.bf16.msra.mxu0 0
    %1740 = vmatprep.subr.bf16.mxu0 0
    %1741 = vmatpush1.bf16.msra.mxu0 0
    %1742 = vmatprep.subr.bf16.mxu0 0
    %1743 = vmatpush1.bf16.msra.mxu0 0
    %1744 = vmatprep.subr.bf16.mxu0 0
    %1745 = vmatpush1.bf16.msra.mxu0 0
    %1746 = vmatprep.subr.bf16.mxu0 0
    %1747 = vmatpush1.bf16.msra.mxu0 0
    %1748 = vmatprep.subr.bf16.mxu0 0
    %1749 = vmatpush1.bf16.msra.mxu0 0
    %1750 = vmatprep.subr.bf16.mxu0 0
    %1751 = vmatpush1.bf16.msra.mxu0 0
    %1752 = vmatprep.subr.bf16.mxu0 0
    %1753 = vmatpush1.bf16.msra.mxu0 0
    %1754 = vmatprep.subr.bf16.mxu0 0
    %1755 = vmatpush1.bf16.msra.mxu0 0
    %1756 = vmatprep.subr.bf16.mxu0 0
    %1757 = vmatpush1.bf16.msra.mxu0 0
    %1758 = vmatprep.subr.bf16.mxu0 0
    %1759 = vmatpush1.bf16.msra.mxu0 0
    %1760 = vmatprep.subr.bf16.mxu0 0
    %1761 = vmatpush1.bf16.msra.mxu0 0
    %1762 = vmatprep.subr.bf16.mxu0 0
    %1763 = vmatpush1.bf16.msra.mxu0 0
    %1764 = vmatprep.subr.bf16.mxu0 0
    %1765 = vmatpush1.bf16.msra.mxu0 0
    %1766 = vmatprep.mubr.bf16.mxu0 0
    %1767 = vmatmul.mubr.bf16.gmra.mrb[0].mxu0 %v1690
    %v1768 = vpop.f32.mrb[0].mxu0
    %v1769 = vadd.f32 0.0, %v1768
    %v1770 = vpop.f32.mrb[0].mxu0
    %v1771 = vpop.f32.mrb[0].mxu0
    %v1772 = vpop.f32.mrb[0].mxu0
    %1773 = vdwg.mxu0
    %v1774 = vadd.f32 %v1733, %v1769
    %v1775 = vxor.u32 %v1774, 2147483648
    %v1776 = vmul.f32 %v1775, 1.442695
    %v1777 = vpow.pop %v1776
    %v1778 = vadd.f32 %v1777, 1.0
    %v1779 = vrcp.pop %v1778
    %v1780 = vmul.f32 1.0, %v1779
    %v1781 = vtanh.pop %v1774
    %v1782 = vmul.f32 %v1780, %v1678
    %1784 = vrot.lane.b32.xlu0 %v1781, 32
    %v1785 = vpop.permute.xlu0 %1784
    %v1787 = vmul.f32 %v1780, %v1785
    %1789 = vrot.lane.b32.xlu0 %v1787, 32
    %v1790 = vpop.permute.xlu0 %1789
    %v1792 = vadd.f32 %v1782, %v1790
    %v1793 = vtanh.pop %v1792
    %1795 = vrot.lane.b32.xlu0 %v1793, 32
    %v1796 = vpop.permute.xlu0 %1795
    %v1798 = vmul.f32 %v1780, %v1796
    %v1799 = vpack.c.bf16 %v1798, %v1798
    %1801 = vrot.lane.b32.xlu0 %v1799, 64
    %v1802 = vpop.permute.xlu0 %1801
    %v1804 = vsel %vm73, %v1802, 0
    %1806 = vmatprep.subr.bf16.mxu0 0
    %1807 = vmatpush1.bf16.msra.mxu0 %v431
    %1808 = vmatprep.subr.bf16.mxu0 0
    %1809 = vmatpush1.bf16.msra.mxu0 %v432
    %1810 = vmatprep.subr.bf16.mxu0 0
    %1811 = vmatpush1.bf16.msra.mxu0 0
    %1812 = vmatprep.subr.bf16.mxu0 0
    %1813 = vmatpush1.bf16.msra.mxu0 0
    %1814 = vmatprep.subr.bf16.mxu0 0
    %1815 = vmatpush1.bf16.msra.mxu0 0
    %1816 = vmatprep.subr.bf16.mxu0 0
    %1817 = vmatpush1.bf16.msra.mxu0 0
    %1818 = vmatprep.subr.bf16.mxu0 0
    %1819 = vmatpush1.bf16.msra.mxu0 0
    %1820 = vmatprep.subr.bf16.mxu0 0
    %1821 = vmatpush1.bf16.msra.mxu0 0
    %1822 = vmatprep.subr.bf16.mxu0 0
    %1823 = vmatpush1.bf16.msra.mxu0 0
    %1824 = vmatprep.subr.bf16.mxu0 0
    %1825 = vmatpush1.bf16.msra.mxu0 0
    %1826 = vmatprep.subr.bf16.mxu0 0
    %1827 = vmatpush1.bf16.msra.mxu0 0
    %1828 = vmatprep.subr.bf16.mxu0 0
    %1829 = vmatpush1.bf16.msra.mxu0 0
    %1830 = vmatprep.subr.bf16.mxu0 0
    %1831 = vmatpush1.bf16.msra.mxu0 0
    %1832 = vmatprep.subr.bf16.mxu0 0
    %1833 = vmatpush1.bf16.msra.mxu0 0
    %1834 = vmatprep.subr.bf16.mxu0 0
    %1835 = vmatpush1.bf16.msra.mxu0 0
    %1836 = vmatprep.subr.bf16.mxu0 0
    %1837 = vmatpush1.bf16.msra.mxu0 0
    %1838 = vmatprep.mubr.bf16.mxu0 0
    %1839 = vmatmul.mubr.bf16.gmra.mrb[0].mxu0 %v1804
    %v1840 = vpop.f32.mrb[0].mxu0
    %v1841 = vadd.f32 %v418, %v1840
    %v1842 = vpop.f32.mrb[0].mxu0
    %v1843 = vpop.f32.mrb[0].mxu0
    %v1844 = vpop.f32.mrb[0].mxu0
    %1845 = vdwg.mxu0
    %1846 = vst [vmem:[#allocation3 + $0x60] sm:$0xff] %v1841
    %v1847 = vld [vmem:[#allocation2 + $0x68] sm:$0xff]
    %1848 = vmatprep.subr.bf16.mxu0 0
    %1849 = vmatpush1.bf16.msra.mxu0 %v337
    %1850 = vmatprep.subr.bf16.mxu0 0
    %1851 = vmatpush1.bf16.msra.mxu0 %v338
    %1852 = vmatprep.subr.bf16.mxu0 0
    %1853 = vmatpush1.bf16.msra.mxu0 0
    %1854 = vmatprep.subr.bf16.mxu0 0
    %1855 = vmatpush1.bf16.msra.mxu0 0
    %1856 = vmatprep.subr.bf16.mxu0 0
    %1857 = vmatpush1.bf16.msra.mxu0 0
    %1858 = vmatprep.subr.bf16.mxu0 0
    %1859 = vmatpush1.bf16.msra.mxu0 0
    %1860 = vmatprep.subr.bf16.mxu0 0
    %1861 = vmatpush1.bf16.msra.mxu0 0
    %1862 = vmatprep.subr.bf16.mxu0 0
    %1863 = vmatpush1.bf16.msra.mxu0 0
    %1864 = vmatprep.subr.bf16.mxu0 0
    %1865 = vmatpush1.bf16.msra.mxu0 0
    %1866 = vmatprep.subr.bf16.mxu0 0
    %1867 = vmatpush1.bf16.msra.mxu0 0
    %1868 = vmatprep.subr.bf16.mxu0 0
    %1869 = vmatpush1.bf16.msra.mxu0 0
    %1870 = vmatprep.subr.bf16.mxu0 0
    %1871 = vmatpush1.bf16.msra.mxu0 0
    %1872 = vmatprep.subr.bf16.mxu0 0
    %1873 = vmatpush1.bf16.msra.mxu0 0
    %1874 = vmatprep.subr.bf16.mxu0 0
    %1875 = vmatpush1.bf16.msra.mxu0 0
    %1876 = vmatprep.subr.bf16.mxu0 0
    %1877 = vmatpush1.bf16.msra.mxu0 0
    %1878 = vmatprep.subr.bf16.mxu0 0
    %1879 = vmatpush1.bf16.msra.mxu0 0
    %1880 = vmatprep.mubr.bf16.mxu0 0
    %1881 = vmatmul.mubr.bf16.gmra.mrb[0].mxu0 %v1804
    %v1882 = vpop.f32.mrb[0].mxu0
    %v1883 = vadd.f32 0.0, %v1882
    %v1884 = vpop.f32.mrb[0].mxu0
    %v1885 = vpop.f32.mrb[0].mxu0
    %v1886 = vpop.f32.mrb[0].mxu0
    %1887 = vdwg.mxu0
    %v1888 = vadd.f32 %v1847, %v1883
    %v1889 = vxor.u32 %v1888, 2147483648
    %v1890 = vmul.f32 %v1889, 1.442695
    %v1891 = vpow.pop %v1890
    %v1892 = vadd.f32 %v1891, 1.0
    %v1893 = vrcp.pop %v1892
    %v1894 = vmul.f32 1.0, %v1893
    %v1895 = vtanh.pop %v1888
    %v1896 = vmul.f32 %v1894, %v1792
    %1898 = vrot.lane.b32.xlu0 %v1895, 32
    %v1899 = vpop.permute.xlu0 %1898
    %v1901 = vmul.f32 %v1894, %v1899
    %1903 = vrot.lane.b32.xlu0 %v1901, 32
    %v1904 = vpop.permute.xlu0 %1903
    %v1906 = vadd.f32 %v1896, %v1904
    %v1907 = vtanh.pop %v1906
    %1909 = vrot.lane.b32.xlu0 %v1907, 32
    %v1910 = vpop.permute.xlu0 %1909
    %v1912 = vmul.f32 %v1894, %v1910
    %v1913 = vpack.c.bf16 %v1912, %v1912
    %1915 = vrot.lane.b32.xlu0 %v1913, 64
    %v1916 = vpop.permute.xlu0 %1915
    %v1918 = vsel %vm73, %v1916, 0
    %1920 = vmatprep.subr.bf16.mxu0 0
    %1921 = vmatpush1.bf16.msra.mxu0 %v431
    %1922 = vmatprep.subr.bf16.mxu0 0
    %1923 = vmatpush1.bf16.msra.mxu0 %v432
    %1924 = vmatprep.subr.bf16.mxu0 0
    %1925 = vmatpush1.bf16.msra.mxu0 0
    %1926 = vmatprep.subr.bf16.mxu0 0
    %1927 = vmatpush1.bf16.msra.mxu0 0
    %1928 = vmatprep.subr.bf16.mxu0 0
    %1929 = vmatpush1.bf16.msra.mxu0 0
    %1930 = vmatprep.subr.bf16.mxu0 0
    %1931 = vmatpush1.bf16.msra.mxu0 0
    %1932 = vmatprep.subr.bf16.mxu0 0
    %1933 = vmatpush1.bf16.msra.mxu0 0
    %1934 = vmatprep.subr.bf16.mxu0 0
    %1935 = vmatpush1.bf16.msra.mxu0 0
    %1936 = vmatprep.subr.bf16.mxu0 0
    %1937 = vmatpush1.bf16.msra.mxu0 0
    %1938 = vmatprep.subr.bf16.mxu0 0
    %1939 = vmatpush1.bf16.msra.mxu0 0
    %1940 = vmatprep.subr.bf16.mxu0 0
    %1941 = vmatpush1.bf16.msra.mxu0 0
    %1942 = vmatprep.subr.bf16.mxu0 0
    %1943 = vmatpush1.bf16.msra.mxu0 0
    %1944 = vmatprep.subr.bf16.mxu0 0
    %1945 = vmatpush1.bf16.msra.mxu0 0
    %1946 = vmatprep.subr.bf16.mxu0 0
    %1947 = vmatpush1.bf16.msra.mxu0 0
    %1948 = vmatprep.subr.bf16.mxu0 0
    %1949 = vmatpush1.bf16.msra.mxu0 0
    %1950 = vmatprep.subr.bf16.mxu0 0
    %1951 = vmatpush1.bf16.msra.mxu0 0
    %1952 = vmatprep.mubr.bf16.mxu0 0
    %1953 = vmatmul.mubr.bf16.gmra.mrb[0].mxu0 %v1918
    %v1954 = vpop.f32.mrb[0].mxu0
    %v1955 = vadd.f32 %v418, %v1954
    %v1956 = vpop.f32.mrb[0].mxu0
    %v1957 = vpop.f32.mrb[0].mxu0
    %v1958 = vpop.f32.mrb[0].mxu0
    %1959 = vdwg.mxu0
    %1960 = vst [vmem:[#allocation3 + $0x68] sm:$0xff] %v1955
    %v1961 = vld [vmem:[#allocation2 + $0x70] sm:$0xff]
    %1962 = vmatprep.subr.bf16.mxu0 0
    %1963 = vmatpush1.bf16.msra.mxu0 %v337
    %1964 = vmatprep.subr.bf16.mxu0 0
    %1965 = vmatpush1.bf16.msra.mxu0 %v338
    %1966 = vmatprep.subr.bf16.mxu0 0
    %1967 = vmatpush1.bf16.msra.mxu0 0
    %1968 = vmatprep.subr.bf16.mxu0 0
    %1969 = vmatpush1.bf16.msra.mxu0 0
    %1970 = vmatprep.subr.bf16.mxu0 0
    %1971 = vmatpush1.bf16.msra.mxu0 0
    %1972 = vmatprep.subr.bf16.mxu0 0
    %1973 = vmatpush1.bf16.msra.mxu0 0
    %1974 = vmatprep.subr.bf16.mxu0 0
    %1975 = vmatpush1.bf16.msra.mxu0 0
    %1976 = vmatprep.subr.bf16.mxu0 0
    %1977 = vmatpush1.bf16.msra.mxu0 0
    %1978 = vmatprep.subr.bf16.mxu0 0
    %1979 = vmatpush1.bf16.msra.mxu0 0
    %1980 = vmatprep.subr.bf16.mxu0 0
    %1981 = vmatpush1.bf16.msra.mxu0 0
    %1982 = vmatprep.subr.bf16.mxu0 0
    %1983 = vmatpush1.bf16.msra.mxu0 0
    %1984 = vmatprep.subr.bf16.mxu0 0
    %1985 = vmatpush1.bf16.msra.mxu0 0
    %1986 = vmatprep.subr.bf16.mxu0 0
    %1987 = vmatpush1.bf16.msra.mxu0 0
    %1988 = vmatprep.subr.bf16.mxu0 0
    %1989 = vmatpush1.bf16.msra.mxu0 0
    %1990 = vmatprep.subr.bf16.mxu0 0
    %1991 = vmatpush1.bf16.msra.mxu0 0
    %1992 = vmatprep.subr.bf16.mxu0 0
    %1993 = vmatpush1.bf16.msra.mxu0 0
    %1994 = vmatprep.mubr.bf16.mxu0 0
    %1995 = vmatmul.mubr.bf16.gmra.mrb[0].mxu0 %v1918
    %v1996 = vpop.f32.mrb[0].mxu0
    %v1997 = vadd.f32 0.0, %v1996
    %v1998 = vpop.f32.mrb[0].mxu0
    %v1999 = vpop.f32.mrb[0].mxu0
    %v2000 = vpop.f32.mrb[0].mxu0
    %2001 = vdwg.mxu0
    %v2002 = vadd.f32 %v1961, %v1997
    %v2003 = vxor.u32 %v2002, 2147483648
    %v2004 = vmul.f32 %v2003, 1.442695
    %v2005 = vpow.pop %v2004
    %v2006 = vadd.f32 %v2005, 1.0
    %v2007 = vrcp.pop %v2006
    %v2008 = vmul.f32 1.0, %v2007
    %v2009 = vtanh.pop %v2002
    %v2010 = vmul.f32 %v2008, %v1906
    %2012 = vrot.lane.b32.xlu0 %v2009, 32
    %v2013 = vpop.permute.xlu0 %2012
    %v2015 = vmul.f32 %v2008, %v2013
    %2017 = vrot.lane.b32.xlu0 %v2015, 32
    %v2018 = vpop.permute.xlu0 %2017
    %v2020 = vadd.f32 %v2010, %v2018
    %v2021 = vtanh.pop %v2020
    %2023 = vrot.lane.b32.xlu0 %v2021, 32
    %v2024 = vpop.permute.xlu0 %2023
    %v2026 = vmul.f32 %v2008, %v2024
    %v2027 = vpack.c.bf16 %v2026, %v2026
    %2029 = vrot.lane.b32.xlu0 %v2027, 64
    %v2030 = vpop.permute.xlu0 %2029
    %v2032 = vsel %vm73, %v2030, 0
    %2034 = vmatprep.subr.bf16.mxu0 0
    %2035 = vmatpush1.bf16.msra.mxu0 %v431
    %2036 = vmatprep.subr.bf16.mxu0 0
    %2037 = vmatpush1.bf16.msra.mxu0 %v432
    %2038 = vmatprep.subr.bf16.mxu0 0
    %2039 = vmatpush1.bf16.msra.mxu0 0
    %2040 = vmatprep.subr.bf16.mxu0 0
    %2041 = vmatpush1.bf16.msra.mxu0 0
    %2042 = vmatprep.subr.bf16.mxu0 0
    %2043 = vmatpush1.bf16.msra.mxu0 0
    %2044 = vmatprep.subr.bf16.mxu0 0
    %2045 = vmatpush1.bf16.msra.mxu0 0
    %2046 = vmatprep.subr.bf16.mxu0 0
    %2047 = vmatpush1.bf16.msra.mxu0 0
    %2048 = vmatprep.subr.bf16.mxu0 0
    %2049 = vmatpush1.bf16.msra.mxu0 0
    %2050 = vmatprep.subr.bf16.mxu0 0
    %2051 = vmatpush1.bf16.msra.mxu0 0
    %2052 = vmatprep.subr.bf16.mxu0 0
    %2053 = vmatpush1.bf16.msra.mxu0 0
    %2054 = vmatprep.subr.bf16.mxu0 0
    %2055 = vmatpush1.bf16.msra.mxu0 0
    %2056 = vmatprep.subr.bf16.mxu0 0
    %2057 = vmatpush1.bf16.msra.mxu0 0
    %2058 = vmatprep.subr.bf16.mxu0 0
    %2059 = vmatpush1.bf16.msra.mxu0 0
    %2060 = vmatprep.subr.bf16.mxu0 0
    %2061 = vmatpush1.bf16.msra.mxu0 0
    %2062 = vmatprep.subr.bf16.mxu0 0
    %2063 = vmatpush1.bf16.msra.mxu0 0
    %2064 = vmatprep.subr.bf16.mxu0 0
    %2065 = vmatpush1.bf16.msra.mxu0 0
    %2066 = vmatprep.mubr.bf16.mxu0 0
    %2067 = vmatmul.mubr.bf16.gmra.mrb[0].mxu0 %v2032
    %v2068 = vpop.f32.mrb[0].mxu0
    %v2069 = vadd.f32 %v418, %v2068
    %v2070 = vpop.f32.mrb[0].mxu0
    %v2071 = vpop.f32.mrb[0].mxu0
    %v2072 = vpop.f32.mrb[0].mxu0
    %2073 = vdwg.mxu0
    %2074 = vst [vmem:[#allocation3 + $0x70] sm:$0xff] %v2069
    %v2075 = vld [vmem:[#allocation2 + $0x78] sm:$0xff]
    %2076 = vmatprep.subr.bf16.mxu0 0
    %2077 = vmatpush1.bf16.msra.mxu0 %v337
    %2078 = vmatprep.subr.bf16.mxu0 0
    %2079 = vmatpush1.bf16.msra.mxu0 %v338
    %2080 = vmatprep.subr.bf16.mxu0 0
    %2081 = vmatpush1.bf16.msra.mxu0 0
    %2082 = vmatprep.subr.bf16.mxu0 0
    %2083 = vmatpush1.bf16.msra.mxu0 0
    %2084 = vmatprep.subr.bf16.mxu0 0
    %2085 = vmatpush1.bf16.msra.mxu0 0
    %2086 = vmatprep.subr.bf16.mxu0 0
    %2087 = vmatpush1.bf16.msra.mxu0 0
    %2088 = vmatprep.subr.bf16.mxu0 0
    %2089 = vmatpush1.bf16.msra.mxu0 0
    %2090 = vmatprep.subr.bf16.mxu0 0
    %2091 = vmatpush1.bf16.msra.mxu0 0
    %2092 = vmatprep.subr.bf16.mxu0 0
    %2093 = vmatpush1.bf16.msra.mxu0 0
    %2094 = vmatprep.subr.bf16.mxu0 0
    %2095 = vmatpush1.bf16.msra.mxu0 0
    %2096 = vmatprep.subr.bf16.mxu0 0
    %2097 = vmatpush1.bf16.msra.mxu0 0
    %2098 = vmatprep.subr.bf16.mxu0 0
    %2099 = vmatpush1.bf16.msra.mxu0 0
    %2100 = vmatprep.subr.bf16.mxu0 0
    %2101 = vmatpush1.bf16.msra.mxu0 0
    %2102 = vmatprep.subr.bf16.mxu0 0
    %2103 = vmatpush1.bf16.msra.mxu0 0
    %2104 = vmatprep.subr.bf16.mxu0 0
    %2105 = vmatpush1.bf16.msra.mxu0 0
    %2106 = vmatprep.subr.bf16.mxu0 0
    %2107 = vmatpush1.bf16.msra.mxu0 0
    %2108 = vmatprep.mubr.bf16.mxu0 0
    %2109 = vmatmul.mubr.bf16.gmra.mrb[0].mxu0 %v2032
    %v2110 = vpop.f32.mrb[0].mxu0
    %v2111 = vadd.f32 0.0, %v2110
    %v2112 = vpop.f32.mrb[0].mxu0
    %v2113 = vpop.f32.mrb[0].mxu0
    %v2114 = vpop.f32.mrb[0].mxu0
    %2115 = vdwg.mxu0
    %v2116 = vadd.f32 %v2075, %v2111
    %v2117 = vxor.u32 %v2116, 2147483648
    %v2118 = vmul.f32 %v2117, 1.442695
    %v2119 = vpow.pop %v2118
    %v2120 = vadd.f32 %v2119, 1.0
    %v2121 = vrcp.pop %v2120
    %v2122 = vmul.f32 1.0, %v2121
    %v2123 = vtanh.pop %v2116
    %v2124 = vmul.f32 %v2122, %v2020
    %2126 = vrot.lane.b32.xlu0 %v2123, 32
    %v2127 = vpop.permute.xlu0 %2126
    %v2129 = vmul.f32 %v2122, %v2127
    %2131 = vrot.lane.b32.xlu0 %v2129, 32
    %v2132 = vpop.permute.xlu0 %2131
    %v2134 = vadd.f32 %v2124, %v2132
    %v2135 = vtanh.pop %v2134
    %2137 = vrot.lane.b32.xlu0 %v2135, 32
    %v2138 = vpop.permute.xlu0 %2137
    %v2140 = vmul.f32 %v2122, %v2138
    %v2141 = vpack.c.bf16 %v2140, %v2140
    %2143 = vrot.lane.b32.xlu0 %v2141, 64
    %v2144 = vpop.permute.xlu0 %2143
    %v2146 = vsel %vm73, %v2144, 0
    %2148 = vmatprep.subr.bf16.mxu0 0
    %2149 = vmatpush1.bf16.msra.mxu0 %v431
    %2150 = vmatprep.subr.bf16.mxu0 0
    %2151 = vmatpush1.bf16.msra.mxu0 %v432
    %2152 = vmatprep.subr.bf16.mxu0 0
    %2153 = vmatpush1.bf16.msra.mxu0 0
    %2154 = vmatprep.subr.bf16.mxu0 0
    %2155 = vmatpush1.bf16.msra.mxu0 0
    %2156 = vmatprep.subr.bf16.mxu0 0
    %2157 = vmatpush1.bf16.msra.mxu0 0
    %2158 = vmatprep.subr.bf16.mxu0 0
    %2159 = vmatpush1.bf16.msra.mxu0 0
    %2160 = vmatprep.subr.bf16.mxu0 0
    %2161 = vmatpush1.bf16.msra.mxu0 0
    %2162 = vmatprep.subr.bf16.mxu0 0
    %2163 = vmatpush1.bf16.msra.mxu0 0
    %2164 = vmatprep.subr.bf16.mxu0 0
    %2165 = vmatpush1.bf16.msra.mxu0 0
    %2166 = vmatprep.subr.bf16.mxu0 0
    %2167 = vmatpush1.bf16.msra.mxu0 0
    %2168 = vmatprep.subr.bf16.mxu0 0
    %2169 = vmatpush1.bf16.msra.mxu0 0
    %2170 = vmatprep.subr.bf16.mxu0 0
    %2171 = vmatpush1.bf16.msra.mxu0 0
    %2172 = vmatprep.subr.bf16.mxu0 0
    %2173 = vmatpush1.bf16.msra.mxu0 0
    %2174 = vmatprep.subr.bf16.mxu0 0
    %2175 = vmatpush1.bf16.msra.mxu0 0
    %2176 = vmatprep.subr.bf16.mxu0 0
    %2177 = vmatpush1.bf16.msra.mxu0 0
    %2178 = vmatprep.subr.bf16.mxu0 0
    %2179 = vmatpush1.bf16.msra.mxu0 0
    %2180 = vmatprep.mubr.bf16.mxu0 0
    %2181 = vmatmul.mubr.bf16.gmra.mrb[0].mxu0 %v2146
    %v2182 = vpop.f32.mrb[0].mxu0
    %v2183 = vadd.f32 %v418, %v2182
    %v2184 = vpop.f32.mrb[0].mxu0
    %v2185 = vpop.f32.mrb[0].mxu0
    %v2186 = vpop.f32.mrb[0].mxu0
    %2187 = vdwg.mxu0
    %2188 = vst [vmem:[#allocation3 + $0x78] sm:$0xff] %v2183
    %v2189 = vld [vmem:[%s9] sm:$0xf]
    %v2190 = vld [vmem:[%s9 + $0x4] sm:$0xf]
    %v2191 = vld [vmem:[%s9 + $0x8] sm:$0xf]
    %v2192 = vld [vmem:[%s9 + $0xc] sm:$0xf]
    %v2193 = vld [vmem:[%s3] sm:$0xff]
    %v2194 = vld [vmem:[%s4] sm:$0xff]
    %v2195 = vpack.c.bf16 %v2193, %v2193
    %v2196 = vld [vmem:[#allocation3] sm:$0xff]
    %v2201 = vunpack.c.l.b16 %v2189
    %v2202 = vunpack.c.l.b16 %v2190
    %v2203 = vunpack.c.l.b16 %v2191
    %v2204 = vunpack.c.l.b16 %v2192
    %v2205 = vpack.c.b16 %v2202, %v2201
    %v2206 = vpack.c.b16 %v2204, %v2203
    %v2210 = vsel %vm73, %v2195, 0
    %2212 = vmatprep.subr.bf16.mxu0 0
    %2213 = vmatpush1.bf16.msra.mxu0 %v2205
    %2214 = vmatprep.subr.bf16.mxu0 0
    %2215 = vmatpush1.bf16.msra.mxu0 %v2206
    %2216 = vmatprep.subr.bf16.mxu0 0
    %2217 = vmatpush1.bf16.msra.mxu0 0
    %2218 = vmatprep.subr.bf16.mxu0 0
    %2219 = vmatpush1.bf16.msra.mxu0 0
    %2220 = vmatprep.subr.bf16.mxu0 0
    %2221 = vmatpush1.bf16.msra.mxu0 0
    %2222 = vmatprep.subr.bf16.mxu0 0
    %2223 = vmatpush1.bf16.msra.mxu0 0
    %2224 = vmatprep.subr.bf16.mxu0 0
    %2225 = vmatpush1.bf16.msra.mxu0 0
    %2226 = vmatprep.subr.bf16.mxu0 0
    %2227 = vmatpush1.bf16.msra.mxu0 0
    %2228 = vmatprep.subr.bf16.mxu0 0
    %2229 = vmatpush1.bf16.msra.mxu0 0
    %2230 = vmatprep.subr.bf16.mxu0 0
    %2231 = vmatpush1.bf16.msra.mxu0 0
    %2232 = vmatprep.subr.bf16.mxu0 0
    %2233 = vmatpush1.bf16.msra.mxu0 0
    %2234 = vmatprep.subr.bf16.mxu0 0
    %2235 = vmatpush1.bf16.msra.mxu0 0
    %2236 = vmatprep.subr.bf16.mxu0 0
    %2237 = vmatpush1.bf16.msra.mxu0 0
    %2238 = vmatprep.subr.bf16.mxu0 0
    %2239 = vmatpush1.bf16.msra.mxu0 0
    %2240 = vmatprep.subr.bf16.mxu0 0
    %2241 = vmatpush1.bf16.msra.mxu0 0
    %2242 = vmatprep.subr.bf16.mxu0 0
    %2243 = vmatpush1.bf16.msra.mxu0 0
    %2244 = vmatprep.mubr.bf16.mxu0 0
    %2245 = vmatmul.mubr.bf16.gmra.mrb[0].mxu0 %v2210
    %v2246 = vpop.f32.mrb[0].mxu0
    %v2247 = vadd.f32 0.0, %v2246
    %v2248 = vpop.f32.mrb[0].mxu0
    %v2249 = vpop.f32.mrb[0].mxu0
    %v2250 = vpop.f32.mrb[0].mxu0
    %2251 = vdwg.mxu0
    %v2252 = vadd.f32 %v2196, %v2247
    %v2253 = vxor.u32 %v2252, 2147483648
    %v2254 = vmul.f32 %v2253, 1.442695
    %v2255 = vpow.pop %v2254
    %v2256 = vadd.f32 %v2255, 1.0
    %v2257 = vrcp.pop %v2256
    %v2258 = vmul.f32 1.0, %v2257
    %v2259 = vtanh.pop %v2252
    %2261 = vrot.lane.b32.xlu0 %v2194, 32
    %v2262 = vpop.permute.xlu0 %2261
    %v2264 = vmul.f32 %v2258, %v2262
    %2266 = vrot.lane.b32.xlu0 %v2259, 32
    %v2267 = vpop.permute.xlu0 %2266
    %v2269 = vmul.f32 %v2258, %v2267
    %2271 = vrot.lane.b32.xlu0 %v2269, 32
    %v2272 = vpop.permute.xlu0 %2271
    %v2274 = vadd.f32 %v2264, %v2272
    %v2275 = vtanh.pop %v2274
    %2277 = vrot.lane.b32.xlu0 %v2275, 32
    %v2278 = vpop.permute.xlu0 %2277
    %v2280 = vmul.f32 %v2258, %v2278
    %v2281 = vpack.c.bf16 %v2280, %v2280
    %2283 = vrot.lane.b32.xlu0 %v2280, 64
    %v2284 = vpop.permute.xlu0 %2283
    %2286 = vst.msk [vmem:[#allocation4 + $0x8] sm:$0xff] %vm73, %v2284
    %v2287 = vld [vmem:[#allocation3 + $0x8] sm:$0xff]
    %2289 = vrot.lane.b32.xlu0 %v2281, 64
    %v2290 = vpop.permute.xlu0 %2289
    %v2292 = vsel %vm73, %v2290, 0
    %2294 = vmatprep.subr.bf16.mxu0 0
    %2295 = vmatpush1.bf16.msra.mxu0 %v2205
    %2296 = vmatprep.subr.bf16.mxu0 0
    %2297 = vmatpush1.bf16.msra.mxu0 %v2206
    %2298 = vmatprep.subr.bf16.mxu0 0
    %2299 = vmatpush1.bf16.msra.mxu0 0
    %2300 = vmatprep.subr.bf16.mxu0 0
    %2301 = vmatpush1.bf16.msra.mxu0 0
    %2302 = vmatprep.subr.bf16.mxu0 0
    %2303 = vmatpush1.bf16.msra.mxu0 0
    %2304 = vmatprep.subr.bf16.mxu0 0
    %2305 = vmatpush1.bf16.msra.mxu0 0
    %2306 = vmatprep.subr.bf16.mxu0 0
    %2307 = vmatpush1.bf16.msra.mxu0 0
    %2308 = vmatprep.subr.bf16.mxu0 0
    %2309 = vmatpush1.bf16.msra.mxu0 0
    %2310 = vmatprep.subr.bf16.mxu0 0
    %2311 = vmatpush1.bf16.msra.mxu0 0
    %2312 = vmatprep.subr.bf16.mxu0 0
    %2313 = vmatpush1.bf16.msra.mxu0 0
    %2314 = vmatprep.subr.bf16.mxu0 0
    %2315 = vmatpush1.bf16.msra.mxu0 0
    %2316 = vmatprep.subr.bf16.mxu0 0
    %2317 = vmatpush1.bf16.msra.mxu0 0
    %2318 = vmatprep.subr.bf16.mxu0 0
    %2319 = vmatpush1.bf16.msra.mxu0 0
    %2320 = vmatprep.subr.bf16.mxu0 0
    %2321 = vmatpush1.bf16.msra.mxu0 0
    %2322 = vmatprep.subr.bf16.mxu0 0
    %2323 = vmatpush1.bf16.msra.mxu0 0
    %2324 = vmatprep.subr.bf16.mxu0 0
    %2325 = vmatpush1.bf16.msra.mxu0 0
    %2326 = vmatprep.mubr.bf16.mxu0 0
    %2327 = vmatmul.mubr.bf16.gmra.mrb[0].mxu0 %v2292
    %v2328 = vpop.f32.mrb[0].mxu0
    %v2329 = vadd.f32 0.0, %v2328
    %v2330 = vpop.f32.mrb[0].mxu0
    %v2331 = vpop.f32.mrb[0].mxu0
    %v2332 = vpop.f32.mrb[0].mxu0
    %2333 = vdwg.mxu0
    %v2334 = vadd.f32 %v2287, %v2329
    %v2335 = vxor.u32 %v2334, 2147483648
    %v2336 = vmul.f32 %v2335, 1.442695
    %v2337 = vpow.pop %v2336
    %v2338 = vadd.f32 %v2337, 1.0
    %v2339 = vrcp.pop %v2338
    %v2340 = vmul.f32 1.0, %v2339
    %v2341 = vtanh.pop %v2334
    %v2342 = vmul.f32 %v2340, %v2274
    %2344 = vrot.lane.b32.xlu0 %v2341, 32
    %v2345 = vpop.permute.xlu0 %2344
    %v2347 = vmul.f32 %v2340, %v2345
    %2349 = vrot.lane.b32.xlu0 %v2347, 32
    %v2350 = vpop.permute.xlu0 %2349
    %v2352 = vadd.f32 %v2342, %v2350
    %v2353 = vtanh.pop %v2352
    %2355 = vrot.lane.b32.xlu0 %v2353, 32
    %v2356 = vpop.permute.xlu0 %2355
    %v2358 = vmul.f32 %v2340, %v2356
    %v2359 = vpack.c.bf16 %v2358, %v2358
    %2361 = vrot.lane.b32.xlu0 %v2358, 64
    %v2362 = vpop.permute.xlu0 %2361
    %2364 = vst.msk [vmem:[#allocation4 + $0x10] sm:$0xff] %vm73, %v2362
    %v2365 = vld [vmem:[#allocation3 + $0x10] sm:$0xff]
    %2367 = vrot.lane.b32.xlu0 %v2359, 64
    %v2368 = vpop.permute.xlu0 %2367
    %v2370 = vsel %vm73, %v2368, 0
    %2372 = vmatprep.subr.bf16.mxu0 0
    %2373 = vmatpush1.bf16.msra.mxu0 %v2205
    %2374 = vmatprep.subr.bf16.mxu0 0
    %2375 = vmatpush1.bf16.msra.mxu0 %v2206
    %2376 = vmatprep.subr.bf16.mxu0 0
    %2377 = vmatpush1.bf16.msra.mxu0 0
    %2378 = vmatprep.subr.bf16.mxu0 0
    %2379 = vmatpush1.bf16.msra.mxu0 0
    %2380 = vmatprep.subr.bf16.mxu0 0
    %2381 = vmatpush1.bf16.msra.mxu0 0
    %2382 = vmatprep.subr.bf16.mxu0 0
    %2383 = vmatpush1.bf16.msra.mxu0 0
    %2384 = vmatprep.subr.bf16.mxu0 0
    %2385 = vmatpush1.bf16.msra.mxu0 0
    %2386 = vmatprep.subr.bf16.mxu0 0
    %2387 = vmatpush1.bf16.msra.mxu0 0
    %2388 = vmatprep.subr.bf16.mxu0 0
    %2389 = vmatpush1.bf16.msra.mxu0 0
    %2390 = vmatprep.subr.bf16.mxu0 0
    %2391 = vmatpush1.bf16.msra.mxu0 0
    %2392 = vmatprep.subr.bf16.mxu0 0
    %2393 = vmatpush1.bf16.msra.mxu0 0
    %2394 = vmatprep.subr.bf16.mxu0 0
    %2395 = vmatpush1.bf16.msra.mxu0 0
    %2396 = vmatprep.subr.bf16.mxu0 0
    %2397 = vmatpush1.bf16.msra.mxu0 0
    %2398 = vmatprep.subr.bf16.mxu0 0
    %2399 = vmatpush1.bf16.msra.mxu0 0
    %2400 = vmatprep.subr.bf16.mxu0 0
    %2401 = vmatpush1.bf16.msra.mxu0 0
    %2402 = vmatprep.subr.bf16.mxu0 0
    %2403 = vmatpush1.bf16.msra.mxu0 0
    %2404 = vmatprep.mubr.bf16.mxu0 0
    %2405 = vmatmul.mubr.bf16.gmra.mrb[0].mxu0 %v2370
    %v2406 = vpop.f32.mrb[0].mxu0
    %v2407 = vadd.f32 0.0, %v2406
    %v2408 = vpop.f32.mrb[0].mxu0
    %v2409 = vpop.f32.mrb[0].mxu0
    %v2410 = vpop.f32.mrb[0].mxu0
    %2411 = vdwg.mxu0
    %v2412 = vadd.f32 %v2365, %v2407
    %v2413 = vxor.u32 %v2412, 2147483648
    %v2414 = vmul.f32 %v2413, 1.442695
    %v2415 = vpow.pop %v2414
    %v2416 = vadd.f32 %v2415, 1.0
    %v2417 = vrcp.pop %v2416
    %v2418 = vmul.f32 1.0, %v2417
    %v2419 = vtanh.pop %v2412
    %v2420 = vmul.f32 %v2418, %v2352
    %2422 = vrot.lane.b32.xlu0 %v2419, 32
    %v2423 = vpop.permute.xlu0 %2422
    %v2425 = vmul.f32 %v2418, %v2423
    %2427 = vrot.lane.b32.xlu0 %v2425, 32
    %v2428 = vpop.permute.xlu0 %2427
    %v2430 = vadd.f32 %v2420, %v2428
    %v2431 = vtanh.pop %v2430
    %2433 = vrot.lane.b32.xlu0 %v2431, 32
    %v2434 = vpop.permute.xlu0 %2433
    %v2436 = vmul.f32 %v2418, %v2434
    %v2437 = vpack.c.bf16 %v2436, %v2436
    %2439 = vrot.lane.b32.xlu0 %v2436, 64
    %v2440 = vpop.permute.xlu0 %2439
    %2442 = vst.msk [vmem:[#allocation4 + $0x18] sm:$0xff] %vm73, %v2440
    %v2443 = vld [vmem:[#allocation3 + $0x18] sm:$0xff]
    %2445 = vrot.lane.b32.xlu0 %v2437, 64
    %v2446 = vpop.permute.xlu0 %2445
    %v2448 = vsel %vm73, %v2446, 0
    %2450 = vmatprep.subr.bf16.mxu0 0
    %2451 = vmatpush1.bf16.msra.mxu0 %v2205
    %2452 = vmatprep.subr.bf16.mxu0 0
    %2453 = vmatpush1.bf16.msra.mxu0 %v2206
    %2454 = vmatprep.subr.bf16.mxu0 0
    %2455 = vmatpush1.bf16.msra.mxu0 0
    %2456 = vmatprep.subr.bf16.mxu0 0
    %2457 = vmatpush1.bf16.msra.mxu0 0
    %2458 = vmatprep.subr.bf16.mxu0 0
    %2459 = vmatpush1.bf16.msra.mxu0 0
    %2460 = vmatprep.subr.bf16.mxu0 0
    %2461 = vmatpush1.bf16.msra.mxu0 0
    %2462 = vmatprep.subr.bf16.mxu0 0
    %2463 = vmatpush1.bf16.msra.mxu0 0
    %2464 = vmatprep.subr.bf16.mxu0 0
    %2465 = vmatpush1.bf16.msra.mxu0 0
    %2466 = vmatprep.subr.bf16.mxu0 0
    %2467 = vmatpush1.bf16.msra.mxu0 0
    %2468 = vmatprep.subr.bf16.mxu0 0
    %2469 = vmatpush1.bf16.msra.mxu0 0
    %2470 = vmatprep.subr.bf16.mxu0 0
    %2471 = vmatpush1.bf16.msra.mxu0 0
    %2472 = vmatprep.subr.bf16.mxu0 0
    %2473 = vmatpush1.bf16.msra.mxu0 0
    %2474 = vmatprep.subr.bf16.mxu0 0
    %2475 = vmatpush1.bf16.msra.mxu0 0
    %2476 = vmatprep.subr.bf16.mxu0 0
    %2477 = vmatpush1.bf16.msra.mxu0 0
    %2478 = vmatprep.subr.bf16.mxu0 0
    %2479 = vmatpush1.bf16.msra.mxu0 0
    %2480 = vmatprep.subr.bf16.mxu0 0
    %2481 = vmatpush1.bf16.msra.mxu0 0
    %2482 = vmatprep.mubr.bf16.mxu0 0
    %2483 = vmatmul.mubr.bf16.gmra.mrb[0].mxu0 %v2448
    %v2484 = vpop.f32.mrb[0].mxu0
    %v2485 = vadd.f32 0.0, %v2484
    %v2486 = vpop.f32.mrb[0].mxu0
    %v2487 = vpop.f32.mrb[0].mxu0
    %v2488 = vpop.f32.mrb[0].mxu0
    %2489 = vdwg.mxu0
    %v2490 = vadd.f32 %v2443, %v2485
    %v2491 = vxor.u32 %v2490, 2147483648
    %v2492 = vmul.f32 %v2491, 1.442695
    %v2493 = vpow.pop %v2492
    %v2494 = vadd.f32 %v2493, 1.0
    %v2495 = vrcp.pop %v2494
    %v2496 = vmul.f32 1.0, %v2495
    %v2497 = vtanh.pop %v2490
    %v2498 = vmul.f32 %v2496, %v2430
    %2500 = vrot.lane.b32.xlu0 %v2497, 32
    %v2501 = vpop.permute.xlu0 %2500
    %v2503 = vmul.f32 %v2496, %v2501
    %2505 = vrot.lane.b32.xlu0 %v2503, 32
    %v2506 = vpop.permute.xlu0 %2505
    %v2508 = vadd.f32 %v2498, %v2506
    %v2509 = vtanh.pop %v2508
    %2511 = vrot.lane.b32.xlu0 %v2509, 32
    %v2512 = vpop.permute.xlu0 %2511
    %v2514 = vmul.f32 %v2496, %v2512
    %v2515 = vpack.c.bf16 %v2514, %v2514
    %2517 = vrot.lane.b32.xlu0 %v2514, 64
    %v2518 = vpop.permute.xlu0 %2517
    %2520 = vst.msk [vmem:[#allocation4 + $0x20] sm:$0xff] %vm73, %v2518
    %v2521 = vld [vmem:[#allocation3 + $0x20] sm:$0xff]
    %2523 = vrot.lane.b32.xlu0 %v2515, 64
    %v2524 = vpop.permute.xlu0 %2523
    %v2526 = vsel %vm73, %v2524, 0
    %2528 = vmatprep.subr.bf16.mxu0 0
    %2529 = vmatpush1.bf16.msra.mxu0 %v2205
    %2530 = vmatprep.subr.bf16.mxu0 0
    %2531 = vmatpush1.bf16.msra.mxu0 %v2206
    %2532 = vmatprep.subr.bf16.mxu0 0
    %2533 = vmatpush1.bf16.msra.mxu0 0
    %2534 = vmatprep.subr.bf16.mxu0 0
    %2535 = vmatpush1.bf16.msra.mxu0 0
    %2536 = vmatprep.subr.bf16.mxu0 0
    %2537 = vmatpush1.bf16.msra.mxu0 0
    %2538 = vmatprep.subr.bf16.mxu0 0
    %2539 = vmatpush1.bf16.msra.mxu0 0
    %2540 = vmatprep.subr.bf16.mxu0 0
    %2541 = vmatpush1.bf16.msra.mxu0 0
    %2542 = vmatprep.subr.bf16.mxu0 0
    %2543 = vmatpush1.bf16.msra.mxu0 0
    %2544 = vmatprep.subr.bf16.mxu0 0
    %2545 = vmatpush1.bf16.msra.mxu0 0
    %2546 = vmatprep.subr.bf16.mxu0 0
    %2547 = vmatpush1.bf16.msra.mxu0 0
    %2548 = vmatprep.subr.bf16.mxu0 0
    %2549 = vmatpush1.bf16.msra.mxu0 0
    %2550 = vmatprep.subr.bf16.mxu0 0
    %2551 = vmatpush1.bf16.msra.mxu0 0
    %2552 = vmatprep.subr.bf16.mxu0 0
    %2553 = vmatpush1.bf16.msra.mxu0 0
    %2554 = vmatprep.subr.bf16.mxu0 0
    %2555 = vmatpush1.bf16.msra.mxu0 0
    %2556 = vmatprep.subr.bf16.mxu0 0
    %2557 = vmatpush1.bf16.msra.mxu0 0
    %2558 = vmatprep.subr.bf16.mxu0 0
    %2559 = vmatpush1.bf16.msra.mxu0 0
    %2560 = vmatprep.mubr.bf16.mxu0 0
    %2561 = vmatmul.mubr.bf16.gmra.mrb[0].mxu0 %v2526
    %v2562 = vpop.f32.mrb[0].mxu0
    %v2563 = vadd.f32 0.0, %v2562
    %v2564 = vpop.f32.mrb[0].mxu0
    %v2565 = vpop.f32.mrb[0].mxu0
    %v2566 = vpop.f32.mrb[0].mxu0
    %2567 = vdwg.mxu0
    %v2568 = vadd.f32 %v2521, %v2563
    %v2569 = vxor.u32 %v2568, 2147483648
    %v2570 = vmul.f32 %v2569, 1.442695
    %v2571 = vpow.pop %v2570
    %v2572 = vadd.f32 %v2571, 1.0
    %v2573 = vrcp.pop %v2572
    %v2574 = vmul.f32 1.0, %v2573
    %v2575 = vtanh.pop %v2568
    %v2576 = vmul.f32 %v2574, %v2508
    %2578 = vrot.lane.b32.xlu0 %v2575, 32
    %v2579 = vpop.permute.xlu0 %2578
    %v2581 = vmul.f32 %v2574, %v2579
    %2583 = vrot.lane.b32.xlu0 %v2581, 32
    %v2584 = vpop.permute.xlu0 %2583
    %v2586 = vadd.f32 %v2576, %v2584
    %v2587 = vtanh.pop %v2586
    %2589 = vrot.lane.b32.xlu0 %v2587, 32
    %v2590 = vpop.permute.xlu0 %2589
    %v2592 = vmul.f32 %v2574, %v2590
    %v2593 = vpack.c.bf16 %v2592, %v2592
    %2595 = vrot.lane.b32.xlu0 %v2592, 64
    %v2596 = vpop.permute.xlu0 %2595
    %2598 = vst.msk [vmem:[#allocation4 + $0x28] sm:$0xff] %vm73, %v2596
    %v2599 = vld [vmem:[#allocation3 + $0x28] sm:$0xff]
    %2601 = vrot.lane.b32.xlu0 %v2593, 64
    %v2602 = vpop.permute.xlu0 %2601
    %v2604 = vsel %vm73, %v2602, 0
    %2606 = vmatprep.subr.bf16.mxu0 0
    %2607 = vmatpush1.bf16.msra.mxu0 %v2205
    %2608 = vmatprep.subr.bf16.mxu0 0
    %2609 = vmatpush1.bf16.msra.mxu0 %v2206
    %2610 = vmatprep.subr.bf16.mxu0 0
    %2611 = vmatpush1.bf16.msra.mxu0 0
    %2612 = vmatprep.subr.bf16.mxu0 0
    %2613 = vmatpush1.bf16.msra.mxu0 0
    %2614 = vmatprep.subr.bf16.mxu0 0
    %2615 = vmatpush1.bf16.msra.mxu0 0
    %2616 = vmatprep.subr.bf16.mxu0 0
    %2617 = vmatpush1.bf16.msra.mxu0 0
    %2618 = vmatprep.subr.bf16.mxu0 0
    %2619 = vmatpush1.bf16.msra.mxu0 0
    %2620 = vmatprep.subr.bf16.mxu0 0
    %2621 = vmatpush1.bf16.msra.mxu0 0
    %2622 = vmatprep.subr.bf16.mxu0 0
    %2623 = vmatpush1.bf16.msra.mxu0 0
    %2624 = vmatprep.subr.bf16.mxu0 0
    %2625 = vmatpush1.bf16.msra.mxu0 0
    %2626 = vmatprep.subr.bf16.mxu0 0
    %2627 = vmatpush1.bf16.msra.mxu0 0
    %2628 = vmatprep.subr.bf16.mxu0 0
    %2629 = vmatpush1.bf16.msra.mxu0 0
    %2630 = vmatprep.subr.bf16.mxu0 0
    %2631 = vmatpush1.bf16.msra.mxu0 0
    %2632 = vmatprep.subr.bf16.mxu0 0
    %2633 = vmatpush1.bf16.msra.mxu0 0
    %2634 = vmatprep.subr.bf16.mxu0 0
    %2635 = vmatpush1.bf16.msra.mxu0 0
    %2636 = vmatprep.subr.bf16.mxu0 0
    %2637 = vmatpush1.bf16.msra.mxu0 0
    %2638 = vmatprep.mubr.bf16.mxu0 0
    %2639 = vmatmul.mubr.bf16.gmra.mrb[0].mxu0 %v2604
    %v2640 = vpop.f32.mrb[0].mxu0
    %v2641 = vadd.f32 0.0, %v2640
    %v2642 = vpop.f32.mrb[0].mxu0
    %v2643 = vpop.f32.mrb[0].mxu0
    %v2644 = vpop.f32.mrb[0].mxu0
    %2645 = vdwg.mxu0
    %v2646 = vadd.f32 %v2599, %v2641
    %v2647 = vxor.u32 %v2646, 2147483648
    %v2648 = vmul.f32 %v2647, 1.442695
    %v2649 = vpow.pop %v2648
    %v2650 = vadd.f32 %v2649, 1.0
    %v2651 = vrcp.pop %v2650
    %v2652 = vmul.f32 1.0, %v2651
    %v2653 = vtanh.pop %v2646
    %v2654 = vmul.f32 %v2652, %v2586
    %2656 = vrot.lane.b32.xlu0 %v2653, 32
    %v2657 = vpop.permute.xlu0 %2656
    %v2659 = vmul.f32 %v2652, %v2657
    %2661 = vrot.lane.b32.xlu0 %v2659, 32
    %v2662 = vpop.permute.xlu0 %2661
    %v2664 = vadd.f32 %v2654, %v2662
    %v2665 = vtanh.pop %v2664
    %2667 = vrot.lane.b32.xlu0 %v2665, 32
    %v2668 = vpop.permute.xlu0 %2667
    %v2670 = vmul.f32 %v2652, %v2668
    %v2671 = vpack.c.bf16 %v2670, %v2670
    %2673 = vrot.lane.b32.xlu0 %v2670, 64
    %v2674 = vpop.permute.xlu0 %2673
    %2676 = vst.msk [vmem:[#allocation4 + $0x30] sm:$0xff] %vm73, %v2674
    %v2677 = vld [vmem:[#allocation3 + $0x30] sm:$0xff]
    %2679 = vrot.lane.b32.xlu0 %v2671, 64
    %v2680 = vpop.permute.xlu0 %2679
    %v2682 = vsel %vm73, %v2680, 0
    %2684 = vmatprep.subr.bf16.mxu0 0
    %2685 = vmatpush1.bf16.msra.mxu0 %v2205
    %2686 = vmatprep.subr.bf16.mxu0 0
    %2687 = vmatpush1.bf16.msra.mxu0 %v2206
    %2688 = vmatprep.subr.bf16.mxu0 0
    %2689 = vmatpush1.bf16.msra.mxu0 0
    %2690 = vmatprep.subr.bf16.mxu0 0
    %2691 = vmatpush1.bf16.msra.mxu0 0
    %2692 = vmatprep.subr.bf16.mxu0 0
    %2693 = vmatpush1.bf16.msra.mxu0 0
    %2694 = vmatprep.subr.bf16.mxu0 0
    %2695 = vmatpush1.bf16.msra.mxu0 0
    %2696 = vmatprep.subr.bf16.mxu0 0
    %2697 = vmatpush1.bf16.msra.mxu0 0
    %2698 = vmatprep.subr.bf16.mxu0 0
    %2699 = vmatpush1.bf16.msra.mxu0 0
    %2700 = vmatprep.subr.bf16.mxu0 0
    %2701 = vmatpush1.bf16.msra.mxu0 0
    %2702 = vmatprep.subr.bf16.mxu0 0
    %2703 = vmatpush1.bf16.msra.mxu0 0
    %2704 = vmatprep.subr.bf16.mxu0 0
    %2705 = vmatpush1.bf16.msra.mxu0 0
    %2706 = vmatprep.subr.bf16.mxu0 0
    %2707 = vmatpush1.bf16.msra.mxu0 0
    %2708 = vmatprep.subr.bf16.mxu0 0
    %2709 = vmatpush1.bf16.msra.mxu0 0
    %2710 = vmatprep.subr.bf16.mxu0 0
    %2711 = vmatpush1.bf16.msra.mxu0 0
    %2712 = vmatprep.subr.bf16.mxu0 0
    %2713 = vmatpush1.bf16.msra.mxu0 0
    %2714 = vmatprep.subr.bf16.mxu0 0
    %2715 = vmatpush1.bf16.msra.mxu0 0
    %2716 = vmatprep.mubr.bf16.mxu0 0
    %2717 = vmatmul.mubr.bf16.gmra.mrb[0].mxu0 %v2682
    %v2718 = vpop.f32.mrb[0].mxu0
    %v2719 = vadd.f32 0.0, %v2718
    %v2720 = vpop.f32.mrb[0].mxu0
    %v2721 = vpop.f32.mrb[0].mxu0
    %v2722 = vpop.f32.mrb[0].mxu0
    %2723 = vdwg.mxu0
    %v2724 = vadd.f32 %v2677, %v2719
    %v2725 = vxor.u32 %v2724, 2147483648
    %v2726 = vmul.f32 %v2725, 1.442695
    %v2727 = vpow.pop %v2726
    %v2728 = vadd.f32 %v2727, 1.0
    %v2729 = vrcp.pop %v2728
    %v2730 = vmul.f32 1.0, %v2729
    %v2731 = vtanh.pop %v2724
    %v2732 = vmul.f32 %v2730, %v2664
    %2734 = vrot.lane.b32.xlu0 %v2731, 32
    %v2735 = vpop.permute.xlu0 %2734
    %v2737 = vmul.f32 %v2730, %v2735
    %2739 = vrot.lane.b32.xlu0 %v2737, 32
    %v2740 = vpop.permute.xlu0 %2739
    %v2742 = vadd.f32 %v2732, %v2740
    %v2743 = vtanh.pop %v2742
    %2745 = vrot.lane.b32.xlu0 %v2743, 32
    %v2746 = vpop.permute.xlu0 %2745
    %v2748 = vmul.f32 %v2730, %v2746
    %v2749 = vpack.c.bf16 %v2748, %v2748
    %2751 = vrot.lane.b32.xlu0 %v2748, 64
    %v2752 = vpop.permute.xlu0 %2751
    %2754 = vst.msk [vmem:[#allocation4 + $0x38] sm:$0xff] %vm73, %v2752
    %v2755 = vld [vmem:[#allocation3 + $0x38] sm:$0xff]
    %2757 = vrot.lane.b32.xlu0 %v2749, 64
    %v2758 = vpop.permute.xlu0 %2757
    %v2760 = vsel %vm73, %v2758, 0
    %2762 = vmatprep.subr.bf16.mxu0 0
    %2763 = vmatpush1.bf16.msra.mxu0 %v2205
    %2764 = vmatprep.subr.bf16.mxu0 0
    %2765 = vmatpush1.bf16.msra.mxu0 %v2206
    %2766 = vmatprep.subr.bf16.mxu0 0
    %2767 = vmatpush1.bf16.msra.mxu0 0
    %2768 = vmatprep.subr.bf16.mxu0 0
    %2769 = vmatpush1.bf16.msra.mxu0 0
    %2770 = vmatprep.subr.bf16.mxu0 0
    %2771 = vmatpush1.bf16.msra.mxu0 0
    %2772 = vmatprep.subr.bf16.mxu0 0
    %2773 = vmatpush1.bf16.msra.mxu0 0
    %2774 = vmatprep.subr.bf16.mxu0 0
    %2775 = vmatpush1.bf16.msra.mxu0 0
    %2776 = vmatprep.subr.bf16.mxu0 0
    %2777 = vmatpush1.bf16.msra.mxu0 0
    %2778 = vmatprep.subr.bf16.mxu0 0
    %2779 = vmatpush1.bf16.msra.mxu0 0
    %2780 = vmatprep.subr.bf16.mxu0 0
    %2781 = vmatpush1.bf16.msra.mxu0 0
    %2782 = vmatprep.subr.bf16.mxu0 0
    %2783 = vmatpush1.bf16.msra.mxu0 0
    %2784 = vmatprep.subr.bf16.mxu0 0
    %2785 = vmatpush1.bf16.msra.mxu0 0
    %2786 = vmatprep.subr.bf16.mxu0 0
    %2787 = vmatpush1.bf16.msra.mxu0 0
    %2788 = vmatprep.subr.bf16.mxu0 0
    %2789 = vmatpush1.bf16.msra.mxu0 0
    %2790 = vmatprep.subr.bf16.mxu0 0
    %2791 = vmatpush1.bf16.msra.mxu0 0
    %2792 = vmatprep.subr.bf16.mxu0 0
    %2793 = vmatpush1.bf16.msra.mxu0 0
    %2794 = vmatprep.mubr.bf16.mxu0 0
    %2795 = vmatmul.mubr.bf16.gmra.mrb[0].mxu0 %v2760
    %v2796 = vpop.f32.mrb[0].mxu0
    %v2797 = vadd.f32 0.0, %v2796
    %v2798 = vpop.f32.mrb[0].mxu0
    %v2799 = vpop.f32.mrb[0].mxu0
    %v2800 = vpop.f32.mrb[0].mxu0
    %2801 = vdwg.mxu0
    %v2802 = vadd.f32 %v2755, %v2797
    %v2803 = vxor.u32 %v2802, 2147483648
    %v2804 = vmul.f32 %v2803, 1.442695
    %v2805 = vpow.pop %v2804
    %v2806 = vadd.f32 %v2805, 1.0
    %v2807 = vrcp.pop %v2806
    %v2808 = vmul.f32 1.0, %v2807
    %v2809 = vtanh.pop %v2802
    %v2810 = vmul.f32 %v2808, %v2742
    %2812 = vrot.lane.b32.xlu0 %v2809, 32
    %v2813 = vpop.permute.xlu0 %2812
    %v2815 = vmul.f32 %v2808, %v2813
    %2817 = vrot.lane.b32.xlu0 %v2815, 32
    %v2818 = vpop.permute.xlu0 %2817
    %v2820 = vadd.f32 %v2810, %v2818
    %v2821 = vtanh.pop %v2820
    %2823 = vrot.lane.b32.xlu0 %v2821, 32
    %v2824 = vpop.permute.xlu0 %2823
    %v2826 = vmul.f32 %v2808, %v2824
    %v2827 = vpack.c.bf16 %v2826, %v2826
    %2829 = vrot.lane.b32.xlu0 %v2826, 64
    %v2830 = vpop.permute.xlu0 %2829
    %2832 = vst.msk [vmem:[#allocation4 + $0x40] sm:$0xff] %vm73, %v2830
    %v2833 = vld [vmem:[#allocation3 + $0x40] sm:$0xff]
    %2835 = vrot.lane.b32.xlu0 %v2827, 64
    %v2836 = vpop.permute.xlu0 %2835
    %v2838 = vsel %vm73, %v2836, 0
    %2840 = vmatprep.subr.bf16.mxu0 0
    %2841 = vmatpush1.bf16.msra.mxu0 %v2205
    %2842 = vmatprep.subr.bf16.mxu0 0
    %2843 = vmatpush1.bf16.msra.mxu0 %v2206
    %2844 = vmatprep.subr.bf16.mxu0 0
    %2845 = vmatpush1.bf16.msra.mxu0 0
    %2846 = vmatprep.subr.bf16.mxu0 0
    %2847 = vmatpush1.bf16.msra.mxu0 0
    %2848 = vmatprep.subr.bf16.mxu0 0
    %2849 = vmatpush1.bf16.msra.mxu0 0
    %2850 = vmatprep.subr.bf16.mxu0 0
    %2851 = vmatpush1.bf16.msra.mxu0 0
    %2852 = vmatprep.subr.bf16.mxu0 0
    %2853 = vmatpush1.bf16.msra.mxu0 0
    %2854 = vmatprep.subr.bf16.mxu0 0
    %2855 = vmatpush1.bf16.msra.mxu0 0
    %2856 = vmatprep.subr.bf16.mxu0 0
    %2857 = vmatpush1.bf16.msra.mxu0 0
    %2858 = vmatprep.subr.bf16.mxu0 0
    %2859 = vmatpush1.bf16.msra.mxu0 0
    %2860 = vmatprep.subr.bf16.mxu0 0
    %2861 = vmatpush1.bf16.msra.mxu0 0
    %2862 = vmatprep.subr.bf16.mxu0 0
    %2863 = vmatpush1.bf16.msra.mxu0 0
    %2864 = vmatprep.subr.bf16.mxu0 0
    %2865 = vmatpush1.bf16.msra.mxu0 0
    %2866 = vmatprep.subr.bf16.mxu0 0
    %2867 = vmatpush1.bf16.msra.mxu0 0
    %2868 = vmatprep.subr.bf16.mxu0 0
    %2869 = vmatpush1.bf16.msra.mxu0 0
    %2870 = vmatprep.subr.bf16.mxu0 0
    %2871 = vmatpush1.bf16.msra.mxu0 0
    %2872 = vmatprep.mubr.bf16.mxu0 0
    %2873 = vmatmul.mubr.bf16.gmra.mrb[0].mxu0 %v2838
    %v2874 = vpop.f32.mrb[0].mxu0
    %v2875 = vadd.f32 0.0, %v2874
    %v2876 = vpop.f32.mrb[0].mxu0
    %v2877 = vpop.f32.mrb[0].mxu0
    %v2878 = vpop.f32.mrb[0].mxu0
    %2879 = vdwg.mxu0
    %v2880 = vadd.f32 %v2833, %v2875
    %v2881 = vxor.u32 %v2880, 2147483648
    %v2882 = vmul.f32 %v2881, 1.442695
    %v2883 = vpow.pop %v2882
    %v2884 = vadd.f32 %v2883, 1.0
    %v2885 = vrcp.pop %v2884
    %v2886 = vmul.f32 1.0, %v2885
    %v2887 = vtanh.pop %v2880
    %v2888 = vmul.f32 %v2886, %v2820
    %2890 = vrot.lane.b32.xlu0 %v2887, 32
    %v2891 = vpop.permute.xlu0 %2890
    %v2893 = vmul.f32 %v2886, %v2891
    %2895 = vrot.lane.b32.xlu0 %v2893, 32
    %v2896 = vpop.permute.xlu0 %2895
    %v2898 = vadd.f32 %v2888, %v2896
    %v2899 = vtanh.pop %v2898
    %2901 = vrot.lane.b32.xlu0 %v2899, 32
    %v2902 = vpop.permute.xlu0 %2901
    %v2904 = vmul.f32 %v2886, %v2902
    %v2905 = vpack.c.bf16 %v2904, %v2904
    %2907 = vrot.lane.b32.xlu0 %v2904, 64
    %v2908 = vpop.permute.xlu0 %2907
    %2910 = vst.msk [vmem:[#allocation4 + $0x48] sm:$0xff] %vm73, %v2908
    %v2911 = vld [vmem:[#allocation3 + $0x48] sm:$0xff]
    %2913 = vrot.lane.b32.xlu0 %v2905, 64
    %v2914 = vpop.permute.xlu0 %2913
    %v2916 = vsel %vm73, %v2914, 0
    %2918 = vmatprep.subr.bf16.mxu0 0
    %2919 = vmatpush1.bf16.msra.mxu0 %v2205
    %2920 = vmatprep.subr.bf16.mxu0 0
    %2921 = vmatpush1.bf16.msra.mxu0 %v2206
    %2922 = vmatprep.subr.bf16.mxu0 0
    %2923 = vmatpush1.bf16.msra.mxu0 0
    %2924 = vmatprep.subr.bf16.mxu0 0
    %2925 = vmatpush1.bf16.msra.mxu0 0
    %2926 = vmatprep.subr.bf16.mxu0 0
    %2927 = vmatpush1.bf16.msra.mxu0 0
    %2928 = vmatprep.subr.bf16.mxu0 0
    %2929 = vmatpush1.bf16.msra.mxu0 0
    %2930 = vmatprep.subr.bf16.mxu0 0
    %2931 = vmatpush1.bf16.msra.mxu0 0
    %2932 = vmatprep.subr.bf16.mxu0 0
    %2933 = vmatpush1.bf16.msra.mxu0 0
    %2934 = vmatprep.subr.bf16.mxu0 0
    %2935 = vmatpush1.bf16.msra.mxu0 0
    %2936 = vmatprep.subr.bf16.mxu0 0
    %2937 = vmatpush1.bf16.msra.mxu0 0
    %2938 = vmatprep.subr.bf16.mxu0 0
    %2939 = vmatpush1.bf16.msra.mxu0 0
    %2940 = vmatprep.subr.bf16.mxu0 0
    %2941 = vmatpush1.bf16.msra.mxu0 0
    %2942 = vmatprep.subr.bf16.mxu0 0
    %2943 = vmatpush1.bf16.msra.mxu0 0
    %2944 = vmatprep.subr.bf16.mxu0 0
    %2945 = vmatpush1.bf16.msra.mxu0 0
    %2946 = vmatprep.subr.bf16.mxu0 0
    %2947 = vmatpush1.bf16.msra.mxu0 0
    %2948 = vmatprep.subr.bf16.mxu0 0
    %2949 = vmatpush1.bf16.msra.mxu0 0
    %2950 = vmatprep.mubr.bf16.mxu0 0
    %2951 = vmatmul.mubr.bf16.gmra.mrb[0].mxu0 %v2916
    %v2952 = vpop.f32.mrb[0].mxu0
    %v2953 = vadd.f32 0.0, %v2952
    %v2954 = vpop.f32.mrb[0].mxu0
    %v2955 = vpop.f32.mrb[0].mxu0
    %v2956 = vpop.f32.mrb[0].mxu0
    %2957 = vdwg.mxu0
    %v2958 = vadd.f32 %v2911, %v2953
    %v2959 = vxor.u32 %v2958, 2147483648
    %v2960 = vmul.f32 %v2959, 1.442695
    %v2961 = vpow.pop %v2960
    %v2962 = vadd.f32 %v2961, 1.0
    %v2963 = vrcp.pop %v2962
    %v2964 = vmul.f32 1.0, %v2963
    %v2965 = vtanh.pop %v2958
    %v2966 = vmul.f32 %v2964, %v2898
    %2968 = vrot.lane.b32.xlu0 %v2965, 32
    %v2969 = vpop.permute.xlu0 %2968
    %v2971 = vmul.f32 %v2964, %v2969
    %2973 = vrot.lane.b32.xlu0 %v2971, 32
    %v2974 = vpop.permute.xlu0 %2973
    %v2976 = vadd.f32 %v2966, %v2974
    %v2977 = vtanh.pop %v2976
    %2979 = vrot.lane.b32.xlu0 %v2977, 32
    %v2980 = vpop.permute.xlu0 %2979
    %v2982 = vmul.f32 %v2964, %v2980
    %v2983 = vpack.c.bf16 %v2982, %v2982
    %2985 = vrot.lane.b32.xlu0 %v2982, 64
    %v2986 = vpop.permute.xlu0 %2985
    %2988 = vst.msk [vmem:[#allocation4 + $0x50] sm:$0xff] %vm73, %v2986
    %v2989 = vld [vmem:[#allocation3 + $0x50] sm:$0xff]
    %2991 = vrot.lane.b32.xlu0 %v2983, 64
    %v2992 = vpop.permute.xlu0 %2991
    %v2994 = vsel %vm73, %v2992, 0
    %2996 = vmatprep.subr.bf16.mxu0 0
    %2997 = vmatpush1.bf16.msra.mxu0 %v2205
    %2998 = vmatprep.subr.bf16.mxu0 0
    %2999 = vmatpush1.bf16.msra.mxu0 %v2206
    %3000 = vmatprep.subr.bf16.mxu0 0
    %3001 = vmatpush1.bf16.msra.mxu0 0
    %3002 = vmatprep.subr.bf16.mxu0 0
    %3003 = vmatpush1.bf16.msra.mxu0 0
    %3004 = vmatprep.subr.bf16.mxu0 0
    %3005 = vmatpush1.bf16.msra.mxu0 0
    %3006 = vmatprep.subr.bf16.mxu0 0
    %3007 = vmatpush1.bf16.msra.mxu0 0
    %3008 = vmatprep.subr.bf16.mxu0 0
    %3009 = vmatpush1.bf16.msra.mxu0 0
    %3010 = vmatprep.subr.bf16.mxu0 0
    %3011 = vmatpush1.bf16.msra.mxu0 0
    %3012 = vmatprep.subr.bf16.mxu0 0
    %3013 = vmatpush1.bf16.msra.mxu0 0
    %3014 = vmatprep.subr.bf16.mxu0 0
    %3015 = vmatpush1.bf16.msra.mxu0 0
    %3016 = vmatprep.subr.bf16.mxu0 0
    %3017 = vmatpush1.bf16.msra.mxu0 0
    %3018 = vmatprep.subr.bf16.mxu0 0
    %3019 = vmatpush1.bf16.msra.mxu0 0
    %3020 = vmatprep.subr.bf16.mxu0 0
    %3021 = vmatpush1.bf16.msra.mxu0 0
    %3022 = vmatprep.subr.bf16.mxu0 0
    %3023 = vmatpush1.bf16.msra.mxu0 0
    %3024 = vmatprep.subr.bf16.mxu0 0
    %3025 = vmatpush1.bf16.msra.mxu0 0
    %3026 = vmatprep.subr.bf16.mxu0 0
    %3027 = vmatpush1.bf16.msra.mxu0 0
    %3028 = vmatprep.mubr.bf16.mxu0 0
    %3029 = vmatmul.mubr.bf16.gmra.mrb[0].mxu0 %v2994
    %v3030 = vpop.f32.mrb[0].mxu0
    %v3031 = vadd.f32 0.0, %v3030
    %v3032 = vpop.f32.mrb[0].mxu0
    %v3033 = vpop.f32.mrb[0].mxu0
    %v3034 = vpop.f32.mrb[0].mxu0
    %3035 = vdwg.mxu0
    %v3036 = vadd.f32 %v2989, %v3031
    %v3037 = vxor.u32 %v3036, 2147483648
    %v3038 = vmul.f32 %v3037, 1.442695
    %v3039 = vpow.pop %v3038
    %v3040 = vadd.f32 %v3039, 1.0
    %v3041 = vrcp.pop %v3040
    %v3042 = vmul.f32 1.0, %v3041
    %v3043 = vtanh.pop %v3036
    %v3044 = vmul.f32 %v3042, %v2976
    %3046 = vrot.lane.b32.xlu0 %v3043, 32
    %v3047 = vpop.permute.xlu0 %3046
    %v3049 = vmul.f32 %v3042, %v3047
    %3051 = vrot.lane.b32.xlu0 %v3049, 32
    %v3052 = vpop.permute.xlu0 %3051
    %v3054 = vadd.f32 %v3044, %v3052
    %v3055 = vtanh.pop %v3054
    %3057 = vrot.lane.b32.xlu0 %v3055, 32
    %v3058 = vpop.permute.xlu0 %3057
    %v3060 = vmul.f32 %v3042, %v3058
    %v3061 = vpack.c.bf16 %v3060, %v3060
    %3063 = vrot.lane.b32.xlu0 %v3060, 64
    %v3064 = vpop.permute.xlu0 %3063
    %3066 = vst.msk [vmem:[#allocation4 + $0x58] sm:$0xff] %vm73, %v3064
    %v3067 = vld [vmem:[#allocation3 + $0x58] sm:$0xff]
    %3069 = vrot.lane.b32.xlu0 %v3061, 64
    %v3070 = vpop.permute.xlu0 %3069
    %v3072 = vsel %vm73, %v3070, 0
    %3074 = vmatprep.subr.bf16.mxu0 0
    %3075 = vmatpush1.bf16.msra.mxu0 %v2205
    %3076 = vmatprep.subr.bf16.mxu0 0
    %3077 = vmatpush1.bf16.msra.mxu0 %v2206
    %3078 = vmatprep.subr.bf16.mxu0 0
    %3079 = vmatpush1.bf16.msra.mxu0 0
    %3080 = vmatprep.subr.bf16.mxu0 0
    %3081 = vmatpush1.bf16.msra.mxu0 0
    %3082 = vmatprep.subr.bf16.mxu0 0
    %3083 = vmatpush1.bf16.msra.mxu0 0
    %3084 = vmatprep.subr.bf16.mxu0 0
    %3085 = vmatpush1.bf16.msra.mxu0 0
    %3086 = vmatprep.subr.bf16.mxu0 0
    %3087 = vmatpush1.bf16.msra.mxu0 0
    %3088 = vmatprep.subr.bf16.mxu0 0
    %3089 = vmatpush1.bf16.msra.mxu0 0
    %3090 = vmatprep.subr.bf16.mxu0 0
    %3091 = vmatpush1.bf16.msra.mxu0 0
    %3092 = vmatprep.subr.bf16.mxu0 0
    %3093 = vmatpush1.bf16.msra.mxu0 0
    %3094 = vmatprep.subr.bf16.mxu0 0
    %3095 = vmatpush1.bf16.msra.mxu0 0
    %3096 = vmatprep.subr.bf16.mxu0 0
    %3097 = vmatpush1.bf16.msra.mxu0 0
    %3098 = vmatprep.subr.bf16.mxu0 0
    %3099 = vmatpush1.bf16.msra.mxu0 0
    %3100 = vmatprep.subr.bf16.mxu0 0
    %3101 = vmatpush1.bf16.msra.mxu0 0
    %3102 = vmatprep.subr.bf16.mxu0 0
    %3103 = vmatpush1.bf16.msra.mxu0 0
    %3104 = vmatprep.subr.bf16.mxu0 0
    %3105 = vmatpush1.bf16.msra.mxu0 0
    %3106 = vmatprep.mubr.bf16.mxu0 0
    %3107 = vmatmul.mubr.bf16.gmra.mrb[0].mxu0 %v3072
    %v3108 = vpop.f32.mrb[0].mxu0
    %v3109 = vadd.f32 0.0, %v3108
    %v3110 = vpop.f32.mrb[0].mxu0
    %v3111 = vpop.f32.mrb[0].mxu0
    %v3112 = vpop.f32.mrb[0].mxu0
    %3113 = vdwg.mxu0
    %v3114 = vadd.f32 %v3067, %v3109
    %v3115 = vxor.u32 %v3114, 2147483648
    %v3116 = vmul.f32 %v3115, 1.442695
    %v3117 = vpow.pop %v3116
    %v3118 = vadd.f32 %v3117, 1.0
    %v3119 = vrcp.pop %v3118
    %v3120 = vmul.f32 1.0, %v3119
    %v3121 = vtanh.pop %v3114
    %v3122 = vmul.f32 %v3120, %v3054
    %3124 = vrot.lane.b32.xlu0 %v3121, 32
    %v3125 = vpop.permute.xlu0 %3124
    %v3127 = vmul.f32 %v3120, %v3125
    %3129 = vrot.lane.b32.xlu0 %v3127, 32
    %v3130 = vpop.permute.xlu0 %3129
    %v3132 = vadd.f32 %v3122, %v3130
    %v3133 = vtanh.pop %v3132
    %3135 = vrot.lane.b32.xlu0 %v3133, 32
    %v3136 = vpop.permute.xlu0 %3135
    %v3138 = vmul.f32 %v3120, %v3136
    %v3139 = vpack.c.bf16 %v3138, %v3138
    %3141 = vrot.lane.b32.xlu0 %v3138, 64
    %v3142 = vpop.permute.xlu0 %3141
    %3144 = vst.msk [vmem:[#allocation4 + $0x60] sm:$0xff] %vm73, %v3142
    %v3145 = vld [vmem:[#allocation3 + $0x60] sm:$0xff]
    %3147 = vrot.lane.b32.xlu0 %v3139, 64
    %v3148 = vpop.permute.xlu0 %3147
    %v3150 = vsel %vm73, %v3148, 0
    %3152 = vmatprep.subr.bf16.mxu0 0
    %3153 = vmatpush1.bf16.msra.mxu0 %v2205
    %3154 = vmatprep.subr.bf16.mxu0 0
    %3155 = vmatpush1.bf16.msra.mxu0 %v2206
    %3156 = vmatprep.subr.bf16.mxu0 0
    %3157 = vmatpush1.bf16.msra.mxu0 0
    %3158 = vmatprep.subr.bf16.mxu0 0
    %3159 = vmatpush1.bf16.msra.mxu0 0
    %3160 = vmatprep.subr.bf16.mxu0 0
    %3161 = vmatpush1.bf16.msra.mxu0 0
    %3162 = vmatprep.subr.bf16.mxu0 0
    %3163 = vmatpush1.bf16.msra.mxu0 0
    %3164 = vmatprep.subr.bf16.mxu0 0
    %3165 = vmatpush1.bf16.msra.mxu0 0
    %3166 = vmatprep.subr.bf16.mxu0 0
    %3167 = vmatpush1.bf16.msra.mxu0 0
    %3168 = vmatprep.subr.bf16.mxu0 0
    %3169 = vmatpush1.bf16.msra.mxu0 0
    %3170 = vmatprep.subr.bf16.mxu0 0
    %3171 = vmatpush1.bf16.msra.mxu0 0
    %3172 = vmatprep.subr.bf16.mxu0 0
    %3173 = vmatpush1.bf16.msra.mxu0 0
    %3174 = vmatprep.subr.bf16.mxu0 0
    %3175 = vmatpush1.bf16.msra.mxu0 0
    %3176 = vmatprep.subr.bf16.mxu0 0
    %3177 = vmatpush1.bf16.msra.mxu0 0
    %3178 = vmatprep.subr.bf16.mxu0 0
    %3179 = vmatpush1.bf16.msra.mxu0 0
    %3180 = vmatprep.subr.bf16.mxu0 0
    %3181 = vmatpush1.bf16.msra.mxu0 0
    %3182 = vmatprep.subr.bf16.mxu0 0
    %3183 = vmatpush1.bf16.msra.mxu0 0
    %3184 = vmatprep.mubr.bf16.mxu0 0
    %3185 = vmatmul.mubr.bf16.gmra.mrb[0].mxu0 %v3150
    %v3186 = vpop.f32.mrb[0].mxu0
    %v3187 = vadd.f32 0.0, %v3186
    %v3188 = vpop.f32.mrb[0].mxu0
    %v3189 = vpop.f32.mrb[0].mxu0
    %v3190 = vpop.f32.mrb[0].mxu0
    %3191 = vdwg.mxu0
    %v3192 = vadd.f32 %v3145, %v3187
    %v3193 = vxor.u32 %v3192, 2147483648
    %v3194 = vmul.f32 %v3193, 1.442695
    %v3195 = vpow.pop %v3194
    %v3196 = vadd.f32 %v3195, 1.0
    %v3197 = vrcp.pop %v3196
    %v3198 = vmul.f32 1.0, %v3197
    %v3199 = vtanh.pop %v3192
    %v3200 = vmul.f32 %v3198, %v3132
    %3202 = vrot.lane.b32.xlu0 %v3199, 32
    %v3203 = vpop.permute.xlu0 %3202
    %v3205 = vmul.f32 %v3198, %v3203
    %3207 = vrot.lane.b32.xlu0 %v3205, 32
    %v3208 = vpop.permute.xlu0 %3207
    %v3210 = vadd.f32 %v3200, %v3208
    %v3211 = vtanh.pop %v3210
    %3213 = vrot.lane.b32.xlu0 %v3211, 32
    %v3214 = vpop.permute.xlu0 %3213
    %v3216 = vmul.f32 %v3198, %v3214
    %v3217 = vpack.c.bf16 %v3216, %v3216
    %3219 = vrot.lane.b32.xlu0 %v3216, 64
    %v3220 = vpop.permute.xlu0 %3219
    %3222 = vst.msk [vmem:[#allocation4 + $0x68] sm:$0xff] %vm73, %v3220
    %v3223 = vld [vmem:[#allocation3 + $0x68] sm:$0xff]
    %3225 = vrot.lane.b32.xlu0 %v3217, 64
    %v3226 = vpop.permute.xlu0 %3225
    %v3228 = vsel %vm73, %v3226, 0
    %3230 = vmatprep.subr.bf16.mxu0 0
    %3231 = vmatpush1.bf16.msra.mxu0 %v2205
    %3232 = vmatprep.subr.bf16.mxu0 0
    %3233 = vmatpush1.bf16.msra.mxu0 %v2206
    %3234 = vmatprep.subr.bf16.mxu0 0
    %3235 = vmatpush1.bf16.msra.mxu0 0
    %3236 = vmatprep.subr.bf16.mxu0 0
    %3237 = vmatpush1.bf16.msra.mxu0 0
    %3238 = vmatprep.subr.bf16.mxu0 0
    %3239 = vmatpush1.bf16.msra.mxu0 0
    %3240 = vmatprep.subr.bf16.mxu0 0
    %3241 = vmatpush1.bf16.msra.mxu0 0
    %3242 = vmatprep.subr.bf16.mxu0 0
    %3243 = vmatpush1.bf16.msra.mxu0 0
    %3244 = vmatprep.subr.bf16.mxu0 0
    %3245 = vmatpush1.bf16.msra.mxu0 0
    %3246 = vmatprep.subr.bf16.mxu0 0
    %3247 = vmatpush1.bf16.msra.mxu0 0
    %3248 = vmatprep.subr.bf16.mxu0 0
    %3249 = vmatpush1.bf16.msra.mxu0 0
    %3250 = vmatprep.subr.bf16.mxu0 0
    %3251 = vmatpush1.bf16.msra.mxu0 0
    %3252 = vmatprep.subr.bf16.mxu0 0
    %3253 = vmatpush1.bf16.msra.mxu0 0
    %3254 = vmatprep.subr.bf16.mxu0 0
    %3255 = vmatpush1.bf16.msra.mxu0 0
    %3256 = vmatprep.subr.bf16.mxu0 0
    %3257 = vmatpush1.bf16.msra.mxu0 0
    %3258 = vmatprep.subr.bf16.mxu0 0
    %3259 = vmatpush1.bf16.msra.mxu0 0
    %3260 = vmatprep.subr.bf16.mxu0 0
    %3261 = vmatpush1.bf16.msra.mxu0 0
    %3262 = vmatprep.mubr.bf16.mxu0 0
    %3263 = vmatmul.mubr.bf16.gmra.mrb[0].mxu0 %v3228
    %v3264 = vpop.f32.mrb[0].mxu0
    %v3265 = vadd.f32 0.0, %v3264
    %v3266 = vpop.f32.mrb[0].mxu0
    %v3267 = vpop.f32.mrb[0].mxu0
    %v3268 = vpop.f32.mrb[0].mxu0
    %3269 = vdwg.mxu0
    %v3270 = vadd.f32 %v3223, %v3265
    %v3271 = vxor.u32 %v3270, 2147483648
    %v3272 = vmul.f32 %v3271, 1.442695
    %v3273 = vpow.pop %v3272
    %v3274 = vadd.f32 %v3273, 1.0
    %v3275 = vrcp.pop %v3274
    %v3276 = vmul.f32 1.0, %v3275
    %v3277 = vtanh.pop %v3270
    %v3278 = vmul.f32 %v3276, %v3210
    %3280 = vrot.lane.b32.xlu0 %v3277, 32
    %v3281 = vpop.permute.xlu0 %3280
    %v3283 = vmul.f32 %v3276, %v3281
    %3285 = vrot.lane.b32.xlu0 %v3283, 32
    %v3286 = vpop.permute.xlu0 %3285
    %v3288 = vadd.f32 %v3278, %v3286
    %v3289 = vtanh.pop %v3288
    %3291 = vrot.lane.b32.xlu0 %v3289, 32
    %v3292 = vpop.permute.xlu0 %3291
    %v3294 = vmul.f32 %v3276, %v3292
    %v3295 = vpack.c.bf16 %v3294, %v3294
    %3297 = vrot.lane.b32.xlu0 %v3294, 64
    %v3298 = vpop.permute.xlu0 %3297
    %3300 = vst.msk [vmem:[#allocation4 + $0x70] sm:$0xff] %vm73, %v3298
    %v3301 = vld [vmem:[#allocation3 + $0x70] sm:$0xff]
    %3303 = vrot.lane.b32.xlu0 %v3295, 64
    %v3304 = vpop.permute.xlu0 %3303
    %v3306 = vsel %vm73, %v3304, 0
    %3308 = vmatprep.subr.bf16.mxu0 0
    %3309 = vmatpush1.bf16.msra.mxu0 %v2205
    %3310 = vmatprep.subr.bf16.mxu0 0
    %3311 = vmatpush1.bf16.msra.mxu0 %v2206
    %3312 = vmatprep.subr.bf16.mxu0 0
    %3313 = vmatpush1.bf16.msra.mxu0 0
    %3314 = vmatprep.subr.bf16.mxu0 0
    %3315 = vmatpush1.bf16.msra.mxu0 0
    %3316 = vmatprep.subr.bf16.mxu0 0
    %3317 = vmatpush1.bf16.msra.mxu0 0
    %3318 = vmatprep.subr.bf16.mxu0 0
    %3319 = vmatpush1.bf16.msra.mxu0 0
    %3320 = vmatprep.subr.bf16.mxu0 0
    %3321 = vmatpush1.bf16.msra.mxu0 0
    %3322 = vmatprep.subr.bf16.mxu0 0
    %3323 = vmatpush1.bf16.msra.mxu0 0
    %3324 = vmatprep.subr.bf16.mxu0 0
    %3325 = vmatpush1.bf16.msra.mxu0 0
    %3326 = vmatprep.subr.bf16.mxu0 0
    %3327 = vmatpush1.bf16.msra.mxu0 0
    %3328 = vmatprep.subr.bf16.mxu0 0
    %3329 = vmatpush1.bf16.msra.mxu0 0
    %3330 = vmatprep.subr.bf16.mxu0 0
    %3331 = vmatpush1.bf16.msra.mxu0 0
    %3332 = vmatprep.subr.bf16.mxu0 0
    %3333 = vmatpush1.bf16.msra.mxu0 0
    %3334 = vmatprep.subr.bf16.mxu0 0
    %3335 = vmatpush1.bf16.msra.mxu0 0
    %3336 = vmatprep.subr.bf16.mxu0 0
    %3337 = vmatpush1.bf16.msra.mxu0 0
    %3338 = vmatprep.subr.bf16.mxu0 0
    %3339 = vmatpush1.bf16.msra.mxu0 0
    %3340 = vmatprep.mubr.bf16.mxu0 0
    %3341 = vmatmul.mubr.bf16.gmra.mrb[0].mxu0 %v3306
    %v3342 = vpop.f32.mrb[0].mxu0
    %v3343 = vadd.f32 0.0, %v3342
    %v3344 = vpop.f32.mrb[0].mxu0
    %v3345 = vpop.f32.mrb[0].mxu0
    %v3346 = vpop.f32.mrb[0].mxu0
    %3347 = vdwg.mxu0
    %v3348 = vadd.f32 %v3301, %v3343
    %v3349 = vxor.u32 %v3348, 2147483648
    %v3350 = vmul.f32 %v3349, 1.442695
    %v3351 = vpow.pop %v3350
    %v3352 = vadd.f32 %v3351, 1.0
    %v3353 = vrcp.pop %v3352
    %v3354 = vmul.f32 1.0, %v3353
    %v3355 = vtanh.pop %v3348
    %v3356 = vmul.f32 %v3354, %v3288
    %3358 = vrot.lane.b32.xlu0 %v3355, 32
    %v3359 = vpop.permute.xlu0 %3358
    %v3361 = vmul.f32 %v3354, %v3359
    %3363 = vrot.lane.b32.xlu0 %v3361, 32
    %v3364 = vpop.permute.xlu0 %3363
    %v3366 = vadd.f32 %v3356, %v3364
    %v3367 = vtanh.pop %v3366
    %3369 = vrot.lane.b32.xlu0 %v3367, 32
    %v3370 = vpop.permute.xlu0 %3369
    %v3372 = vmul.f32 %v3354, %v3370
    %v3373 = vpack.c.bf16 %v3372, %v3372
    %3375 = vrot.lane.b32.xlu0 %v3372, 64
    %v3376 = vpop.permute.xlu0 %3375
    %3378 = vst.msk [vmem:[#allocation4 + $0x78] sm:$0xff] %vm73, %v3376
    %v3379 = vld [vmem:[#allocation3 + $0x78] sm:$0xff]
    %3381 = vrot.lane.b32.xlu0 %v3373, 64
    %v3382 = vpop.permute.xlu0 %3381
    %v3384 = vsel %vm73, %v3382, 0
    %3386 = vmatprep.subr.bf16.mxu0 0
    %3387 = vmatpush1.bf16.msra.mxu0 %v2205
    %3388 = vmatprep.subr.bf16.mxu0 0
    %3389 = vmatpush1.bf16.msra.mxu0 %v2206
    %3390 = vmatprep.subr.bf16.mxu0 0
    %3391 = vmatpush1.bf16.msra.mxu0 0
    %3392 = vmatprep.subr.bf16.mxu0 0
    %3393 = vmatpush1.bf16.msra.mxu0 0
    %3394 = vmatprep.subr.bf16.mxu0 0
    %3395 = vmatpush1.bf16.msra.mxu0 0
    %3396 = vmatprep.subr.bf16.mxu0 0
    %3397 = vmatpush1.bf16.msra.mxu0 0
    %3398 = vmatprep.subr.bf16.mxu0 0
    %3399 = vmatpush1.bf16.msra.mxu0 0
    %3400 = vmatprep.subr.bf16.mxu0 0
    %3401 = vmatpush1.bf16.msra.mxu0 0
    %3402 = vmatprep.subr.bf16.mxu0 0
    %3403 = vmatpush1.bf16.msra.mxu0 0
    %3404 = vmatprep.subr.bf16.mxu0 0
    %3405 = vmatpush1.bf16.msra.mxu0 0
    %3406 = vmatprep.subr.bf16.mxu0 0
    %3407 = vmatpush1.bf16.msra.mxu0 0
    %3408 = vmatprep.subr.bf16.mxu0 0
    %3409 = vmatpush1.bf16.msra.mxu0 0
    %3410 = vmatprep.subr.bf16.mxu0 0
    %3411 = vmatpush1.bf16.msra.mxu0 0
    %3412 = vmatprep.subr.bf16.mxu0 0
    %3413 = vmatpush1.bf16.msra.mxu0 0
    %3414 = vmatprep.subr.bf16.mxu0 0
    %3415 = vmatpush1.bf16.msra.mxu0 0
    %3416 = vmatprep.subr.bf16.mxu0 0
    %3417 = vmatpush1.bf16.msra.mxu0 0
    %3418 = vmatprep.mubr.bf16.mxu0 0
    %3419 = vmatmul.mubr.bf16.gmra.mrb[0].mxu0 %v3384
    %v3420 = vpop.f32.mrb[0].mxu0
    %v3421 = vadd.f32 0.0, %v3420
    %v3422 = vpop.f32.mrb[0].mxu0
    %v3423 = vpop.f32.mrb[0].mxu0
    %v3424 = vpop.f32.mrb[0].mxu0
    %3425 = vdwg.mxu0
    %v3426 = vadd.f32 %v3379, %v3421
    %v3427 = vxor.u32 %v3426, 2147483648
    %v3428 = vmul.f32 %v3427, 1.442695
    %v3429 = vpow.pop %v3428
    %v3430 = vadd.f32 %v3429, 1.0
    %v3431 = vrcp.pop %v3430
    %v3432 = vmul.f32 1.0, %v3431
    %v3433 = vtanh.pop %v3426
    %v3434 = vmul.f32 %v3432, %v3366
    %3436 = vrot.lane.b32.xlu0 %v3433, 32
    %v3437 = vpop.permute.xlu0 %3436
    %v3439 = vmul.f32 %v3432, %v3437
    %3441 = vrot.lane.b32.xlu0 %v3439, 32
    %v3442 = vpop.permute.xlu0 %3441
    %v3444 = vadd.f32 %v3434, %v3442
    %v3445 = vtanh.pop %v3444
    %3447 = vrot.lane.b32.xlu0 %v3445, 32
    %v3448 = vpop.permute.xlu0 %3447
    %v3450 = vmul.f32 %v3432, %v3448
    %3452 = vrot.lane.b32.xlu0 %v3450, 64
    %v3453 = vpop.permute.xlu0 %3452
    %3455 = vst.msk [vmem:[#allocation4 + $0x80] sm:$0xff] %vm73, %v3453
    %v3456 = vld [vmem:[%s15] sm:$0xff]
    %v3457 = vld [vmem:[%s15 + $0x8] sm:$0xff]
    %v3458 = vld [vmem:[%s15 + $0x10] sm:$0xff]
    %v3459 = vld [vmem:[%s15 + $0x18] sm:$0xff]
    %v3460 = vld [vmem:[%s15 + $0x20] sm:$0xff]
    %v3461 = vld [vmem:[%s15 + $0x28] sm:$0xff]
    %v3462 = vld [vmem:[%s15 + $0x30] sm:$0xff]
    %v3463 = vld [vmem:[%s15 + $0x38] sm:$0xff]
    %v3464 = vld [vmem:[%s15 + $0x40] sm:$0xff]
    %v3465 = vld [vmem:[%s15 + $0x48] sm:$0xff]
    %v3466 = vld [vmem:[%s15 + $0x50] sm:$0xff]
    %v3467 = vld [vmem:[%s15 + $0x58] sm:$0xff]
    %v3468 = vld [vmem:[%s15 + $0x60] sm:$0xff]
    %v3469 = vld [vmem:[%s15 + $0x68] sm:$0xff]
    %v3470 = vld [vmem:[%s15 + $0x70] sm:$0xff]
    %v3471 = vld [vmem:[%s15 + $0x78] sm:$0xff]
    %v3472 = vld [vmem:[%s16] sm:$0xff]
    %v3473 = vld [vmem:[%s16 + $0x8] sm:$0xff]
    %v3474 = vld [vmem:[%s16 + $0x10] sm:$0xff]
    %v3475 = vld [vmem:[%s16 + $0x18] sm:$0xff]
    %v3476 = vld [vmem:[%s16 + $0x20] sm:$0xff]
    %v3477 = vld [vmem:[%s16 + $0x28] sm:$0xff]
    %v3478 = vld [vmem:[%s16 + $0x30] sm:$0xff]
    %v3479 = vld [vmem:[%s16 + $0x38] sm:$0xff]
    %v3480 = vld [vmem:[%s16 + $0x40] sm:$0xff]
    %v3481 = vld [vmem:[%s16 + $0x48] sm:$0xff]
    %v3482 = vld [vmem:[%s16 + $0x50] sm:$0xff]
    %v3483 = vld [vmem:[%s16 + $0x58] sm:$0xff]
    %v3484 = vld [vmem:[%s16 + $0x60] sm:$0xff]
    %v3485 = vld [vmem:[%s16 + $0x68] sm:$0xff]
    %v3486 = vld [vmem:[%s16 + $0x70] sm:$0xff]
    %v3487 = vld [vmem:[%s16 + $0x78] sm:$0xff]
    %v3488 = vld [vmem:[#allocation4] sm:$0xff]
    %v3489 = vld [vmem:[#allocation4 + $0x8] sm:$0xff]
    %v3490 = vld [vmem:[#allocation4 + $0x10] sm:$0xff]
    %v3491 = vld [vmem:[#allocation4 + $0x18] sm:$0xff]
    %v3492 = vld [vmem:[#allocation4 + $0x20] sm:$0xff]
    %v3493 = vld [vmem:[#allocation4 + $0x28] sm:$0xff]
    %v3494 = vld [vmem:[#allocation4 + $0x30] sm:$0xff]
    %v3495 = vld [vmem:[#allocation4 + $0x38] sm:$0xff]
    %v3496 = vld [vmem:[#allocation4 + $0x40] sm:$0xff]
    %v3497 = vld [vmem:[#allocation4 + $0x48] sm:$0xff]
    %v3498 = vld [vmem:[#allocation4 + $0x50] sm:$0xff]
    %v3499 = vld [vmem:[#allocation4 + $0x58] sm:$0xff]
    %v3500 = vld [vmem:[#allocation4 + $0x60] sm:$0xff]
    %v3501 = vld [vmem:[#allocation4 + $0x68] sm:$0xff]
    %v3502 = vld [vmem:[#allocation4 + $0x70] sm:$0xff]
    %v3503 = vld [vmem:[#allocation4 + $0x78] sm:$0xff]
    %v3504 = vld [vmem:[%s11] sm:$0xff]
    %v3505 = vld [vmem:[%s11 + $0x8] sm:$0xff]
    %v3506 = vld [vmem:[%s11 + $0x10] sm:$0xff]
    %v3507 = vld [vmem:[%s11 + $0x18] sm:$0xff]
    %v3508 = vld [vmem:[#allocation4 + $0x80] sm:$0xff]
    %s3509 = scalar_lea.vmem %s11, 32
    %v3510 = vld [vmem:[%s3509] sm:$0xff]
    %v3511 = vld [vmem:[%s3509 + $0x8] sm:$0xff]
    %v3512 = vld [vmem:[%s3509 + $0x10] sm:$0xff]
    %v3513 = vld [vmem:[%s3509 + $0x18] sm:$0xff]
    %v3515 = vsel %vm73, %v3489, 0
    %v3518 = vsel %vm73, %v3490, 0
    %v3521 = vsel %vm73, %v3491, 0
    %v3524 = vsel %vm73, %v3492, 0
    %v3527 = vsel %vm73, %v3493, 0
    %v3530 = vsel %vm73, %v3494, 0
    %v3533 = vsel %vm73, %v3495, 0
    %v3536 = vsel %vm73, %v3496, 0
    %v3539 = vsel %vm73, %v3497, 0
    %v3542 = vsel %vm73, %v3498, 0
    %v3545 = vsel %vm73, %v3499, 0
    %v3548 = vsel %vm73, %v3500, 0
    %v3551 = vsel %vm73, %v3501, 0
    %v3554 = vsel %vm73, %v3502, 0
    %v3557 = vsel %vm73, %v3503, 0
    %v3560 = vsel %vm73, %v3508, 0
    %3562 = vmatprep.subr.mxu0 0.0
    %3563 = vmatpush1.msra.mxu0 %v3510
    %3564 = vmatprep.subr.mxu0 0.0
    %3565 = vmatpush1.msra.mxu0 %v3511
    %3566 = vmatprep.subr.mxu0 0.0
    %3567 = vmatpush1.msra.mxu0 %v3512
    %3568 = vmatprep.subr.mxu0 0.0
    %3569 = vmatpush1.msra.mxu0 %v3513
    %3570 = vmatprep.subr.mxu0 0.0
    %3571 = vmatpush1.msra.mxu0 0.0
    %3572 = vmatprep.subr.mxu0 0.0
    %3573 = vmatpush1.msra.mxu0 0.0
    %3574 = vmatprep.subr.mxu0 0.0
    %3575 = vmatpush1.msra.mxu0 0.0
    %3576 = vmatprep.subr.mxu0 0.0
    %3577 = vmatpush1.msra.mxu0 0.0
    %3578 = vmatprep.subr.mxu0 0.0
    %3579 = vmatpush1.msra.mxu0 0.0
    %3580 = vmatprep.subr.mxu0 0.0
    %3581 = vmatpush1.msra.mxu0 0.0
    %3582 = vmatprep.subr.mxu0 0.0
    %3583 = vmatpush1.msra.mxu0 0.0
    %3584 = vmatprep.subr.mxu0 0.0
    %3585 = vmatpush1.msra.mxu0 0.0
    %3586 = vmatprep.subr.mxu0 0.0
    %3587 = vmatpush1.msra.mxu0 0.0
    %3588 = vmatprep.subr.mxu0 0.0
    %3589 = vmatpush1.msra.mxu0 0.0
    %3590 = vmatprep.subr.mxu0 0.0
    %3591 = vmatpush1.msra.mxu0 0.0
    %3592 = vmatprep.subr.mxu0 0.0
    %3593 = vmatpush1.msra.mxu0 0.0
    %3594 = vmatprep.subr.mxu0 0.0
    %3595 = vmatpush1.msra.mxu0 0.0
    %3596 = vmatprep.subr.mxu0 0.0
    %3597 = vmatpush1.msra.mxu0 0.0
    %3598 = vmatprep.subr.mxu0 0.0
    %3599 = vmatpush1.msra.mxu0 0.0
    %3600 = vmatprep.subr.mxu0 0.0
    %3601 = vmatpush1.msra.mxu0 0.0
    %3602 = vmatprep.subr.mxu0 0.0
    %3603 = vmatpush1.msra.mxu0 0.0
    %3604 = vmatprep.subr.mxu0 0.0
    %3605 = vmatpush1.msra.mxu0 0.0
    %3606 = vmatprep.subr.mxu0 0.0
    %3607 = vmatpush1.msra.mxu0 0.0
    %3608 = vmatprep.subr.mxu0 0.0
    %3609 = vmatpush1.msra.mxu0 0.0
    %3610 = vmatprep.subr.mxu0 0.0
    %3611 = vmatpush1.msra.mxu0 0.0
    %3612 = vmatprep.subr.mxu0 0.0
    %3613 = vmatpush1.msra.mxu0 0.0
    %3614 = vmatprep.subr.mxu0 0.0
    %3615 = vmatpush1.msra.mxu0 0.0
    %3616 = vmatprep.subr.mxu0 0.0
    %3617 = vmatpush1.msra.mxu0 0.0
    %3618 = vmatprep.subr.mxu0 0.0
    %3619 = vmatpush1.msra.mxu0 0.0
    %3620 = vmatprep.subr.mxu0 0.0
    %3621 = vmatpush1.msra.mxu0 0.0
    %3622 = vmatprep.subr.mxu0 0.0
    %3623 = vmatpush1.msra.mxu0 0.0
    %3624 = vmatprep.subr.mxu0 0.0
    %3625 = vmatpush1.msra.mxu0 0.0
    %3626 = vmatprep.mubr.f32.mxu0 0.0
    %3627 = vmatmul.mubr.f32.gmra.mrb[0].mxu0 %v3515
    %v3628 = vpop.f32.mrb[0].mxu0
    %v3629 = vadd.f32 0.0, %v3628
    %v3630 = vpop.f32.mrb[0].mxu0
    %3631 = vmatprep.mubr.f32.mxu0 0.0
    %3632 = vmatmul.mubr.f32.gmra.mrb[0].mxu0 %v3518
    %v3633 = vpop.f32.mrb[0].mxu0
    %v3634 = vadd.f32 0.0, %v3633
    %v3635 = vpop.f32.mrb[0].mxu0
    %3636 = vmatprep.mubr.f32.mxu0 0.0
    %3637 = vmatmul.mubr.f32.gmra.mrb[0].mxu0 %v3521
    %v3638 = vpop.f32.mrb[0].mxu0
    %v3639 = vadd.f32 0.0, %v3638
    %v3640 = vpop.f32.mrb[0].mxu0
    %3641 = vmatprep.mubr.f32.mxu0 0.0
    %3642 = vmatmul.mubr.f32.gmra.mrb[0].mxu0 %v3524
    %v3643 = vpop.f32.mrb[0].mxu0
    %v3644 = vadd.f32 0.0, %v3643
    %v3645 = vpop.f32.mrb[0].mxu0
    %3646 = vmatprep.mubr.f32.mxu0 0.0
    %3647 = vmatmul.mubr.f32.gmra.mrb[0].mxu0 %v3527
    %v3648 = vpop.f32.mrb[0].mxu0
    %v3649 = vadd.f32 0.0, %v3648
    %v3650 = vpop.f32.mrb[0].mxu0
    %3651 = vmatprep.mubr.f32.mxu0 0.0
    %3652 = vmatmul.mubr.f32.gmra.mrb[0].mxu0 %v3530
    %v3653 = vpop.f32.mrb[0].mxu0
    %v3654 = vadd.f32 0.0, %v3653
    %v3655 = vpop.f32.mrb[0].mxu0
    %3656 = vmatprep.mubr.f32.mxu0 0.0
    %3657 = vmatmul.mubr.f32.gmra.mrb[0].mxu0 %v3533
    %v3658 = vpop.f32.mrb[0].mxu0
    %v3659 = vadd.f32 0.0, %v3658
    %v3660 = vpop.f32.mrb[0].mxu0
    %3661 = vmatprep.mubr.f32.mxu0 0.0
    %3662 = vmatmul.mubr.f32.gmra.mrb[0].mxu0 %v3536
    %v3663 = vpop.f32.mrb[0].mxu0
    %v3664 = vadd.f32 0.0, %v3663
    %v3665 = vpop.f32.mrb[0].mxu0
    %3666 = vmatprep.mubr.f32.mxu0 0.0
    %3667 = vmatmul.mubr.f32.gmra.mrb[0].mxu0 %v3539
    %v3668 = vpop.f32.mrb[0].mxu0
    %v3669 = vadd.f32 0.0, %v3668
    %v3670 = vpop.f32.mrb[0].mxu0
    %3671 = vmatprep.mubr.f32.mxu0 0.0
    %3672 = vmatmul.mubr.f32.gmra.mrb[0].mxu0 %v3542
    %v3673 = vpop.f32.mrb[0].mxu0
    %v3674 = vadd.f32 0.0, %v3673
    %v3675 = vpop.f32.mrb[0].mxu0
    %3676 = vmatprep.mubr.f32.mxu0 0.0
    %3677 = vmatmul.mubr.f32.gmra.mrb[0].mxu0 %v3545
    %v3678 = vpop.f32.mrb[0].mxu0
    %v3679 = vadd.f32 0.0, %v3678
    %v3680 = vpop.f32.mrb[0].mxu0
    %3681 = vmatprep.mubr.f32.mxu0 0.0
    %3682 = vmatmul.mubr.f32.gmra.mrb[0].mxu0 %v3548
    %v3683 = vpop.f32.mrb[0].mxu0
    %v3684 = vadd.f32 0.0, %v3683
    %v3685 = vpop.f32.mrb[0].mxu0
    %3686 = vmatprep.mubr.f32.mxu0 0.0
    %3687 = vmatmul.mubr.f32.gmra.mrb[0].mxu0 %v3551
    %v3688 = vpop.f32.mrb[0].mxu0
    %v3689 = vadd.f32 0.0, %v3688
    %v3690 = vpop.f32.mrb[0].mxu0
    %3691 = vmatprep.mubr.f32.mxu0 0.0
    %3692 = vmatmul.mubr.f32.gmra.mrb[0].mxu0 %v3554
    %v3693 = vpop.f32.mrb[0].mxu0
    %v3694 = vadd.f32 0.0, %v3693
    %v3695 = vpop.f32.mrb[0].mxu0
    %3696 = vmatprep.mubr.f32.mxu0 0.0
    %3697 = vmatmul.mubr.f32.gmra.mrb[0].mxu0 %v3557
    %v3698 = vpop.f32.mrb[0].mxu0
    %v3699 = vadd.f32 0.0, %v3698
    %v3700 = vpop.f32.mrb[0].mxu0
    %3701 = vmatprep.mubr.f32.mxu0 0.0
    %3702 = vmatmul.mubr.f32.gmra.mrb[0].mxu0 %v3560
    %v3703 = vpop.f32.mrb[0].mxu0
    %v3704 = vadd.f32 0.0, %v3703
    %v3705 = vpop.f32.mrb[0].mxu0
    %3706 = vdwg.mxu0
    %v3708 = vsel %vm73, %v3488, 0
    %3710 = vmatprep.subr.mxu0 0.0
    %3711 = vmatpush1.msra.mxu0 %v3504
    %3712 = vmatprep.subr.mxu0 0.0
    %3713 = vmatpush1.msra.mxu0 %v3505
    %3714 = vmatprep.subr.mxu0 0.0
    %3715 = vmatpush1.msra.mxu0 %v3506
    %3716 = vmatprep.subr.mxu0 0.0
    %3717 = vmatpush1.msra.mxu0 %v3507
    %3718 = vmatprep.subr.mxu0 0.0
    %3719 = vmatpush1.msra.mxu0 0.0
    %3720 = vmatprep.subr.mxu0 0.0
    %3721 = vmatpush1.msra.mxu0 0.0
    %3722 = vmatprep.subr.mxu0 0.0
    %3723 = vmatpush1.msra.mxu0 0.0
    %3724 = vmatprep.subr.mxu0 0.0
    %3725 = vmatpush1.msra.mxu0 0.0
    %3726 = vmatprep.subr.mxu0 0.0
    %3727 = vmatpush1.msra.mxu0 0.0
    %3728 = vmatprep.subr.mxu0 0.0
    %3729 = vmatpush1.msra.mxu0 0.0
    %3730 = vmatprep.subr.mxu0 0.0
    %3731 = vmatpush1.msra.mxu0 0.0
    %3732 = vmatprep.subr.mxu0 0.0
    %3733 = vmatpush1.msra.mxu0 0.0
    %3734 = vmatprep.subr.mxu0 0.0
    %3735 = vmatpush1.msra.mxu0 0.0
    %3736 = vmatprep.subr.mxu0 0.0
    %3737 = vmatpush1.msra.mxu0 0.0
    %3738 = vmatprep.subr.mxu0 0.0
    %3739 = vmatpush1.msra.mxu0 0.0
    %3740 = vmatprep.subr.mxu0 0.0
    %3741 = vmatpush1.msra.mxu0 0.0
    %3742 = vmatprep.subr.mxu0 0.0
    %3743 = vmatpush1.msra.mxu0 0.0
    %3744 = vmatprep.subr.mxu0 0.0
    %3745 = vmatpush1.msra.mxu0 0.0
    %3746 = vmatprep.subr.mxu0 0.0
    %3747 = vmatpush1.msra.mxu0 0.0
    %3748 = vmatprep.subr.mxu0 0.0
    %3749 = vmatpush1.msra.mxu0 0.0
    %3750 = vmatprep.subr.mxu0 0.0
    %3751 = vmatpush1.msra.mxu0 0.0
    %3752 = vmatprep.subr.mxu0 0.0
    %3753 = vmatpush1.msra.mxu0 0.0
    %3754 = vmatprep.subr.mxu0 0.0
    %3755 = vmatpush1.msra.mxu0 0.0
    %3756 = vmatprep.subr.mxu0 0.0
    %3757 = vmatpush1.msra.mxu0 0.0
    %3758 = vmatprep.subr.mxu0 0.0
    %3759 = vmatpush1.msra.mxu0 0.0
    %3760 = vmatprep.subr.mxu0 0.0
    %3761 = vmatpush1.msra.mxu0 0.0
    %3762 = vmatprep.subr.mxu0 0.0
    %3763 = vmatpush1.msra.mxu0 0.0
    %3764 = vmatprep.subr.mxu0 0.0
    %3765 = vmatpush1.msra.mxu0 0.0
    %3766 = vmatprep.subr.mxu0 0.0
    %3767 = vmatpush1.msra.mxu0 0.0
    %3768 = vmatprep.subr.mxu0 0.0
    %3769 = vmatpush1.msra.mxu0 0.0
    %3770 = vmatprep.subr.mxu0 0.0
    %3771 = vmatpush1.msra.mxu0 0.0
    %3772 = vmatprep.subr.mxu0 0.0
    %3773 = vmatpush1.msra.mxu0 0.0
    %3774 = vmatprep.mubr.f32.mxu0 0.0
    %3775 = vmatmul.mubr.f32.gmra.mrb[0].mxu0 %v3708
    %v3776 = vpop.f32.mrb[0].mxu0
    %v3777 = vadd.f32 %v3629, %v3776
    %v3778 = vpop.f32.mrb[0].mxu0
    %3779 = vmatprep.mubr.f32.mxu0 0.0
    %3780 = vmatmul.mubr.f32.gmra.mrb[0].mxu0 %v3515
    %v3781 = vpop.f32.mrb[0].mxu0
    %v3782 = vadd.f32 %v3634, %v3781
    %v3783 = vpop.f32.mrb[0].mxu0
    %3784 = vmatprep.mubr.f32.mxu0 0.0
    %3785 = vmatmul.mubr.f32.gmra.mrb[0].mxu0 %v3518
    %v3786 = vpop.f32.mrb[0].mxu0
    %v3787 = vadd.f32 %v3639, %v3786
    %v3788 = vpop.f32.mrb[0].mxu0
    %3789 = vmatprep.mubr.f32.mxu0 0.0
    %3790 = vmatmul.mubr.f32.gmra.mrb[0].mxu0 %v3521
    %v3791 = vpop.f32.mrb[0].mxu0
    %v3792 = vadd.f32 %v3644, %v3791
    %v3793 = vpop.f32.mrb[0].mxu0
    %3794 = vmatprep.mubr.f32.mxu0 0.0
    %3795 = vmatmul.mubr.f32.gmra.mrb[0].mxu0 %v3524
    %v3796 = vpop.f32.mrb[0].mxu0
    %v3797 = vadd.f32 %v3649, %v3796
    %v3798 = vpop.f32.mrb[0].mxu0
    %3799 = vmatprep.mubr.f32.mxu0 0.0
    %3800 = vmatmul.mubr.f32.gmra.mrb[0].mxu0 %v3527
    %v3801 = vpop.f32.mrb[0].mxu0
    %v3802 = vadd.f32 %v3654, %v3801
    %v3803 = vpop.f32.mrb[0].mxu0
    %3804 = vmatprep.mubr.f32.mxu0 0.0
    %3805 = vmatmul.mubr.f32.gmra.mrb[0].mxu0 %v3530
    %v3806 = vpop.f32.mrb[0].mxu0
    %v3807 = vadd.f32 %v3659, %v3806
    %v3808 = vpop.f32.mrb[0].mxu0
    %3809 = vmatprep.mubr.f32.mxu0 0.0
    %3810 = vmatmul.mubr.f32.gmra.mrb[0].mxu0 %v3533
    %v3811 = vpop.f32.mrb[0].mxu0
    %v3812 = vadd.f32 %v3664, %v3811
    %v3813 = vpop.f32.mrb[0].mxu0
    %3814 = vmatprep.mubr.f32.mxu0 0.0
    %3815 = vmatmul.mubr.f32.gmra.mrb[0].mxu0 %v3536
    %v3816 = vpop.f32.mrb[0].mxu0
    %v3817 = vadd.f32 %v3669, %v3816
    %v3818 = vpop.f32.mrb[0].mxu0
    %3819 = vmatprep.mubr.f32.mxu0 0.0
    %3820 = vmatmul.mubr.f32.gmra.mrb[0].mxu0 %v3539
    %v3821 = vpop.f32.mrb[0].mxu0
    %v3822 = vadd.f32 %v3674, %v3821
    %v3823 = vpop.f32.mrb[0].mxu0
    %3824 = vmatprep.mubr.f32.mxu0 0.0
    %3825 = vmatmul.mubr.f32.gmra.mrb[0].mxu0 %v3542
    %v3826 = vpop.f32.mrb[0].mxu0
    %v3827 = vadd.f32 %v3679, %v3826
    %v3828 = vpop.f32.mrb[0].mxu0
    %3829 = vmatprep.mubr.f32.mxu0 0.0
    %3830 = vmatmul.mubr.f32.gmra.mrb[0].mxu0 %v3545
    %v3831 = vpop.f32.mrb[0].mxu0
    %v3832 = vadd.f32 %v3684, %v3831
    %v3833 = vpop.f32.mrb[0].mxu0
    %3834 = vmatprep.mubr.f32.mxu0 0.0
    %3835 = vmatmul.mubr.f32.gmra.mrb[0].mxu0 %v3548
    %v3836 = vpop.f32.mrb[0].mxu0
    %v3837 = vadd.f32 %v3689, %v3836
    %v3838 = vpop.f32.mrb[0].mxu0
    %3839 = vmatprep.mubr.f32.mxu0 0.0
    %3840 = vmatmul.mubr.f32.gmra.mrb[0].mxu0 %v3551
    %v3841 = vpop.f32.mrb[0].mxu0
    %v3842 = vadd.f32 %v3694, %v3841
    %v3843 = vpop.f32.mrb[0].mxu0
    %3844 = vmatprep.mubr.f32.mxu0 0.0
    %3845 = vmatmul.mubr.f32.gmra.mrb[0].mxu0 %v3554
    %v3846 = vpop.f32.mrb[0].mxu0
    %v3847 = vadd.f32 %v3699, %v3846
    %v3848 = vpop.f32.mrb[0].mxu0
    %3849 = vmatprep.mubr.f32.mxu0 0.0
    %3850 = vmatmul.mubr.f32.gmra.mrb[0].mxu0 %v3557
    %v3851 = vpop.f32.mrb[0].mxu0
    %v3852 = vadd.f32 %v3704, %v3851
    %v3853 = vpop.f32.mrb[0].mxu0
    %3854 = vdwg.mxu0
    %v3855 = vld [vmem:[#allocation4 + $0x10] sm:$0xff]
    %v3856 = vld [vmem:[#allocation4 + $0x18] sm:$0xff]
    %v3857 = vld [vmem:[#allocation4 + $0x20] sm:$0xff]
    %v3858 = vld [vmem:[#allocation4 + $0x28] sm:$0xff]
    %v3859 = vld [vmem:[#allocation4 + $0x30] sm:$0xff]
    %v3860 = vld [vmem:[#allocation4 + $0x38] sm:$0xff]
    %v3861 = vld [vmem:[#allocation4 + $0x40] sm:$0xff]
    %v3862 = vld [vmem:[#allocation4 + $0x48] sm:$0xff]
    %v3863 = vld [vmem:[#allocation4 + $0x50] sm:$0xff]
    %v3864 = vld [vmem:[#allocation4 + $0x58] sm:$0xff]
    %v3865 = vld [vmem:[#allocation4 + $0x60] sm:$0xff]
    %v3866 = vld [vmem:[#allocation4 + $0x68] sm:$0xff]
    %v3867 = vld [vmem:[#allocation4 + $0x70] sm:$0xff]
    %v3868 = vld [vmem:[#allocation4 + $0x78] sm:$0xff]
    %v3869 = vld [vmem:[#allocation4 + $0x80] sm:$0xff]
    %v3870 = vld [vmem:[#allocation4 + $0x88] sm:$0xff]
    %s3871 = scalar_lea.vmem %s11, 64
    %v3872 = vld [vmem:[%s3871] sm:$0xff]
    %v3873 = vld [vmem:[%s3871 + $0x8] sm:$0xff]
    %v3874 = vld [vmem:[%s3871 + $0x10] sm:$0xff]
    %v3875 = vld [vmem:[%s3871 + $0x18] sm:$0xff]
    %v3877 = vsel %vm73, %v3855, 0
    %v3880 = vsel %vm73, %v3856, 0
    %v3883 = vsel %vm73, %v3857, 0
    %v3886 = vsel %vm73, %v3858, 0
    %v3889 = vsel %vm73, %v3859, 0
    %v3892 = vsel %vm73, %v3860, 0
    %v3895 = vsel %vm73, %v3861, 0
    %v3898 = vsel %vm73, %v3862, 0
    %v3901 = vsel %vm73, %v3863, 0
    %v3904 = vsel %vm73, %v3864, 0
    %v3907 = vsel %vm73, %v3865, 0
    %v3910 = vsel %vm73, %v3866, 0
    %v3913 = vsel %vm73, %v3867, 0
    %v3916 = vsel %vm73, %v3868, 0
    %v3919 = vsel %vm73, %v3869, 0
    %v3922 = vsel %vm73, %v3870, 0
    %3924 = vmatprep.subr.mxu0 0.0
    %3925 = vmatpush1.msra.mxu0 %v3872
    %3926 = vmatprep.subr.mxu0 0.0
    %3927 = vmatpush1.msra.mxu0 %v3873
    %3928 = vmatprep.subr.mxu0 0.0
    %3929 = vmatpush1.msra.mxu0 %v3874
    %3930 = vmatprep.subr.mxu0 0.0
    %3931 = vmatpush1.msra.mxu0 %v3875
    %3932 = vmatprep.subr.mxu0 0.0
    %3933 = vmatpush1.msra.mxu0 0.0
    %3934 = vmatprep.subr.mxu0 0.0
    %3935 = vmatpush1.msra.mxu0 0.0
    %3936 = vmatprep.subr.mxu0 0.0
    %3937 = vmatpush1.msra.mxu0 0.0
    %3938 = vmatprep.subr.mxu0 0.0
    %3939 = vmatpush1.msra.mxu0 0.0
    %3940 = vmatprep.subr.mxu0 0.0
    %3941 = vmatpush1.msra.mxu0 0.0
    %3942 = vmatprep.subr.mxu0 0.0
    %3943 = vmatpush1.msra.mxu0 0.0
    %3944 = vmatprep.subr.mxu0 0.0
    %3945 = vmatpush1.msra.mxu0 0.0
    %3946 = vmatprep.subr.mxu0 0.0
    %3947 = vmatpush1.msra.mxu0 0.0
    %3948 = vmatprep.subr.mxu0 0.0
    %3949 = vmatpush1.msra.mxu0 0.0
    %3950 = vmatprep.subr.mxu0 0.0
    %3951 = vmatpush1.msra.mxu0 0.0
    %3952 = vmatprep.subr.mxu0 0.0
    %3953 = vmatpush1.msra.mxu0 0.0
    %3954 = vmatprep.subr.mxu0 0.0
    %3955 = vmatpush1.msra.mxu0 0.0
    %3956 = vmatprep.subr.mxu0 0.0
    %3957 = vmatpush1.msra.mxu0 0.0
    %3958 = vmatprep.subr.mxu0 0.0
    %3959 = vmatpush1.msra.mxu0 0.0
    %3960 = vmatprep.subr.mxu0 0.0
    %3961 = vmatpush1.msra.mxu0 0.0
    %3962 = vmatprep.subr.mxu0 0.0
    %3963 = vmatpush1.msra.mxu0 0.0
    %3964 = vmatprep.subr.mxu0 0.0
    %3965 = vmatpush1.msra.mxu0 0.0
    %3966 = vmatprep.subr.mxu0 0.0
    %3967 = vmatpush1.msra.mxu0 0.0
    %3968 = vmatprep.subr.mxu0 0.0
    %3969 = vmatpush1.msra.mxu0 0.0
    %3970 = vmatprep.subr.mxu0 0.0
    %3971 = vmatpush1.msra.mxu0 0.0
    %3972 = vmatprep.subr.mxu0 0.0
    %3973 = vmatpush1.msra.mxu0 0.0
    %3974 = vmatprep.subr.mxu0 0.0
    %3975 = vmatpush1.msra.mxu0 0.0
    %3976 = vmatprep.subr.mxu0 0.0
    %3977 = vmatpush1.msra.mxu0 0.0
    %3978 = vmatprep.subr.mxu0 0.0
    %3979 = vmatpush1.msra.mxu0 0.0
    %3980 = vmatprep.subr.mxu0 0.0
    %3981 = vmatpush1.msra.mxu0 0.0
    %3982 = vmatprep.subr.mxu0 0.0
    %3983 = vmatpush1.msra.mxu0 0.0
    %3984 = vmatprep.subr.mxu0 0.0
    %3985 = vmatpush1.msra.mxu0 0.0
    %3986 = vmatprep.subr.mxu0 0.0
    %3987 = vmatpush1.msra.mxu0 0.0
    %3988 = vmatprep.mubr.f32.mxu0 0.0
    %3989 = vmatmul.mubr.f32.gmra.mrb[0].mxu0 %v3877
    %v3990 = vpop.f32.mrb[0].mxu0
    %v3991 = vadd.f32 0.0, %v3990
    %v3992 = vpop.f32.mrb[0].mxu0
    %3993 = vmatprep.mubr.f32.mxu0 0.0
    %3994 = vmatmul.mubr.f32.gmra.mrb[0].mxu0 %v3880
    %v3995 = vpop.f32.mrb[0].mxu0
    %v3996 = vadd.f32 0.0, %v3995
    %v3997 = vpop.f32.mrb[0].mxu0
    %3998 = vmatprep.mubr.f32.mxu0 0.0
    %3999 = vmatmul.mubr.f32.gmra.mrb[0].mxu0 %v3883
    %v4000 = vpop.f32.mrb[0].mxu0
    %v4001 = vadd.f32 0.0, %v4000
    %v4002 = vpop.f32.mrb[0].mxu0
    %4003 = vmatprep.mubr.f32.mxu0 0.0
    %4004 = vmatmul.mubr.f32.gmra.mrb[0].mxu0 %v3886
    %v4005 = vpop.f32.mrb[0].mxu0
    %v4006 = vadd.f32 0.0, %v4005
    %v4007 = vpop.f32.mrb[0].mxu0
    %4008 = vmatprep.mubr.f32.mxu0 0.0
    %4009 = vmatmul.mubr.f32.gmra.mrb[0].mxu0 %v3889
    %v4010 = vpop.f32.mrb[0].mxu0
    %v4011 = vadd.f32 0.0, %v4010
    %v4012 = vpop.f32.mrb[0].mxu0
    %4013 = vmatprep.mubr.f32.mxu0 0.0
    %4014 = vmatmul.mubr.f32.gmra.mrb[0].mxu0 %v3892
    %v4015 = vpop.f32.mrb[0].mxu0
    %v4016 = vadd.f32 0.0, %v4015
    %v4017 = vpop.f32.mrb[0].mxu0
    %4018 = vmatprep.mubr.f32.mxu0 0.0
    %4019 = vmatmul.mubr.f32.gmra.mrb[0].mxu0 %v3895
    %v4020 = vpop.f32.mrb[0].mxu0
    %v4021 = vadd.f32 0.0, %v4020
    %v4022 = vpop.f32.mrb[0].mxu0
    %4023 = vmatprep.mubr.f32.mxu0 0.0
    %4024 = vmatmul.mubr.f32.gmra.mrb[0].mxu0 %v3898
    %v4025 = vpop.f32.mrb[0].mxu0
    %v4026 = vadd.f32 0.0, %v4025
    %v4027 = vpop.f32.mrb[0].mxu0
    %4028 = vmatprep.mubr.f32.mxu0 0.0
    %4029 = vmatmul.mubr.f32.gmra.mrb[0].mxu0 %v3901
    %v4030 = vpop.f32.mrb[0].mxu0
    %v4031 = vadd.f32 0.0, %v4030
    %v4032 = vpop.f32.mrb[0].mxu0
    %4033 = vmatprep.mubr.f32.mxu0 0.0
    %4034 = vmatmul.mubr.f32.gmra.mrb[0].mxu0 %v3904
    %v4035 = vpop.f32.mrb[0].mxu0
    %v4036 = vadd.f32 0.0, %v4035
    %v4037 = vpop.f32.mrb[0].mxu0
    %4038 = vmatprep.mubr.f32.mxu0 0.0
    %4039 = vmatmul.mubr.f32.gmra.mrb[0].mxu0 %v3907
    %v4040 = vpop.f32.mrb[0].mxu0
    %v4041 = vadd.f32 0.0, %v4040
    %v4042 = vpop.f32.mrb[0].mxu0
    %4043 = vmatprep.mubr.f32.mxu0 0.0
    %4044 = vmatmul.mubr.f32.gmra.mrb[0].mxu0 %v3910
    %v4045 = vpop.f32.mrb[0].mxu0
    %v4046 = vadd.f32 0.0, %v4045
    %v4047 = vpop.f32.mrb[0].mxu0
    %4048 = vmatprep.mubr.f32.mxu0 0.0
    %4049 = vmatmul.mubr.f32.gmra.mrb[0].mxu0 %v3913
    %v4050 = vpop.f32.mrb[0].mxu0
    %v4051 = vadd.f32 0.0, %v4050
    %v4052 = vpop.f32.mrb[0].mxu0
    %4053 = vmatprep.mubr.f32.mxu0 0.0
    %4054 = vmatmul.mubr.f32.gmra.mrb[0].mxu0 %v3916
    %v4055 = vpop.f32.mrb[0].mxu0
    %v4056 = vadd.f32 0.0, %v4055
    %v4057 = vpop.f32.mrb[0].mxu0
    %4058 = vmatprep.mubr.f32.mxu0 0.0
    %4059 = vmatmul.mubr.f32.gmra.mrb[0].mxu0 %v3919
    %v4060 = vpop.f32.mrb[0].mxu0
    %v4061 = vadd.f32 0.0, %v4060
    %v4062 = vpop.f32.mrb[0].mxu0
    %4063 = vmatprep.mubr.f32.mxu0 0.0
    %4064 = vmatmul.mubr.f32.gmra.mrb[0].mxu0 %v3922
    %v4065 = vpop.f32.mrb[0].mxu0
    %v4066 = vadd.f32 0.0, %v4065
    %v4067 = vpop.f32.mrb[0].mxu0
    %4068 = vdwg.mxu0
    %v4069 = vadd.f32 %v3777, %v3991
    %v4070 = vadd.f32 %v3782, %v3996
    %v4071 = vadd.f32 %v3787, %v4001
    %v4072 = vadd.f32 %v3792, %v4006
    %v4073 = vadd.f32 %v3797, %v4011
    %v4074 = vadd.f32 %v3802, %v4016
    %v4075 = vadd.f32 %v3807, %v4021
    %v4076 = vadd.f32 %v3812, %v4026
    %v4077 = vadd.f32 %v3817, %v4031
    %v4078 = vadd.f32 %v3822, %v4036
    %v4079 = vadd.f32 %v3827, %v4041
    %v4080 = vadd.f32 %v3832, %v4046
    %v4081 = vadd.f32 %v3837, %v4051
    %v4082 = vadd.f32 %v3842, %v4056
    %v4083 = vadd.f32 %v3847, %v4061
    %v4084 = vadd.f32 %v3852, %v4066
    %v4085 = vld [vmem:[%s12] sm:$0x1]
    %v4087 = vlaneseq
    %v4088 = vshrl.u32 %v4087, 7
    %v4089 = vsub.s32 0, %v4088
    %v4090 = vrot.slane %v4085, %v4089
    %v4092 = vadd.f32 %v4069, %v4090
    %v4093 = vadd.f32 %v4070, %v4090
    %v4094 = vadd.f32 %v4071, %v4090
    %v4095 = vadd.f32 %v4072, %v4090
    %v4096 = vadd.f32 %v4073, %v4090
    %v4097 = vadd.f32 %v4074, %v4090
    %v4098 = vadd.f32 %v4075, %v4090
    %v4099 = vadd.f32 %v4076, %v4090
    %v4100 = vadd.f32 %v4077, %v4090
    %v4101 = vadd.f32 %v4078, %v4090
    %v4102 = vadd.f32 %v4079, %v4090
    %v4103 = vadd.f32 %v4080, %v4090
    %v4104 = vadd.f32 %v4081, %v4090
    %v4105 = vadd.f32 %v4082, %v4090
    %v4106 = vadd.f32 %v4083, %v4090
    %v4107 = vadd.f32 %v4084, %v4090
    %v4108 = vmul.f32 %v4092, %v3456
    %v4109 = vmul.f32 %v4093, %v3457
    %v4110 = vmul.f32 %v4094, %v3458
    %v4111 = vmul.f32 %v4095, %v3459
    %v4112 = vmul.f32 %v4096, %v3460
    %v4113 = vmul.f32 %v4097, %v3461
    %v4114 = vmul.f32 %v4098, %v3462
    %v4115 = vmul.f32 %v4099, %v3463
    %v4116 = vmul.f32 %v4100, %v3464
    %v4117 = vmul.f32 %v4101, %v3465
    %v4118 = vmul.f32 %v4102, %v3466
    %v4119 = vmul.f32 %v4103, %v3467
    %v4120 = vmul.f32 %v4104, %v3468
    %v4121 = vmul.f32 %v4105, %v3469
    %v4122 = vmul.f32 %v4106, %v3470
    %v4123 = vmul.f32 %v4107, %v3471
    %v4124 = vadd.f32 %v4108, %v3472
    %v4125 = vadd.f32 %v4109, %v3473
    %v4126 = vadd.f32 %v4110, %v3474
    %v4127 = vadd.f32 %v4111, %v3475
    %v4128 = vadd.f32 %v4112, %v3476
    %v4129 = vadd.f32 %v4113, %v3477
    %v4130 = vadd.f32 %v4114, %v3478
    %v4131 = vadd.f32 %v4115, %v3479
    %v4132 = vadd.f32 %v4116, %v3480
    %v4133 = vadd.f32 %v4117, %v3481
    %v4134 = vadd.f32 %v4118, %v3482
    %v4135 = vadd.f32 %v4119, %v3483
    %v4136 = vadd.f32 %v4120, %v3484
    %v4137 = vadd.f32 %v4121, %v3485
    %v4138 = vadd.f32 %v4122, %v3486
    %v4139 = vadd.f32 %v4123, %v3487
    %v4140 = vmax.f32 %v4124, 0.0
    %v4141 = vmax.f32 %v4125, 0.0
    %v4142 = vmax.f32 %v4126, 0.0
    %v4143 = vmax.f32 %v4127, 0.0
    %v4144 = vmax.f32 %v4128, 0.0
    %v4145 = vmax.f32 %v4129, 0.0
    %v4146 = vmax.f32 %v4130, 0.0
    %v4147 = vmax.f32 %v4131, 0.0
    %v4148 = vmax.f32 %v4132, 0.0
    %v4149 = vmax.f32 %v4133, 0.0
    %v4150 = vmax.f32 %v4134, 0.0
    %v4151 = vmax.f32 %v4135, 0.0
    %v4152 = vmax.f32 %v4136, 0.0
    %v4153 = vmax.f32 %v4137, 0.0
    %v4154 = vmax.f32 %v4138, 0.0
    %v4155 = vmax.f32 %v4139, 0.0
    %v4156 = vld [vmem:[%s17] sm:$0xff]
    %v4157 = vld [vmem:[%s17 + $0x8] sm:$0xff]
    %v4158 = vld [vmem:[%s17 + $0x10] sm:$0xff]
    %v4159 = vld [vmem:[%s17 + $0x18] sm:$0xff]
    %v4161 = vsel %vm73, %v4140, 0
    %v4164 = vsel %vm73, %v4141, 0
    %v4167 = vsel %vm73, %v4142, 0
    %v4170 = vsel %vm73, %v4143, 0
    %v4173 = vsel %vm73, %v4144, 0
    %v4176 = vsel %vm73, %v4145, 0
    %v4179 = vsel %vm73, %v4146, 0
    %v4182 = vsel %vm73, %v4147, 0
    %v4185 = vsel %vm73, %v4148, 0
    %v4188 = vsel %vm73, %v4149, 0
    %v4191 = vsel %vm73, %v4150, 0
    %v4194 = vsel %vm73, %v4151, 0
    %v4197 = vsel %vm73, %v4152, 0
    %v4200 = vsel %vm73, %v4153, 0
    %v4203 = vsel %vm73, %v4154, 0
    %v4206 = vsel %vm73, %v4155, 0
    %4208 = vmatprep.subr.mxu0 0.0
    %4209 = vmatpush1.msra.mxu0 %v4156
    %4210 = vmatprep.subr.mxu0 0.0
    %4211 = vmatpush1.msra.mxu0 %v4157
    %4212 = vmatprep.subr.mxu0 0.0
    %4213 = vmatpush1.msra.mxu0 %v4158
    %4214 = vmatprep.subr.mxu0 0.0
    %4215 = vmatpush1.msra.mxu0 %v4159
    %4216 = vmatprep.subr.mxu0 0.0
    %4217 = vmatpush1.msra.mxu0 0.0
    %4218 = vmatprep.subr.mxu0 0.0
    %4219 = vmatpush1.msra.mxu0 0.0
    %4220 = vmatprep.subr.mxu0 0.0
    %4221 = vmatpush1.msra.mxu0 0.0
    %4222 = vmatprep.subr.mxu0 0.0
    %4223 = vmatpush1.msra.mxu0 0.0
    %4224 = vmatprep.subr.mxu0 0.0
    %4225 = vmatpush1.msra.mxu0 0.0
    %4226 = vmatprep.subr.mxu0 0.0
    %4227 = vmatpush1.msra.mxu0 0.0
    %4228 = vmatprep.subr.mxu0 0.0
    %4229 = vmatpush1.msra.mxu0 0.0
    %4230 = vmatprep.subr.mxu0 0.0
    %4231 = vmatpush1.msra.mxu0 0.0
    %4232 = vmatprep.subr.mxu0 0.0
    %4233 = vmatpush1.msra.mxu0 0.0
    %4234 = vmatprep.subr.mxu0 0.0
    %4235 = vmatpush1.msra.mxu0 0.0
    %4236 = vmatprep.subr.mxu0 0.0
    %4237 = vmatpush1.msra.mxu0 0.0
    %4238 = vmatprep.subr.mxu0 0.0
    %4239 = vmatpush1.msra.mxu0 0.0
    %4240 = vmatprep.subr.mxu0 0.0
    %4241 = vmatpush1.msra.mxu0 0.0
    %4242 = vmatprep.subr.mxu0 0.0
    %4243 = vmatpush1.msra.mxu0 0.0
    %4244 = vmatprep.subr.mxu0 0.0
    %4245 = vmatpush1.msra.mxu0 0.0
    %4246 = vmatprep.subr.mxu0 0.0
    %4247 = vmatpush1.msra.mxu0 0.0
    %4248 = vmatprep.subr.mxu0 0.0
    %4249 = vmatpush1.msra.mxu0 0.0
    %4250 = vmatprep.subr.mxu0 0.0
    %4251 = vmatpush1.msra.mxu0 0.0
    %4252 = vmatprep.subr.mxu0 0.0
    %4253 = vmatpush1.msra.mxu0 0.0
    %4254 = vmatprep.subr.mxu0 0.0
    %4255 = vmatpush1.msra.mxu0 0.0
    %4256 = vmatprep.subr.mxu0 0.0
    %4257 = vmatpush1.msra.mxu0 0.0
    %4258 = vmatprep.subr.mxu0 0.0
    %4259 = vmatpush1.msra.mxu0 0.0
    %4260 = vmatprep.subr.mxu0 0.0
    %4261 = vmatpush1.msra.mxu0 0.0
    %4262 = vmatprep.subr.mxu0 0.0
    %4263 = vmatpush1.msra.mxu0 0.0
    %4264 = vmatprep.subr.mxu0 0.0
    %4265 = vmatpush1.msra.mxu0 0.0
    %4266 = vmatprep.subr.mxu0 0.0
    %4267 = vmatpush1.msra.mxu0 0.0
    %4268 = vmatprep.subr.mxu0 0.0
    %4269 = vmatpush1.msra.mxu0 0.0
    %4270 = vmatprep.subr.mxu0 0.0
    %4271 = vmatpush1.msra.mxu0 0.0
    %4272 = vmatprep.mubr.f32.mxu0 0.0
    %4273 = vmatmul.mubr.f32.gmra.mrb[0].mxu0 %v4161
    %v4274 = vpop.f32.mrb[0].mxu0
    %v4275 = vadd.f32 0.0, %v4274
    %v4276 = vpop.f32.mrb[0].mxu0
    %4277 = vmatprep.mubr.f32.mxu0 0.0
    %4278 = vmatmul.mubr.f32.gmra.mrb[0].mxu0 %v4164
    %v4279 = vpop.f32.mrb[0].mxu0
    %v4280 = vadd.f32 0.0, %v4279
    %v4281 = vpop.f32.mrb[0].mxu0
    %4282 = vmatprep.mubr.f32.mxu0 0.0
    %4283 = vmatmul.mubr.f32.gmra.mrb[0].mxu0 %v4167
    %v4284 = vpop.f32.mrb[0].mxu0
    %v4285 = vadd.f32 0.0, %v4284
    %v4286 = vpop.f32.mrb[0].mxu0
    %4287 = vmatprep.mubr.f32.mxu0 0.0
    %4288 = vmatmul.mubr.f32.gmra.mrb[0].mxu0 %v4170
    %v4289 = vpop.f32.mrb[0].mxu0
    %v4290 = vadd.f32 0.0, %v4289
    %v4291 = vpop.f32.mrb[0].mxu0
    %4292 = vmatprep.mubr.f32.mxu0 0.0
    %4293 = vmatmul.mubr.f32.gmra.mrb[0].mxu0 %v4173
    %v4294 = vpop.f32.mrb[0].mxu0
    %v4295 = vadd.f32 0.0, %v4294
    %v4296 = vpop.f32.mrb[0].mxu0
    %4297 = vmatprep.mubr.f32.mxu0 0.0
    %4298 = vmatmul.mubr.f32.gmra.mrb[0].mxu0 %v4176
    %v4299 = vpop.f32.mrb[0].mxu0
    %v4300 = vadd.f32 0.0, %v4299
    %v4301 = vpop.f32.mrb[0].mxu0
    %4302 = vmatprep.mubr.f32.mxu0 0.0
    %4303 = vmatmul.mubr.f32.gmra.mrb[0].mxu0 %v4179
    %v4304 = vpop.f32.mrb[0].mxu0
    %v4305 = vadd.f32 0.0, %v4304
    %v4306 = vpop.f32.mrb[0].mxu0
    %4307 = vmatprep.mubr.f32.mxu0 0.0
    %4308 = vmatmul.mubr.f32.gmra.mrb[0].mxu0 %v4182
    %v4309 = vpop.f32.mrb[0].mxu0
    %v4310 = vadd.f32 0.0, %v4309
    %v4311 = vpop.f32.mrb[0].mxu0
    %4312 = vmatprep.mubr.f32.mxu0 0.0
    %4313 = vmatmul.mubr.f32.gmra.mrb[0].mxu0 %v4185
    %v4314 = vpop.f32.mrb[0].mxu0
    %v4315 = vadd.f32 0.0, %v4314
    %v4316 = vpop.f32.mrb[0].mxu0
    %4317 = vmatprep.mubr.f32.mxu0 0.0
    %4318 = vmatmul.mubr.f32.gmra.mrb[0].mxu0 %v4188
    %v4319 = vpop.f32.mrb[0].mxu0
    %v4320 = vadd.f32 0.0, %v4319
    %v4321 = vpop.f32.mrb[0].mxu0
    %4322 = vmatprep.mubr.f32.mxu0 0.0
    %4323 = vmatmul.mubr.f32.gmra.mrb[0].mxu0 %v4191
    %v4324 = vpop.f32.mrb[0].mxu0
    %v4325 = vadd.f32 0.0, %v4324
    %v4326 = vpop.f32.mrb[0].mxu0
    %4327 = vmatprep.mubr.f32.mxu0 0.0
    %4328 = vmatmul.mubr.f32.gmra.mrb[0].mxu0 %v4194
    %v4329 = vpop.f32.mrb[0].mxu0
    %v4330 = vadd.f32 0.0, %v4329
    %v4331 = vpop.f32.mrb[0].mxu0
    %4332 = vmatprep.mubr.f32.mxu0 0.0
    %4333 = vmatmul.mubr.f32.gmra.mrb[0].mxu0 %v4197
    %v4334 = vpop.f32.mrb[0].mxu0
    %v4335 = vadd.f32 0.0, %v4334
    %v4336 = vpop.f32.mrb[0].mxu0
    %4337 = vmatprep.mubr.f32.mxu0 0.0
    %4338 = vmatmul.mubr.f32.gmra.mrb[0].mxu0 %v4200
    %v4339 = vpop.f32.mrb[0].mxu0
    %v4340 = vadd.f32 0.0, %v4339
    %v4341 = vpop.f32.mrb[0].mxu0
    %4342 = vmatprep.mubr.f32.mxu0 0.0
    %4343 = vmatmul.mubr.f32.gmra.mrb[0].mxu0 %v4203
    %v4344 = vpop.f32.mrb[0].mxu0
    %v4345 = vadd.f32 0.0, %v4344
    %v4346 = vpop.f32.mrb[0].mxu0
    %4347 = vmatprep.mubr.f32.mxu0 0.0
    %4348 = vmatmul.mubr.f32.gmra.mrb[0].mxu0 %v4206
    %v4349 = vpop.f32.mrb[0].mxu0
    %v4350 = vadd.f32 0.0, %v4349
    %v4351 = vpop.f32.mrb[0].mxu0
    %4352 = vdwg.mxu0
    %v4353 = vmax.f32 %v4140, %v4275
    %v4354 = vmax.f32 %v4141, %v4280
    %v4355 = vmax.f32 %v4142, %v4285
    %v4356 = vmax.f32 %v4143, %v4290
    %v4357 = vmax.f32 %v4144, %v4295
    %v4358 = vmax.f32 %v4145, %v4300
    %v4359 = vmax.f32 %v4146, %v4305
    %v4360 = vmax.f32 %v4147, %v4310
    %v4361 = vmax.f32 %v4148, %v4315
    %v4362 = vmax.f32 %v4149, %v4320
    %v4363 = vmax.f32 %v4150, %v4325
    %v4364 = vmax.f32 %v4151, %v4330
    %v4365 = vmax.f32 %v4152, %v4335
    %v4366 = vmax.f32 %v4153, %v4340
    %v4367 = vmax.f32 %v4154, %v4345
    %v4368 = vmax.f32 %v4155, %v4350
    %4369 = vst.msk [vmem:[#allocation5 + $0x8] sm:$0xff] %vm73, %v4353
    %4370 = vst.msk [vmem:[#allocation5 + $0x10] sm:$0xff] %vm73, %v4354
    %4371 = vst.msk [vmem:[#allocation5 + $0x18] sm:$0xff] %vm73, %v4355
    %4372 = vst.msk [vmem:[#allocation5 + $0x20] sm:$0xff] %vm73, %v4356
    %4373 = vst.msk [vmem:[#allocation5 + $0x28] sm:$0xff] %vm73, %v4357
    %4374 = vst.msk [vmem:[#allocation5 + $0x30] sm:$0xff] %vm73, %v4358
    %4375 = vst.msk [vmem:[#allocation5 + $0x38] sm:$0xff] %vm73, %v4359
    %4376 = vst.msk [vmem:[#allocation5 + $0x40] sm:$0xff] %vm73, %v4360
    %4377 = vst.msk [vmem:[#allocation5 + $0x48] sm:$0xff] %vm73, %v4361
    %4378 = vst.msk [vmem:[#allocation5 + $0x50] sm:$0xff] %vm73, %v4362
    %4379 = vst.msk [vmem:[#allocation5 + $0x58] sm:$0xff] %vm73, %v4363
    %4380 = vst.msk [vmem:[#allocation5 + $0x60] sm:$0xff] %vm73, %v4364
    %4381 = vst.msk [vmem:[#allocation5 + $0x68] sm:$0xff] %vm73, %v4365
    %4382 = vst.msk [vmem:[#allocation5 + $0x70] sm:$0xff] %vm73, %v4366
    %4383 = vst.msk [vmem:[#allocation5 + $0x78] sm:$0xff] %vm73, %v4367
    %4384 = vst.msk [vmem:[#allocation5 + $0x80] sm:$0xff] %vm73, %v4368
    %v4385 = vld [vmem:[#allocation5] sm:$0xff]
    %v4386 = vld [vmem:[#allocation5 + $0x8] sm:$0xff]
    %v4387 = vld [vmem:[#allocation5 + $0x10] sm:$0xff]
    %v4388 = vld [vmem:[#allocation5 + $0x18] sm:$0xff]
    %v4389 = vld [vmem:[#allocation5 + $0x20] sm:$0xff]
    %v4390 = vld [vmem:[#allocation5 + $0x28] sm:$0xff]
    %v4391 = vld [vmem:[#allocation5 + $0x30] sm:$0xff]
    %v4392 = vld [vmem:[#allocation5 + $0x38] sm:$0xff]
    %v4393 = vld [vmem:[#allocation5 + $0x40] sm:$0xff]
    %v4394 = vld [vmem:[#allocation5 + $0x48] sm:$0xff]
    %v4395 = vld [vmem:[#allocation5 + $0x50] sm:$0xff]
    %v4396 = vld [vmem:[#allocation5 + $0x58] sm:$0xff]
    %v4397 = vld [vmem:[#allocation5 + $0x60] sm:$0xff]
    %v4398 = vld [vmem:[#allocation5 + $0x68] sm:$0xff]
    %v4399 = vld [vmem:[#allocation5 + $0x70] sm:$0xff]
    %v4400 = vld [vmem:[#allocation5 + $0x78] sm:$0xff]
    %v4401 = vld [vmem:[%s13] sm:$0xff]
    %v4402 = vld [vmem:[%s13 + $0x8] sm:$0xff]
    %v4403 = vld [vmem:[%s13 + $0x10] sm:$0xff]
    %v4404 = vld [vmem:[%s13 + $0x18] sm:$0xff]
    %v4405 = vld [vmem:[#allocation5 + $0x80] sm:$0xff]
    %s4406 = scalar_lea.vmem %s13, 32
    %v4407 = vld [vmem:[%s4406] sm:$0xff]
    %v4408 = vld [vmem:[%s4406 + $0x8] sm:$0xff]
    %v4409 = vld [vmem:[%s4406 + $0x10] sm:$0xff]
    %v4410 = vld [vmem:[%s4406 + $0x18] sm:$0xff]
    %v4412 = vsel %vm73, %v4386, 0
    %v4415 = vsel %vm73, %v4387, 0
    %v4418 = vsel %vm73, %v4388, 0
    %v4421 = vsel %vm73, %v4389, 0
    %v4424 = vsel %vm73, %v4390, 0
    %v4427 = vsel %vm73, %v4391, 0
    %v4430 = vsel %vm73, %v4392, 0
    %v4433 = vsel %vm73, %v4393, 0
    %v4436 = vsel %vm73, %v4394, 0
    %v4439 = vsel %vm73, %v4395, 0
    %v4442 = vsel %vm73, %v4396, 0
    %v4445 = vsel %vm73, %v4397, 0
    %v4448 = vsel %vm73, %v4398, 0
    %v4451 = vsel %vm73, %v4399, 0
    %v4454 = vsel %vm73, %v4400, 0
    %v4457 = vsel %vm73, %v4405, 0
    %4459 = vmatprep.subr.mxu0 0.0
    %4460 = vmatpush1.msra.mxu0 %v4407
    %4461 = vmatprep.subr.mxu0 0.0
    %4462 = vmatpush1.msra.mxu0 %v4408
    %4463 = vmatprep.subr.mxu0 0.0
    %4464 = vmatpush1.msra.mxu0 %v4409
    %4465 = vmatprep.subr.mxu0 0.0
    %4466 = vmatpush1.msra.mxu0 %v4410
    %4467 = vmatprep.subr.mxu0 0.0
    %4468 = vmatpush1.msra.mxu0 0.0
    %4469 = vmatprep.subr.mxu0 0.0
    %4470 = vmatpush1.msra.mxu0 0.0
    %4471 = vmatprep.subr.mxu0 0.0
    %4472 = vmatpush1.msra.mxu0 0.0
    %4473 = vmatprep.subr.mxu0 0.0
    %4474 = vmatpush1.msra.mxu0 0.0
    %4475 = vmatprep.subr.mxu0 0.0
    %4476 = vmatpush1.msra.mxu0 0.0
    %4477 = vmatprep.subr.mxu0 0.0
    %4478 = vmatpush1.msra.mxu0 0.0
    %4479 = vmatprep.subr.mxu0 0.0
    %4480 = vmatpush1.msra.mxu0 0.0
    %4481 = vmatprep.subr.mxu0 0.0
    %4482 = vmatpush1.msra.mxu0 0.0
    %4483 = vmatprep.subr.mxu0 0.0
    %4484 = vmatpush1.msra.mxu0 0.0
    %4485 = vmatprep.subr.mxu0 0.0
    %4486 = vmatpush1.msra.mxu0 0.0
    %4487 = vmatprep.subr.mxu0 0.0
    %4488 = vmatpush1.msra.mxu0 0.0
    %4489 = vmatprep.subr.mxu0 0.0
    %4490 = vmatpush1.msra.mxu0 0.0
    %4491 = vmatprep.subr.mxu0 0.0
    %4492 = vmatpush1.msra.mxu0 0.0
    %4493 = vmatprep.subr.mxu0 0.0
    %4494 = vmatpush1.msra.mxu0 0.0
    %4495 = vmatprep.subr.mxu0 0.0
    %4496 = vmatpush1.msra.mxu0 0.0
    %4497 = vmatprep.subr.mxu0 0.0
    %4498 = vmatpush1.msra.mxu0 0.0
    %4499 = vmatprep.subr.mxu0 0.0
    %4500 = vmatpush1.msra.mxu0 0.0
    %4501 = vmatprep.subr.mxu0 0.0
    %4502 = vmatpush1.msra.mxu0 0.0
    %4503 = vmatprep.subr.mxu0 0.0
    %4504 = vmatpush1.msra.mxu0 0.0
    %4505 = vmatprep.subr.mxu0 0.0
    %4506 = vmatpush1.msra.mxu0 0.0
    %4507 = vmatprep.subr.mxu0 0.0
    %4508 = vmatpush1.msra.mxu0 0.0
    %4509 = vmatprep.subr.mxu0 0.0
    %4510 = vmatpush1.msra.mxu0 0.0
    %4511 = vmatprep.subr.mxu0 0.0
    %4512 = vmatpush1.msra.mxu0 0.0
    %4513 = vmatprep.subr.mxu0 0.0
    %4514 = vmatpush1.msra.mxu0 0.0
    %4515 = vmatprep.subr.mxu0 0.0
    %4516 = vmatpush1.msra.mxu0 0.0
    %4517 = vmatprep.subr.mxu0 0.0
    %4518 = vmatpush1.msra.mxu0 0.0
    %4519 = vmatprep.subr.mxu0 0.0
    %4520 = vmatpush1.msra.mxu0 0.0
    %4521 = vmatprep.subr.mxu0 0.0
    %4522 = vmatpush1.msra.mxu0 0.0
    %4523 = vmatprep.mubr.f32.mxu0 0.0
    %4524 = vmatmul.mubr.f32.gmra.mrb[0].mxu0 %v4412
    %v4525 = vpop.f32.mrb[0].mxu0
    %v4526 = vadd.f32 0.0, %v4525
    %v4527 = vpop.f32.mrb[0].mxu0
    %4528 = vmatprep.mubr.f32.mxu0 0.0
    %4529 = vmatmul.mubr.f32.gmra.mrb[0].mxu0 %v4415
    %v4530 = vpop.f32.mrb[0].mxu0
    %v4531 = vadd.f32 0.0, %v4530
    %v4532 = vpop.f32.mrb[0].mxu0
    %4533 = vmatprep.mubr.f32.mxu0 0.0
    %4534 = vmatmul.mubr.f32.gmra.mrb[0].mxu0 %v4418
    %v4535 = vpop.f32.mrb[0].mxu0
    %v4536 = vadd.f32 0.0, %v4535
    %v4537 = vpop.f32.mrb[0].mxu0
    %4538 = vmatprep.mubr.f32.mxu0 0.0
    %4539 = vmatmul.mubr.f32.gmra.mrb[0].mxu0 %v4421
    %v4540 = vpop.f32.mrb[0].mxu0
    %v4541 = vadd.f32 0.0, %v4540
    %v4542 = vpop.f32.mrb[0].mxu0
    %4543 = vmatprep.mubr.f32.mxu0 0.0
    %4544 = vmatmul.mubr.f32.gmra.mrb[0].mxu0 %v4424
    %v4545 = vpop.f32.mrb[0].mxu0
    %v4546 = vadd.f32 0.0, %v4545
    %v4547 = vpop.f32.mrb[0].mxu0
    %4548 = vmatprep.mubr.f32.mxu0 0.0
    %4549 = vmatmul.mubr.f32.gmra.mrb[0].mxu0 %v4427
    %v4550 = vpop.f32.mrb[0].mxu0
    %v4551 = vadd.f32 0.0, %v4550
    %v4552 = vpop.f32.mrb[0].mxu0
    %4553 = vmatprep.mubr.f32.mxu0 0.0
    %4554 = vmatmul.mubr.f32.gmra.mrb[0].mxu0 %v4430
    %v4555 = vpop.f32.mrb[0].mxu0
    %v4556 = vadd.f32 0.0, %v4555
    %v4557 = vpop.f32.mrb[0].mxu0
    %4558 = vmatprep.mubr.f32.mxu0 0.0
    %4559 = vmatmul.mubr.f32.gmra.mrb[0].mxu0 %v4433
    %v4560 = vpop.f32.mrb[0].mxu0
    %v4561 = vadd.f32 0.0, %v4560
    %v4562 = vpop.f32.mrb[0].mxu0
    %4563 = vmatprep.mubr.f32.mxu0 0.0
    %4564 = vmatmul.mubr.f32.gmra.mrb[0].mxu0 %v4436
    %v4565 = vpop.f32.mrb[0].mxu0
    %v4566 = vadd.f32 0.0, %v4565
    %v4567 = vpop.f32.mrb[0].mxu0
    %4568 = vmatprep.mubr.f32.mxu0 0.0
    %4569 = vmatmul.mubr.f32.gmra.mrb[0].mxu0 %v4439
    %v4570 = vpop.f32.mrb[0].mxu0
    %v4571 = vadd.f32 0.0, %v4570
    %v4572 = vpop.f32.mrb[0].mxu0
    %4573 = vmatprep.mubr.f32.mxu0 0.0
    %4574 = vmatmul.mubr.f32.gmra.mrb[0].mxu0 %v4442
    %v4575 = vpop.f32.mrb[0].mxu0
    %v4576 = vadd.f32 0.0, %v4575
    %v4577 = vpop.f32.mrb[0].mxu0
    %4578 = vmatprep.mubr.f32.mxu0 0.0
    %4579 = vmatmul.mubr.f32.gmra.mrb[0].mxu0 %v4445
    %v4580 = vpop.f32.mrb[0].mxu0
    %v4581 = vadd.f32 0.0, %v4580
    %v4582 = vpop.f32.mrb[0].mxu0
    %4583 = vmatprep.mubr.f32.mxu0 0.0
    %4584 = vmatmul.mubr.f32.gmra.mrb[0].mxu0 %v4448
    %v4585 = vpop.f32.mrb[0].mxu0
    %v4586 = vadd.f32 0.0, %v4585
    %v4587 = vpop.f32.mrb[0].mxu0
    %4588 = vmatprep.mubr.f32.mxu0 0.0
    %4589 = vmatmul.mubr.f32.gmra.mrb[0].mxu0 %v4451
    %v4590 = vpop.f32.mrb[0].mxu0
    %v4591 = vadd.f32 0.0, %v4590
    %v4592 = vpop.f32.mrb[0].mxu0
    %4593 = vmatprep.mubr.f32.mxu0 0.0
    %4594 = vmatmul.mubr.f32.gmra.mrb[0].mxu0 %v4454
    %v4595 = vpop.f32.mrb[0].mxu0
    %v4596 = vadd.f32 0.0, %v4595
    %v4597 = vpop.f32.mrb[0].mxu0
    %4598 = vmatprep.mubr.f32.mxu0 0.0
    %4599 = vmatmul.mubr.f32.gmra.mrb[0].mxu0 %v4457
    %v4600 = vpop.f32.mrb[0].mxu0
    %v4601 = vadd.f32 0.0, %v4600
    %v4602 = vpop.f32.mrb[0].mxu0
    %4603 = vdwg.mxu0
    %v4605 = vsel %vm73, %v4385, 0
    %4607 = vmatprep.subr.mxu0 0.0
    %4608 = vmatpush1.msra.mxu0 %v4401
    %4609 = vmatprep.subr.mxu0 0.0
    %4610 = vmatpush1.msra.mxu0 %v4402
    %4611 = vmatprep.subr.mxu0 0.0
    %4612 = vmatpush1.msra.mxu0 %v4403
    %4613 = vmatprep.subr.mxu0 0.0
    %4614 = vmatpush1.msra.mxu0 %v4404
    %4615 = vmatprep.subr.mxu0 0.0
    %4616 = vmatpush1.msra.mxu0 0.0
    %4617 = vmatprep.subr.mxu0 0.0
    %4618 = vmatpush1.msra.mxu0 0.0
    %4619 = vmatprep.subr.mxu0 0.0
    %4620 = vmatpush1.msra.mxu0 0.0
    %4621 = vmatprep.subr.mxu0 0.0
    %4622 = vmatpush1.msra.mxu0 0.0
    %4623 = vmatprep.subr.mxu0 0.0
    %4624 = vmatpush1.msra.mxu0 0.0
    %4625 = vmatprep.subr.mxu0 0.0
    %4626 = vmatpush1.msra.mxu0 0.0
    %4627 = vmatprep.subr.mxu0 0.0
    %4628 = vmatpush1.msra.mxu0 0.0
    %4629 = vmatprep.subr.mxu0 0.0
    %4630 = vmatpush1.msra.mxu0 0.0
    %4631 = vmatprep.subr.mxu0 0.0
    %4632 = vmatpush1.msra.mxu0 0.0
    %4633 = vmatprep.subr.mxu0 0.0
    %4634 = vmatpush1.msra.mxu0 0.0
    %4635 = vmatprep.subr.mxu0 0.0
    %4636 = vmatpush1.msra.mxu0 0.0
    %4637 = vmatprep.subr.mxu0 0.0
    %4638 = vmatpush1.msra.mxu0 0.0
    %4639 = vmatprep.subr.mxu0 0.0
    %4640 = vmatpush1.msra.mxu0 0.0
    %4641 = vmatprep.subr.mxu0 0.0
    %4642 = vmatpush1.msra.mxu0 0.0
    %4643 = vmatprep.subr.mxu0 0.0
    %4644 = vmatpush1.msra.mxu0 0.0
    %4645 = vmatprep.subr.mxu0 0.0
    %4646 = vmatpush1.msra.mxu0 0.0
    %4647 = vmatprep.subr.mxu0 0.0
    %4648 = vmatpush1.msra.mxu0 0.0
    %4649 = vmatprep.subr.mxu0 0.0
    %4650 = vmatpush1.msra.mxu0 0.0
    %4651 = vmatprep.subr.mxu0 0.0
    %4652 = vmatpush1.msra.mxu0 0.0
    %4653 = vmatprep.subr.mxu0 0.0
    %4654 = vmatpush1.msra.mxu0 0.0
    %4655 = vmatprep.subr.mxu0 0.0
    %4656 = vmatpush1.msra.mxu0 0.0
    %4657 = vmatprep.subr.mxu0 0.0
    %4658 = vmatpush1.msra.mxu0 0.0
    %4659 = vmatprep.subr.mxu0 0.0
    %4660 = vmatpush1.msra.mxu0 0.0
    %4661 = vmatprep.subr.mxu0 0.0
    %4662 = vmatpush1.msra.mxu0 0.0
    %4663 = vmatprep.subr.mxu0 0.0
    %4664 = vmatpush1.msra.mxu0 0.0
    %4665 = vmatprep.subr.mxu0 0.0
    %4666 = vmatpush1.msra.mxu0 0.0
    %4667 = vmatprep.subr.mxu0 0.0
    %4668 = vmatpush1.msra.mxu0 0.0
    %4669 = vmatprep.subr.mxu0 0.0
    %4670 = vmatpush1.msra.mxu0 0.0
    %4671 = vmatprep.mubr.f32.mxu0 0.0
    %4672 = vmatmul.mubr.f32.gmra.mrb[0].mxu0 %v4605
    %v4673 = vpop.f32.mrb[0].mxu0
    %v4674 = vadd.f32 %v4526, %v4673
    %v4675 = vpop.f32.mrb[0].mxu0
    %4676 = vmatprep.mubr.f32.mxu0 0.0
    %4677 = vmatmul.mubr.f32.gmra.mrb[0].mxu0 %v4412
    %v4678 = vpop.f32.mrb[0].mxu0
    %v4679 = vadd.f32 %v4531, %v4678
    %v4680 = vpop.f32.mrb[0].mxu0
    %4681 = vmatprep.mubr.f32.mxu0 0.0
    %4682 = vmatmul.mubr.f32.gmra.mrb[0].mxu0 %v4415
    %v4683 = vpop.f32.mrb[0].mxu0
    %v4684 = vadd.f32 %v4536, %v4683
    %v4685 = vpop.f32.mrb[0].mxu0
    %4686 = vmatprep.mubr.f32.mxu0 0.0
    %4687 = vmatmul.mubr.f32.gmra.mrb[0].mxu0 %v4418
    %v4688 = vpop.f32.mrb[0].mxu0
    %v4689 = vadd.f32 %v4541, %v4688
    %v4690 = vpop.f32.mrb[0].mxu0
    %4691 = vmatprep.mubr.f32.mxu0 0.0
    %4692 = vmatmul.mubr.f32.gmra.mrb[0].mxu0 %v4421
    %v4693 = vpop.f32.mrb[0].mxu0
    %v4694 = vadd.f32 %v4546, %v4693
    %v4695 = vpop.f32.mrb[0].mxu0
    %4696 = vmatprep.mubr.f32.mxu0 0.0
    %4697 = vmatmul.mubr.f32.gmra.mrb[0].mxu0 %v4424
    %v4698 = vpop.f32.mrb[0].mxu0
    %v4699 = vadd.f32 %v4551, %v4698
    %v4700 = vpop.f32.mrb[0].mxu0
    %4701 = vmatprep.mubr.f32.mxu0 0.0
    %4702 = vmatmul.mubr.f32.gmra.mrb[0].mxu0 %v4427
    %v4703 = vpop.f32.mrb[0].mxu0
    %v4704 = vadd.f32 %v4556, %v4703
    %v4705 = vpop.f32.mrb[0].mxu0
    %4706 = vmatprep.mubr.f32.mxu0 0.0
    %4707 = vmatmul.mubr.f32.gmra.mrb[0].mxu0 %v4430
    %v4708 = vpop.f32.mrb[0].mxu0
    %v4709 = vadd.f32 %v4561, %v4708
    %v4710 = vpop.f32.mrb[0].mxu0
    %4711 = vmatprep.mubr.f32.mxu0 0.0
    %4712 = vmatmul.mubr.f32.gmra.mrb[0].mxu0 %v4433
    %v4713 = vpop.f32.mrb[0].mxu0
    %v4714 = vadd.f32 %v4566, %v4713
    %v4715 = vpop.f32.mrb[0].mxu0
    %4716 = vmatprep.mubr.f32.mxu0 0.0
    %4717 = vmatmul.mubr.f32.gmra.mrb[0].mxu0 %v4436
    %v4718 = vpop.f32.mrb[0].mxu0
    %v4719 = vadd.f32 %v4571, %v4718
    %v4720 = vpop.f32.mrb[0].mxu0
    %4721 = vmatprep.mubr.f32.mxu0 0.0
    %4722 = vmatmul.mubr.f32.gmra.mrb[0].mxu0 %v4439
    %v4723 = vpop.f32.mrb[0].mxu0
    %v4724 = vadd.f32 %v4576, %v4723
    %v4725 = vpop.f32.mrb[0].mxu0
    %4726 = vmatprep.mubr.f32.mxu0 0.0
    %4727 = vmatmul.mubr.f32.gmra.mrb[0].mxu0 %v4442
    %v4728 = vpop.f32.mrb[0].mxu0
    %v4729 = vadd.f32 %v4581, %v4728
    %v4730 = vpop.f32.mrb[0].mxu0
    %4731 = vmatprep.mubr.f32.mxu0 0.0
    %4732 = vmatmul.mubr.f32.gmra.mrb[0].mxu0 %v4445
    %v4733 = vpop.f32.mrb[0].mxu0
    %v4734 = vadd.f32 %v4586, %v4733
    %v4735 = vpop.f32.mrb[0].mxu0
    %4736 = vmatprep.mubr.f32.mxu0 0.0
    %4737 = vmatmul.mubr.f32.gmra.mrb[0].mxu0 %v4448
    %v4738 = vpop.f32.mrb[0].mxu0
    %v4739 = vadd.f32 %v4591, %v4738
    %v4740 = vpop.f32.mrb[0].mxu0
    %4741 = vmatprep.mubr.f32.mxu0 0.0
    %4742 = vmatmul.mubr.f32.gmra.mrb[0].mxu0 %v4451
    %v4743 = vpop.f32.mrb[0].mxu0
    %v4744 = vadd.f32 %v4596, %v4743
    %v4745 = vpop.f32.mrb[0].mxu0
    %4746 = vmatprep.mubr.f32.mxu0 0.0
    %4747 = vmatmul.mubr.f32.gmra.mrb[0].mxu0 %v4454
    %v4748 = vpop.f32.mrb[0].mxu0
    %v4749 = vadd.f32 %v4601, %v4748
    %v4750 = vpop.f32.mrb[0].mxu0
    %4751 = vdwg.mxu0
    %v4752 = vld [vmem:[#allocation5 + $0x10] sm:$0xff]
    %v4753 = vld [vmem:[#allocation5 + $0x18] sm:$0xff]
    %v4754 = vld [vmem:[#allocation5 + $0x20] sm:$0xff]
    %v4755 = vld [vmem:[#allocation5 + $0x28] sm:$0xff]
    %v4756 = vld [vmem:[#allocation5 + $0x30] sm:$0xff]
    %v4757 = vld [vmem:[#allocation5 + $0x38] sm:$0xff]
    %v4758 = vld [vmem:[#allocation5 + $0x40] sm:$0xff]
    %v4759 = vld [vmem:[#allocation5 + $0x48] sm:$0xff]
    %v4760 = vld [vmem:[#allocation5 + $0x50] sm:$0xff]
    %v4761 = vld [vmem:[#allocation5 + $0x58] sm:$0xff]
    %v4762 = vld [vmem:[#allocation5 + $0x60] sm:$0xff]
    %v4763 = vld [vmem:[#allocation5 + $0x68] sm:$0xff]
    %v4764 = vld [vmem:[#allocation5 + $0x70] sm:$0xff]
    %v4765 = vld [vmem:[#allocation5 + $0x78] sm:$0xff]
    %v4766 = vld [vmem:[#allocation5 + $0x80] sm:$0xff]
    %v4767 = vld [vmem:[#allocation5 + $0x88] sm:$0xff]
    %s4768 = scalar_lea.vmem %s13, 64
    %v4769 = vld [vmem:[%s4768] sm:$0xff]
    %v4770 = vld [vmem:[%s4768 + $0x8] sm:$0xff]
    %v4771 = vld [vmem:[%s4768 + $0x10] sm:$0xff]
    %v4772 = vld [vmem:[%s4768 + $0x18] sm:$0xff]
    %v4774 = vsel %vm73, %v4752, 0
    %v4777 = vsel %vm73, %v4753, 0
    %v4780 = vsel %vm73, %v4754, 0
    %v4783 = vsel %vm73, %v4755, 0
    %v4786 = vsel %vm73, %v4756, 0
    %v4789 = vsel %vm73, %v4757, 0
    %v4792 = vsel %vm73, %v4758, 0
    %v4795 = vsel %vm73, %v4759, 0
    %v4798 = vsel %vm73, %v4760, 0
    %v4801 = vsel %vm73, %v4761, 0
    %v4804 = vsel %vm73, %v4762, 0
    %v4807 = vsel %vm73, %v4763, 0
    %v4810 = vsel %vm73, %v4764, 0
    %v4813 = vsel %vm73, %v4765, 0
    %v4816 = vsel %vm73, %v4766, 0
    %v4819 = vsel %vm73, %v4767, 0
    %4821 = vmatprep.subr.mxu0 0.0
    %4822 = vmatpush1.msra.mxu0 %v4769
    %4823 = vmatprep.subr.mxu0 0.0
    %4824 = vmatpush1.msra.mxu0 %v4770
    %4825 = vmatprep.subr.mxu0 0.0
    %4826 = vmatpush1.msra.mxu0 %v4771
    %4827 = vmatprep.subr.mxu0 0.0
    %4828 = vmatpush1.msra.mxu0 %v4772
    %4829 = vmatprep.subr.mxu0 0.0
    %4830 = vmatpush1.msra.mxu0 0.0
    %4831 = vmatprep.subr.mxu0 0.0
    %4832 = vmatpush1.msra.mxu0 0.0
    %4833 = vmatprep.subr.mxu0 0.0
    %4834 = vmatpush1.msra.mxu0 0.0
    %4835 = vmatprep.subr.mxu0 0.0
    %4836 = vmatpush1.msra.mxu0 0.0
    %4837 = vmatprep.subr.mxu0 0.0
    %4838 = vmatpush1.msra.mxu0 0.0
    %4839 = vmatprep.subr.mxu0 0.0
    %4840 = vmatpush1.msra.mxu0 0.0
    %4841 = vmatprep.subr.mxu0 0.0
    %4842 = vmatpush1.msra.mxu0 0.0
    %4843 = vmatprep.subr.mxu0 0.0
    %4844 = vmatpush1.msra.mxu0 0.0
    %4845 = vmatprep.subr.mxu0 0.0
    %4846 = vmatpush1.msra.mxu0 0.0
    %4847 = vmatprep.subr.mxu0 0.0
    %4848 = vmatpush1.msra.mxu0 0.0
    %4849 = vmatprep.subr.mxu0 0.0
    %4850 = vmatpush1.msra.mxu0 0.0
    %4851 = vmatprep.subr.mxu0 0.0
    %4852 = vmatpush1.msra.mxu0 0.0
    %4853 = vmatprep.subr.mxu0 0.0
    %4854 = vmatpush1.msra.mxu0 0.0
    %4855 = vmatprep.subr.mxu0 0.0
    %4856 = vmatpush1.msra.mxu0 0.0
    %4857 = vmatprep.subr.mxu0 0.0
    %4858 = vmatpush1.msra.mxu0 0.0
    %4859 = vmatprep.subr.mxu0 0.0
    %4860 = vmatpush1.msra.mxu0 0.0
    %4861 = vmatprep.subr.mxu0 0.0
    %4862 = vmatpush1.msra.mxu0 0.0
    %4863 = vmatprep.subr.mxu0 0.0
    %4864 = vmatpush1.msra.mxu0 0.0
    %4865 = vmatprep.subr.mxu0 0.0
    %4866 = vmatpush1.msra.mxu0 0.0
    %4867 = vmatprep.subr.mxu0 0.0
    %4868 = vmatpush1.msra.mxu0 0.0
    %4869 = vmatprep.subr.mxu0 0.0
    %4870 = vmatpush1.msra.mxu0 0.0
    %4871 = vmatprep.subr.mxu0 0.0
    %4872 = vmatpush1.msra.mxu0 0.0
    %4873 = vmatprep.subr.mxu0 0.0
    %4874 = vmatpush1.msra.mxu0 0.0
    %4875 = vmatprep.subr.mxu0 0.0
    %4876 = vmatpush1.msra.mxu0 0.0
    %4877 = vmatprep.subr.mxu0 0.0
    %4878 = vmatpush1.msra.mxu0 0.0
    %4879 = vmatprep.subr.mxu0 0.0
    %4880 = vmatpush1.msra.mxu0 0.0
    %4881 = vmatprep.subr.mxu0 0.0
    %4882 = vmatpush1.msra.mxu0 0.0
    %4883 = vmatprep.subr.mxu0 0.0
    %4884 = vmatpush1.msra.mxu0 0.0
    %4885 = vmatprep.mubr.f32.mxu0 0.0
    %4886 = vmatmul.mubr.f32.gmra.mrb[0].mxu0 %v4774
    %v4887 = vpop.f32.mrb[0].mxu0
    %v4888 = vadd.f32 0.0, %v4887
    %v4889 = vpop.f32.mrb[0].mxu0
    %4890 = vmatprep.mubr.f32.mxu0 0.0
    %4891 = vmatmul.mubr.f32.gmra.mrb[0].mxu0 %v4777
    %v4892 = vpop.f32.mrb[0].mxu0
    %v4893 = vadd.f32 0.0, %v4892
    %v4894 = vpop.f32.mrb[0].mxu0
    %4895 = vmatprep.mubr.f32.mxu0 0.0
    %4896 = vmatmul.mubr.f32.gmra.mrb[0].mxu0 %v4780
    %v4897 = vpop.f32.mrb[0].mxu0
    %v4898 = vadd.f32 0.0, %v4897
    %v4899 = vpop.f32.mrb[0].mxu0
    %4900 = vmatprep.mubr.f32.mxu0 0.0
    %4901 = vmatmul.mubr.f32.gmra.mrb[0].mxu0 %v4783
    %v4902 = vpop.f32.mrb[0].mxu0
    %v4903 = vadd.f32 0.0, %v4902
    %v4904 = vpop.f32.mrb[0].mxu0
    %4905 = vmatprep.mubr.f32.mxu0 0.0
    %4906 = vmatmul.mubr.f32.gmra.mrb[0].mxu0 %v4786
    %v4907 = vpop.f32.mrb[0].mxu0
    %v4908 = vadd.f32 0.0, %v4907
    %v4909 = vpop.f32.mrb[0].mxu0
    %4910 = vmatprep.mubr.f32.mxu0 0.0
    %4911 = vmatmul.mubr.f32.gmra.mrb[0].mxu0 %v4789
    %v4912 = vpop.f32.mrb[0].mxu0
    %v4913 = vadd.f32 0.0, %v4912
    %v4914 = vpop.f32.mrb[0].mxu0
    %4915 = vmatprep.mubr.f32.mxu0 0.0
    %4916 = vmatmul.mubr.f32.gmra.mrb[0].mxu0 %v4792
    %v4917 = vpop.f32.mrb[0].mxu0
    %v4918 = vadd.f32 0.0, %v4917
    %v4919 = vpop.f32.mrb[0].mxu0
    %4920 = vmatprep.mubr.f32.mxu0 0.0
    %4921 = vmatmul.mubr.f32.gmra.mrb[0].mxu0 %v4795
    %v4922 = vpop.f32.mrb[0].mxu0
    %v4923 = vadd.f32 0.0, %v4922
    %v4924 = vpop.f32.mrb[0].mxu0
    %4925 = vmatprep.mubr.f32.mxu0 0.0
    %4926 = vmatmul.mubr.f32.gmra.mrb[0].mxu0 %v4798
    %v4927 = vpop.f32.mrb[0].mxu0
    %v4928 = vadd.f32 0.0, %v4927
    %v4929 = vpop.f32.mrb[0].mxu0
    %4930 = vmatprep.mubr.f32.mxu0 0.0
    %4931 = vmatmul.mubr.f32.gmra.mrb[0].mxu0 %v4801
    %v4932 = vpop.f32.mrb[0].mxu0
    %v4933 = vadd.f32 0.0, %v4932
    %v4934 = vpop.f32.mrb[0].mxu0
    %4935 = vmatprep.mubr.f32.mxu0 0.0
    %4936 = vmatmul.mubr.f32.gmra.mrb[0].mxu0 %v4804
    %v4937 = vpop.f32.mrb[0].mxu0
    %v4938 = vadd.f32 0.0, %v4937
    %v4939 = vpop.f32.mrb[0].mxu0
    %4940 = vmatprep.mubr.f32.mxu0 0.0
    %4941 = vmatmul.mubr.f32.gmra.mrb[0].mxu0 %v4807
    %v4942 = vpop.f32.mrb[0].mxu0
    %v4943 = vadd.f32 0.0, %v4942
    %v4944 = vpop.f32.mrb[0].mxu0
    %4945 = vmatprep.mubr.f32.mxu0 0.0
    %4946 = vmatmul.mubr.f32.gmra.mrb[0].mxu0 %v4810
    %v4947 = vpop.f32.mrb[0].mxu0
    %v4948 = vadd.f32 0.0, %v4947
    %v4949 = vpop.f32.mrb[0].mxu0
    %4950 = vmatprep.mubr.f32.mxu0 0.0
    %4951 = vmatmul.mubr.f32.gmra.mrb[0].mxu0 %v4813
    %v4952 = vpop.f32.mrb[0].mxu0
    %v4953 = vadd.f32 0.0, %v4952
    %v4954 = vpop.f32.mrb[0].mxu0
    %4955 = vmatprep.mubr.f32.mxu0 0.0
    %4956 = vmatmul.mubr.f32.gmra.mrb[0].mxu0 %v4816
    %v4957 = vpop.f32.mrb[0].mxu0
    %v4958 = vadd.f32 0.0, %v4957
    %v4959 = vpop.f32.mrb[0].mxu0
    %4960 = vmatprep.mubr.f32.mxu0 0.0
    %4961 = vmatmul.mubr.f32.gmra.mrb[0].mxu0 %v4819
    %v4962 = vpop.f32.mrb[0].mxu0
    %v4963 = vadd.f32 0.0, %v4962
    %v4964 = vpop.f32.mrb[0].mxu0
    %4965 = vdwg.mxu0
    %v4966 = vadd.f32 %v4674, %v4888
    %v4967 = vadd.f32 %v4679, %v4893
    %v4968 = vadd.f32 %v4684, %v4898
    %v4969 = vadd.f32 %v4689, %v4903
    %v4970 = vadd.f32 %v4694, %v4908
    %v4971 = vadd.f32 %v4699, %v4913
    %v4972 = vadd.f32 %v4704, %v4918
    %v4973 = vadd.f32 %v4709, %v4923
    %v4974 = vadd.f32 %v4714, %v4928
    %v4975 = vadd.f32 %v4719, %v4933
    %v4976 = vadd.f32 %v4724, %v4938
    %v4977 = vadd.f32 %v4729, %v4943
    %v4978 = vadd.f32 %v4734, %v4948
    %v4979 = vadd.f32 %v4739, %v4953
    %v4980 = vadd.f32 %v4744, %v4958
    %v4981 = vadd.f32 %v4749, %v4963
    %v4982 = vld [vmem:[%s14] sm:$0x1]
    %v4984 = vlaneseq
    %v4985 = vshrl.u32 %v4984, 7
    %v4986 = vsub.s32 0, %v4985
    %v4987 = vrot.slane %v4982, %v4986
    %v4989 = vadd.f32 %v4966, %v4987
    %v4990 = vadd.f32 %v4967, %v4987
    %v4991 = vadd.f32 %v4968, %v4987
    %v4992 = vadd.f32 %v4969, %v4987
    %v4993 = vadd.f32 %v4970, %v4987
    %v4994 = vadd.f32 %v4971, %v4987
    %v4995 = vadd.f32 %v4972, %v4987
    %v4996 = vadd.f32 %v4973, %v4987
    %v4997 = vadd.f32 %v4974, %v4987
    %v4998 = vadd.f32 %v4975, %v4987
    %v4999 = vadd.f32 %v4976, %v4987
    %v5000 = vadd.f32 %v4977, %v4987
    %v5001 = vadd.f32 %v4978, %v4987
    %v5002 = vadd.f32 %v4979, %v4987
    %v5003 = vadd.f32 %v4980, %v4987
    %v5004 = vadd.f32 %v4981, %v4987
    %v5005 = vmul.f32 %v4989, %v3456
    %v5006 = vmul.f32 %v4990, %v3457
    %v5007 = vmul.f32 %v4991, %v3458
    %v5008 = vmul.f32 %v4992, %v3459
    %v5009 = vmul.f32 %v4993, %v3460
    %v5010 = vmul.f32 %v4994, %v3461
    %v5011 = vmul.f32 %v4995, %v3462
    %v5012 = vmul.f32 %v4996, %v3463
    %v5013 = vmul.f32 %v4997, %v3464
    %v5014 = vmul.f32 %v4998, %v3465
    %v5015 = vmul.f32 %v4999, %v3466
    %v5016 = vmul.f32 %v5000, %v3467
    %v5017 = vmul.f32 %v5001, %v3468
    %v5018 = vmul.f32 %v5002, %v3469
    %v5019 = vmul.f32 %v5003, %v3470
    %v5020 = vmul.f32 %v5004, %v3471
    %v5021 = vadd.f32 %v5005, %v3472
    %v5022 = vadd.f32 %v5006, %v3473
    %v5023 = vadd.f32 %v5007, %v3474
    %v5024 = vadd.f32 %v5008, %v3475
    %v5025 = vadd.f32 %v5009, %v3476
    %v5026 = vadd.f32 %v5010, %v3477
    %v5027 = vadd.f32 %v5011, %v3478
    %v5028 = vadd.f32 %v5012, %v3479
    %v5029 = vadd.f32 %v5013, %v3480
    %v5030 = vadd.f32 %v5014, %v3481
    %v5031 = vadd.f32 %v5015, %v3482
    %v5032 = vadd.f32 %v5016, %v3483
    %v5033 = vadd.f32 %v5017, %v3484
    %v5034 = vadd.f32 %v5018, %v3485
    %v5035 = vadd.f32 %v5019, %v3486
    %v5036 = vadd.f32 %v5020, %v3487
    %v5037 = vmax.f32 %v5021, 0.0
    %v5038 = vmax.f32 %v5022, 0.0
    %v5039 = vmax.f32 %v5023, 0.0
    %v5040 = vmax.f32 %v5024, 0.0
    %v5041 = vmax.f32 %v5025, 0.0
    %v5042 = vmax.f32 %v5026, 0.0
    %v5043 = vmax.f32 %v5027, 0.0
    %v5044 = vmax.f32 %v5028, 0.0
    %v5045 = vmax.f32 %v5029, 0.0
    %v5046 = vmax.f32 %v5030, 0.0
    %v5047 = vmax.f32 %v5031, 0.0
    %v5048 = vmax.f32 %v5032, 0.0
    %v5049 = vmax.f32 %v5033, 0.0
    %v5050 = vmax.f32 %v5034, 0.0
    %v5051 = vmax.f32 %v5035, 0.0
    %v5052 = vmax.f32 %v5036, 0.0
    %v5053 = vld [vmem:[%s18] sm:$0xff]
    %v5054 = vld [vmem:[%s18 + $0x8] sm:$0xff]
    %vm5055 = vcmask 130048
    %v5057 = vsel %vm5055, %v5037, 0
    %v5060 = vsel %vm5055, %v5038, 0
    %v5063 = vsel %vm5055, %v5039, 0
    %v5066 = vsel %vm5055, %v5040, 0
    %v5069 = vsel %vm5055, %v5041, 0
    %v5072 = vsel %vm5055, %v5042, 0
    %v5075 = vsel %vm5055, %v5043, 0
    %v5078 = vsel %vm5055, %v5044, 0
    %v5081 = vsel %vm5055, %v5045, 0
    %v5084 = vsel %vm5055, %v5046, 0
    %v5087 = vsel %vm5055, %v5047, 0
    %v5090 = vsel %vm5055, %v5048, 0
    %v5093 = vsel %vm5055, %v5049, 0
    %v5096 = vsel %vm5055, %v5050, 0
    %v5099 = vsel %vm5055, %v5051, 0
    %v5102 = vsel %vm5055, %v5052, 0
    %5104 = vmatprep.subr.mxu0 0.0
    %5105 = vmatpush1.msra.mxu0 %v5053
    %5106 = vmatprep.subr.mxu0 0.0
    %5107 = vmatpush1.msra.mxu0 %v5054
    %5108 = vmatprep.subr.mxu0 0.0
    %5109 = vmatpush1.msra.mxu0 0.0
    %5110 = vmatprep.subr.mxu0 0.0
    %5111 = vmatpush1.msra.mxu0 0.0
    %5112 = vmatprep.subr.mxu0 0.0
    %5113 = vmatpush1.msra.mxu0 0.0
    %5114 = vmatprep.subr.mxu0 0.0
    %5115 = vmatpush1.msra.mxu0 0.0
    %5116 = vmatprep.subr.mxu0 0.0
    %5117 = vmatpush1.msra.mxu0 0.0
    %5118 = vmatprep.subr.mxu0 0.0
    %5119 = vmatpush1.msra.mxu0 0.0
    %5120 = vmatprep.subr.mxu0 0.0
    %5121 = vmatpush1.msra.mxu0 0.0
    %5122 = vmatprep.subr.mxu0 0.0
    %5123 = vmatpush1.msra.mxu0 0.0
    %5124 = vmatprep.subr.mxu0 0.0
    %5125 = vmatpush1.msra.mxu0 0.0
    %5126 = vmatprep.subr.mxu0 0.0
    %5127 = vmatpush1.msra.mxu0 0.0
    %5128 = vmatprep.subr.mxu0 0.0
    %5129 = vmatpush1.msra.mxu0 0.0
    %5130 = vmatprep.subr.mxu0 0.0
    %5131 = vmatpush1.msra.mxu0 0.0
    %5132 = vmatprep.subr.mxu0 0.0
    %5133 = vmatpush1.msra.mxu0 0.0
    %5134 = vmatprep.subr.mxu0 0.0
    %5135 = vmatpush1.msra.mxu0 0.0
    %5136 = vmatprep.subr.mxu0 0.0
    %5137 = vmatpush1.msra.mxu0 0.0
    %5138 = vmatprep.subr.mxu0 0.0
    %5139 = vmatpush1.msra.mxu0 0.0
    %5140 = vmatprep.subr.mxu0 0.0
    %5141 = vmatpush1.msra.mxu0 0.0
    %5142 = vmatprep.subr.mxu0 0.0
    %5143 = vmatpush1.msra.mxu0 0.0
    %5144 = vmatprep.subr.mxu0 0.0
    %5145 = vmatpush1.msra.mxu0 0.0
    %5146 = vmatprep.subr.mxu0 0.0
    %5147 = vmatpush1.msra.mxu0 0.0
    %5148 = vmatprep.subr.mxu0 0.0
    %5149 = vmatpush1.msra.mxu0 0.0
    %5150 = vmatprep.subr.mxu0 0.0
    %5151 = vmatpush1.msra.mxu0 0.0
    %5152 = vmatprep.subr.mxu0 0.0
    %5153 = vmatpush1.msra.mxu0 0.0
    %5154 = vmatprep.subr.mxu0 0.0
    %5155 = vmatpush1.msra.mxu0 0.0
    %5156 = vmatprep.subr.mxu0 0.0
    %5157 = vmatpush1.msra.mxu0 0.0
    %5158 = vmatprep.subr.mxu0 0.0
    %5159 = vmatpush1.msra.mxu0 0.0
    %5160 = vmatprep.subr.mxu0 0.0
    %5161 = vmatpush1.msra.mxu0 0.0
    %5162 = vmatprep.subr.mxu0 0.0
    %5163 = vmatpush1.msra.mxu0 0.0
    %5164 = vmatprep.subr.mxu0 0.0
    %5165 = vmatpush1.msra.mxu0 0.0
    %5166 = vmatprep.subr.mxu0 0.0
    %5167 = vmatpush1.msra.mxu0 0.0
    %5168 = vmatprep.mubr.f32.mxu0 0.0
    %5169 = vmatmul.mubr.f32.gmra.mrb[0].mxu0 %v5057
    %v5170 = vpop.f32.mrb[0].mxu0
    %v5171 = vadd.f32 0.0, %v5170
    %v5172 = vpop.f32.mrb[0].mxu0
    %5173 = vmatprep.mubr.f32.mxu0 0.0
    %5174 = vmatmul.mubr.f32.gmra.mrb[0].mxu0 %v5060
    %v5175 = vpop.f32.mrb[0].mxu0
    %v5176 = vadd.f32 0.0, %v5175
    %v5177 = vpop.f32.mrb[0].mxu0
    %5178 = vmatprep.mubr.f32.mxu0 0.0
    %5179 = vmatmul.mubr.f32.gmra.mrb[0].mxu0 %v5063
    %v5180 = vpop.f32.mrb[0].mxu0
    %v5181 = vadd.f32 0.0, %v5180
    %v5182 = vpop.f32.mrb[0].mxu0
    %5183 = vmatprep.mubr.f32.mxu0 0.0
    %5184 = vmatmul.mubr.f32.gmra.mrb[0].mxu0 %v5066
    %v5185 = vpop.f32.mrb[0].mxu0
    %v5186 = vadd.f32 0.0, %v5185
    %v5187 = vpop.f32.mrb[0].mxu0
    %5188 = vmatprep.mubr.f32.mxu0 0.0
    %5189 = vmatmul.mubr.f32.gmra.mrb[0].mxu0 %v5069
    %v5190 = vpop.f32.mrb[0].mxu0
    %v5191 = vadd.f32 0.0, %v5190
    %v5192 = vpop.f32.mrb[0].mxu0
    %5193 = vmatprep.mubr.f32.mxu0 0.0
    %5194 = vmatmul.mubr.f32.gmra.mrb[0].mxu0 %v5072
    %v5195 = vpop.f32.mrb[0].mxu0
    %v5196 = vadd.f32 0.0, %v5195
    %v5197 = vpop.f32.mrb[0].mxu0
    %5198 = vmatprep.mubr.f32.mxu0 0.0
    %5199 = vmatmul.mubr.f32.gmra.mrb[0].mxu0 %v5075
    %v5200 = vpop.f32.mrb[0].mxu0
    %v5201 = vadd.f32 0.0, %v5200
    %v5202 = vpop.f32.mrb[0].mxu0
    %5203 = vmatprep.mubr.f32.mxu0 0.0
    %5204 = vmatmul.mubr.f32.gmra.mrb[0].mxu0 %v5078
    %v5205 = vpop.f32.mrb[0].mxu0
    %v5206 = vadd.f32 0.0, %v5205
    %v5207 = vpop.f32.mrb[0].mxu0
    %5208 = vmatprep.mubr.f32.mxu0 0.0
    %5209 = vmatmul.mubr.f32.gmra.mrb[0].mxu0 %v5081
    %v5210 = vpop.f32.mrb[0].mxu0
    %v5211 = vadd.f32 0.0, %v5210
    %v5212 = vpop.f32.mrb[0].mxu0
    %5213 = vmatprep.mubr.f32.mxu0 0.0
    %5214 = vmatmul.mubr.f32.gmra.mrb[0].mxu0 %v5084
    %v5215 = vpop.f32.mrb[0].mxu0
    %v5216 = vadd.f32 0.0, %v5215
    %v5217 = vpop.f32.mrb[0].mxu0
    %5218 = vmatprep.mubr.f32.mxu0 0.0
    %5219 = vmatmul.mubr.f32.gmra.mrb[0].mxu0 %v5087
    %v5220 = vpop.f32.mrb[0].mxu0
    %v5221 = vadd.f32 0.0, %v5220
    %v5222 = vpop.f32.mrb[0].mxu0
    %5223 = vmatprep.mubr.f32.mxu0 0.0
    %5224 = vmatmul.mubr.f32.gmra.mrb[0].mxu0 %v5090
    %v5225 = vpop.f32.mrb[0].mxu0
    %v5226 = vadd.f32 0.0, %v5225
    %v5227 = vpop.f32.mrb[0].mxu0
    %5228 = vmatprep.mubr.f32.mxu0 0.0
    %5229 = vmatmul.mubr.f32.gmra.mrb[0].mxu0 %v5093
    %v5230 = vpop.f32.mrb[0].mxu0
    %v5231 = vadd.f32 0.0, %v5230
    %v5232 = vpop.f32.mrb[0].mxu0
    %5233 = vmatprep.mubr.f32.mxu0 0.0
    %5234 = vmatmul.mubr.f32.gmra.mrb[0].mxu0 %v5096
    %v5235 = vpop.f32.mrb[0].mxu0
    %v5236 = vadd.f32 0.0, %v5235
    %v5237 = vpop.f32.mrb[0].mxu0
    %5238 = vmatprep.mubr.f32.mxu0 0.0
    %5239 = vmatmul.mubr.f32.gmra.mrb[0].mxu0 %v5099
    %v5240 = vpop.f32.mrb[0].mxu0
    %v5241 = vadd.f32 0.0, %v5240
    %v5242 = vpop.f32.mrb[0].mxu0
    %5243 = vmatprep.mubr.f32.mxu0 0.0
    %5244 = vmatmul.mubr.f32.gmra.mrb[0].mxu0 %v5102
    %v5245 = vpop.f32.mrb[0].mxu0
    %v5246 = vadd.f32 0.0, %v5245
    %v5247 = vpop.f32.mrb[0].mxu0
    %5248 = vdwg.mxu0
    %v5249 = vmax.f32 %v5037, %v5171
    %v5250 = vmax.f32 %v5038, %v5176
    %v5251 = vmax.f32 %v5039, %v5181
    %v5252 = vmax.f32 %v5040, %v5186
    %v5253 = vmax.f32 %v5041, %v5191
    %v5254 = vmax.f32 %v5042, %v5196
    %v5255 = vmax.f32 %v5043, %v5201
    %v5256 = vmax.f32 %v5044, %v5206
    %v5257 = vmax.f32 %v5045, %v5211
    %v5258 = vmax.f32 %v5046, %v5216
    %v5259 = vmax.f32 %v5047, %v5221
    %v5260 = vmax.f32 %v5048, %v5226
    %v5261 = vmax.f32 %v5049, %v5231
    %v5262 = vmax.f32 %v5050, %v5236
    %v5263 = vmax.f32 %v5051, %v5241
    %v5264 = vmax.f32 %v5052, %v5246
    %v5265 = vld [vmem:[%s19] sm:$0xff]
    %5266 = vmatprep.subr.mxu0 0.0
    %5267 = vmatpush1.msra.mxu0 %v5249
    %5268 = vmatprep.subr.mxu0 0.0
    %5269 = vmatpush1.msra.mxu0 %v5250
    %5270 = vmatprep.subr.mxu0 0.0
    %5271 = vmatpush1.msra.mxu0 %v5251
    %5272 = vmatprep.subr.mxu0 0.0
    %5273 = vmatpush1.msra.mxu0 %v5252
    %5274 = vmatprep.subr.mxu0 0.0
    %5275 = vmatpush1.msra.mxu0 %v5253
    %5276 = vmatprep.subr.mxu0 0.0
    %5277 = vmatpush1.msra.mxu0 %v5254
    %5278 = vmatprep.subr.mxu0 0.0
    %5279 = vmatpush1.msra.mxu0 %v5255
    %5280 = vmatprep.subr.mxu0 0.0
    %5281 = vmatpush1.msra.mxu0 %v5256
    %5282 = vmatprep.subr.mxu0 0.0
    %5283 = vmatpush1.msra.mxu0 %v5257
    %5284 = vmatprep.subr.mxu0 0.0
    %5285 = vmatpush1.msra.mxu0 %v5258
    %5286 = vmatprep.subr.mxu0 0.0
    %5287 = vmatpush1.msra.mxu0 %v5259
    %5288 = vmatprep.subr.mxu0 0.0
    %5289 = vmatpush1.msra.mxu0 %v5260
    %5290 = vmatprep.subr.mxu0 0.0
    %5291 = vmatpush1.msra.mxu0 %v5261
    %5292 = vmatprep.subr.mxu0 0.0
    %5293 = vmatpush1.msra.mxu0 %v5262
    %5294 = vmatprep.subr.mxu0 0.0
    %5295 = vmatpush1.msra.mxu0 %v5263
    %5296 = vmatprep.subr.mxu0 0.0
    %5297 = vmatpush1.msra.mxu0 %v5264
    %5298 = vmatprep.subr.mxu0 0.0
    %5299 = vmatpush1.msra.mxu0 0.0
    %5300 = vmatprep.subr.mxu0 0.0
    %5301 = vmatpush1.msra.mxu0 0.0
    %5302 = vmatprep.subr.mxu0 0.0
    %5303 = vmatpush1.msra.mxu0 0.0
    %5304 = vmatprep.subr.mxu0 0.0
    %5305 = vmatpush1.msra.mxu0 0.0
    %5306 = vmatprep.subr.mxu0 0.0
    %5307 = vmatpush1.msra.mxu0 0.0
    %5308 = vmatprep.subr.mxu0 0.0
    %5309 = vmatpush1.msra.mxu0 0.0
    %5310 = vmatprep.subr.mxu0 0.0
    %5311 = vmatpush1.msra.mxu0 0.0
    %5312 = vmatprep.subr.mxu0 0.0
    %5313 = vmatpush1.msra.mxu0 0.0
    %5314 = vmatprep.subr.mxu0 0.0
    %5315 = vmatpush1.msra.mxu0 0.0
    %5316 = vmatprep.subr.mxu0 0.0
    %5317 = vmatpush1.msra.mxu0 0.0
    %5318 = vmatprep.subr.mxu0 0.0
    %5319 = vmatpush1.msra.mxu0 0.0
    %5320 = vmatprep.subr.mxu0 0.0
    %5321 = vmatpush1.msra.mxu0 0.0
    %5322 = vmatprep.subr.mxu0 0.0
    %5323 = vmatpush1.msra.mxu0 0.0
    %5324 = vmatprep.subr.mxu0 0.0
    %5325 = vmatpush1.msra.mxu0 0.0
    %5326 = vmatprep.subr.mxu0 0.0
    %5327 = vmatpush1.msra.mxu0 0.0
    %5328 = vmatprep.subr.mxu0 0.0
    %5329 = vmatpush1.msra.mxu0 0.0
    %5330 = vmatprep.mubr.f32.mxu0 0.0
    %5331 = vmatmul.mubr.f32.gmra.mrb[0].mxu0 %v5265
    %v5332 = vpop.f32.mrb[0].mxu0
    %v5333 = vadd.f32 0.0, %v5332
    %v5334 = vpop.f32.mrb[0].mxu0
    %5335 = vdwg.mxu0
    %v5336 = vld [vmem:[%s20] sm:$0xff]
    %v5337 = vld [vmem:[%s20 + $0x8] sm:$0xff]
    %v5338 = vld [vmem:[%s21] sm:$0x1]
    %v5340 = vlaneseq
    %v5341 = vshrl.u32 %v5340, 7
    %v5342 = vsub.s32 0, %v5341
    %v5343 = vrot.slane %v5338, %v5342
    %v5346 = vsel %vm5055, %v5333, 0
    %5348 = vmatprep.subr.mxu0 0.0
    %5349 = vmatpush1.msra.mxu0 %v5336
    %5350 = vmatprep.subr.mxu0 0.0
    %5351 = vmatpush1.msra.mxu0 %v5337
    %5352 = vmatprep.subr.mxu0 0.0
    %5353 = vmatpush1.msra.mxu0 0.0
    %5354 = vmatprep.subr.mxu0 0.0
    %5355 = vmatpush1.msra.mxu0 0.0
    %5356 = vmatprep.subr.mxu0 0.0
    %5357 = vmatpush1.msra.mxu0 0.0
    %5358 = vmatprep.subr.mxu0 0.0
    %5359 = vmatpush1.msra.mxu0 0.0
    %5360 = vmatprep.subr.mxu0 0.0
    %5361 = vmatpush1.msra.mxu0 0.0
    %5362 = vmatprep.subr.mxu0 0.0
    %5363 = vmatpush1.msra.mxu0 0.0
    %5364 = vmatprep.subr.mxu0 0.0
    %5365 = vmatpush1.msra.mxu0 0.0
    %5366 = vmatprep.subr.mxu0 0.0
    %5367 = vmatpush1.msra.mxu0 0.0
    %5368 = vmatprep.subr.mxu0 0.0
    %5369 = vmatpush1.msra.mxu0 0.0
    %5370 = vmatprep.subr.mxu0 0.0
    %5371 = vmatpush1.msra.mxu0 0.0
    %5372 = vmatprep.subr.mxu0 0.0
    %5373 = vmatpush1.msra.mxu0 0.0
    %5374 = vmatprep.subr.mxu0 0.0
    %5375 = vmatpush1.msra.mxu0 0.0
    %5376 = vmatprep.subr.mxu0 0.0
    %5377 = vmatpush1.msra.mxu0 0.0
    %5378 = vmatprep.subr.mxu0 0.0
    %5379 = vmatpush1.msra.mxu0 0.0
    %5380 = vmatprep.subr.mxu0 0.0
    %5381 = vmatpush1.msra.mxu0 0.0
    %5382 = vmatprep.subr.mxu0 0.0
    %5383 = vmatpush1.msra.mxu0 0.0
    %5384 = vmatprep.subr.mxu0 0.0
    %5385 = vmatpush1.msra.mxu0 0.0
    %5386 = vmatprep.subr.mxu0 0.0
    %5387 = vmatpush1.msra.mxu0 0.0
    %5388 = vmatprep.subr.mxu0 0.0
    %5389 = vmatpush1.msra.mxu0 0.0
    %5390 = vmatprep.subr.mxu0 0.0
    %5391 = vmatpush1.msra.mxu0 0.0
    %5392 = vmatprep.subr.mxu0 0.0
    %5393 = vmatpush1.msra.mxu0 0.0
    %5394 = vmatprep.subr.mxu0 0.0
    %5395 = vmatpush1.msra.mxu0 0.0
    %5396 = vmatprep.subr.mxu0 0.0
    %5397 = vmatpush1.msra.mxu0 0.0
    %5398 = vmatprep.subr.mxu0 0.0
    %5399 = vmatpush1.msra.mxu0 0.0
    %5400 = vmatprep.subr.mxu0 0.0
    %5401 = vmatpush1.msra.mxu0 0.0
    %5402 = vmatprep.subr.mxu0 0.0
    %5403 = vmatpush1.msra.mxu0 0.0
    %5404 = vmatprep.subr.mxu0 0.0
    %5405 = vmatpush1.msra.mxu0 0.0
    %5406 = vmatprep.subr.mxu0 0.0
    %5407 = vmatpush1.msra.mxu0 0.0
    %5408 = vmatprep.subr.mxu0 0.0
    %5409 = vmatpush1.msra.mxu0 0.0
    %5410 = vmatprep.subr.mxu0 0.0
    %5411 = vmatpush1.msra.mxu0 0.0
    %5412 = vmatprep.mubr.f32.mxu0 0.0
    %5413 = vmatmul.mubr.f32.gmra.mrb[0].mxu0 %v5346
    %v5414 = vpop.f32.mrb[0].mxu0
    %v5415 = vadd.f32 %v5343, %v5414
    %v5416 = vpop.f32.mrb[0].mxu0
    %5417 = vdwg.mxu0
    %vm5418 = vcmask 39936
    %5419 = vst.msk [vmem:[#allocation6] sm:$0xff] %vm5418, %v5415
    // Predicated region
    $region90: #{lstmcnn1d_forward.1} parent=1 // pred_check
      _
    $region91: #{lstmcnn1d_forward.1} parent=1 // pred_check_branch
      %5421 = sbr.rel (0) target = $region93
    $region92: #{lstmcnn1d_forward.1} parent=1 // pred_region
      %s5423 = ssub.s32 128, 128
      %5424 = vsyncadd [#allocation7], %s5423
      %s5426 = sshll.u32 [#allocation6], 4
      %s5427 = int_to_ptr.vmem [resolvable:$true] %s5426
      %5429 = dma.vmem_to_hbm [thread:$0]  %s5427, 128, %s22, [#allocation7]
    $region93: #{lstmcnn1d_forward.1} parent=1 // pred_fallthru
      _
    // Predicated region
    $region94: #{lstmcnn1d_forward.1} parent=1 // pred_check
      _
    $region95: #{lstmcnn1d_forward.1} parent=1 // pred_check_branch
      %5431 = sbr.rel (0) target = $region97
    $region96: #{lstmcnn1d_forward.1} parent=1 // pred_region
      %5432 = dma.done [#allocation7], 128
    $region97: #{lstmcnn1d_forward.1} parent=1 // pred_fallthru
      _
    %5433 = vsyncpa [#allocation7], 1

</llo_original>
